<compile_context>
chip_gen: v7x
topology: tpu7x:2x2x1
jax: 0.10.0
libtpu: 0.0.40
codegen_flags: <defaults>
</compile_context>

<pallas_src>
import numpy as np

import jax
import jax.numpy as jnp
from jax import lax
from jax.experimental import pallas as pl
from jax.experimental.pallas import tpu as pltpu


# ----------------------------------------------------------------------------
# Geometry (MNIST-style 28x28 input, required for the view(-1, 320))
# ----------------------------------------------------------------------------
H = W = 28                    # input spatial
KS = 5                        # conv kernel size
C1, C2 = 10, 20               # conv channels
FC1, NCLS = 128, 10           # fc sizes
P2 = 4                        # pooled conv2 spatial (4x4)
NPOOL2 = P2 * P2              # 16
NFLAT = C2 * NPOOL2           # 320

# Strides on the flattened (row-major) 28x28 grid:
X_ROW = W                     # 28  : conv1-output row stride (same grid as x)
H1_ROW, H1_COL = 2 * W, 2     # 56,2: h1 (12x12) grid strides after pool stride 2
H2_ROW, H2_COL = 4 * W, 4     # 112,4: pooled-conv2 (4x4) grid strides

# Extents of each flat intermediate (computed back-to-front so every read of
# the previous stage stays in bounds; invalid "wrap" lanes are finite and are
# never selected downstream).
M2_LEN = (P2 - 1) * H2_ROW + (P2 - 1) * H2_COL + 1                 # 349
ACC2_LEN = (M2_LEN - 1) + H1_ROW + H1_COL + 1                      # 407
M1_LEN = (ACC2_LEN - 1) + (KS - 1) * (H1_ROW + H1_COL) + 1         # 639
ACC1_LEN = (M1_LEN - 1) + X_ROW + 1 + 1                            # 668
assert (ACC1_LEN - 1) + (KS - 1) * (X_ROW + 1) < H * W             # 783 < 784


# ----------------------------------------------------------------------------
# Fused forward kernel (one grid step == one sample, everything in VMEM)
# ----------------------------------------------------------------------------
def _fused_net_kernel(x_ref, w1_ref, b1_ref, w2_ref, b2_ref, sel_ref,
                      wfc1_ref, bfc1_ref, wfc2_ref, bfc2_ref,
                      feat_ref, out_ref,
                      acc1_ref, m1_ref, acc2_ref, pool_ref):
    # ---- conv1 (1->10, k5, valid): 25 shifted broadcast-MACs over the flat
    #      row-major input; output layout (C1, flat-spatial) is lane-dense.
    acc1 = jnp.zeros((C1, ACC1_LEN), jnp.float32)
    for di in range(KS):
        for dj in range(KS):
            k = di * KS + dj
            off = di * X_ROW + dj
            acc1 = acc1 + (w1_ref[:, k:k + 1] *
                           x_ref[0, :, off:off + ACC1_LEN])
    acc1_ref[...] = acc1

    # ---- maxpool(2,2) + bias + ReLU fused (bias & relu commute with max)
    m1 = jnp.maximum(
        jnp.maximum(acc1_ref[:, 0:M1_LEN],
                    acc1_ref[:, 1:1 + M1_LEN]),
        jnp.maximum(acc1_ref[:, X_ROW:X_ROW + M1_LEN],
                    acc1_ref[:, X_ROW + 1:X_ROW + 1 + M1_LEN]))
    m1_ref[...] = jnp.maximum(m1 + b1_ref[...], 0.0)

    # ---- conv2 (10->20, k5): in-kernel "im2col-free" formulation — 25
    #      shifted (C2,C1)x(C1,spatial) MXU matmuls on the lane-dense flat
    #      activation (no patch tensor ever materialised).
    acc2 = jnp.zeros((C2, ACC2_LEN), jnp.float32)
    for di in range(KS):
        for dj in range(KS):
            k = di * KS + dj
            off = di * H1_ROW + dj * H1_COL
            acc2 = acc2 + jnp.dot(w2_ref[k],
                                  m1_ref[:, off:off + ACC2_LEN],
                                  preferred_element_type=jnp.float32)
    acc2_ref[...] = acc2

    # ---- maxpool(2,2) + bias + ReLU for conv2 (dropout2d = identity)
    m2 = jnp.maximum(
        jnp.maximum(acc2_ref[:, 0:M2_LEN],
                    acc2_ref[:, H1_COL:H1_COL + M2_LEN]),
        jnp.maximum(acc2_ref[:, H1_ROW:H1_ROW + M2_LEN],
                    acc2_ref[:, H1_ROW + H1_COL:H1_ROW + H1_COL + M2_LEN]))
    m2 = jnp.maximum(m2 + b2_ref[...], 0.0)                      # (C2, 349)

    # ---- compact the 4x4 valid pooled pixels per channel with a constant
    #      0/1 selection matmul (avoids strided lane gathers / reshapes)
    pool_ref[...] = jnp.dot(m2, sel_ref[...],
                            preferred_element_type=jnp.float32)  # (C2, 16)

    # ---- fc1 (320->128) + ReLU: contract channel-by-channel so the NCHW
    #      flatten never needs an in-kernel reshape; output lanes = 128.
    acc_fc = bfc1_ref[...]                                       # (1, 128)
    for c in range(C2):
        acc_fc = acc_fc + jnp.dot(pool_ref[c:c + 1, :], wfc1_ref[c],
                                  preferred_element_type=jnp.float32)
    feat = jnp.maximum(acc_fc, 0.0)                              # (1, 128)
    feat_ref[0] = feat

    # ---- fc2 (128->10)   (F.dropout = identity)
    out_ref[0] = (jnp.dot(feat, wfc2_ref[...],
                          preferred_element_type=jnp.float32) + bfc2_ref[...])


# ----------------------------------------------------------------------------
# One-time parameter re-layout (feedback: no .T / transposes inside forward)
# ----------------------------------------------------------------------------
def prepare_params(params):
    sel = np.zeros((M2_LEN, NPOOL2), np.float32)
    for qi in range(P2):
        for qj in range(P2):
            sel[qi * H2_ROW + qj * H2_COL, qi * P2 + qj] = 1.0
    return {
        "w1":   params["conv1_w"].reshape(C1, KS * KS),                 # (10,25)
        "b1":   params["conv1_b"].reshape(C1, 1),
        "w2":   jnp.transpose(params["conv2_w"],
                              (2, 3, 0, 1)).reshape(KS * KS, C2, C1),   # (25,20,10)
        "b2":   params["conv2_b"].reshape(C2, 1),
        "sel":  jnp.asarray(sel),                                       # (349,16)
        "wfc1": params["fc1_w"].T.reshape(C2, NPOOL2, FC1),             # (20,16,128)
        "bfc1": params["fc1_b"].reshape(1, FC1),
        "wfc2": params["fc2_w"].T,                                      # (128,10)
        "bfc2": params["fc2_b"].reshape(1, NCLS),
    }


@jax.jit
def net_forward(x, kp):
    """x: (B, 1, 28, 28) f32 -> (feat (B,128), out (B,10))."""
    B = x.shape[0]
    xf = x.reshape(B, 1, H * W)
    per_sample = lambda b: (b, 0, 0)
    const2 = lambda b: (0, 0)
    const3 = lambda b: (0, 0, 0)

    feat, logits = pl.pallas_call(
        _fused_net_kernel,
        out_shape=(jax.ShapeDtypeStruct((B, 1, FC1), jnp.float32),
                   jax.ShapeDtypeStruct((B, 1, NCLS), jnp.float32)),
        grid=(B,),
        in_specs=[
            pl.BlockSpec((1, 1, H * W), per_sample),        # x (flattened)
            pl.BlockSpec((C1, KS * KS), const2),            # w1
            pl.BlockSpec((C1, 1), const2),                  # b1
            pl.BlockSpec((KS * KS, C2, C1), const3),        # w2
            pl.BlockSpec((C2, 1), const2),                  # b2
            pl.BlockSpec((M2_LEN, NPOOL2), const2),         # pooled-pixel selector
            pl.BlockSpec((C2, NPOOL2, FC1), const3),        # fc1 weights (3D)
            pl.BlockSpec((1, FC1), const2),                 # fc1 bias
            pl.BlockSpec((FC1, NCLS), const2),              # fc2 weights (pre-T)
            pl.BlockSpec((1, NCLS), const2),                # fc2 bias
        ],
        out_specs=(pl.BlockSpec((1, 1, FC1), per_sample),
                   pl.BlockSpec((1, 1, NCLS), per_sample)),
        scratch_shapes=[
            pltpu.VMEM((C1, ACC1_LEN), jnp.float32),        # conv1 flat output
            pltpu.VMEM((C1, M1_LEN), jnp.float32),          # pooled+relu conv1
            pltpu.VMEM((C2, ACC2_LEN), jnp.float32),        # conv2 flat output
            pltpu.VMEM((C2, NPOOL2), jnp.float32),          # pooled+relu conv2
        ],
        compiler_params=pltpu.CompilerParams(
            dimension_semantics=("parallel",)),             # shards batch on v7x
    )(xf, kp["w1"], kp["b1"], kp["w2"], kp["b2"], kp["sel"],
      kp["wfc1"], kp["bfc1"], kp["wfc2"], kp["bfc2"])

    return feat.reshape(B, FC1), logits.reshape(B, NCLS)


# ----------------------------------------------------------------------------
# Pure-JAX reference (sanity check) — original PyTorch-style parameters
# ----------------------------------------------------------------------------
def ref_forward(x, params):
    dn = ("NCHW", "OIHW", "NCHW")
    y = lax.conv_general_dilated(x, params["conv1_w"], (1, 1), "VALID",
                                 dimension_numbers=dn)
    y = y + params["conv1_b"][None, :, None, None]
    y = lax.reduce_window(y, -jnp.inf, lax.max, (1, 1, 2, 2), (1, 1, 2, 2),
                          "VALID")
    y = jnp.maximum(y, 0.0)
    y = lax.conv_general_dilated(y, params["conv2_w"], (1, 1), "VALID",
                                 dimension_numbers=dn)
    y = y + params["conv2_b"][None, :, None, None]
    y = lax.reduce_window(y, -jnp.inf, lax.max, (1, 1, 2, 2), (1, 1, 2, 2),
                          "VALID")
    y = jnp.maximum(y, 0.0)
    y = y.reshape(y.shape[0], NFLAT)
    feat = jnp.maximum(y @ params["fc1_w"].T + params["fc1_b"], 0.0)
    out = feat @ params["fc2_w"].T + params["fc2_b"]
    return feat, out


def init_params(key):
    ks = jax.random.split(key, 8)

    def u(k, shape, fan_in):
        bound = 1.0 / np.sqrt(fan_in)
        return jax.random.uniform(k, shape, jnp.float32, -bound, bound)

    return {
        "conv1_w": u(ks[0], (C1, 1, KS, KS), 1 * KS * KS),
        "conv1_b": u(ks[1], (C1,), 1 * KS * KS),
        "conv2_w": u(ks[2], (C2, C1, KS, KS), C1 * KS * KS),
        "conv2_b": u(ks[3], (C2,), C1 * KS * KS),
        "fc1_w":   u(ks[4], (FC1, NFLAT), NFLAT),
        "fc1_b":   u(ks[5], (FC1,), NFLAT),
        "fc2_w":   u(ks[6], (NCLS, FC1), FC1),
        "fc2_b":   u(ks[7], (NCLS,), FC1),
    }


if __name__ == "__main__":
    key = jax.random.PRNGKey(0)
    pkey, xkey = jax.random.split(key)
    params = init_params(pkey)
    kparams = prepare_params(params)

    # MNIST-style input: batch=2, 1 channel, 28x28 (required for the 320-dim view)
    x = jax.random.normal(xkey, (2, 1, H, W), jnp.float32)

    feat, out = net_forward(x, kparams)
    feat = jax.block_until_ready(feat)
    out = jax.block_until_ready(out)

    assert feat.shape == (2, FC1) and out.shape == (2, NCLS)

    feat_exp, out_exp = ref_forward(x, params)
    np.testing.assert_allclose(np.asarray(feat), np.asarray(feat_exp),
                               rtol=1e-4, atol=1e-4)
    np.testing.assert_allclose(np.asarray(out), np.asarray(out_exp),
                               rtol=1e-4, atol=1e-4)

    print("KERNEL_OK")
</pallas_src>

<mosaic_0001>
module attributes {stable_mosaic.version = 11 : i64} {
  func.func @_fused_net_kernel(%arg0: i32, %arg1: memref<1x1x784xf32, #tpu.memory_space<vmem>>, %arg2: memref<10x25xf32, #tpu.memory_space<vmem>>, %arg3: memref<10x1xf32, #tpu.memory_space<vmem>>, %arg4: memref<25x20x10xf32, #tpu.memory_space<vmem>>, %arg5: memref<20x1xf32, #tpu.memory_space<vmem>>, %arg6: memref<349x16xf32, #tpu.memory_space<vmem>>, %arg7: memref<20x16x128xf32, #tpu.memory_space<vmem>>, %arg8: memref<1x128xf32, #tpu.memory_space<vmem>>, %arg9: memref<128x10xf32, #tpu.memory_space<vmem>>, %arg10: memref<1x10xf32, #tpu.memory_space<vmem>>, %arg11: memref<1x1x128xf32, #tpu.memory_space<vmem>>, %arg12: memref<1x1x10xf32, #tpu.memory_space<vmem>>, %arg13: memref<10x668xf32, #tpu.memory_space<vmem>>, %arg14: memref<10x639xf32, #tpu.memory_space<vmem>>, %arg15: memref<20x407xf32, #tpu.memory_space<vmem>>, %arg16: memref<20x16xf32, #tpu.memory_space<vmem>>) attributes {dimension_semantics = [#tpu.dimension_semantics<parallel>], iteration_bounds = array<i64: 2>, scalar_prefetch = 0 : i64, scratch_operands = 4 : i64, tpu.core_type = #tpu.core_type<tc>, window_params = [{transform_indices = @transform_0, window_bounds = array<i64: 1, 1, 784>}, {pipeline_mode = #tpu.pipeline_mode<synchronous>, transform_indices = @transform_1, window_bounds = array<i64: 10, 25>}, {pipeline_mode = #tpu.pipeline_mode<synchronous>, transform_indices = @transform_2, window_bounds = array<i64: 10, 1>}, {pipeline_mode = #tpu.pipeline_mode<synchronous>, transform_indices = @transform_3, window_bounds = array<i64: 25, 20, 10>}, {pipeline_mode = #tpu.pipeline_mode<synchronous>, transform_indices = @transform_4, window_bounds = array<i64: 20, 1>}, {pipeline_mode = #tpu.pipeline_mode<synchronous>, transform_indices = @transform_5, window_bounds = array<i64: 349, 16>}, {pipeline_mode = #tpu.pipeline_mode<synchronous>, transform_indices = @transform_6, window_bounds = array<i64: 20, 16, 128>}, {pipeline_mode = #tpu.pipeline_mode<synchronous>, transform_indices = @transform_7, window_bounds = array<i64: 1, 128>}, {pipeline_mode = #tpu.pipeline_mode<synchronous>, transform_indices = @transform_8, window_bounds = array<i64: 128, 10>}, {pipeline_mode = #tpu.pipeline_mode<synchronous>, transform_indices = @transform_9, window_bounds = array<i64: 1, 10>}, {transform_indices = @transform_10, window_bounds = array<i64: 1, 1, 128>}, {transform_indices = @transform_11, window_bounds = array<i64: 1, 1, 10>}]} {
    %cst = arith.constant 0.000000e+00 : f32
    %0 = vector.broadcast %cst : f32 to vector<10x668xf32>
    %c0 = arith.constant 0 : index
    %c0_0 = arith.constant 0 : index
    %1 = vector.load %arg2[%c0, %c0_0] : memref<10x25xf32, #tpu.memory_space<vmem>>, vector<10x1xf32>
    %c0_1 = arith.constant 0 : index
    %c0_2 = arith.constant 0 : index
    %c0_3 = arith.constant 0 : index
    %2 = vector.load %arg1[%c0_1, %c0_2, %c0_3] : memref<1x1x784xf32, #tpu.memory_space<vmem>>, vector<1x1x668xf32>
    %3 = vector.shape_cast %2 : vector<1x1x668xf32> to vector<1x668xf32>
    %4 = vector.broadcast %1 : vector<10x1xf32> to vector<10x668xf32>
    %5 = vector.broadcast %3 : vector<1x668xf32> to vector<10x668xf32>
    %6 = arith.mulf %4, %5 : vector<10x668xf32>
    %7 = arith.addf %0, %6 : vector<10x668xf32>
    %c0_4 = arith.constant 0 : index
    %c1 = arith.constant 1 : index
    %8 = vector.load %arg2[%c0_4, %c1] : memref<10x25xf32, #tpu.memory_space<vmem>>, vector<10x1xf32>
    %c0_5 = arith.constant 0 : index
    %c0_6 = arith.constant 0 : index
    %c1_7 = arith.constant 1 : index
    %9 = vector.load %arg1[%c0_5, %c0_6, %c1_7] : memref<1x1x784xf32, #tpu.memory_space<vmem>>, vector<1x1x668xf32>
    %10 = vector.shape_cast %9 : vector<1x1x668xf32> to vector<1x668xf32>
    %11 = vector.broadcast %8 : vector<10x1xf32> to vector<10x668xf32>
    %12 = vector.broadcast %10 : vector<1x668xf32> to vector<10x668xf32>
    %13 = arith.mulf %11, %12 : vector<10x668xf32>
    %14 = arith.addf %7, %13 : vector<10x668xf32>
    %c0_8 = arith.constant 0 : index
    %c2 = arith.constant 2 : index
    %15 = vector.load %arg2[%c0_8, %c2] : memref<10x25xf32, #tpu.memory_space<vmem>>, vector<10x1xf32>
    %c0_9 = arith.constant 0 : index
    %c0_10 = arith.constant 0 : index
    %c2_11 = arith.constant 2 : index
    %16 = vector.load %arg1[%c0_9, %c0_10, %c2_11] : memref<1x1x784xf32, #tpu.memory_space<vmem>>, vector<1x1x668xf32>
    %17 = vector.shape_cast %16 : vector<1x1x668xf32> to vector<1x668xf32>
    %18 = vector.broadcast %15 : vector<10x1xf32> to vector<10x668xf32>
    %19 = vector.broadcast %17 : vector<1x668xf32> to vector<10x668xf32>
    %20 = arith.mulf %18, %19 : vector<10x668xf32>
    %21 = arith.addf %14, %20 : vector<10x668xf32>
    %c0_12 = arith.constant 0 : index
    %c3 = arith.constant 3 : index
    %22 = vector.load %arg2[%c0_12, %c3] : memref<10x25xf32, #tpu.memory_space<vmem>>, vector<10x1xf32>
    %c0_13 = arith.constant 0 : index
    %c0_14 = arith.constant 0 : index
    %c3_15 = arith.constant 3 : index
    %23 = vector.load %arg1[%c0_13, %c0_14, %c3_15] : memref<1x1x784xf32, #tpu.memory_space<vmem>>, vector<1x1x668xf32>
    %24 = vector.shape_cast %23 : vector<1x1x668xf32> to vector<1x668xf32>
    %25 = vector.broadcast %22 : vector<10x1xf32> to vector<10x668xf32>
    %26 = vector.broadcast %24 : vector<1x668xf32> to vector<10x668xf32>
    %27 = arith.mulf %25, %26 : vector<10x668xf32>
    %28 = arith.addf %21, %27 : vector<10x668xf32>
    %c0_16 = arith.constant 0 : index
    %c4 = arith.constant 4 : index
    %29 = vector.load %arg2[%c0_16, %c4] : memref<10x25xf32, #tpu.memory_space<vmem>>, vector<10x1xf32>
    %c0_17 = arith.constant 0 : index
    %c0_18 = arith.constant 0 : index
    %c4_19 = arith.constant 4 : index
    %30 = vector.load %arg1[%c0_17, %c0_18, %c4_19] : memref<1x1x784xf32, #tpu.memory_space<vmem>>, vector<1x1x668xf32>
    %31 = vector.shape_cast %30 : vector<1x1x668xf32> to vector<1x668xf32>
    %32 = vector.broadcast %29 : vector<10x1xf32> to vector<10x668xf32>
    %33 = vector.broadcast %31 : vector<1x668xf32> to vector<10x668xf32>
    %34 = arith.mulf %32, %33 : vector<10x668xf32>
    %35 = arith.addf %28, %34 : vector<10x668xf32>
    %c0_20 = arith.constant 0 : index
    %c5 = arith.constant 5 : index
    %36 = vector.load %arg2[%c0_20, %c5] : memref<10x25xf32, #tpu.memory_space<vmem>>, vector<10x1xf32>
    %c0_21 = arith.constant 0 : index
    %c0_22 = arith.constant 0 : index
    %c28 = arith.constant 28 : index
    %37 = vector.load %arg1[%c0_21, %c0_22, %c28] : memref<1x1x784xf32, #tpu.memory_space<vmem>>, vector<1x1x668xf32>
    %38 = vector.shape_cast %37 : vector<1x1x668xf32> to vector<1x668xf32>
    %39 = vector.broadcast %36 : vector<10x1xf32> to vector<10x668xf32>
    %40 = vector.broadcast %38 : vector<1x668xf32> to vector<10x668xf32>
    %41 = arith.mulf %39, %40 : vector<10x668xf32>
    %42 = arith.addf %35, %41 : vector<10x668xf32>
    %c0_23 = arith.constant 0 : index
    %c6 = arith.constant 6 : index
    %43 = vector.load %arg2[%c0_23, %c6] : memref<10x25xf32, #tpu.memory_space<vmem>>, vector<10x1xf32>
    %c0_24 = arith.constant 0 : index
    %c0_25 = arith.constant 0 : index
    %c29 = arith.constant 29 : index
    %44 = vector.load %arg1[%c0_24, %c0_25, %c29] : memref<1x1x784xf32, #tpu.memory_space<vmem>>, vector<1x1x668xf32>
    %45 = vector.shape_cast %44 : vector<1x1x668xf32> to vector<1x668xf32>
    %46 = vector.broadcast %43 : vector<10x1xf32> to vector<10x668xf32>
    %47 = vector.broadcast %45 : vector<1x668xf32> to vector<10x668xf32>
    %48 = arith.mulf %46, %47 : vector<10x668xf32>
    %49 = arith.addf %42, %48 : vector<10x668xf32>
    %c0_26 = arith.constant 0 : index
    %c7 = arith.constant 7 : index
    %50 = vector.load %arg2[%c0_26, %c7] : memref<10x25xf32, #tpu.memory_space<vmem>>, vector<10x1xf32>
    %c0_27 = arith.constant 0 : index
    %c0_28 = arith.constant 0 : index
    %c30 = arith.constant 30 : index
    %51 = vector.load %arg1[%c0_27, %c0_28, %c30] : memref<1x1x784xf32, #tpu.memory_space<vmem>>, vector<1x1x668xf32>
    %52 = vector.shape_cast %51 : vector<1x1x668xf32> to vector<1x668xf32>
    %53 = vector.broadcast %50 : vector<10x1xf32> to vector<10x668xf32>
    %54 = vector.broadcast %52 : vector<1x668xf32> to vector<10x668xf32>
    %55 = arith.mulf %53, %54 : vector<10x668xf32>
    %56 = arith.addf %49, %55 : vector<10x668xf32>
    %c0_29 = arith.constant 0 : index
    %c8 = arith.constant 8 : index
    %57 = vector.load %arg2[%c0_29, %c8] : memref<10x25xf32, #tpu.memory_space<vmem>>, vector<10x1xf32>
    %c0_30 = arith.constant 0 : index
    %c0_31 = arith.constant 0 : index
    %c31 = arith.constant 31 : index
    %58 = vector.load %arg1[%c0_30, %c0_31, %c31] : memref<1x1x784xf32, #tpu.memory_space<vmem>>, vector<1x1x668xf32>
    %59 = vector.shape_cast %58 : vector<1x1x668xf32> to vector<1x668xf32>
    %60 = vector.broadcast %57 : vector<10x1xf32> to vector<10x668xf32>
    %61 = vector.broadcast %59 : vector<1x668xf32> to vector<10x668xf32>
    %62 = arith.mulf %60, %61 : vector<10x668xf32>
    %63 = arith.addf %56, %62 : vector<10x668xf32>
    %c0_32 = arith.constant 0 : index
    %c9 = arith.constant 9 : index
    %64 = vector.load %arg2[%c0_32, %c9] : memref<10x25xf32, #tpu.memory_space<vmem>>, vector<10x1xf32>
    %c0_33 = arith.constant 0 : index
    %c0_34 = arith.constant 0 : index
    %c32 = arith.constant 32 : index
    %65 = vector.load %arg1[%c0_33, %c0_34, %c32] : memref<1x1x784xf32, #tpu.memory_space<vmem>>, vector<1x1x668xf32>
    %66 = vector.shape_cast %65 : vector<1x1x668xf32> to vector<1x668xf32>
    %67 = vector.broadcast %64 : vector<10x1xf32> to vector<10x668xf32>
    %68 = vector.broadcast %66 : vector<1x668xf32> to vector<10x668xf32>
    %69 = arith.mulf %67, %68 : vector<10x668xf32>
    %70 = arith.addf %63, %69 : vector<10x668xf32>
    %c0_35 = arith.constant 0 : index
    %c10 = arith.constant 10 : index
    %71 = vector.load %arg2[%c0_35, %c10] : memref<10x25xf32, #tpu.memory_space<vmem>>, vector<10x1xf32>
    %c0_36 = arith.constant 0 : index
    %c0_37 = arith.constant 0 : index
    %c56 = arith.constant 56 : index
    %72 = vector.load %arg1[%c0_36, %c0_37, %c56] : memref<1x1x784xf32, #tpu.memory_space<vmem>>, vector<1x1x668xf32>
    %73 = vector.shape_cast %72 : vector<1x1x668xf32> to vector<1x668xf32>
    %74 = vector.broadcast %71 : vector<10x1xf32> to vector<10x668xf32>
    %75 = vector.broadcast %73 : vector<1x668xf32> to vector<10x668xf32>
    %76 = arith.mulf %74, %75 : vector<10x668xf32>
    %77 = arith.addf %70, %76 : vector<10x668xf32>
    %c0_38 = arith.constant 0 : index
    %c11 = arith.constant 11 : index
    %78 = vector.load %arg2[%c0_38, %c11] : memref<10x25xf32, #tpu.memory_space<vmem>>, vector<10x1xf32>
    %c0_39 = arith.constant 0 : index
    %c0_40 = arith.constant 0 : index
    %c57 = arith.constant 57 : index
    %79 = vector.load %arg1[%c0_39, %c0_40, %c57] : memref<1x1x784xf32, #tpu.memory_space<vmem>>, vector<1x1x668xf32>
    %80 = vector.shape_cast %79 : vector<1x1x668xf32> to vector<1x668xf32>
    %81 = vector.broadcast %78 : vector<10x1xf32> to vector<10x668xf32>
    %82 = vector.broadcast %80 : vector<1x668xf32> to vector<10x668xf32>
    %83 = arith.mulf %81, %82 : vector<10x668xf32>
    %84 = arith.addf %77, %83 : vector<10x668xf32>
    %c0_41 = arith.constant 0 : index
    %c12 = arith.constant 12 : index
    %85 = vector.load %arg2[%c0_41, %c12] : memref<10x25xf32, #tpu.memory_space<vmem>>, vector<10x1xf32>
    %c0_42 = arith.constant 0 : index
    %c0_43 = arith.constant 0 : index
    %c58 = arith.constant 58 : index
    %86 = vector.load %arg1[%c0_42, %c0_43, %c58] : memref<1x1x784xf32, #tpu.memory_space<vmem>>, vector<1x1x668xf32>
    %87 = vector.shape_cast %86 : vector<1x1x668xf32> to vector<1x668xf32>
    %88 = vector.broadcast %85 : vector<10x1xf32> to vector<10x668xf32>
    %89 = vector.broadcast %87 : vector<1x668xf32> to vector<10x668xf32>
    %90 = arith.mulf %88, %89 : vector<10x668xf32>
    %91 = arith.addf %84, %90 : vector<10x668xf32>
    %c0_44 = arith.constant 0 : index
    %c13 = arith.constant 13 : index
    %92 = vector.load %arg2[%c0_44, %c13] : memref<10x25xf32, #tpu.memory_space<vmem>>, vector<10x1xf32>
    %c0_45 = arith.constant 0 : index
    %c0_46 = arith.constant 0 : index
    %c59 = arith.constant 59 : index
    %93 = vector.load %arg1[%c0_45, %c0_46, %c59] : memref<1x1x784xf32, #tpu.memory_space<vmem>>, vector<1x1x668xf32>
    %94 = vector.shape_cast %93 : vector<1x1x668xf32> to vector<1x668xf32>
    %95 = vector.broadcast %92 : vector<10x1xf32> to vector<10x668xf32>
    %96 = vector.broadcast %94 : vector<1x668xf32> to vector<10x668xf32>
    %97 = arith.mulf %95, %96 : vector<10x668xf32>
    %98 = arith.addf %91, %97 : vector<10x668xf32>
    %c0_47 = arith.constant 0 : index
    %c14 = arith.constant 14 : index
    %99 = vector.load %arg2[%c0_47, %c14] : memref<10x25xf32, #tpu.memory_space<vmem>>, vector<10x1xf32>
    %c0_48 = arith.constant 0 : index
    %c0_49 = arith.constant 0 : index
    %c60 = arith.constant 60 : index
    %100 = vector.load %arg1[%c0_48, %c0_49, %c60] : memref<1x1x784xf32, #tpu.memory_space<vmem>>, vector<1x1x668xf32>
    %101 = vector.shape_cast %100 : vector<1x1x668xf32> to vector<1x668xf32>
    %102 = vector.broadcast %99 : vector<10x1xf32> to vector<10x668xf32>
    %103 = vector.broadcast %101 : vector<1x668xf32> to vector<10x668xf32>
    %104 = arith.mulf %102, %103 : vector<10x668xf32>
    %105 = arith.addf %98, %104 : vector<10x668xf32>
    %c0_50 = arith.constant 0 : index
    %c15 = arith.constant 15 : index
    %106 = vector.load %arg2[%c0_50, %c15] : memref<10x25xf32, #tpu.memory_space<vmem>>, vector<10x1xf32>
    %c0_51 = arith.constant 0 : index
    %c0_52 = arith.constant 0 : index
    %c84 = arith.constant 84 : index
    %107 = vector.load %arg1[%c0_51, %c0_52, %c84] : memref<1x1x784xf32, #tpu.memory_space<vmem>>, vector<1x1x668xf32>
    %108 = vector.shape_cast %107 : vector<1x1x668xf32> to vector<1x668xf32>
    %109 = vector.broadcast %106 : vector<10x1xf32> to vector<10x668xf32>
    %110 = vector.broadcast %108 : vector<1x668xf32> to vector<10x668xf32>
    %111 = arith.mulf %109, %110 : vector<10x668xf32>
    %112 = arith.addf %105, %111 : vector<10x668xf32>
    %c0_53 = arith.constant 0 : index
    %c16 = arith.constant 16 : index
    %113 = vector.load %arg2[%c0_53, %c16] : memref<10x25xf32, #tpu.memory_space<vmem>>, vector<10x1xf32>
    %c0_54 = arith.constant 0 : index
    %c0_55 = arith.constant 0 : index
    %c85 = arith.constant 85 : index
    %114 = vector.load %arg1[%c0_54, %c0_55, %c85] : memref<1x1x784xf32, #tpu.memory_space<vmem>>, vector<1x1x668xf32>
    %115 = vector.shape_cast %114 : vector<1x1x668xf32> to vector<1x668xf32>
    %116 = vector.broadcast %113 : vector<10x1xf32> to vector<10x668xf32>
    %117 = vector.broadcast %115 : vector<1x668xf32> to vector<10x668xf32>
    %118 = arith.mulf %116, %117 : vector<10x668xf32>
    %119 = arith.addf %112, %118 : vector<10x668xf32>
    %c0_56 = arith.constant 0 : index
    %c17 = arith.constant 17 : index
    %120 = vector.load %arg2[%c0_56, %c17] : memref<10x25xf32, #tpu.memory_space<vmem>>, vector<10x1xf32>
    %c0_57 = arith.constant 0 : index
    %c0_58 = arith.constant 0 : index
    %c86 = arith.constant 86 : index
    %121 = vector.load %arg1[%c0_57, %c0_58, %c86] : memref<1x1x784xf32, #tpu.memory_space<vmem>>, vector<1x1x668xf32>
    %122 = vector.shape_cast %121 : vector<1x1x668xf32> to vector<1x668xf32>
    %123 = vector.broadcast %120 : vector<10x1xf32> to vector<10x668xf32>
    %124 = vector.broadcast %122 : vector<1x668xf32> to vector<10x668xf32>
    %125 = arith.mulf %123, %124 : vector<10x668xf32>
    %126 = arith.addf %119, %125 : vector<10x668xf32>
    %c0_59 = arith.constant 0 : index
    %c18 = arith.constant 18 : index
    %127 = vector.load %arg2[%c0_59, %c18] : memref<10x25xf32, #tpu.memory_space<vmem>>, vector<10x1xf32>
    %c0_60 = arith.constant 0 : index
    %c0_61 = arith.constant 0 : index
    %c87 = arith.constant 87 : index
    %128 = vector.load %arg1[%c0_60, %c0_61, %c87] : memref<1x1x784xf32, #tpu.memory_space<vmem>>, vector<1x1x668xf32>
    %129 = vector.shape_cast %128 : vector<1x1x668xf32> to vector<1x668xf32>
    %130 = vector.broadcast %127 : vector<10x1xf32> to vector<10x668xf32>
    %131 = vector.broadcast %129 : vector<1x668xf32> to vector<10x668xf32>
    %132 = arith.mulf %130, %131 : vector<10x668xf32>
    %133 = arith.addf %126, %132 : vector<10x668xf32>
    %c0_62 = arith.constant 0 : index
    %c19 = arith.constant 19 : index
    %134 = vector.load %arg2[%c0_62, %c19] : memref<10x25xf32, #tpu.memory_space<vmem>>, vector<10x1xf32>
    %c0_63 = arith.constant 0 : index
    %c0_64 = arith.constant 0 : index
    %c88 = arith.constant 88 : index
    %135 = vector.load %arg1[%c0_63, %c0_64, %c88] : memref<1x1x784xf32, #tpu.memory_space<vmem>>, vector<1x1x668xf32>
    %136 = vector.shape_cast %135 : vector<1x1x668xf32> to vector<1x668xf32>
    %137 = vector.broadcast %134 : vector<10x1xf32> to vector<10x668xf32>
    %138 = vector.broadcast %136 : vector<1x668xf32> to vector<10x668xf32>
    %139 = arith.mulf %137, %138 : vector<10x668xf32>
    %140 = arith.addf %133, %139 : vector<10x668xf32>
    %c0_65 = arith.constant 0 : index
    %c20 = arith.constant 20 : index
    %141 = vector.load %arg2[%c0_65, %c20] : memref<10x25xf32, #tpu.memory_space<vmem>>, vector<10x1xf32>
    %c0_66 = arith.constant 0 : index
    %c0_67 = arith.constant 0 : index
    %c112 = arith.constant 112 : index
    %142 = vector.load %arg1[%c0_66, %c0_67, %c112] : memref<1x1x784xf32, #tpu.memory_space<vmem>>, vector<1x1x668xf32>
    %143 = vector.shape_cast %142 : vector<1x1x668xf32> to vector<1x668xf32>
    %144 = vector.broadcast %141 : vector<10x1xf32> to vector<10x668xf32>
    %145 = vector.broadcast %143 : vector<1x668xf32> to vector<10x668xf32>
    %146 = arith.mulf %144, %145 : vector<10x668xf32>
    %147 = arith.addf %140, %146 : vector<10x668xf32>
    %c0_68 = arith.constant 0 : index
    %c21 = arith.constant 21 : index
    %148 = vector.load %arg2[%c0_68, %c21] : memref<10x25xf32, #tpu.memory_space<vmem>>, vector<10x1xf32>
    %c0_69 = arith.constant 0 : index
    %c0_70 = arith.constant 0 : index
    %c113 = arith.constant 113 : index
    %149 = vector.load %arg1[%c0_69, %c0_70, %c113] : memref<1x1x784xf32, #tpu.memory_space<vmem>>, vector<1x1x668xf32>
    %150 = vector.shape_cast %149 : vector<1x1x668xf32> to vector<1x668xf32>
    %151 = vector.broadcast %148 : vector<10x1xf32> to vector<10x668xf32>
    %152 = vector.broadcast %150 : vector<1x668xf32> to vector<10x668xf32>
    %153 = arith.mulf %151, %152 : vector<10x668xf32>
    %154 = arith.addf %147, %153 : vector<10x668xf32>
    %c0_71 = arith.constant 0 : index
    %c22 = arith.constant 22 : index
    %155 = vector.load %arg2[%c0_71, %c22] : memref<10x25xf32, #tpu.memory_space<vmem>>, vector<10x1xf32>
    %c0_72 = arith.constant 0 : index
    %c0_73 = arith.constant 0 : index
    %c114 = arith.constant 114 : index
    %156 = vector.load %arg1[%c0_72, %c0_73, %c114] : memref<1x1x784xf32, #tpu.memory_space<vmem>>, vector<1x1x668xf32>
    %157 = vector.shape_cast %156 : vector<1x1x668xf32> to vector<1x668xf32>
    %158 = vector.broadcast %155 : vector<10x1xf32> to vector<10x668xf32>
    %159 = vector.broadcast %157 : vector<1x668xf32> to vector<10x668xf32>
    %160 = arith.mulf %158, %159 : vector<10x668xf32>
    %161 = arith.addf %154, %160 : vector<10x668xf32>
    %c0_74 = arith.constant 0 : index
    %c23 = arith.constant 23 : index
    %162 = vector.load %arg2[%c0_74, %c23] : memref<10x25xf32, #tpu.memory_space<vmem>>, vector<10x1xf32>
    %c0_75 = arith.constant 0 : index
    %c0_76 = arith.constant 0 : index
    %c115 = arith.constant 115 : index
    %163 = vector.load %arg1[%c0_75, %c0_76, %c115] : memref<1x1x784xf32, #tpu.memory_space<vmem>>, vector<1x1x668xf32>
    %164 = vector.shape_cast %163 : vector<1x1x668xf32> to vector<1x668xf32>
    %165 = vector.broadcast %162 : vector<10x1xf32> to vector<10x668xf32>
    %166 = vector.broadcast %164 : vector<1x668xf32> to vector<10x668xf32>
    %167 = arith.mulf %165, %166 : vector<10x668xf32>
    %168 = arith.addf %161, %167 : vector<10x668xf32>
    %c0_77 = arith.constant 0 : index
    %c24 = arith.constant 24 : index
    %169 = vector.load %arg2[%c0_77, %c24] : memref<10x25xf32, #tpu.memory_space<vmem>>, vector<10x1xf32>
    %c0_78 = arith.constant 0 : index
    %c0_79 = arith.constant 0 : index
    %c116 = arith.constant 116 : index
    %170 = vector.load %arg1[%c0_78, %c0_79, %c116] : memref<1x1x784xf32, #tpu.memory_space<vmem>>, vector<1x1x668xf32>
    %171 = vector.shape_cast %170 : vector<1x1x668xf32> to vector<1x668xf32>
    %172 = vector.broadcast %169 : vector<10x1xf32> to vector<10x668xf32>
    %173 = vector.broadcast %171 : vector<1x668xf32> to vector<10x668xf32>
    %174 = arith.mulf %172, %173 : vector<10x668xf32>
    %175 = arith.addf %168, %174 : vector<10x668xf32>
    %c0_80 = arith.constant 0 : index
    %c0_81 = arith.constant 0 : index
    %176 = vector.load %arg13[%c0_80, %c0_81] : memref<10x668xf32, #tpu.memory_space<vmem>>, vector<10x668xf32>
    tpu.vector_store %arg13[%c0_80, %c0_81], %175 {strides = array<i32>} : memref<10x668xf32, #tpu.memory_space<vmem>>, vector<10x668xf32>,
    %c0_82 = arith.constant 0 : index
    %c0_83 = arith.constant 0 : index
    %177 = vector.load %arg13[%c0_82, %c0_83] : memref<10x668xf32, #tpu.memory_space<vmem>>, vector<10x639xf32>
    %c0_84 = arith.constant 0 : index
    %c1_85 = arith.constant 1 : index
    %178 = vector.load %arg13[%c0_84, %c1_85] : memref<10x668xf32, #tpu.memory_space<vmem>>, vector<10x639xf32>
    %179 = arith.maximumf %177, %178 : vector<10x639xf32>
    %c0_86 = arith.constant 0 : index
    %c28_87 = arith.constant 28 : index
    %180 = vector.load %arg13[%c0_86, %c28_87] : memref<10x668xf32, #tpu.memory_space<vmem>>, vector<10x639xf32>
    %c0_88 = arith.constant 0 : index
    %c29_89 = arith.constant 29 : index
    %181 = vector.load %arg13[%c0_88, %c29_89] : memref<10x668xf32, #tpu.memory_space<vmem>>, vector<10x639xf32>
    %182 = arith.maximumf %180, %181 : vector<10x639xf32>
    %183 = arith.maximumf %179, %182 : vector<10x639xf32>
    %c0_90 = arith.constant 0 : index
    %c0_91 = arith.constant 0 : index
    %184 = vector.load %arg3[%c0_90, %c0_91] : memref<10x1xf32, #tpu.memory_space<vmem>>, vector<10x1xf32>
    %185 = vector.broadcast %184 : vector<10x1xf32> to vector<10x639xf32>
    %186 = arith.addf %183, %185 : vector<10x639xf32>
    %cst_92 = arith.constant 0.000000e+00 : f32
    %187 = vector.broadcast %cst_92 : f32 to vector<10x639xf32>
    %188 = arith.maximumf %186, %187 : vector<10x639xf32>
    %c0_93 = arith.constant 0 : index
    %c0_94 = arith.constant 0 : index
    %189 = vector.load %arg14[%c0_93, %c0_94] : memref<10x639xf32, #tpu.memory_space<vmem>>, vector<10x639xf32>
    tpu.vector_store %arg14[%c0_93, %c0_94], %188 {strides = array<i32>} : memref<10x639xf32, #tpu.memory_space<vmem>>, vector<10x639xf32>,
    %cst_95 = arith.constant 0.000000e+00 : f32
    %190 = vector.broadcast %cst_95 : f32 to vector<20x407xf32>
    %c0_96 = arith.constant 0 : index
    %c0_97 = arith.constant 0 : index
    %c0_98 = arith.constant 0 : index
    %191 = vector.load %arg4[%c0_96, %c0_97, %c0_98] : memref<25x20x10xf32, #tpu.memory_space<vmem>>, vector<1x20x10xf32>
    %192 = vector.shape_cast %191 : vector<1x20x10xf32> to vector<20x10xf32>
    %c0_99 = arith.constant 0 : index
    %c0_100 = arith.constant 0 : index
    %193 = vector.load %arg14[%c0_99, %c0_100] : memref<10x639xf32, #tpu.memory_space<vmem>>, vector<10x407xf32>
    %cst_101 = arith.constant dense<0.000000e+00> : vector<20x407xf32>
    %194 = tpu.matmul %192, %193, %cst_101 {dimension_numbers = #tpu.dot_dimension_numbers<[1], [0], [0], [1], [0, 0, 1, 1], [], []>} : vector<20x10xf32>, vector<10x407xf32>, vector<20x407xf32> -> vector<20x407xf32>
    %195 = arith.addf %190, %194 : vector<20x407xf32>
    %c1_102 = arith.constant 1 : index
    %c0_103 = arith.constant 0 : index
    %c0_104 = arith.constant 0 : index
    %196 = vector.load %arg4[%c1_102, %c0_103, %c0_104] : memref<25x20x10xf32, #tpu.memory_space<vmem>>, vector<1x20x10xf32>
    %197 = vector.shape_cast %196 : vector<1x20x10xf32> to vector<20x10xf32>
    %c0_105 = arith.constant 0 : index
    %c2_106 = arith.constant 2 : index
    %198 = vector.load %arg14[%c0_105, %c2_106] : memref<10x639xf32, #tpu.memory_space<vmem>>, vector<10x407xf32>
    %cst_107 = arith.constant dense<0.000000e+00> : vector<20x407xf32>
    %199 = tpu.matmul %197, %198, %cst_107 {dimension_numbers = #tpu.dot_dimension_numbers<[1], [0], [0], [1], [0, 0, 1, 1], [], []>} : vector<20x10xf32>, vector<10x407xf32>, vector<20x407xf32> -> vector<20x407xf32>
    %200 = arith.addf %195, %199 : vector<20x407xf32>
    %c2_108 = arith.constant 2 : index
    %c0_109 = arith.constant 0 : index
    %c0_110 = arith.constant 0 : index
    %201 = vector.load %arg4[%c2_108, %c0_109, %c0_110] : memref<25x20x10xf32, #tpu.memory_space<vmem>>, vector<1x20x10xf32>
    %202 = vector.shape_cast %201 : vector<1x20x10xf32> to vector<20x10xf32>
    %c0_111 = arith.constant 0 : index
    %c4_112 = arith.constant 4 : index
    %203 = vector.load %arg14[%c0_111, %c4_112] : memref<10x639xf32, #tpu.memory_space<vmem>>, vector<10x407xf32>
    %cst_113 = arith.constant dense<0.000000e+00> : vector<20x407xf32>
    %204 = tpu.matmul %202, %203, %cst_113 {dimension_numbers = #tpu.dot_dimension_numbers<[1], [0], [0], [1], [0, 0, 1, 1], [], []>} : vector<20x10xf32>, vector<10x407xf32>, vector<20x407xf32> -> vector<20x407xf32>
    %205 = arith.addf %200, %204 : vector<20x407xf32>
    %c3_114 = arith.constant 3 : index
    %c0_115 = arith.constant 0 : index
    %c0_116 = arith.constant 0 : index
    %206 = vector.load %arg4[%c3_114, %c0_115, %c0_116] : memref<25x20x10xf32, #tpu.memory_space<vmem>>, vector<1x20x10xf32>
    %207 = vector.shape_cast %206 : vector<1x20x10xf32> to vector<20x10xf32>
    %c0_117 = arith.constant 0 : index
    %c6_118 = arith.constant 6 : index
    %208 = vector.load %arg14[%c0_117, %c6_118] : memref<10x639xf32, #tpu.memory_space<vmem>>, vector<10x407xf32>
    %cst_119 = arith.constant dense<0.000000e+00> : vector<20x407xf32>
    %209 = tpu.matmul %207, %208, %cst_119 {dimension_numbers = #tpu.dot_dimension_numbers<[1], [0], [0], [1], [0, 0, 1, 1], [], []>} : vector<20x10xf32>, vector<10x407xf32>, vector<20x407xf32> -> vector<20x407xf32>
    %210 = arith.addf %205, %209 : vector<20x407xf32>
    %c4_120 = arith.constant 4 : index
    %c0_121 = arith.constant 0 : index
    %c0_122 = arith.constant 0 : index
    %211 = vector.load %arg4[%c4_120, %c0_121, %c0_122] : memref<25x20x10xf32, #tpu.memory_space<vmem>>, vector<1x20x10xf32>
    %212 = vector.shape_cast %211 : vector<1x20x10xf32> to vector<20x10xf32>
    %c0_123 = arith.constant 0 : index
    %c8_124 = arith.constant 8 : index
    %213 = vector.load %arg14[%c0_123, %c8_124] : memref<10x639xf32, #tpu.memory_space<vmem>>, vector<10x407xf32>
    %cst_125 = arith.constant dense<0.000000e+00> : vector<20x407xf32>
    %214 = tpu.matmul %212, %213, %cst_125 {dimension_numbers = #tpu.dot_dimension_numbers<[1], [0], [0], [1], [0, 0, 1, 1], [], []>} : vector<20x10xf32>, vector<10x407xf32>, vector<20x407xf32> -> vector<20x407xf32>
    %215 = arith.addf %210, %214 : vector<20x407xf32>
    %c5_126 = arith.constant 5 : index
    %c0_127 = arith.constant 0 : index
    %c0_128 = arith.constant 0 : index
    %216 = vector.load %arg4[%c5_126, %c0_127, %c0_128] : memref<25x20x10xf32, #tpu.memory_space<vmem>>, vector<1x20x10xf32>
    %217 = vector.shape_cast %216 : vector<1x20x10xf32> to vector<20x10xf32>
    %c0_129 = arith.constant 0 : index
    %c56_130 = arith.constant 56 : index
    %218 = vector.load %arg14[%c0_129, %c56_130] : memref<10x639xf32, #tpu.memory_space<vmem>>, vector<10x407xf32>
    %cst_131 = arith.constant dense<0.000000e+00> : vector<20x407xf32>
    %219 = tpu.matmul %217, %218, %cst_131 {dimension_numbers = #tpu.dot_dimension_numbers<[1], [0], [0], [1], [0, 0, 1, 1], [], []>} : vector<20x10xf32>, vector<10x407xf32>, vector<20x407xf32> -> vector<20x407xf32>
    %220 = arith.addf %215, %219 : vector<20x407xf32>
    %c6_132 = arith.constant 6 : index
    %c0_133 = arith.constant 0 : index
    %c0_134 = arith.constant 0 : index
    %221 = vector.load %arg4[%c6_132, %c0_133, %c0_134] : memref<25x20x10xf32, #tpu.memory_space<vmem>>, vector<1x20x10xf32>
    %222 = vector.shape_cast %221 : vector<1x20x10xf32> to vector<20x10xf32>
    %c0_135 = arith.constant 0 : index
    %c58_136 = arith.constant 58 : index
    %223 = vector.load %arg14[%c0_135, %c58_136] : memref<10x639xf32, #tpu.memory_space<vmem>>, vector<10x407xf32>
    %cst_137 = arith.constant dense<0.000000e+00> : vector<20x407xf32>
    %224 = tpu.matmul %222, %223, %cst_137 {dimension_numbers = #tpu.dot_dimension_numbers<[1], [0], [0], [1], [0, 0, 1, 1], [], []>} : vector<20x10xf32>, vector<10x407xf32>, vector<20x407xf32> -> vector<20x407xf32>
    %225 = arith.addf %220, %224 : vector<20x407xf32>
    %c7_138 = arith.constant 7 : index
    %c0_139 = arith.constant 0 : index
    %c0_140 = arith.constant 0 : index
    %226 = vector.load %arg4[%c7_138, %c0_139, %c0_140] : memref<25x20x10xf32, #tpu.memory_space<vmem>>, vector<1x20x10xf32>
    %227 = vector.shape_cast %226 : vector<1x20x10xf32> to vector<20x10xf32>
    %c0_141 = arith.constant 0 : index
    %c60_142 = arith.constant 60 : index
    %228 = vector.load %arg14[%c0_141, %c60_142] : memref<10x639xf32, #tpu.memory_space<vmem>>, vector<10x407xf32>
    %cst_143 = arith.constant dense<0.000000e+00> : vector<20x407xf32>
    %229 = tpu.matmul %227, %228, %cst_143 {dimension_numbers = #tpu.dot_dimension_numbers<[1], [0], [0], [1], [0, 0, 1, 1], [], []>} : vector<20x10xf32>, vector<10x407xf32>, vector<20x407xf32> -> vector<20x407xf32>
    %230 = arith.addf %225, %229 : vector<20x407xf32>
    %c8_144 = arith.constant 8 : index
    %c0_145 = arith.constant 0 : index
    %c0_146 = arith.constant 0 : index
    %231 = vector.load %arg4[%c8_144, %c0_145, %c0_146] : memref<25x20x10xf32, #tpu.memory_space<vmem>>, vector<1x20x10xf32>
    %232 = vector.shape_cast %231 : vector<1x20x10xf32> to vector<20x10xf32>
    %c0_147 = arith.constant 0 : index
    %c62 = arith.constant 62 : index
    %233 = vector.load %arg14[%c0_147, %c62] : memref<10x639xf32, #tpu.memory_space<vmem>>, vector<10x407xf32>
    %cst_148 = arith.constant dense<0.000000e+00> : vector<20x407xf32>
    %234 = tpu.matmul %232, %233, %cst_148 {dimension_numbers = #tpu.dot_dimension_numbers<[1], [0], [0], [1], [0, 0, 1, 1], [], []>} : vector<20x10xf32>, vector<10x407xf32>, vector<20x407xf32> -> vector<20x407xf32>
    %235 = arith.addf %230, %234 : vector<20x407xf32>
    %c9_149 = arith.constant 9 : index
    %c0_150 = arith.constant 0 : index
    %c0_151 = arith.constant 0 : index
    %236 = vector.load %arg4[%c9_149, %c0_150, %c0_151] : memref<25x20x10xf32, #tpu.memory_space<vmem>>, vector<1x20x10xf32>
    %237 = vector.shape_cast %236 : vector<1x20x10xf32> to vector<20x10xf32>
    %c0_152 = arith.constant 0 : index
    %c64 = arith.constant 64 : index
    %238 = vector.load %arg14[%c0_152, %c64] : memref<10x639xf32, #tpu.memory_space<vmem>>, vector<10x407xf32>
    %cst_153 = arith.constant dense<0.000000e+00> : vector<20x407xf32>
    %239 = tpu.matmul %237, %238, %cst_153 {dimension_numbers = #tpu.dot_dimension_numbers<[1], [0], [0], [1], [0, 0, 1, 1], [], []>} : vector<20x10xf32>, vector<10x407xf32>, vector<20x407xf32> -> vector<20x407xf32>
    %240 = arith.addf %235, %239 : vector<20x407xf32>
    %c10_154 = arith.constant 10 : index
    %c0_155 = arith.constant 0 : index
    %c0_156 = arith.constant 0 : index
    %241 = vector.load %arg4[%c10_154, %c0_155, %c0_156] : memref<25x20x10xf32, #tpu.memory_space<vmem>>, vector<1x20x10xf32>
    %242 = vector.shape_cast %241 : vector<1x20x10xf32> to vector<20x10xf32>
    %c0_157 = arith.constant 0 : index
    %c112_158 = arith.constant 112 : index
    %243 = vector.load %arg14[%c0_157, %c112_158] : memref<10x639xf32, #tpu.memory_space<vmem>>, vector<10x407xf32>
    %cst_159 = arith.constant dense<0.000000e+00> : vector<20x407xf32>
    %244 = tpu.matmul %242, %243, %cst_159 {dimension_numbers = #tpu.dot_dimension_numbers<[1], [0], [0], [1], [0, 0, 1, 1], [], []>} : vector<20x10xf32>, vector<10x407xf32>, vector<20x407xf32> -> vector<20x407xf32>
    %245 = arith.addf %240, %244 : vector<20x407xf32>
    %c11_160 = arith.constant 11 : index
    %c0_161 = arith.constant 0 : index
    %c0_162 = arith.constant 0 : index
    %246 = vector.load %arg4[%c11_160, %c0_161, %c0_162] : memref<25x20x10xf32, #tpu.memory_space<vmem>>, vector<1x20x10xf32>
    %247 = vector.shape_cast %246 : vector<1x20x10xf32> to vector<20x10xf32>
    %c0_163 = arith.constant 0 : index
    %c114_164 = arith.constant 114 : index
    %248 = vector.load %arg14[%c0_163, %c114_164] : memref<10x639xf32, #tpu.memory_space<vmem>>, vector<10x407xf32>
    %cst_165 = arith.constant dense<0.000000e+00> : vector<20x407xf32>
    %249 = tpu.matmul %247, %248, %cst_165 {dimension_numbers = #tpu.dot_dimension_numbers<[1], [0], [0], [1], [0, 0, 1, 1], [], []>} : vector<20x10xf32>, vector<10x407xf32>, vector<20x407xf32> -> vector<20x407xf32>
    %250 = arith.addf %245, %249 : vector<20x407xf32>
    %c12_166 = arith.constant 12 : index
    %c0_167 = arith.constant 0 : index
    %c0_168 = arith.constant 0 : index
    %251 = vector.load %arg4[%c12_166, %c0_167, %c0_168] : memref<25x20x10xf32, #tpu.memory_space<vmem>>, vector<1x20x10xf32>
    %252 = vector.shape_cast %251 : vector<1x20x10xf32> to vector<20x10xf32>
    %c0_169 = arith.constant 0 : index
    %c116_170 = arith.constant 116 : index
    %253 = vector.load %arg14[%c0_169, %c116_170] : memref<10x639xf32, #tpu.memory_space<vmem>>, vector<10x407xf32>
    %cst_171 = arith.constant dense<0.000000e+00> : vector<20x407xf32>
    %254 = tpu.matmul %252, %253, %cst_171 {dimension_numbers = #tpu.dot_dimension_numbers<[1], [0], [0], [1], [0, 0, 1, 1], [], []>} : vector<20x10xf32>, vector<10x407xf32>, vector<20x407xf32> -> vector<20x407xf32>
    %255 = arith.addf %250, %254 : vector<20x407xf32>
    %c13_172 = arith.constant 13 : index
    %c0_173 = arith.constant 0 : index
    %c0_174 = arith.constant 0 : index
    %256 = vector.load %arg4[%c13_172, %c0_173, %c0_174] : memref<25x20x10xf32, #tpu.memory_space<vmem>>, vector<1x20x10xf32>
    %257 = vector.shape_cast %256 : vector<1x20x10xf32> to vector<20x10xf32>
    %c0_175 = arith.constant 0 : index
    %c118 = arith.constant 118 : index
    %258 = vector.load %arg14[%c0_175, %c118] : memref<10x639xf32, #tpu.memory_space<vmem>>, vector<10x407xf32>
    %cst_176 = arith.constant dense<0.000000e+00> : vector<20x407xf32>
    %259 = tpu.matmul %257, %258, %cst_176 {dimension_numbers = #tpu.dot_dimension_numbers<[1], [0], [0], [1], [0, 0, 1, 1], [], []>} : vector<20x10xf32>, vector<10x407xf32>, vector<20x407xf32> -> vector<20x407xf32>
    %260 = arith.addf %255, %259 : vector<20x407xf32>
    %c14_177 = arith.constant 14 : index
    %c0_178 = arith.constant 0 : index
    %c0_179 = arith.constant 0 : index
    %261 = vector.load %arg4[%c14_177, %c0_178, %c0_179] : memref<25x20x10xf32, #tpu.memory_space<vmem>>, vector<1x20x10xf32>
    %262 = vector.shape_cast %261 : vector<1x20x10xf32> to vector<20x10xf32>
    %c0_180 = arith.constant 0 : index
    %c120 = arith.constant 120 : index
    %263 = vector.load %arg14[%c0_180, %c120] : memref<10x639xf32, #tpu.memory_space<vmem>>, vector<10x407xf32>
    %cst_181 = arith.constant dense<0.000000e+00> : vector<20x407xf32>
    %264 = tpu.matmul %262, %263, %cst_181 {dimension_numbers = #tpu.dot_dimension_numbers<[1], [0], [0], [1], [0, 0, 1, 1], [], []>} : vector<20x10xf32>, vector<10x407xf32>, vector<20x407xf32> -> vector<20x407xf32>
    %265 = arith.addf %260, %264 : vector<20x407xf32>
    %c15_182 = arith.constant 15 : index
    %c0_183 = arith.constant 0 : index
    %c0_184 = arith.constant 0 : index
    %266 = vector.load %arg4[%c15_182, %c0_183, %c0_184] : memref<25x20x10xf32, #tpu.memory_space<vmem>>, vector<1x20x10xf32>
    %267 = vector.shape_cast %266 : vector<1x20x10xf32> to vector<20x10xf32>
    %c0_185 = arith.constant 0 : index
    %c168 = arith.constant 168 : index
    %268 = vector.load %arg14[%c0_185, %c168] : memref<10x639xf32, #tpu.memory_space<vmem>>, vector<10x407xf32>
    %cst_186 = arith.constant dense<0.000000e+00> : vector<20x407xf32>
    %269 = tpu.matmul %267, %268, %cst_186 {dimension_numbers = #tpu.dot_dimension_numbers<[1], [0], [0], [1], [0, 0, 1, 1], [], []>} : vector<20x10xf32>, vector<10x407xf32>, vector<20x407xf32> -> vector<20x407xf32>
    %270 = arith.addf %265, %269 : vector<20x407xf32>
    %c16_187 = arith.constant 16 : index
    %c0_188 = arith.constant 0 : index
    %c0_189 = arith.constant 0 : index
    %271 = vector.load %arg4[%c16_187, %c0_188, %c0_189] : memref<25x20x10xf32, #tpu.memory_space<vmem>>, vector<1x20x10xf32>
    %272 = vector.shape_cast %271 : vector<1x20x10xf32> to vector<20x10xf32>
    %c0_190 = arith.constant 0 : index
    %c170 = arith.constant 170 : index
    %273 = vector.load %arg14[%c0_190, %c170] : memref<10x639xf32, #tpu.memory_space<vmem>>, vector<10x407xf32>
    %cst_191 = arith.constant dense<0.000000e+00> : vector<20x407xf32>
    %274 = tpu.matmul %272, %273, %cst_191 {dimension_numbers = #tpu.dot_dimension_numbers<[1], [0], [0], [1], [0, 0, 1, 1], [], []>} : vector<20x10xf32>, vector<10x407xf32>, vector<20x407xf32> -> vector<20x407xf32>
    %275 = arith.addf %270, %274 : vector<20x407xf32>
    %c17_192 = arith.constant 17 : index
    %c0_193 = arith.constant 0 : index
    %c0_194 = arith.constant 0 : index
    %276 = vector.load %arg4[%c17_192, %c0_193, %c0_194] : memref<25x20x10xf32, #tpu.memory_space<vmem>>, vector<1x20x10xf32>
    %277 = vector.shape_cast %276 : vector<1x20x10xf32> to vector<20x10xf32>
    %c0_195 = arith.constant 0 : index
    %c172 = arith.constant 172 : index
    %278 = vector.load %arg14[%c0_195, %c172] : memref<10x639xf32, #tpu.memory_space<vmem>>, vector<10x407xf32>
    %cst_196 = arith.constant dense<0.000000e+00> : vector<20x407xf32>
    %279 = tpu.matmul %277, %278, %cst_196 {dimension_numbers = #tpu.dot_dimension_numbers<[1], [0], [0], [1], [0, 0, 1, 1], [], []>} : vector<20x10xf32>, vector<10x407xf32>, vector<20x407xf32> -> vector<20x407xf32>
    %280 = arith.addf %275, %279 : vector<20x407xf32>
    %c18_197 = arith.constant 18 : index
    %c0_198 = arith.constant 0 : index
    %c0_199 = arith.constant 0 : index
    %281 = vector.load %arg4[%c18_197, %c0_198, %c0_199] : memref<25x20x10xf32, #tpu.memory_space<vmem>>, vector<1x20x10xf32>
    %282 = vector.shape_cast %281 : vector<1x20x10xf32> to vector<20x10xf32>
    %c0_200 = arith.constant 0 : index
    %c174 = arith.constant 174 : index
    %283 = vector.load %arg14[%c0_200, %c174] : memref<10x639xf32, #tpu.memory_space<vmem>>, vector<10x407xf32>
    %cst_201 = arith.constant dense<0.000000e+00> : vector<20x407xf32>
    %284 = tpu.matmul %282, %283, %cst_201 {dimension_numbers = #tpu.dot_dimension_numbers<[1], [0], [0], [1], [0, 0, 1, 1], [], []>} : vector<20x10xf32>, vector<10x407xf32>, vector<20x407xf32> -> vector<20x407xf32>
    %285 = arith.addf %280, %284 : vector<20x407xf32>
    %c19_202 = arith.constant 19 : index
    %c0_203 = arith.constant 0 : index
    %c0_204 = arith.constant 0 : index
    %286 = vector.load %arg4[%c19_202, %c0_203, %c0_204] : memref<25x20x10xf32, #tpu.memory_space<vmem>>, vector<1x20x10xf32>
    %287 = vector.shape_cast %286 : vector<1x20x10xf32> to vector<20x10xf32>
    %c0_205 = arith.constant 0 : index
    %c176 = arith.constant 176 : index
    %288 = vector.load %arg14[%c0_205, %c176] : memref<10x639xf32, #tpu.memory_space<vmem>>, vector<10x407xf32>
    %cst_206 = arith.constant dense<0.000000e+00> : vector<20x407xf32>
    %289 = tpu.matmul %287, %288, %cst_206 {dimension_numbers = #tpu.dot_dimension_numbers<[1], [0], [0], [1], [0, 0, 1, 1], [], []>} : vector<20x10xf32>, vector<10x407xf32>, vector<20x407xf32> -> vector<20x407xf32>
    %290 = arith.addf %285, %289 : vector<20x407xf32>
    %c20_207 = arith.constant 20 : index
    %c0_208 = arith.constant 0 : index
    %c0_209 = arith.constant 0 : index
    %291 = vector.load %arg4[%c20_207, %c0_208, %c0_209] : memref<25x20x10xf32, #tpu.memory_space<vmem>>, vector<1x20x10xf32>
    %292 = vector.shape_cast %291 : vector<1x20x10xf32> to vector<20x10xf32>
    %c0_210 = arith.constant 0 : index
    %c224 = arith.constant 224 : index
    %293 = vector.load %arg14[%c0_210, %c224] : memref<10x639xf32, #tpu.memory_space<vmem>>, vector<10x407xf32>
    %cst_211 = arith.constant dense<0.000000e+00> : vector<20x407xf32>
    %294 = tpu.matmul %292, %293, %cst_211 {dimension_numbers = #tpu.dot_dimension_numbers<[1], [0], [0], [1], [0, 0, 1, 1], [], []>} : vector<20x10xf32>, vector<10x407xf32>, vector<20x407xf32> -> vector<20x407xf32>
    %295 = arith.addf %290, %294 : vector<20x407xf32>
    %c21_212 = arith.constant 21 : index
    %c0_213 = arith.constant 0 : index
    %c0_214 = arith.constant 0 : index
    %296 = vector.load %arg4[%c21_212, %c0_213, %c0_214] : memref<25x20x10xf32, #tpu.memory_space<vmem>>, vector<1x20x10xf32>
    %297 = vector.shape_cast %296 : vector<1x20x10xf32> to vector<20x10xf32>
    %c0_215 = arith.constant 0 : index
    %c226 = arith.constant 226 : index
    %298 = vector.load %arg14[%c0_215, %c226] : memref<10x639xf32, #tpu.memory_space<vmem>>, vector<10x407xf32>
    %cst_216 = arith.constant dense<0.000000e+00> : vector<20x407xf32>
    %299 = tpu.matmul %297, %298, %cst_216 {dimension_numbers = #tpu.dot_dimension_numbers<[1], [0], [0], [1], [0, 0, 1, 1], [], []>} : vector<20x10xf32>, vector<10x407xf32>, vector<20x407xf32> -> vector<20x407xf32>
    %300 = arith.addf %295, %299 : vector<20x407xf32>
    %c22_217 = arith.constant 22 : index
    %c0_218 = arith.constant 0 : index
    %c0_219 = arith.constant 0 : index
    %301 = vector.load %arg4[%c22_217, %c0_218, %c0_219] : memref<25x20x10xf32, #tpu.memory_space<vmem>>, vector<1x20x10xf32>
    %302 = vector.shape_cast %301 : vector<1x20x10xf32> to vector<20x10xf32>
    %c0_220 = arith.constant 0 : index
    %c228 = arith.constant 228 : index
    %303 = vector.load %arg14[%c0_220, %c228] : memref<10x639xf32, #tpu.memory_space<vmem>>, vector<10x407xf32>
    %cst_221 = arith.constant dense<0.000000e+00> : vector<20x407xf32>
    %304 = tpu.matmul %302, %303, %cst_221 {dimension_numbers = #tpu.dot_dimension_numbers<[1], [0], [0], [1], [0, 0, 1, 1], [], []>} : vector<20x10xf32>, vector<10x407xf32>, vector<20x407xf32> -> vector<20x407xf32>
    %305 = arith.addf %300, %304 : vector<20x407xf32>
    %c23_222 = arith.constant 23 : index
    %c0_223 = arith.constant 0 : index
    %c0_224 = arith.constant 0 : index
    %306 = vector.load %arg4[%c23_222, %c0_223, %c0_224] : memref<25x20x10xf32, #tpu.memory_space<vmem>>, vector<1x20x10xf32>
    %307 = vector.shape_cast %306 : vector<1x20x10xf32> to vector<20x10xf32>
    %c0_225 = arith.constant 0 : index
    %c230 = arith.constant 230 : index
    %308 = vector.load %arg14[%c0_225, %c230] : memref<10x639xf32, #tpu.memory_space<vmem>>, vector<10x407xf32>
    %cst_226 = arith.constant dense<0.000000e+00> : vector<20x407xf32>
    %309 = tpu.matmul %307, %308, %cst_226 {dimension_numbers = #tpu.dot_dimension_numbers<[1], [0], [0], [1], [0, 0, 1, 1], [], []>} : vector<20x10xf32>, vector<10x407xf32>, vector<20x407xf32> -> vector<20x407xf32>
    %310 = arith.addf %305, %309 : vector<20x407xf32>
    %c24_227 = arith.constant 24 : index
    %c0_228 = arith.constant 0 : index
    %c0_229 = arith.constant 0 : index
    %311 = vector.load %arg4[%c24_227, %c0_228, %c0_229] : memref<25x20x10xf32, #tpu.memory_space<vmem>>, vector<1x20x10xf32>
    %312 = vector.shape_cast %311 : vector<1x20x10xf32> to vector<20x10xf32>
    %c0_230 = arith.constant 0 : index
    %c232 = arith.constant 232 : index
    %313 = vector.load %arg14[%c0_230, %c232] : memref<10x639xf32, #tpu.memory_space<vmem>>, vector<10x407xf32>
    %cst_231 = arith.constant dense<0.000000e+00> : vector<20x407xf32>
    %314 = tpu.matmul %312, %313, %cst_231 {dimension_numbers = #tpu.dot_dimension_numbers<[1], [0], [0], [1], [0, 0, 1, 1], [], []>} : vector<20x10xf32>, vector<10x407xf32>, vector<20x407xf32> -> vector<20x407xf32>
    %315 = arith.addf %310, %314 : vector<20x407xf32>
    %c0_232 = arith.constant 0 : index
    %c0_233 = arith.constant 0 : index
    %316 = vector.load %arg15[%c0_232, %c0_233] : memref<20x407xf32, #tpu.memory_space<vmem>>, vector<20x407xf32>
    tpu.vector_store %arg15[%c0_232, %c0_233], %315 {strides = array<i32>} : memref<20x407xf32, #tpu.memory_space<vmem>>, vector<20x407xf32>,
    %c0_234 = arith.constant 0 : index
    %c0_235 = arith.constant 0 : index
    %317 = vector.load %arg15[%c0_234, %c0_235] : memref<20x407xf32, #tpu.memory_space<vmem>>, vector<20x349xf32>
    %c0_236 = arith.constant 0 : index
    %c2_237 = arith.constant 2 : index
    %318 = vector.load %arg15[%c0_236, %c2_237] : memref<20x407xf32, #tpu.memory_space<vmem>>, vector<20x349xf32>
    %319 = arith.maximumf %317, %318 : vector<20x349xf32>
    %c0_238 = arith.constant 0 : index
    %c56_239 = arith.constant 56 : index
    %320 = vector.load %arg15[%c0_238, %c56_239] : memref<20x407xf32, #tpu.memory_space<vmem>>, vector<20x349xf32>
    %c0_240 = arith.constant 0 : index
    %c58_241 = arith.constant 58 : index
    %321 = vector.load %arg15[%c0_240, %c58_241] : memref<20x407xf32, #tpu.memory_space<vmem>>, vector<20x349xf32>
    %322 = arith.maximumf %320, %321 : vector<20x349xf32>
    %323 = arith.maximumf %319, %322 : vector<20x349xf32>
    %c0_242 = arith.constant 0 : index
    %c0_243 = arith.constant 0 : index
    %324 = vector.load %arg5[%c0_242, %c0_243] : memref<20x1xf32, #tpu.memory_space<vmem>>, vector<20x1xf32>
    %325 = vector.broadcast %324 : vector<20x1xf32> to vector<20x349xf32>
    %326 = arith.addf %323, %325 : vector<20x349xf32>
    %cst_244 = arith.constant 0.000000e+00 : f32
    %327 = vector.broadcast %cst_244 : f32 to vector<20x349xf32>
    %328 = arith.maximumf %326, %327 : vector<20x349xf32>
    %c0_245 = arith.constant 0 : index
    %c0_246 = arith.constant 0 : index
    %329 = vector.load %arg6[%c0_245, %c0_246] : memref<349x16xf32, #tpu.memory_space<vmem>>, vector<349x16xf32>
    %cst_247 = arith.constant dense<0.000000e+00> : vector<20x16xf32>
    %330 = tpu.matmul %328, %329, %cst_247 {dimension_numbers = #tpu.dot_dimension_numbers<[1], [0], [0], [1], [0, 0, 1, 1], [], []>} : vector<20x349xf32>, vector<349x16xf32>, vector<20x16xf32> -> vector<20x16xf32>
    %c0_248 = arith.constant 0 : index
    %c0_249 = arith.constant 0 : index
    %331 = vector.load %arg16[%c0_248, %c0_249] : memref<20x16xf32, #tpu.memory_space<vmem>>, vector<20x16xf32>
    tpu.vector_store %arg16[%c0_248, %c0_249], %330 {strides = array<i32>} : memref<20x16xf32, #tpu.memory_space<vmem>>, vector<20x16xf32>,
    %c0_250 = arith.constant 0 : index
    %c0_251 = arith.constant 0 : index
    %332 = vector.load %arg8[%c0_250, %c0_251] : memref<1x128xf32, #tpu.memory_space<vmem>>, vector<1x128xf32>
    %c0_252 = arith.constant 0 : index
    %c0_253 = arith.constant 0 : index
    %333 = vector.load %arg16[%c0_252, %c0_253] : memref<20x16xf32, #tpu.memory_space<vmem>>, vector<1x16xf32>
    %c0_254 = arith.constant 0 : index
    %c0_255 = arith.constant 0 : index
    %c0_256 = arith.constant 0 : index
    %334 = vector.load %arg7[%c0_254, %c0_255, %c0_256] : memref<20x16x128xf32, #tpu.memory_space<vmem>>, vector<1x16x128xf32>
    %335 = vector.shape_cast %334 : vector<1x16x128xf32> to vector<16x128xf32>
    %cst_257 = arith.constant dense<0.000000e+00> : vector<1x128xf32>
    %336 = tpu.matmul %333, %335, %cst_257 {dimension_numbers = #tpu.dot_dimension_numbers<[1], [0], [0], [1], [0, 0, 1, 1], [], []>} : vector<1x16xf32>, vector<16x128xf32>, vector<1x128xf32> -> vector<1x128xf32>
    %337 = arith.addf %332, %336 : vector<1x128xf32>
    %c1_258 = arith.constant 1 : index
    %c0_259 = arith.constant 0 : index
    %338 = vector.load %arg16[%c1_258, %c0_259] : memref<20x16xf32, #tpu.memory_space<vmem>>, vector<1x16xf32>
    %c1_260 = arith.constant 1 : index
    %c0_261 = arith.constant 0 : index
    %c0_262 = arith.constant 0 : index
    %339 = vector.load %arg7[%c1_260, %c0_261, %c0_262] : memref<20x16x128xf32, #tpu.memory_space<vmem>>, vector<1x16x128xf32>
    %340 = vector.shape_cast %339 : vector<1x16x128xf32> to vector<16x128xf32>
    %cst_263 = arith.constant dense<0.000000e+00> : vector<1x128xf32>
    %341 = tpu.matmul %338, %340, %cst_263 {dimension_numbers = #tpu.dot_dimension_numbers<[1], [0], [0], [1], [0, 0, 1, 1], [], []>} : vector<1x16xf32>, vector<16x128xf32>, vector<1x128xf32> -> vector<1x128xf32>
    %342 = arith.addf %337, %341 : vector<1x128xf32>
    %c2_264 = arith.constant 2 : index
    %c0_265 = arith.constant 0 : index
    %343 = vector.load %arg16[%c2_264, %c0_265] : memref<20x16xf32, #tpu.memory_space<vmem>>, vector<1x16xf32>
    %c2_266 = arith.constant 2 : index
    %c0_267 = arith.constant 0 : index
    %c0_268 = arith.constant 0 : index
    %344 = vector.load %arg7[%c2_266, %c0_267, %c0_268] : memref<20x16x128xf32, #tpu.memory_space<vmem>>, vector<1x16x128xf32>
    %345 = vector.shape_cast %344 : vector<1x16x128xf32> to vector<16x128xf32>
    %cst_269 = arith.constant dense<0.000000e+00> : vector<1x128xf32>
    %346 = tpu.matmul %343, %345, %cst_269 {dimension_numbers = #tpu.dot_dimension_numbers<[1], [0], [0], [1], [0, 0, 1, 1], [], []>} : vector<1x16xf32>, vector<16x128xf32>, vector<1x128xf32> -> vector<1x128xf32>
    %347 = arith.addf %342, %346 : vector<1x128xf32>
    %c3_270 = arith.constant 3 : index
    %c0_271 = arith.constant 0 : index
    %348 = vector.load %arg16[%c3_270, %c0_271] : memref<20x16xf32, #tpu.memory_space<vmem>>, vector<1x16xf32>
    %c3_272 = arith.constant 3 : index
    %c0_273 = arith.constant 0 : index
    %c0_274 = arith.constant 0 : index
    %349 = vector.load %arg7[%c3_272, %c0_273, %c0_274] : memref<20x16x128xf32, #tpu.memory_space<vmem>>, vector<1x16x128xf32>
    %350 = vector.shape_cast %349 : vector<1x16x128xf32> to vector<16x128xf32>
    %cst_275 = arith.constant dense<0.000000e+00> : vector<1x128xf32>
    %351 = tpu.matmul %348, %350, %cst_275 {dimension_numbers = #tpu.dot_dimension_numbers<[1], [0], [0], [1], [0, 0, 1, 1], [], []>} : vector<1x16xf32>, vector<16x128xf32>, vector<1x128xf32> -> vector<1x128xf32>
    %352 = arith.addf %347, %351 : vector<1x128xf32>
    %c4_276 = arith.constant 4 : index
    %c0_277 = arith.constant 0 : index
    %353 = vector.load %arg16[%c4_276, %c0_277] : memref<20x16xf32, #tpu.memory_space<vmem>>, vector<1x16xf32>
    %c4_278 = arith.constant 4 : index
    %c0_279 = arith.constant 0 : index
    %c0_280 = arith.constant 0 : index
    %354 = vector.load %arg7[%c4_278, %c0_279, %c0_280] : memref<20x16x128xf32, #tpu.memory_space<vmem>>, vector<1x16x128xf32>
    %355 = vector.shape_cast %354 : vector<1x16x128xf32> to vector<16x128xf32>
    %cst_281 = arith.constant dense<0.000000e+00> : vector<1x128xf32>
    %356 = tpu.matmul %353, %355, %cst_281 {dimension_numbers = #tpu.dot_dimension_numbers<[1], [0], [0], [1], [0, 0, 1, 1], [], []>} : vector<1x16xf32>, vector<16x128xf32>, vector<1x128xf32> -> vector<1x128xf32>
    %357 = arith.addf %352, %356 : vector<1x128xf32>
    %c5_282 = arith.constant 5 : index
    %c0_283 = arith.constant 0 : index
    %358 = vector.load %arg16[%c5_282, %c0_283] : memref<20x16xf32, #tpu.memory_space<vmem>>, vector<1x16xf32>
    %c5_284 = arith.constant 5 : index
    %c0_285 = arith.constant 0 : index
    %c0_286 = arith.constant 0 : index
    %359 = vector.load %arg7[%c5_284, %c0_285, %c0_286] : memref<20x16x128xf32, #tpu.memory_space<vmem>>, vector<1x16x128xf32>
    %360 = vector.shape_cast %359 : vector<1x16x128xf32> to vector<16x128xf32>
    %cst_287 = arith.constant dense<0.000000e+00> : vector<1x128xf32>
    %361 = tpu.matmul %358, %360, %cst_287 {dimension_numbers = #tpu.dot_dimension_numbers<[1], [0], [0], [1], [0, 0, 1, 1], [], []>} : vector<1x16xf32>, vector<16x128xf32>, vector<1x128xf32> -> vector<1x128xf32>
    %362 = arith.addf %357, %361 : vector<1x128xf32>
    %c6_288 = arith.constant 6 : index
    %c0_289 = arith.constant 0 : index
    %363 = vector.load %arg16[%c6_288, %c0_289] : memref<20x16xf32, #tpu.memory_space<vmem>>, vector<1x16xf32>
    %c6_290 = arith.constant 6 : index
    %c0_291 = arith.constant 0 : index
    %c0_292 = arith.constant 0 : index
    %364 = vector.load %arg7[%c6_290, %c0_291, %c0_292] : memref<20x16x128xf32, #tpu.memory_space<vmem>>, vector<1x16x128xf32>
    %365 = vector.shape_cast %364 : vector<1x16x128xf32> to vector<16x128xf32>
    %cst_293 = arith.constant dense<0.000000e+00> : vector<1x128xf32>
    %366 = tpu.matmul %363, %365, %cst_293 {dimension_numbers = #tpu.dot_dimension_numbers<[1], [0], [0], [1], [0, 0, 1, 1], [], []>} : vector<1x16xf32>, vector<16x128xf32>, vector<1x128xf32> -> vector<1x128xf32>
    %367 = arith.addf %362, %366 : vector<1x128xf32>
    %c7_294 = arith.constant 7 : index
    %c0_295 = arith.constant 0 : index
    %368 = vector.load %arg16[%c7_294, %c0_295] : memref<20x16xf32, #tpu.memory_space<vmem>>, vector<1x16xf32>
    %c7_296 = arith.constant 7 : index
    %c0_297 = arith.constant 0 : index
    %c0_298 = arith.constant 0 : index
    %369 = vector.load %arg7[%c7_296, %c0_297, %c0_298] : memref<20x16x128xf32, #tpu.memory_space<vmem>>, vector<1x16x128xf32>
    %370 = vector.shape_cast %369 : vector<1x16x128xf32> to vector<16x128xf32>
    %cst_299 = arith.constant dense<0.000000e+00> : vector<1x128xf32>
    %371 = tpu.matmul %368, %370, %cst_299 {dimension_numbers = #tpu.dot_dimension_numbers<[1], [0], [0], [1], [0, 0, 1, 1], [], []>} : vector<1x16xf32>, vector<16x128xf32>, vector<1x128xf32> -> vector<1x128xf32>
    %372 = arith.addf %367, %371 : vector<1x128xf32>
    %c8_300 = arith.constant 8 : index
    %c0_301 = arith.constant 0 : index
    %373 = vector.load %arg16[%c8_300, %c0_301] : memref<20x16xf32, #tpu.memory_space<vmem>>, vector<1x16xf32>
    %c8_302 = arith.constant 8 : index
    %c0_303 = arith.constant 0 : index
    %c0_304 = arith.constant 0 : index
    %374 = vector.load %arg7[%c8_302, %c0_303, %c0_304] : memref<20x16x128xf32, #tpu.memory_space<vmem>>, vector<1x16x128xf32>
    %375 = vector.shape_cast %374 : vector<1x16x128xf32> to vector<16x128xf32>
    %cst_305 = arith.constant dense<0.000000e+00> : vector<1x128xf32>
    %376 = tpu.matmul %373, %375, %cst_305 {dimension_numbers = #tpu.dot_dimension_numbers<[1], [0], [0], [1], [0, 0, 1, 1], [], []>} : vector<1x16xf32>, vector<16x128xf32>, vector<1x128xf32> -> vector<1x128xf32>
    %377 = arith.addf %372, %376 : vector<1x128xf32>
    %c9_306 = arith.constant 9 : index
    %c0_307 = arith.constant 0 : index
    %378 = vector.load %arg16[%c9_306, %c0_307] : memref<20x16xf32, #tpu.memory_space<vmem>>, vector<1x16xf32>
    %c9_308 = arith.constant 9 : index
    %c0_309 = arith.constant 0 : index
    %c0_310 = arith.constant 0 : index
    %379 = vector.load %arg7[%c9_308, %c0_309, %c0_310] : memref<20x16x128xf32, #tpu.memory_space<vmem>>, vector<1x16x128xf32>
    %380 = vector.shape_cast %379 : vector<1x16x128xf32> to vector<16x128xf32>
    %cst_311 = arith.constant dense<0.000000e+00> : vector<1x128xf32>
    %381 = tpu.matmul %378, %380, %cst_311 {dimension_numbers = #tpu.dot_dimension_numbers<[1], [0], [0], [1], [0, 0, 1, 1], [], []>} : vector<1x16xf32>, vector<16x128xf32>, vector<1x128xf32> -> vector<1x128xf32>
    %382 = arith.addf %377, %381 : vector<1x128xf32>
    %c10_312 = arith.constant 10 : index
    %c0_313 = arith.constant 0 : index
    %383 = vector.load %arg16[%c10_312, %c0_313] : memref<20x16xf32, #tpu.memory_space<vmem>>, vector<1x16xf32>
    %c10_314 = arith.constant 10 : index
    %c0_315 = arith.constant 0 : index
    %c0_316 = arith.constant 0 : index
    %384 = vector.load %arg7[%c10_314, %c0_315, %c0_316] : memref<20x16x128xf32, #tpu.memory_space<vmem>>, vector<1x16x128xf32>
    %385 = vector.shape_cast %384 : vector<1x16x128xf32> to vector<16x128xf32>
    %cst_317 = arith.constant dense<0.000000e+00> : vector<1x128xf32>
    %386 = tpu.matmul %383, %385, %cst_317 {dimension_numbers = #tpu.dot_dimension_numbers<[1], [0], [0], [1], [0, 0, 1, 1], [], []>} : vector<1x16xf32>, vector<16x128xf32>, vector<1x128xf32> -> vector<1x128xf32>
    %387 = arith.addf %382, %386 : vector<1x128xf32>
    %c11_318 = arith.constant 11 : index
    %c0_319 = arith.constant 0 : index
    %388 = vector.load %arg16[%c11_318, %c0_319] : memref<20x16xf32, #tpu.memory_space<vmem>>, vector<1x16xf32>
    %c11_320 = arith.constant 11 : index
    %c0_321 = arith.constant 0 : index
    %c0_322 = arith.constant 0 : index
    %389 = vector.load %arg7[%c11_320, %c0_321, %c0_322] : memref<20x16x128xf32, #tpu.memory_space<vmem>>, vector<1x16x128xf32>
    %390 = vector.shape_cast %389 : vector<1x16x128xf32> to vector<16x128xf32>
    %cst_323 = arith.constant dense<0.000000e+00> : vector<1x128xf32>
    %391 = tpu.matmul %388, %390, %cst_323 {dimension_numbers = #tpu.dot_dimension_numbers<[1], [0], [0], [1], [0, 0, 1, 1], [], []>} : vector<1x16xf32>, vector<16x128xf32>, vector<1x128xf32> -> vector<1x128xf32>
    %392 = arith.addf %387, %391 : vector<1x128xf32>
    %c12_324 = arith.constant 12 : index
    %c0_325 = arith.constant 0 : index
    %393 = vector.load %arg16[%c12_324, %c0_325] : memref<20x16xf32, #tpu.memory_space<vmem>>, vector<1x16xf32>
    %c12_326 = arith.constant 12 : index
    %c0_327 = arith.constant 0 : index
    %c0_328 = arith.constant 0 : index
    %394 = vector.load %arg7[%c12_326, %c0_327, %c0_328] : memref<20x16x128xf32, #tpu.memory_space<vmem>>, vector<1x16x128xf32>
    %395 = vector.shape_cast %394 : vector<1x16x128xf32> to vector<16x128xf32>
    %cst_329 = arith.constant dense<0.000000e+00> : vector<1x128xf32>
    %396 = tpu.matmul %393, %395, %cst_329 {dimension_numbers = #tpu.dot_dimension_numbers<[1], [0], [0], [1], [0, 0, 1, 1], [], []>} : vector<1x16xf32>, vector<16x128xf32>, vector<1x128xf32> -> vector<1x128xf32>
    %397 = arith.addf %392, %396 : vector<1x128xf32>
    %c13_330 = arith.constant 13 : index
    %c0_331 = arith.constant 0 : index
    %398 = vector.load %arg16[%c13_330, %c0_331] : memref<20x16xf32, #tpu.memory_space<vmem>>, vector<1x16xf32>
    %c13_332 = arith.constant 13 : index
    %c0_333 = arith.constant 0 : index
    %c0_334 = arith.constant 0 : index
    %399 = vector.load %arg7[%c13_332, %c0_333, %c0_334] : memref<20x16x128xf32, #tpu.memory_space<vmem>>, vector<1x16x128xf32>
    %400 = vector.shape_cast %399 : vector<1x16x128xf32> to vector<16x128xf32>
    %cst_335 = arith.constant dense<0.000000e+00> : vector<1x128xf32>
    %401 = tpu.matmul %398, %400, %cst_335 {dimension_numbers = #tpu.dot_dimension_numbers<[1], [0], [0], [1], [0, 0, 1, 1], [], []>} : vector<1x16xf32>, vector<16x128xf32>, vector<1x128xf32> -> vector<1x128xf32>
    %402 = arith.addf %397, %401 : vector<1x128xf32>
    %c14_336 = arith.constant 14 : index
    %c0_337 = arith.constant 0 : index
    %403 = vector.load %arg16[%c14_336, %c0_337] : memref<20x16xf32, #tpu.memory_space<vmem>>, vector<1x16xf32>
    %c14_338 = arith.constant 14 : index
    %c0_339 = arith.constant 0 : index
    %c0_340 = arith.constant 0 : index
    %404 = vector.load %arg7[%c14_338, %c0_339, %c0_340] : memref<20x16x128xf32, #tpu.memory_space<vmem>>, vector<1x16x128xf32>
    %405 = vector.shape_cast %404 : vector<1x16x128xf32> to vector<16x128xf32>
    %cst_341 = arith.constant dense<0.000000e+00> : vector<1x128xf32>
    %406 = tpu.matmul %403, %405, %cst_341 {dimension_numbers = #tpu.dot_dimension_numbers<[1], [0], [0], [1], [0, 0, 1, 1], [], []>} : vector<1x16xf32>, vector<16x128xf32>, vector<1x128xf32> -> vector<1x128xf32>
    %407 = arith.addf %402, %406 : vector<1x128xf32>
    %c15_342 = arith.constant 15 : index
    %c0_343 = arith.constant 0 : index
    %408 = vector.load %arg16[%c15_342, %c0_343] : memref<20x16xf32, #tpu.memory_space<vmem>>, vector<1x16xf32>
    %c15_344 = arith.constant 15 : index
    %c0_345 = arith.constant 0 : index
    %c0_346 = arith.constant 0 : index
    %409 = vector.load %arg7[%c15_344, %c0_345, %c0_346] : memref<20x16x128xf32, #tpu.memory_space<vmem>>, vector<1x16x128xf32>
    %410 = vector.shape_cast %409 : vector<1x16x128xf32> to vector<16x128xf32>
    %cst_347 = arith.constant dense<0.000000e+00> : vector<1x128xf32>
    %411 = tpu.matmul %408, %410, %cst_347 {dimension_numbers = #tpu.dot_dimension_numbers<[1], [0], [0], [1], [0, 0, 1, 1], [], []>} : vector<1x16xf32>, vector<16x128xf32>, vector<1x128xf32> -> vector<1x128xf32>
    %412 = arith.addf %407, %411 : vector<1x128xf32>
    %c16_348 = arith.constant 16 : index
    %c0_349 = arith.constant 0 : index
    %413 = vector.load %arg16[%c16_348, %c0_349] : memref<20x16xf32, #tpu.memory_space<vmem>>, vector<1x16xf32>
    %c16_350 = arith.constant 16 : index
    %c0_351 = arith.constant 0 : index
    %c0_352 = arith.constant 0 : index
    %414 = vector.load %arg7[%c16_350, %c0_351, %c0_352] : memref<20x16x128xf32, #tpu.memory_space<vmem>>, vector<1x16x128xf32>
    %415 = vector.shape_cast %414 : vector<1x16x128xf32> to vector<16x128xf32>
    %cst_353 = arith.constant dense<0.000000e+00> : vector<1x128xf32>
    %416 = tpu.matmul %413, %415, %cst_353 {dimension_numbers = #tpu.dot_dimension_numbers<[1], [0], [0], [1], [0, 0, 1, 1], [], []>} : vector<1x16xf32>, vector<16x128xf32>, vector<1x128xf32> -> vector<1x128xf32>
    %417 = arith.addf %412, %416 : vector<1x128xf32>
    %c17_354 = arith.constant 17 : index
    %c0_355 = arith.constant 0 : index
    %418 = vector.load %arg16[%c17_354, %c0_355] : memref<20x16xf32, #tpu.memory_space<vmem>>, vector<1x16xf32>
    %c17_356 = arith.constant 17 : index
    %c0_357 = arith.constant 0 : index
    %c0_358 = arith.constant 0 : index
    %419 = vector.load %arg7[%c17_356, %c0_357, %c0_358] : memref<20x16x128xf32, #tpu.memory_space<vmem>>, vector<1x16x128xf32>
    %420 = vector.shape_cast %419 : vector<1x16x128xf32> to vector<16x128xf32>
    %cst_359 = arith.constant dense<0.000000e+00> : vector<1x128xf32>
    %421 = tpu.matmul %418, %420, %cst_359 {dimension_numbers = #tpu.dot_dimension_numbers<[1], [0], [0], [1], [0, 0, 1, 1], [], []>} : vector<1x16xf32>, vector<16x128xf32>, vector<1x128xf32> -> vector<1x128xf32>
    %422 = arith.addf %417, %421 : vector<1x128xf32>
    %c18_360 = arith.constant 18 : index
    %c0_361 = arith.constant 0 : index
    %423 = vector.load %arg16[%c18_360, %c0_361] : memref<20x16xf32, #tpu.memory_space<vmem>>, vector<1x16xf32>
    %c18_362 = arith.constant 18 : index
    %c0_363 = arith.constant 0 : index
    %c0_364 = arith.constant 0 : index
    %424 = vector.load %arg7[%c18_362, %c0_363, %c0_364] : memref<20x16x128xf32, #tpu.memory_space<vmem>>, vector<1x16x128xf32>
    %425 = vector.shape_cast %424 : vector<1x16x128xf32> to vector<16x128xf32>
    %cst_365 = arith.constant dense<0.000000e+00> : vector<1x128xf32>
    %426 = tpu.matmul %423, %425, %cst_365 {dimension_numbers = #tpu.dot_dimension_numbers<[1], [0], [0], [1], [0, 0, 1, 1], [], []>} : vector<1x16xf32>, vector<16x128xf32>, vector<1x128xf32> -> vector<1x128xf32>
    %427 = arith.addf %422, %426 : vector<1x128xf32>
    %c19_366 = arith.constant 19 : index
    %c0_367 = arith.constant 0 : index
    %428 = vector.load %arg16[%c19_366, %c0_367] : memref<20x16xf32, #tpu.memory_space<vmem>>, vector<1x16xf32>
    %c19_368 = arith.constant 19 : index
    %c0_369 = arith.constant 0 : index
    %c0_370 = arith.constant 0 : index
    %429 = vector.load %arg7[%c19_368, %c0_369, %c0_370] : memref<20x16x128xf32, #tpu.memory_space<vmem>>, vector<1x16x128xf32>
    %430 = vector.shape_cast %429 : vector<1x16x128xf32> to vector<16x128xf32>
    %cst_371 = arith.constant dense<0.000000e+00> : vector<1x128xf32>
    %431 = tpu.matmul %428, %430, %cst_371 {dimension_numbers = #tpu.dot_dimension_numbers<[1], [0], [0], [1], [0, 0, 1, 1], [], []>} : vector<1x16xf32>, vector<16x128xf32>, vector<1x128xf32> -> vector<1x128xf32>
    %432 = arith.addf %427, %431 : vector<1x128xf32>
    %cst_372 = arith.constant 0.000000e+00 : f32
    %433 = vector.broadcast %cst_372 : f32 to vector<1x128xf32>
    %434 = arith.maximumf %432, %433 : vector<1x128xf32>
    %c0_373 = arith.constant 0 : index
    %c0_374 = arith.constant 0 : index
    %c0_375 = arith.constant 0 : index
    %435 = vector.load %arg11[%c0_373, %c0_374, %c0_375] : memref<1x1x128xf32, #tpu.memory_space<vmem>>, vector<1x1x128xf32>
    %436 = vector.shape_cast %435 : vector<1x1x128xf32> to vector<1x128xf32>
    %437 = vector.shape_cast %434 : vector<1x128xf32> to vector<1x1x128xf32>
    tpu.vector_store %arg11[%c0_373, %c0_374, %c0_375], %437 {strides = array<i32>} : memref<1x1x128xf32, #tpu.memory_space<vmem>>, vector<1x1x128xf32>,
    %c0_376 = arith.constant 0 : index
    %c0_377 = arith.constant 0 : index
    %438 = vector.load %arg9[%c0_376, %c0_377] : memref<128x10xf32, #tpu.memory_space<vmem>>, vector<128x10xf32>
    %cst_378 = arith.constant dense<0.000000e+00> : vector<1x10xf32>
    %439 = tpu.matmul %434, %438, %cst_378 {dimension_numbers = #tpu.dot_dimension_numbers<[1], [0], [0], [1], [0, 0, 1, 1], [], []>} : vector<1x128xf32>, vector<128x10xf32>, vector<1x10xf32> -> vector<1x10xf32>
    %c0_379 = arith.constant 0 : index
    %c0_380 = arith.constant 0 : index
    %440 = vector.load %arg10[%c0_379, %c0_380] : memref<1x10xf32, #tpu.memory_space<vmem>>, vector<1x10xf32>
    %441 = arith.addf %439, %440 : vector<1x10xf32>
    %c0_381 = arith.constant 0 : index
    %c0_382 = arith.constant 0 : index
    %c0_383 = arith.constant 0 : index
    %442 = vector.load %arg12[%c0_381, %c0_382, %c0_383] : memref<1x1x10xf32, #tpu.memory_space<vmem>>, vector<1x1x10xf32>
    %443 = vector.shape_cast %442 : vector<1x1x10xf32> to vector<1x10xf32>
    %444 = vector.shape_cast %441 : vector<1x10xf32> to vector<1x1x10xf32>
    tpu.vector_store %arg12[%c0_381, %c0_382, %c0_383], %444 {strides = array<i32>} : memref<1x1x10xf32, #tpu.memory_space<vmem>>, vector<1x1x10xf32>,
    return
  }
  func.func @transform_0(%arg0: i32) -> (i32, i32, i32) {
    %c0_i32 = arith.constant 0 : i32
    %c0_i32_0 = arith.constant 0 : i32
    %c0_i32_1 = arith.constant 0 : i32
    return %arg0, %c0_i32, %c0_i32_0 : i32, i32, i32
  }
  func.func @transform_1(%arg0: i32) -> (i32, i32) {
    %c0_i32 = arith.constant 0 : i32
    %c0_i32_0 = arith.constant 0 : i32
    %c0_i32_1 = arith.constant 0 : i32
    return %c0_i32, %c0_i32_0 : i32, i32
  }
  func.func @transform_2(%arg0: i32) -> (i32, i32) {
    %c0_i32 = arith.constant 0 : i32
    %c0_i32_0 = arith.constant 0 : i32
    %c0_i32_1 = arith.constant 0 : i32
    return %c0_i32, %c0_i32_0 : i32, i32
  }
  func.func @transform_3(%arg0: i32) -> (i32, i32, i32) {
    %c0_i32 = arith.constant 0 : i32
    %c0_i32_0 = arith.constant 0 : i32
    %c0_i32_1 = arith.constant 0 : i32
    %c0_i32_2 = arith.constant 0 : i32
    return %c0_i32, %c0_i32_0, %c0_i32_1 : i32, i32, i32
  }
  func.func @transform_4(%arg0: i32) -> (i32, i32) {
    %c0_i32 = arith.constant 0 : i32
    %c0_i32_0 = arith.constant 0 : i32
    %c0_i32_1 = arith.constant 0 : i32
    return %c0_i32, %c0_i32_0 : i32, i32
  }
  func.func @transform_5(%arg0: i32) -> (i32, i32) {
    %c0_i32 = arith.constant 0 : i32
    %c0_i32_0 = arith.constant 0 : i32
    %c0_i32_1 = arith.constant 0 : i32
    return %c0_i32, %c0_i32_0 : i32, i32
  }
  func.func @transform_6(%arg0: i32) -> (i32, i32, i32) {
    %c0_i32 = arith.constant 0 : i32
    %c0_i32_0 = arith.constant 0 : i32
    %c0_i32_1 = arith.constant 0 : i32
    %c0_i32_2 = arith.constant 0 : i32
    return %c0_i32, %c0_i32_0, %c0_i32_1 : i32, i32, i32
  }
  func.func @transform_7(%arg0: i32) -> (i32, i32) {
    %c0_i32 = arith.constant 0 : i32
    %c0_i32_0 = arith.constant 0 : i32
    %c0_i32_1 = arith.constant 0 : i32
    return %c0_i32, %c0_i32_0 : i32, i32
  }
  func.func @transform_8(%arg0: i32) -> (i32, i32) {
    %c0_i32 = arith.constant 0 : i32
    %c0_i32_0 = arith.constant 0 : i32
    %c0_i32_1 = arith.constant 0 : i32
    return %c0_i32, %c0_i32_0 : i32, i32
  }
  func.func @transform_9(%arg0: i32) -> (i32, i32) {
    %c0_i32 = arith.constant 0 : i32
    %c0_i32_0 = arith.constant 0 : i32
    %c0_i32_1 = arith.constant 0 : i32
    return %c0_i32, %c0_i32_0 : i32, i32
  }
  func.func @transform_10(%arg0: i32) -> (i32, i32, i32) {
    %c0_i32 = arith.constant 0 : i32
    %c0_i32_0 = arith.constant 0 : i32
    %c0_i32_1 = arith.constant 0 : i32
    return %arg0, %c0_i32, %c0_i32_0 : i32, i32, i32
  }
  func.func @transform_11(%arg0: i32) -> (i32, i32, i32) {
    %c0_i32 = arith.constant 0 : i32
    %c0_i32_0 = arith.constant 0 : i32
    %c0_i32_1 = arith.constant 0 : i32
    return %arg0, %c0_i32, %c0_i32_0 : i32, i32, i32
  }
}

</mosaic_0001>

<llo_original>
// kernel: net_forward.1
$region0: #{net_forward.1}
  #allocation0 [shape = 'u32[]', space=smem, size = 0x4, offset = 0x4, fixed_abs, tag = 'smem constant byte address 0x4 - core index']
  #allocation1 [shape = 'u32[144,128]{1,0:T(1,128)}', space=vmem, size = 0x12000, scoped, tag = 'internal scratch']
  #allocation2 [shape = 'f32[10,668]{1,0:T(8,128)}', space=vmem, size = 0xc000, scoped, tag = 'scratch operand']
  #allocation3 [shape = 'f32[10,639]{1,0:T(8,128)}', space=vmem, size = 0xa000, scoped, tag = 'scratch operand']
  #allocation4 [shape = 'f32[20,407]{1,0:T(8,128)}', space=vmem, size = 0xc000, scoped, tag = 'scratch operand']
  #allocation5 [shape = 'f32[20,16]{1,0:T(8,128)}', space=vmem, size = 0x3000, scoped, tag = 'scratch operand']
  %s0 = inlined_call_operand.vmem [shape: f32[2,1,784], index: 0, kind: input, shape index: {}]
  %s1 = inlined_call_operand.vmem [shape: f32[10,25], index: 1, kind: input, shape index: {}]
  %s2 = inlined_call_operand.vmem [shape: f32[10,1], index: 2, kind: input, shape index: {}]
  %s3 = inlined_call_operand.vmem [shape: f32[25,20,10], index: 3, kind: input, shape index: {}]
  %s4 = inlined_call_operand.vmem [shape: f32[20,1], index: 4, kind: input, shape index: {}]
  %s5 = inlined_call_operand.vmem [shape: f32[349,16], index: 5, kind: input, shape index: {}]
  %s6 = inlined_call_operand.vmem [shape: f32[20,16,128], index: 6, kind: input, shape index: {}]
  %s7 = inlined_call_operand.vmem [shape: f32[1,128], index: 7, kind: input, shape index: {}]
  %s8 = inlined_call_operand.vmem [shape: f32[128,10], index: 8, kind: input, shape index: {}]
  %s9 = inlined_call_operand.vmem [shape: f32[1,10], index: 9, kind: input, shape index: {}]
  %s10 = inlined_call_operand.hbm [shape: f32[2,1,128], index: 10, kind: output, shape index: {0}]
  %s11 = inlined_call_operand.hbm [shape: f32[2,1,10], index: 11, kind: output, shape index: {1}]
  %12 = xla_tuple %s10, %s11
  %s13 = sld [smem:[#allocation0]]
  $region81: #{net_forward.1} parent=0
    _
  %s15 = ssub.s32 1, %s13
  %s16 = scalar_select 0, %s15, %s13
  $region1: #{net_forward.1} parent=0
    #allocation6 [shape = 'u8[1024]{0}', space=vmem, size = 0x400, scoped, tag = 'output window, operand 0']
    #allocation7 [shape = 's32[2]{0}', space=sflag, size = 0x8, scoped, tag = 'scoped memory for net_forward.1']
    #allocation8 [shape = 'u8[1024]{0}', space=vmem, size = 0x400, scoped, tag = 'output window, operand 1']
    #allocation9 [shape = 's32[2]{0}', space=sflag, size = 0x8, scoped, tag = 'scoped memory for net_forward.1']
    %17 = vsyncpa [#allocation7], 0
    %s18 = scalar_lea.sflag [#allocation7], 1
    %19 = vsyncpa %s18, 0
    %20 = vsyncpa [#allocation9], 0
    %s21 = scalar_lea.sflag [#allocation9], 1
    %22 = vsyncpa %s21, 0
    loop: start=0, step=1, limit=4
    $region2: #{net_forward.1} parent=1 // loop_pre_header
      _
    $region3: #{net_forward.1} parent=1 // loop_header
      %s24 = sphi 0, %s28
      %p25 = scmp.ge.s32.totalorder %s24, 4
      %s34 = sphi 0, %s36
      %s37 = sphi 0, %s34
      %s38 = sphi 0, %s37
      %s54 = sphi 0, %s38
      %s58 = sphi 0, %s58
      %s60 = sphi 0, %s58
      %s61 = sphi 0, %s60
      %s75 = sphi 0, %s61
      %s79 = sphi 0, %s79
      %s81 = sphi 0, %s79
      %s82 = sphi 0, %s81
      %s96 = sphi 0, %s82
      %s100 = sphi 0, %s100
      %s102 = sphi 0, %s100
      %s103 = sphi 0, %s102
      %s117 = sphi 0, %s103
      %s121 = sphi 0, %s121
      %s123 = sphi 0, %s121
      %s124 = sphi 0, %s123
      %s138 = sphi 0, %s124
      %s142 = sphi 0, %s142
      %s144 = sphi 0, %s142
      %s145 = sphi 0, %s144
      %s159 = sphi 0, %s145
      %s163 = sphi 0, %s163
      %s165 = sphi 0, %s163
      %s166 = sphi 0, %s165
      %s180 = sphi 0, %s166
      %s184 = sphi 0, %s184
      %s186 = sphi 0, %s184
      %s187 = sphi 0, %s186
      %s201 = sphi 0, %s187
      %s205 = sphi 0, %s205
      %s207 = sphi 0, %s205
      %s208 = sphi 0, %s207
      %s222 = sphi 0, %s208
      %s226 = sphi 0, %s226
      %s228 = sphi 0, %s226
      %s229 = sphi 0, %s228
      %s243 = sphi 0, %s229
      %s249 = sphi 0, %s251
      %s252 = sphi 0, %s249
      %s253 = sphi 0, %s252
      %s269 = sphi 0, %s253
      %s275 = sphi 0, %s277
      %s278 = sphi 0, %s275
      %s279 = sphi 0, %s278
      %s295 = sphi 0, %s279
    $region4: #{net_forward.1} parent=1 // loop_header_branch
      %27 = sbr.rel (%p25) target = $region8
    $region5: #{net_forward.1} parent=1 // loop_body
      %s29 = ssub.s32 %s24, 1
      %s30 = ssub.s32 %s24, 2
      %s31 = sadd.s32 %s24, 1
      %s32 = ssub.s32 %s24, %s31
      %p33 = scmp.eq.s32.totalorder %s32, 0
      %s35 = sadd.s32 %s34, 1
      %s36 = scalar_select %p33, %s34, %s35
      %p39 = pneg %p33
      %p40 = scmp.eq.s32.totalorder %s24, 1
      %p41 = por %p39, %p40
      %p42 = scmp.ne.s32.totalorder %s34, %s37
      %p43 = scmp.eq.s32.totalorder %s24, 0
      %p44 = por %p42, %p43
      %p45 = scmp.ne.s32.totalorder %s34, %s37
      %p46 = scmp.eq.s32.totalorder %s29, 1
      %p47 = por %p45, %p46
      %p48 = scmp.ne.s32.totalorder %s37, %s38
      %p49 = scmp.eq.s32.totalorder %s29, 0
      %p50 = por %p48, %p49
      %p51 = scmp.ne.s32.totalorder %s37, %s38
      %p52 = scmp.eq.s32.totalorder %s30, 1
      %p53 = por %p51, %p52
      %p55 = scmp.ne.s32.totalorder %s38, %s54
      %p56 = scmp.eq.s32.totalorder %s30, 0
      %p57 = por %p55, %p56
      %s59 = sadd.s32 %s58, 1
      %p62 = scmp.eq.s32.totalorder %s24, 1
      %p63 = scmp.ne.s32.totalorder %s58, %s60
      %p64 = scmp.eq.s32.totalorder %s24, 0
      %p65 = por %p63, %p64
      %p66 = scmp.ne.s32.totalorder %s58, %s60
      %p67 = scmp.eq.s32.totalorder %s29, 1
      %p68 = por %p66, %p67
      %p69 = scmp.ne.s32.totalorder %s60, %s61
      %p70 = scmp.eq.s32.totalorder %s29, 0
      %p71 = por %p69, %p70
      %p72 = scmp.ne.s32.totalorder %s60, %s61
      %p73 = scmp.eq.s32.totalorder %s30, 1
      %p74 = por %p72, %p73
      %p76 = scmp.ne.s32.totalorder %s61, %s75
      %p77 = scmp.eq.s32.totalorder %s30, 0
      %p78 = por %p76, %p77
      %s80 = sadd.s32 %s79, 1
      %p83 = scmp.eq.s32.totalorder %s24, 1
      %p84 = scmp.ne.s32.totalorder %s79, %s81
      %p85 = scmp.eq.s32.totalorder %s24, 0
      %p86 = por %p84, %p85
      %p87 = scmp.ne.s32.totalorder %s79, %s81
      %p88 = scmp.eq.s32.totalorder %s29, 1
      %p89 = por %p87, %p88
      %p90 = scmp.ne.s32.totalorder %s81, %s82
      %p91 = scmp.eq.s32.totalorder %s29, 0
      %p92 = por %p90, %p91
      %p93 = scmp.ne.s32.totalorder %s81, %s82
      %p94 = scmp.eq.s32.totalorder %s30, 1
      %p95 = por %p93, %p94
      %p97 = scmp.ne.s32.totalorder %s82, %s96
      %p98 = scmp.eq.s32.totalorder %s30, 0
      %p99 = por %p97, %p98
      %s101 = sadd.s32 %s100, 1
      %p104 = scmp.eq.s32.totalorder %s24, 1
      %p105 = scmp.ne.s32.totalorder %s100, %s102
      %p106 = scmp.eq.s32.totalorder %s24, 0
      %p107 = por %p105, %p106
      %p108 = scmp.ne.s32.totalorder %s100, %s102
      %p109 = scmp.eq.s32.totalorder %s29, 1
      %p110 = por %p108, %p109
      %p111 = scmp.ne.s32.totalorder %s102, %s103
      %p112 = scmp.eq.s32.totalorder %s29, 0
      %p113 = por %p111, %p112
      %p114 = scmp.ne.s32.totalorder %s102, %s103
      %p115 = scmp.eq.s32.totalorder %s30, 1
      %p116 = por %p114, %p115
      %p118 = scmp.ne.s32.totalorder %s103, %s117
      %p119 = scmp.eq.s32.totalorder %s30, 0
      %p120 = por %p118, %p119
      %s122 = sadd.s32 %s121, 1
      %p125 = scmp.eq.s32.totalorder %s24, 1
      %p126 = scmp.ne.s32.totalorder %s121, %s123
      %p127 = scmp.eq.s32.totalorder %s24, 0
      %p128 = por %p126, %p127
      %p129 = scmp.ne.s32.totalorder %s121, %s123
      %p130 = scmp.eq.s32.totalorder %s29, 1
      %p131 = por %p129, %p130
      %p132 = scmp.ne.s32.totalorder %s123, %s124
      %p133 = scmp.eq.s32.totalorder %s29, 0
      %p134 = por %p132, %p133
      %p135 = scmp.ne.s32.totalorder %s123, %s124
      %p136 = scmp.eq.s32.totalorder %s30, 1
      %p137 = por %p135, %p136
      %p139 = scmp.ne.s32.totalorder %s124, %s138
      %p140 = scmp.eq.s32.totalorder %s30, 0
      %p141 = por %p139, %p140
      %s143 = sadd.s32 %s142, 1
      %p146 = scmp.eq.s32.totalorder %s24, 1
      %p147 = scmp.ne.s32.totalorder %s142, %s144
      %p148 = scmp.eq.s32.totalorder %s24, 0
      %p149 = por %p147, %p148
      %p150 = scmp.ne.s32.totalorder %s142, %s144
      %p151 = scmp.eq.s32.totalorder %s29, 1
      %p152 = por %p150, %p151
      %p153 = scmp.ne.s32.totalorder %s144, %s145
      %p154 = scmp.eq.s32.totalorder %s29, 0
      %p155 = por %p153, %p154
      %p156 = scmp.ne.s32.totalorder %s144, %s145
      %p157 = scmp.eq.s32.totalorder %s30, 1
      %p158 = por %p156, %p157
      %p160 = scmp.ne.s32.totalorder %s145, %s159
      %p161 = scmp.eq.s32.totalorder %s30, 0
      %p162 = por %p160, %p161
      %s164 = sadd.s32 %s163, 1
      %p167 = scmp.eq.s32.totalorder %s24, 1
      %p168 = scmp.ne.s32.totalorder %s163, %s165
      %p169 = scmp.eq.s32.totalorder %s24, 0
      %p170 = por %p168, %p169
      %p171 = scmp.ne.s32.totalorder %s163, %s165
      %p172 = scmp.eq.s32.totalorder %s29, 1
      %p173 = por %p171, %p172
      %p174 = scmp.ne.s32.totalorder %s165, %s166
      %p175 = scmp.eq.s32.totalorder %s29, 0
      %p176 = por %p174, %p175
      %p177 = scmp.ne.s32.totalorder %s165, %s166
      %p178 = scmp.eq.s32.totalorder %s30, 1
      %p179 = por %p177, %p178
      %p181 = scmp.ne.s32.totalorder %s166, %s180
      %p182 = scmp.eq.s32.totalorder %s30, 0
      %p183 = por %p181, %p182
      %s185 = sadd.s32 %s184, 1
      %p188 = scmp.eq.s32.totalorder %s24, 1
      %p189 = scmp.ne.s32.totalorder %s184, %s186
      %p190 = scmp.eq.s32.totalorder %s24, 0
      %p191 = por %p189, %p190
      %p192 = scmp.ne.s32.totalorder %s184, %s186
      %p193 = scmp.eq.s32.totalorder %s29, 1
      %p194 = por %p192, %p193
      %p195 = scmp.ne.s32.totalorder %s186, %s187
      %p196 = scmp.eq.s32.totalorder %s29, 0
      %p197 = por %p195, %p196
      %p198 = scmp.ne.s32.totalorder %s186, %s187
      %p199 = scmp.eq.s32.totalorder %s30, 1
      %p200 = por %p198, %p199
      %p202 = scmp.ne.s32.totalorder %s187, %s201
      %p203 = scmp.eq.s32.totalorder %s30, 0
      %p204 = por %p202, %p203
      %s206 = sadd.s32 %s205, 1
      %p209 = scmp.eq.s32.totalorder %s24, 1
      %p210 = scmp.ne.s32.totalorder %s205, %s207
      %p211 = scmp.eq.s32.totalorder %s24, 0
      %p212 = por %p210, %p211
      %p213 = scmp.ne.s32.totalorder %s205, %s207
      %p214 = scmp.eq.s32.totalorder %s29, 1
      %p215 = por %p213, %p214
      %p216 = scmp.ne.s32.totalorder %s207, %s208
      %p217 = scmp.eq.s32.totalorder %s29, 0
      %p218 = por %p216, %p217
      %p219 = scmp.ne.s32.totalorder %s207, %s208
      %p220 = scmp.eq.s32.totalorder %s30, 1
      %p221 = por %p219, %p220
      %p223 = scmp.ne.s32.totalorder %s208, %s222
      %p224 = scmp.eq.s32.totalorder %s30, 0
      %p225 = por %p223, %p224
      %s227 = sadd.s32 %s226, 1
      %p230 = scmp.eq.s32.totalorder %s24, 1
      %p231 = scmp.ne.s32.totalorder %s226, %s228
      %p232 = scmp.eq.s32.totalorder %s24, 0
      %p233 = por %p231, %p232
      %p234 = scmp.ne.s32.totalorder %s226, %s228
      %p235 = scmp.eq.s32.totalorder %s29, 1
      %p236 = por %p234, %p235
      %p237 = scmp.ne.s32.totalorder %s228, %s229
      %p238 = scmp.eq.s32.totalorder %s29, 0
      %p239 = por %p237, %p238
      %p240 = scmp.ne.s32.totalorder %s228, %s229
      %p241 = scmp.eq.s32.totalorder %s30, 1
      %p242 = por %p240, %p241
      %p244 = scmp.ne.s32.totalorder %s229, %s243
      %p245 = scmp.eq.s32.totalorder %s30, 0
      %p246 = por %p244, %p245
      %s247 = ssub.s32 %s24, %s31
      %p248 = scmp.eq.s32.totalorder %s247, 0
      %s250 = sadd.s32 %s249, 1
      %s251 = scalar_select %p248, %s249, %s250
      %p254 = pneg %p248
      %p255 = scmp.eq.s32.totalorder %s24, 1
      %p256 = por %p254, %p255
      %p257 = scmp.ne.s32.totalorder %s249, %s252
      %p258 = scmp.eq.s32.totalorder %s24, 0
      %p259 = por %p257, %p258
      %p260 = scmp.ne.s32.totalorder %s249, %s252
      %p261 = scmp.eq.s32.totalorder %s29, 1
      %p262 = por %p260, %p261
      %p263 = scmp.ne.s32.totalorder %s252, %s253
      %p264 = scmp.eq.s32.totalorder %s29, 0
      %p265 = por %p263, %p264
      %p266 = scmp.ne.s32.totalorder %s252, %s253
      %p267 = scmp.eq.s32.totalorder %s30, 1
      %p268 = por %p266, %p267
      %p270 = scmp.ne.s32.totalorder %s253, %s269
      %p271 = scmp.eq.s32.totalorder %s30, 0
      %p272 = por %p270, %p271
      %s273 = ssub.s32 %s24, %s31
      %p274 = scmp.eq.s32.totalorder %s273, 0
      %s276 = sadd.s32 %s275, 1
      %s277 = scalar_select %p274, %s275, %s276
      %p280 = pneg %p274
      %p281 = scmp.eq.s32.totalorder %s24, 1
      %p282 = por %p280, %p281
      %p283 = scmp.ne.s32.totalorder %s275, %s278
      %p284 = scmp.eq.s32.totalorder %s24, 0
      %p285 = por %p283, %p284
      %p286 = scmp.ne.s32.totalorder %s275, %s278
      %p287 = scmp.eq.s32.totalorder %s29, 1
      %p288 = por %p286, %p287
      %p289 = scmp.ne.s32.totalorder %s278, %s279
      %p290 = scmp.eq.s32.totalorder %s29, 0
      %p291 = por %p289, %p290
      %p292 = scmp.ne.s32.totalorder %s278, %s279
      %p293 = scmp.eq.s32.totalorder %s30, 1
      %p294 = por %p292, %p293
      %p296 = scmp.ne.s32.totalorder %s279, %s295
      %p297 = scmp.eq.s32.totalorder %s30, 0
      %p298 = por %p296, %p297
      %p299 = scmp.le.s32.totalorder 1, %s24
      %p300 = scmp.lt.s32.totalorder %s24, 3
      %p301 = pnand %p299, %p300
      %p302 = pneg %p301
      // Predicated region
      $region9: #{net_forward.1} parent=5 // pred_check
        _
      $region10: #{net_forward.1} parent=5 // pred_check_branch
        %304 = sbr.rel (%p301) target = $region12
      $region11: #{net_forward.1} parent=5 // pred_region
        %s305 = ssub.s32 %s24, 1
        // Predicated region
        $region13: #{net_forward.1} parent=11 // pred_check
          %p306 = pneg %p71
        $region14: #{net_forward.1} parent=11 // pred_check_branch
          %308 = sbr.rel (%p306) target = $region16
        $region15: #{net_forward.1} parent=11 // pred_region
          _
        $region16: #{net_forward.1} parent=11 // pred_fallthru
          _
        // Predicated region
        $region17: #{net_forward.1} parent=11 // pred_check
          %p309 = pneg %p92
        $region18: #{net_forward.1} parent=11 // pred_check_branch
          %311 = sbr.rel (%p309) target = $region20
        $region19: #{net_forward.1} parent=11 // pred_region
          _
        $region20: #{net_forward.1} parent=11 // pred_fallthru
          _
        // Predicated region
        $region21: #{net_forward.1} parent=11 // pred_check
          %p312 = pneg %p113
        $region22: #{net_forward.1} parent=11 // pred_check_branch
          %314 = sbr.rel (%p312) target = $region24
        $region23: #{net_forward.1} parent=11 // pred_region
          _
        $region24: #{net_forward.1} parent=11 // pred_fallthru
          _
        // Predicated region
        $region25: #{net_forward.1} parent=11 // pred_check
          %p315 = pneg %p134
        $region26: #{net_forward.1} parent=11 // pred_check_branch
          %317 = sbr.rel (%p315) target = $region28
        $region27: #{net_forward.1} parent=11 // pred_region
          _
        $region28: #{net_forward.1} parent=11 // pred_fallthru
          _
        // Predicated region
        $region29: #{net_forward.1} parent=11 // pred_check
          %p318 = pneg %p155
        $region30: #{net_forward.1} parent=11 // pred_check_branch
          %320 = sbr.rel (%p318) target = $region32
        $region31: #{net_forward.1} parent=11 // pred_region
          _
        $region32: #{net_forward.1} parent=11 // pred_fallthru
          _
        // Predicated region
        $region33: #{net_forward.1} parent=11 // pred_check
          %p321 = pneg %p176
        $region34: #{net_forward.1} parent=11 // pred_check_branch
          %323 = sbr.rel (%p321) target = $region36
        $region35: #{net_forward.1} parent=11 // pred_region
          _
        $region36: #{net_forward.1} parent=11 // pred_fallthru
          _
        // Predicated region
        $region37: #{net_forward.1} parent=11 // pred_check
          %p324 = pneg %p197
        $region38: #{net_forward.1} parent=11 // pred_check_branch
          %326 = sbr.rel (%p324) target = $region40
        $region39: #{net_forward.1} parent=11 // pred_region
          _
        $region40: #{net_forward.1} parent=11 // pred_fallthru
          _
        // Predicated region
        $region41: #{net_forward.1} parent=11 // pred_check
          %p327 = pneg %p218
        $region42: #{net_forward.1} parent=11 // pred_check_branch
          %329 = sbr.rel (%p327) target = $region44
        $region43: #{net_forward.1} parent=11 // pred_region
          _
        $region44: #{net_forward.1} parent=11 // pred_fallthru
          _
        // Predicated region
        $region45: #{net_forward.1} parent=11 // pred_check
          %p330 = pneg %p239
        $region46: #{net_forward.1} parent=11 // pred_check_branch
          %332 = sbr.rel (%p330) target = $region48
        $region47: #{net_forward.1} parent=11 // pred_region
          _
        $region48: #{net_forward.1} parent=11 // pred_fallthru
          _
      $region12: #{net_forward.1} parent=5 // pred_fallthru
        _
      %p333 = scmp.lt.s32.totalorder %s24, 2
      // Predicated region
      $region49: #{net_forward.1} parent=5 // pred_check
        %p334 = pneg %p333
      $region50: #{net_forward.1} parent=5 // pred_check_branch
        %336 = sbr.rel (%p334) target = $region52
      $region51: #{net_forward.1} parent=5 // pred_region
        // Predicated region
        $region53: #{net_forward.1} parent=51 // pred_check
          %p337 = pneg %p44
        $region54: #{net_forward.1} parent=51 // pred_check_branch
          %339 = sbr.rel (%p337) target = $region56
        $region55: #{net_forward.1} parent=51 // pred_region
          %p340 = scmp.lt.s32.totalorder %s24, 1
          %s341 = scalar_select %p340, %s24, 1
          %s342 = smul.addr %s341, 7
          %s343 = scalar_lea.vmem %s0, %s342
        $region56: #{net_forward.1} parent=51 // pred_fallthru
          _
      $region52: #{net_forward.1} parent=5 // pred_fallthru
        _
      %p344 = scmp.le.s32.totalorder 1, %s24
      %p345 = scmp.lt.s32.totalorder %s24, 3
      %p346 = pnand %p344, %p345
      %p347 = pneg %p346
      // Predicated region
      $region57: #{net_forward.1} parent=5 // pred_check
        _
      $region58: #{net_forward.1} parent=5 // pred_check_branch
        %349 = sbr.rel (%p346) target = $region60
      $region59: #{net_forward.1} parent=5 // pred_region
        %s350 = ssub.s32 %s24, 1
        %p351 = scmp.lt.s32.totalorder %s29, 1
        %s352 = scalar_select %p351, %s29, 1
        %s353 = smul.addr %s352, 7
        %s354 = scalar_lea.vmem %s0, %s353
        %p355 = pneg %p50
        %p356 = pneg %p47
        %p357 = pneg %p71
        %p358 = pneg %p68
        %p359 = pneg %p92
        %p360 = pneg %p89
        %p361 = pneg %p113
        %p362 = pneg %p110
        %p363 = pneg %p134
        %p364 = pneg %p131
        %p365 = pneg %p155
        %p366 = pneg %p152
        %p367 = pneg %p176
        %p368 = pneg %p173
        %p369 = pneg %p197
        %p370 = pneg %p194
        %p371 = pneg %p218
        %p372 = pneg %p215
        %p373 = pneg %p239
        %p374 = pneg %p236
        %p375 = pneg %p265
        %p376 = pneg %p262
        %s377 = sand.u32 %s252, 1
        %s378 = scalar_lea.sflag [#allocation7], %s377
        %s379 = sand.u32 %s252, 1
        %s380 = scalar_lea.vmem [#allocation6], %s379
        %p381 = pneg %p291
        %p382 = pneg %p288
        %s383 = sand.u32 %s278, 1
        %s384 = scalar_lea.sflag [#allocation9], %s383
        %s385 = sand.u32 %s278, 1
        %s386 = scalar_lea.vmem [#allocation8], %s385
        %p387 = scmp.lt.s32.totalorder %s29, 1
        %s388 = scalar_select %p387, %s29, 1
        %s389 = smul.addr %s388, 7
        %s390 = scalar_lea.vmem %s0, %s389
        %v391 = vld [vmem:[%s1] sm:$0xff]
        %v392 = vld [vmem:[%s1 + $0x8] sm:$0x3]
        %v393 = vld [vmem:[%s390] sm:$0x3f]
        %395 = vset.pattern.permute.xlu0 0
        %396 = vperm.xlu0 %395, %v391
        %v397 = vpop.permute.xlu0 %396
        %400 = vset.pattern.permute.xlu0 0
        %401 = vperm.xlu0 %400, %v392
        %v402 = vpop.permute.xlu0 %401
        %v405 = vlaneseq
        %v406 = vshrl.u32 %v405, 7
        %v407 = vsub.s32 0, %v406
        %v408 = vrot.slane %v393, %v407
        %v409 = vlaneseq
        %v410 = vshrl.u32 %v409, 7
        %v411 = vsub.s32 1, %v410
        %v412 = vrot.slane %v393, %v411
        %v413 = vlaneseq
        %v414 = vshrl.u32 %v413, 7
        %v415 = vsub.s32 2, %v414
        %v416 = vrot.slane %v393, %v415
        %v417 = vlaneseq
        %v418 = vshrl.u32 %v417, 7
        %v419 = vsub.s32 3, %v418
        %v420 = vrot.slane %v393, %v419
        %v421 = vlaneseq
        %v422 = vshrl.u32 %v421, 7
        %v423 = vsub.s32 4, %v422
        %v424 = vrot.slane %v393, %v423
        %v425 = vlaneseq
        %v426 = vshrl.u32 %v425, 7
        %v427 = vsub.s32 5, %v426
        %v428 = vrot.slane %v393, %v427
        %v435 = vmul.f32 %v397, %v408
        %v436 = vmul.f32 %v397, %v412
        %v437 = vmul.f32 %v397, %v416
        %v438 = vmul.f32 %v397, %v420
        %v439 = vmul.f32 %v397, %v424
        %v440 = vmul.f32 %v397, %v428
        %v441 = vmul.f32 %v402, %v408
        %v442 = vmul.f32 %v402, %v412
        %v443 = vmul.f32 %v402, %v416
        %v444 = vmul.f32 %v402, %v420
        %v445 = vmul.f32 %v402, %v424
        %v446 = vmul.f32 %v402, %v428
        %v447 = vadd.f32 %v435, 0.0
        %v448 = vadd.f32 %v436, 0.0
        %v449 = vadd.f32 %v437, 0.0
        %v450 = vadd.f32 %v438, 0.0
        %v451 = vadd.f32 %v439, 0.0
        %v452 = vadd.f32 %v440, 0.0
        %v453 = vadd.f32 %v441, 0.0
        %v454 = vadd.f32 %v442, 0.0
        %v455 = vadd.f32 %v443, 0.0
        %v456 = vadd.f32 %v444, 0.0
        %v457 = vadd.f32 %v445, 0.0
        %v458 = vadd.f32 %v446, 0.0
        %459 = vset.pattern.permute.xlu0 1
        %460 = vperm.xlu0 %459, %v391
        %v461 = vpop.permute.xlu0 %460
        %463 = vset.pattern.permute.xlu0 1
        %464 = vperm.xlu0 %463, %v392
        %v465 = vpop.permute.xlu0 %464
        %v467 = vmul.f32 %v461, %v408
        %v468 = vmul.f32 %v461, %v412
        %v469 = vmul.f32 %v461, %v416
        %v470 = vmul.f32 %v461, %v420
        %v471 = vmul.f32 %v461, %v424
        %v472 = vmul.f32 %v461, %v428
        %v473 = vmul.f32 %v465, %v408
        %v474 = vmul.f32 %v465, %v412
        %v475 = vmul.f32 %v465, %v416
        %v476 = vmul.f32 %v465, %v420
        %v477 = vmul.f32 %v465, %v424
        %v478 = vmul.f32 %v465, %v428
        %491 = vrot.lane.b32.xlu0 %v467, 127
        %v492 = vpop.permute.xlu0 %491
        %493 = vrot.lane.b32.xlu0 %v468, 127
        %v494 = vpop.permute.xlu0 %493
        %495 = vrot.lane.b32.xlu0 %v469, 127
        %v496 = vpop.permute.xlu0 %495
        %497 = vrot.lane.b32.xlu0 %v470, 127
        %v498 = vpop.permute.xlu0 %497
        %499 = vrot.lane.b32.xlu0 %v471, 127
        %v500 = vpop.permute.xlu0 %499
        %501 = vrot.lane.b32.xlu0 %v472, 127
        %v502 = vpop.permute.xlu0 %501
        %503 = vrot.lane.b32.xlu0 %v473, 127
        %v504 = vpop.permute.xlu0 %503
        %505 = vrot.lane.b32.xlu0 %v474, 127
        %v506 = vpop.permute.xlu0 %505
        %507 = vrot.lane.b32.xlu0 %v475, 127
        %v508 = vpop.permute.xlu0 %507
        %509 = vrot.lane.b32.xlu0 %v476, 127
        %v510 = vpop.permute.xlu0 %509
        %511 = vrot.lane.b32.xlu0 %v477, 127
        %v512 = vpop.permute.xlu0 %511
        %513 = vrot.lane.b32.xlu0 %v478, 127
        %v514 = vpop.permute.xlu0 %513
        %vm515 = vcmask 1039360
        %v516 = vsel %vm515, %v492, %v494
        %v517 = vsel %vm515, %v494, %v496
        %v518 = vsel %vm515, %v496, %v498
        %v519 = vsel %vm515, %v498, %v500
        %v520 = vsel %vm515, %v500, %v502
        %v521 = vsel %vm515, %v504, %v506
        %v522 = vsel %vm515, %v506, %v508
        %v523 = vsel %vm515, %v508, %v510
        %v524 = vsel %vm515, %v510, %v512
        %v525 = vsel %vm515, %v512, %v514
        %v538 = vadd.f32 %v447, %v516
        %v539 = vadd.f32 %v448, %v517
        %v540 = vadd.f32 %v449, %v518
        %v541 = vadd.f32 %v450, %v519
        %v542 = vadd.f32 %v451, %v520
        %v543 = vadd.f32 %v452, %v502
        %v544 = vadd.f32 %v453, %v521
        %v545 = vadd.f32 %v454, %v522
        %v546 = vadd.f32 %v455, %v523
        %v547 = vadd.f32 %v456, %v524
        %v548 = vadd.f32 %v457, %v525
        %v549 = vadd.f32 %v458, %v514
        %550 = vset.pattern.permute.xlu0 2
        %551 = vperm.xlu0 %550, %v391
        %v552 = vpop.permute.xlu0 %551
        %554 = vset.pattern.permute.xlu0 2
        %555 = vperm.xlu0 %554, %v392
        %v556 = vpop.permute.xlu0 %555
        %v558 = vmul.f32 %v552, %v408
        %v559 = vmul.f32 %v552, %v412
        %v560 = vmul.f32 %v552, %v416
        %v561 = vmul.f32 %v552, %v420
        %v562 = vmul.f32 %v552, %v424
        %v563 = vmul.f32 %v552, %v428
        %v564 = vmul.f32 %v556, %v408
        %v565 = vmul.f32 %v556, %v412
        %v566 = vmul.f32 %v556, %v416
        %v567 = vmul.f32 %v556, %v420
        %v568 = vmul.f32 %v556, %v424
        %v569 = vmul.f32 %v556, %v428
        %582 = vrot.lane.b32.xlu0 %v558, 126
        %v583 = vpop.permute.xlu0 %582
        %584 = vrot.lane.b32.xlu0 %v559, 126
        %v585 = vpop.permute.xlu0 %584
        %586 = vrot.lane.b32.xlu0 %v560, 126
        %v587 = vpop.permute.xlu0 %586
        %588 = vrot.lane.b32.xlu0 %v561, 126
        %v589 = vpop.permute.xlu0 %588
        %590 = vrot.lane.b32.xlu0 %v562, 126
        %v591 = vpop.permute.xlu0 %590
        %592 = vrot.lane.b32.xlu0 %v563, 126
        %v593 = vpop.permute.xlu0 %592
        %594 = vrot.lane.b32.xlu0 %v564, 126
        %v595 = vpop.permute.xlu0 %594
        %596 = vrot.lane.b32.xlu0 %v565, 126
        %v597 = vpop.permute.xlu0 %596
        %598 = vrot.lane.b32.xlu0 %v566, 126
        %v599 = vpop.permute.xlu0 %598
        %600 = vrot.lane.b32.xlu0 %v567, 126
        %v601 = vpop.permute.xlu0 %600
        %602 = vrot.lane.b32.xlu0 %v568, 126
        %v603 = vpop.permute.xlu0 %602
        %604 = vrot.lane.b32.xlu0 %v569, 126
        %v605 = vpop.permute.xlu0 %604
        %vm606 = vcmask 1031168
        %v607 = vsel %vm606, %v583, %v585
        %v608 = vsel %vm606, %v585, %v587
        %v609 = vsel %vm606, %v587, %v589
        %v610 = vsel %vm606, %v589, %v591
        %v611 = vsel %vm606, %v591, %v593
        %v612 = vsel %vm606, %v595, %v597
        %v613 = vsel %vm606, %v597, %v599
        %v614 = vsel %vm606, %v599, %v601
        %v615 = vsel %vm606, %v601, %v603
        %v616 = vsel %vm606, %v603, %v605
        %v629 = vadd.f32 %v538, %v607
        %v630 = vadd.f32 %v539, %v608
        %v631 = vadd.f32 %v540, %v609
        %v632 = vadd.f32 %v541, %v610
        %v633 = vadd.f32 %v542, %v611
        %v634 = vadd.f32 %v543, %v593
        %v635 = vadd.f32 %v544, %v612
        %v636 = vadd.f32 %v545, %v613
        %v637 = vadd.f32 %v546, %v614
        %v638 = vadd.f32 %v547, %v615
        %v639 = vadd.f32 %v548, %v616
        %v640 = vadd.f32 %v549, %v605
        %641 = vset.pattern.permute.xlu0 3
        %642 = vperm.xlu0 %641, %v391
        %v643 = vpop.permute.xlu0 %642
        %645 = vset.pattern.permute.xlu0 3
        %646 = vperm.xlu0 %645, %v392
        %v647 = vpop.permute.xlu0 %646
        %v649 = vmul.f32 %v643, %v408
        %v650 = vmul.f32 %v643, %v412
        %v651 = vmul.f32 %v643, %v416
        %v652 = vmul.f32 %v643, %v420
        %v653 = vmul.f32 %v643, %v424
        %v654 = vmul.f32 %v643, %v428
        %v655 = vmul.f32 %v647, %v408
        %v656 = vmul.f32 %v647, %v412
        %v657 = vmul.f32 %v647, %v416
        %v658 = vmul.f32 %v647, %v420
        %v659 = vmul.f32 %v647, %v424
        %v660 = vmul.f32 %v647, %v428
        %673 = vrot.lane.b32.xlu0 %v649, 125
        %v674 = vpop.permute.xlu0 %673
        %675 = vrot.lane.b32.xlu0 %v650, 125
        %v676 = vpop.permute.xlu0 %675
        %677 = vrot.lane.b32.xlu0 %v651, 125
        %v678 = vpop.permute.xlu0 %677
        %679 = vrot.lane.b32.xlu0 %v652, 125
        %v680 = vpop.permute.xlu0 %679
        %681 = vrot.lane.b32.xlu0 %v653, 125
        %v682 = vpop.permute.xlu0 %681
        %683 = vrot.lane.b32.xlu0 %v654, 125
        %v684 = vpop.permute.xlu0 %683
        %685 = vrot.lane.b32.xlu0 %v655, 125
        %v686 = vpop.permute.xlu0 %685
        %687 = vrot.lane.b32.xlu0 %v656, 125
        %v688 = vpop.permute.xlu0 %687
        %689 = vrot.lane.b32.xlu0 %v657, 125
        %v690 = vpop.permute.xlu0 %689
        %691 = vrot.lane.b32.xlu0 %v658, 125
        %v692 = vpop.permute.xlu0 %691
        %693 = vrot.lane.b32.xlu0 %v659, 125
        %v694 = vpop.permute.xlu0 %693
        %695 = vrot.lane.b32.xlu0 %v660, 125
        %v696 = vpop.permute.xlu0 %695
        %vm697 = vcmask 1022976
        %v698 = vsel %vm697, %v674, %v676
        %v699 = vsel %vm697, %v676, %v678
        %v700 = vsel %vm697, %v678, %v680
        %v701 = vsel %vm697, %v680, %v682
        %v702 = vsel %vm697, %v682, %v684
        %v703 = vsel %vm697, %v686, %v688
        %v704 = vsel %vm697, %v688, %v690
        %v705 = vsel %vm697, %v690, %v692
        %v706 = vsel %vm697, %v692, %v694
        %v707 = vsel %vm697, %v694, %v696
        %v720 = vadd.f32 %v629, %v698
        %v721 = vadd.f32 %v630, %v699
        %v722 = vadd.f32 %v631, %v700
        %v723 = vadd.f32 %v632, %v701
        %v724 = vadd.f32 %v633, %v702
        %v725 = vadd.f32 %v634, %v684
        %v726 = vadd.f32 %v635, %v703
        %v727 = vadd.f32 %v636, %v704
        %v728 = vadd.f32 %v637, %v705
        %v729 = vadd.f32 %v638, %v706
        %v730 = vadd.f32 %v639, %v707
        %v731 = vadd.f32 %v640, %v696
        %732 = vset.pattern.permute.xlu0 4
        %733 = vperm.xlu0 %732, %v391
        %v734 = vpop.permute.xlu0 %733
        %736 = vset.pattern.permute.xlu0 4
        %737 = vperm.xlu0 %736, %v392
        %v738 = vpop.permute.xlu0 %737
        %v740 = vmul.f32 %v734, %v408
        %v741 = vmul.f32 %v734, %v412
        %v742 = vmul.f32 %v734, %v416
        %v743 = vmul.f32 %v734, %v420
        %v744 = vmul.f32 %v734, %v424
        %v745 = vmul.f32 %v734, %v428
        %v746 = vmul.f32 %v738, %v408
        %v747 = vmul.f32 %v738, %v412
        %v748 = vmul.f32 %v738, %v416
        %v749 = vmul.f32 %v738, %v420
        %v750 = vmul.f32 %v738, %v424
        %v751 = vmul.f32 %v738, %v428
        %764 = vrot.lane.b32.xlu0 %v740, 124
        %v765 = vpop.permute.xlu0 %764
        %766 = vrot.lane.b32.xlu0 %v741, 124
        %v767 = vpop.permute.xlu0 %766
        %768 = vrot.lane.b32.xlu0 %v742, 124
        %v769 = vpop.permute.xlu0 %768
        %770 = vrot.lane.b32.xlu0 %v743, 124
        %v771 = vpop.permute.xlu0 %770
        %772 = vrot.lane.b32.xlu0 %v744, 124
        %v773 = vpop.permute.xlu0 %772
        %774 = vrot.lane.b32.xlu0 %v745, 124
        %v775 = vpop.permute.xlu0 %774
        %776 = vrot.lane.b32.xlu0 %v746, 124
        %v777 = vpop.permute.xlu0 %776
        %778 = vrot.lane.b32.xlu0 %v747, 124
        %v779 = vpop.permute.xlu0 %778
        %780 = vrot.lane.b32.xlu0 %v748, 124
        %v781 = vpop.permute.xlu0 %780
        %782 = vrot.lane.b32.xlu0 %v749, 124
        %v783 = vpop.permute.xlu0 %782
        %784 = vrot.lane.b32.xlu0 %v750, 124
        %v785 = vpop.permute.xlu0 %784
        %786 = vrot.lane.b32.xlu0 %v751, 124
        %v787 = vpop.permute.xlu0 %786
        %vm788 = vcmask 1014784
        %v789 = vsel %vm788, %v765, %v767
        %v790 = vsel %vm788, %v767, %v769
        %v791 = vsel %vm788, %v769, %v771
        %v792 = vsel %vm788, %v771, %v773
        %v793 = vsel %vm788, %v773, %v775
        %v794 = vsel %vm788, %v777, %v779
        %v795 = vsel %vm788, %v779, %v781
        %v796 = vsel %vm788, %v781, %v783
        %v797 = vsel %vm788, %v783, %v785
        %v798 = vsel %vm788, %v785, %v787
        %v811 = vadd.f32 %v720, %v789
        %v812 = vadd.f32 %v721, %v790
        %v813 = vadd.f32 %v722, %v791
        %v814 = vadd.f32 %v723, %v792
        %v815 = vadd.f32 %v724, %v793
        %v816 = vadd.f32 %v725, %v775
        %v817 = vadd.f32 %v726, %v794
        %v818 = vadd.f32 %v727, %v795
        %v819 = vadd.f32 %v728, %v796
        %v820 = vadd.f32 %v729, %v797
        %v821 = vadd.f32 %v730, %v798
        %v822 = vadd.f32 %v731, %v787
        %823 = vset.pattern.permute.xlu0 5
        %824 = vperm.xlu0 %823, %v391
        %v825 = vpop.permute.xlu0 %824
        %827 = vset.pattern.permute.xlu0 5
        %828 = vperm.xlu0 %827, %v392
        %v829 = vpop.permute.xlu0 %828
        %v831 = vmul.f32 %v825, %v408
        %v832 = vmul.f32 %v825, %v412
        %v833 = vmul.f32 %v825, %v416
        %v834 = vmul.f32 %v825, %v420
        %v835 = vmul.f32 %v825, %v424
        %v836 = vmul.f32 %v825, %v428
        %v837 = vmul.f32 %v829, %v408
        %v838 = vmul.f32 %v829, %v412
        %v839 = vmul.f32 %v829, %v416
        %v840 = vmul.f32 %v829, %v420
        %v841 = vmul.f32 %v829, %v424
        %v842 = vmul.f32 %v829, %v428
        %855 = vrot.lane.b32.xlu0 %v831, 100
        %v856 = vpop.permute.xlu0 %855
        %857 = vrot.lane.b32.xlu0 %v832, 100
        %v858 = vpop.permute.xlu0 %857
        %859 = vrot.lane.b32.xlu0 %v833, 100
        %v860 = vpop.permute.xlu0 %859
        %861 = vrot.lane.b32.xlu0 %v834, 100
        %v862 = vpop.permute.xlu0 %861
        %863 = vrot.lane.b32.xlu0 %v835, 100
        %v864 = vpop.permute.xlu0 %863
        %865 = vrot.lane.b32.xlu0 %v836, 100
        %v866 = vpop.permute.xlu0 %865
        %867 = vrot.lane.b32.xlu0 %v837, 100
        %v868 = vpop.permute.xlu0 %867
        %869 = vrot.lane.b32.xlu0 %v838, 100
        %v870 = vpop.permute.xlu0 %869
        %871 = vrot.lane.b32.xlu0 %v839, 100
        %v872 = vpop.permute.xlu0 %871
        %873 = vrot.lane.b32.xlu0 %v840, 100
        %v874 = vpop.permute.xlu0 %873
        %875 = vrot.lane.b32.xlu0 %v841, 100
        %v876 = vpop.permute.xlu0 %875
        %877 = vrot.lane.b32.xlu0 %v842, 100
        %v878 = vpop.permute.xlu0 %877
        %vm879 = vcmask 818176
        %v880 = vsel %vm879, %v856, %v858
        %v881 = vsel %vm879, %v858, %v860
        %v882 = vsel %vm879, %v860, %v862
        %v883 = vsel %vm879, %v862, %v864
        %v884 = vsel %vm879, %v864, %v866
        %v885 = vsel %vm879, %v868, %v870
        %v886 = vsel %vm879, %v870, %v872
        %v887 = vsel %vm879, %v872, %v874
        %v888 = vsel %vm879, %v874, %v876
        %v889 = vsel %vm879, %v876, %v878
        %v902 = vadd.f32 %v811, %v880
        %v903 = vadd.f32 %v812, %v881
        %v904 = vadd.f32 %v813, %v882
        %v905 = vadd.f32 %v814, %v883
        %v906 = vadd.f32 %v815, %v884
        %v907 = vadd.f32 %v816, %v866
        %v908 = vadd.f32 %v817, %v885
        %v909 = vadd.f32 %v818, %v886
        %v910 = vadd.f32 %v819, %v887
        %v911 = vadd.f32 %v820, %v888
        %v912 = vadd.f32 %v821, %v889
        %v913 = vadd.f32 %v822, %v878
        %914 = vset.pattern.permute.xlu0 6
        %915 = vperm.xlu0 %914, %v391
        %v916 = vpop.permute.xlu0 %915
        %918 = vset.pattern.permute.xlu0 6
        %919 = vperm.xlu0 %918, %v392
        %v920 = vpop.permute.xlu0 %919
        %v922 = vmul.f32 %v916, %v408
        %v923 = vmul.f32 %v916, %v412
        %v924 = vmul.f32 %v916, %v416
        %v925 = vmul.f32 %v916, %v420
        %v926 = vmul.f32 %v916, %v424
        %v927 = vmul.f32 %v916, %v428
        %v928 = vmul.f32 %v920, %v408
        %v929 = vmul.f32 %v920, %v412
        %v930 = vmul.f32 %v920, %v416
        %v931 = vmul.f32 %v920, %v420
        %v932 = vmul.f32 %v920, %v424
        %v933 = vmul.f32 %v920, %v428
        %946 = vrot.lane.b32.xlu0 %v922, 99
        %v947 = vpop.permute.xlu0 %946
        %948 = vrot.lane.b32.xlu0 %v923, 99
        %v949 = vpop.permute.xlu0 %948
        %950 = vrot.lane.b32.xlu0 %v924, 99
        %v951 = vpop.permute.xlu0 %950
        %952 = vrot.lane.b32.xlu0 %v925, 99
        %v953 = vpop.permute.xlu0 %952
        %954 = vrot.lane.b32.xlu0 %v926, 99
        %v955 = vpop.permute.xlu0 %954
        %956 = vrot.lane.b32.xlu0 %v927, 99
        %v957 = vpop.permute.xlu0 %956
        %958 = vrot.lane.b32.xlu0 %v928, 99
        %v959 = vpop.permute.xlu0 %958
        %960 = vrot.lane.b32.xlu0 %v929, 99
        %v961 = vpop.permute.xlu0 %960
        %962 = vrot.lane.b32.xlu0 %v930, 99
        %v963 = vpop.permute.xlu0 %962
        %964 = vrot.lane.b32.xlu0 %v931, 99
        %v965 = vpop.permute.xlu0 %964
        %966 = vrot.lane.b32.xlu0 %v932, 99
        %v967 = vpop.permute.xlu0 %966
        %968 = vrot.lane.b32.xlu0 %v933, 99
        %v969 = vpop.permute.xlu0 %968
        %vm970 = vcmask 809984
        %v971 = vsel %vm970, %v947, %v949
        %v972 = vsel %vm970, %v949, %v951
        %v973 = vsel %vm970, %v951, %v953
        %v974 = vsel %vm970, %v953, %v955
        %v975 = vsel %vm970, %v955, %v957
        %v976 = vsel %vm970, %v959, %v961
        %v977 = vsel %vm970, %v961, %v963
        %v978 = vsel %vm970, %v963, %v965
        %v979 = vsel %vm970, %v965, %v967
        %v980 = vsel %vm970, %v967, %v969
        %v993 = vadd.f32 %v902, %v971
        %v994 = vadd.f32 %v903, %v972
        %v995 = vadd.f32 %v904, %v973
        %v996 = vadd.f32 %v905, %v974
        %v997 = vadd.f32 %v906, %v975
        %v998 = vadd.f32 %v907, %v957
        %v999 = vadd.f32 %v908, %v976
        %v1000 = vadd.f32 %v909, %v977
        %v1001 = vadd.f32 %v910, %v978
        %v1002 = vadd.f32 %v911, %v979
        %v1003 = vadd.f32 %v912, %v980
        %v1004 = vadd.f32 %v913, %v969
        %1005 = vset.pattern.permute.xlu0 7
        %1006 = vperm.xlu0 %1005, %v391
        %v1007 = vpop.permute.xlu0 %1006
        %1009 = vset.pattern.permute.xlu0 7
        %1010 = vperm.xlu0 %1009, %v392
        %v1011 = vpop.permute.xlu0 %1010
        %v1013 = vmul.f32 %v1007, %v408
        %v1014 = vmul.f32 %v1007, %v412
        %v1015 = vmul.f32 %v1007, %v416
        %v1016 = vmul.f32 %v1007, %v420
        %v1017 = vmul.f32 %v1007, %v424
        %v1018 = vmul.f32 %v1007, %v428
        %v1019 = vmul.f32 %v1011, %v408
        %v1020 = vmul.f32 %v1011, %v412
        %v1021 = vmul.f32 %v1011, %v416
        %v1022 = vmul.f32 %v1011, %v420
        %v1023 = vmul.f32 %v1011, %v424
        %v1024 = vmul.f32 %v1011, %v428
        %1037 = vrot.lane.b32.xlu0 %v1013, 98
        %v1038 = vpop.permute.xlu0 %1037
        %1039 = vrot.lane.b32.xlu0 %v1014, 98
        %v1040 = vpop.permute.xlu0 %1039
        %1041 = vrot.lane.b32.xlu0 %v1015, 98
        %v1042 = vpop.permute.xlu0 %1041
        %1043 = vrot.lane.b32.xlu0 %v1016, 98
        %v1044 = vpop.permute.xlu0 %1043
        %1045 = vrot.lane.b32.xlu0 %v1017, 98
        %v1046 = vpop.permute.xlu0 %1045
        %1047 = vrot.lane.b32.xlu0 %v1018, 98
        %v1048 = vpop.permute.xlu0 %1047
        %1049 = vrot.lane.b32.xlu0 %v1019, 98
        %v1050 = vpop.permute.xlu0 %1049
        %1051 = vrot.lane.b32.xlu0 %v1020, 98
        %v1052 = vpop.permute.xlu0 %1051
        %1053 = vrot.lane.b32.xlu0 %v1021, 98
        %v1054 = vpop.permute.xlu0 %1053
        %1055 = vrot.lane.b32.xlu0 %v1022, 98
        %v1056 = vpop.permute.xlu0 %1055
        %1057 = vrot.lane.b32.xlu0 %v1023, 98
        %v1058 = vpop.permute.xlu0 %1057
        %1059 = vrot.lane.b32.xlu0 %v1024, 98
        %v1060 = vpop.permute.xlu0 %1059
        %vm1061 = vcmask 801792
        %v1062 = vsel %vm1061, %v1038, %v1040
        %v1063 = vsel %vm1061, %v1040, %v1042
        %v1064 = vsel %vm1061, %v1042, %v1044
        %v1065 = vsel %vm1061, %v1044, %v1046
        %v1066 = vsel %vm1061, %v1046, %v1048
        %v1067 = vsel %vm1061, %v1050, %v1052
        %v1068 = vsel %vm1061, %v1052, %v1054
        %v1069 = vsel %vm1061, %v1054, %v1056
        %v1070 = vsel %vm1061, %v1056, %v1058
        %v1071 = vsel %vm1061, %v1058, %v1060
        %v1084 = vadd.f32 %v993, %v1062
        %v1085 = vadd.f32 %v994, %v1063
        %v1086 = vadd.f32 %v995, %v1064
        %v1087 = vadd.f32 %v996, %v1065
        %v1088 = vadd.f32 %v997, %v1066
        %v1089 = vadd.f32 %v998, %v1048
        %v1090 = vadd.f32 %v999, %v1067
        %v1091 = vadd.f32 %v1000, %v1068
        %v1092 = vadd.f32 %v1001, %v1069
        %v1093 = vadd.f32 %v1002, %v1070
        %v1094 = vadd.f32 %v1003, %v1071
        %v1095 = vadd.f32 %v1004, %v1060
        %1096 = vset.pattern.permute.xlu0 8
        %1097 = vperm.xlu0 %1096, %v391
        %v1098 = vpop.permute.xlu0 %1097
        %1100 = vset.pattern.permute.xlu0 8
        %1101 = vperm.xlu0 %1100, %v392
        %v1102 = vpop.permute.xlu0 %1101
        %v1104 = vmul.f32 %v1098, %v408
        %v1105 = vmul.f32 %v1098, %v412
        %v1106 = vmul.f32 %v1098, %v416
        %v1107 = vmul.f32 %v1098, %v420
        %v1108 = vmul.f32 %v1098, %v424
        %v1109 = vmul.f32 %v1098, %v428
        %v1110 = vmul.f32 %v1102, %v408
        %v1111 = vmul.f32 %v1102, %v412
        %v1112 = vmul.f32 %v1102, %v416
        %v1113 = vmul.f32 %v1102, %v420
        %v1114 = vmul.f32 %v1102, %v424
        %v1115 = vmul.f32 %v1102, %v428
        %1128 = vrot.lane.b32.xlu0 %v1104, 97
        %v1129 = vpop.permute.xlu0 %1128
        %1130 = vrot.lane.b32.xlu0 %v1105, 97
        %v1131 = vpop.permute.xlu0 %1130
        %1132 = vrot.lane.b32.xlu0 %v1106, 97
        %v1133 = vpop.permute.xlu0 %1132
        %1134 = vrot.lane.b32.xlu0 %v1107, 97
        %v1135 = vpop.permute.xlu0 %1134
        %1136 = vrot.lane.b32.xlu0 %v1108, 97
        %v1137 = vpop.permute.xlu0 %1136
        %1138 = vrot.lane.b32.xlu0 %v1109, 97
        %v1139 = vpop.permute.xlu0 %1138
        %1140 = vrot.lane.b32.xlu0 %v1110, 97
        %v1141 = vpop.permute.xlu0 %1140
        %1142 = vrot.lane.b32.xlu0 %v1111, 97
        %v1143 = vpop.permute.xlu0 %1142
        %1144 = vrot.lane.b32.xlu0 %v1112, 97
        %v1145 = vpop.permute.xlu0 %1144
        %1146 = vrot.lane.b32.xlu0 %v1113, 97
        %v1147 = vpop.permute.xlu0 %1146
        %1148 = vrot.lane.b32.xlu0 %v1114, 97
        %v1149 = vpop.permute.xlu0 %1148
        %1150 = vrot.lane.b32.xlu0 %v1115, 97
        %v1151 = vpop.permute.xlu0 %1150
        %vm1152 = vcmask 793600
        %v1153 = vsel %vm1152, %v1129, %v1131
        %v1154 = vsel %vm1152, %v1131, %v1133
        %v1155 = vsel %vm1152, %v1133, %v1135
        %v1156 = vsel %vm1152, %v1135, %v1137
        %v1157 = vsel %vm1152, %v1137, %v1139
        %v1158 = vsel %vm1152, %v1141, %v1143
        %v1159 = vsel %vm1152, %v1143, %v1145
        %v1160 = vsel %vm1152, %v1145, %v1147
        %v1161 = vsel %vm1152, %v1147, %v1149
        %v1162 = vsel %vm1152, %v1149, %v1151
        %v1175 = vadd.f32 %v1084, %v1153
        %v1176 = vadd.f32 %v1085, %v1154
        %v1177 = vadd.f32 %v1086, %v1155
        %v1178 = vadd.f32 %v1087, %v1156
        %v1179 = vadd.f32 %v1088, %v1157
        %v1180 = vadd.f32 %v1089, %v1139
        %v1181 = vadd.f32 %v1090, %v1158
        %v1182 = vadd.f32 %v1091, %v1159
        %v1183 = vadd.f32 %v1092, %v1160
        %v1184 = vadd.f32 %v1093, %v1161
        %v1185 = vadd.f32 %v1094, %v1162
        %v1186 = vadd.f32 %v1095, %v1151
        %1187 = vset.pattern.permute.xlu0 9
        %1188 = vperm.xlu0 %1187, %v391
        %v1189 = vpop.permute.xlu0 %1188
        %1191 = vset.pattern.permute.xlu0 9
        %1192 = vperm.xlu0 %1191, %v392
        %v1193 = vpop.permute.xlu0 %1192
        %v1195 = vmul.f32 %v1189, %v408
        %v1196 = vmul.f32 %v1189, %v412
        %v1197 = vmul.f32 %v1189, %v416
        %v1198 = vmul.f32 %v1189, %v420
        %v1199 = vmul.f32 %v1189, %v424
        %v1200 = vmul.f32 %v1189, %v428
        %v1201 = vmul.f32 %v1193, %v408
        %v1202 = vmul.f32 %v1193, %v412
        %v1203 = vmul.f32 %v1193, %v416
        %v1204 = vmul.f32 %v1193, %v420
        %v1205 = vmul.f32 %v1193, %v424
        %v1206 = vmul.f32 %v1193, %v428
        %1219 = vrot.lane.b32.xlu0 %v1195, 96
        %v1220 = vpop.permute.xlu0 %1219
        %1221 = vrot.lane.b32.xlu0 %v1196, 96
        %v1222 = vpop.permute.xlu0 %1221
        %1223 = vrot.lane.b32.xlu0 %v1197, 96
        %v1224 = vpop.permute.xlu0 %1223
        %1225 = vrot.lane.b32.xlu0 %v1198, 96
        %v1226 = vpop.permute.xlu0 %1225
        %1227 = vrot.lane.b32.xlu0 %v1199, 96
        %v1228 = vpop.permute.xlu0 %1227
        %1229 = vrot.lane.b32.xlu0 %v1200, 96
        %v1230 = vpop.permute.xlu0 %1229
        %1231 = vrot.lane.b32.xlu0 %v1201, 96
        %v1232 = vpop.permute.xlu0 %1231
        %1233 = vrot.lane.b32.xlu0 %v1202, 96
        %v1234 = vpop.permute.xlu0 %1233
        %1235 = vrot.lane.b32.xlu0 %v1203, 96
        %v1236 = vpop.permute.xlu0 %1235
        %1237 = vrot.lane.b32.xlu0 %v1204, 96
        %v1238 = vpop.permute.xlu0 %1237
        %1239 = vrot.lane.b32.xlu0 %v1205, 96
        %v1240 = vpop.permute.xlu0 %1239
        %1241 = vrot.lane.b32.xlu0 %v1206, 96
        %v1242 = vpop.permute.xlu0 %1241
        %vm1243 = vcmask 785408
        %v1244 = vsel %vm1243, %v1220, %v1222
        %v1245 = vsel %vm1243, %v1222, %v1224
        %v1246 = vsel %vm1243, %v1224, %v1226
        %v1247 = vsel %vm1243, %v1226, %v1228
        %v1248 = vsel %vm1243, %v1228, %v1230
        %v1249 = vsel %vm1243, %v1232, %v1234
        %v1250 = vsel %vm1243, %v1234, %v1236
        %v1251 = vsel %vm1243, %v1236, %v1238
        %v1252 = vsel %vm1243, %v1238, %v1240
        %v1253 = vsel %vm1243, %v1240, %v1242
        %v1266 = vadd.f32 %v1175, %v1244
        %v1267 = vadd.f32 %v1176, %v1245
        %v1268 = vadd.f32 %v1177, %v1246
        %v1269 = vadd.f32 %v1178, %v1247
        %v1270 = vadd.f32 %v1179, %v1248
        %v1271 = vadd.f32 %v1180, %v1230
        %v1272 = vadd.f32 %v1181, %v1249
        %v1273 = vadd.f32 %v1182, %v1250
        %v1274 = vadd.f32 %v1183, %v1251
        %v1275 = vadd.f32 %v1184, %v1252
        %v1276 = vadd.f32 %v1185, %v1253
        %v1277 = vadd.f32 %v1186, %v1242
        %1278 = vset.pattern.permute.xlu0 10
        %1279 = vperm.xlu0 %1278, %v391
        %v1280 = vpop.permute.xlu0 %1279
        %1282 = vset.pattern.permute.xlu0 10
        %1283 = vperm.xlu0 %1282, %v392
        %v1284 = vpop.permute.xlu0 %1283
        %v1286 = vmul.f32 %v1280, %v408
        %v1287 = vmul.f32 %v1280, %v412
        %v1288 = vmul.f32 %v1280, %v416
        %v1289 = vmul.f32 %v1280, %v420
        %v1290 = vmul.f32 %v1280, %v424
        %v1291 = vmul.f32 %v1280, %v428
        %v1292 = vmul.f32 %v1284, %v408
        %v1293 = vmul.f32 %v1284, %v412
        %v1294 = vmul.f32 %v1284, %v416
        %v1295 = vmul.f32 %v1284, %v420
        %v1296 = vmul.f32 %v1284, %v424
        %v1297 = vmul.f32 %v1284, %v428
        %1310 = vrot.lane.b32.xlu0 %v1286, 72
        %v1311 = vpop.permute.xlu0 %1310
        %1312 = vrot.lane.b32.xlu0 %v1287, 72
        %v1313 = vpop.permute.xlu0 %1312
        %1314 = vrot.lane.b32.xlu0 %v1288, 72
        %v1315 = vpop.permute.xlu0 %1314
        %1316 = vrot.lane.b32.xlu0 %v1289, 72
        %v1317 = vpop.permute.xlu0 %1316
        %1318 = vrot.lane.b32.xlu0 %v1290, 72
        %v1319 = vpop.permute.xlu0 %1318
        %1320 = vrot.lane.b32.xlu0 %v1291, 72
        %v1321 = vpop.permute.xlu0 %1320
        %1322 = vrot.lane.b32.xlu0 %v1292, 72
        %v1323 = vpop.permute.xlu0 %1322
        %1324 = vrot.lane.b32.xlu0 %v1293, 72
        %v1325 = vpop.permute.xlu0 %1324
        %1326 = vrot.lane.b32.xlu0 %v1294, 72
        %v1327 = vpop.permute.xlu0 %1326
        %1328 = vrot.lane.b32.xlu0 %v1295, 72
        %v1329 = vpop.permute.xlu0 %1328
        %1330 = vrot.lane.b32.xlu0 %v1296, 72
        %v1331 = vpop.permute.xlu0 %1330
        %1332 = vrot.lane.b32.xlu0 %v1297, 72
        %v1333 = vpop.permute.xlu0 %1332
        %vm1334 = vcmask 588800
        %v1335 = vsel %vm1334, %v1311, %v1313
        %v1336 = vsel %vm1334, %v1313, %v1315
        %v1337 = vsel %vm1334, %v1315, %v1317
        %v1338 = vsel %vm1334, %v1317, %v1319
        %v1339 = vsel %vm1334, %v1319, %v1321
        %v1340 = vsel %vm1334, %v1323, %v1325
        %v1341 = vsel %vm1334, %v1325, %v1327
        %v1342 = vsel %vm1334, %v1327, %v1329
        %v1343 = vsel %vm1334, %v1329, %v1331
        %v1344 = vsel %vm1334, %v1331, %v1333
        %v1357 = vadd.f32 %v1266, %v1335
        %v1358 = vadd.f32 %v1267, %v1336
        %v1359 = vadd.f32 %v1268, %v1337
        %v1360 = vadd.f32 %v1269, %v1338
        %v1361 = vadd.f32 %v1270, %v1339
        %v1362 = vadd.f32 %v1271, %v1321
        %v1363 = vadd.f32 %v1272, %v1340
        %v1364 = vadd.f32 %v1273, %v1341
        %v1365 = vadd.f32 %v1274, %v1342
        %v1366 = vadd.f32 %v1275, %v1343
        %v1367 = vadd.f32 %v1276, %v1344
        %v1368 = vadd.f32 %v1277, %v1333
        %1369 = vset.pattern.permute.xlu0 11
        %1370 = vperm.xlu0 %1369, %v391
        %v1371 = vpop.permute.xlu0 %1370
        %1373 = vset.pattern.permute.xlu0 11
        %1374 = vperm.xlu0 %1373, %v392
        %v1375 = vpop.permute.xlu0 %1374
        %v1377 = vmul.f32 %v1371, %v408
        %v1378 = vmul.f32 %v1371, %v412
        %v1379 = vmul.f32 %v1371, %v416
        %v1380 = vmul.f32 %v1371, %v420
        %v1381 = vmul.f32 %v1371, %v424
        %v1382 = vmul.f32 %v1371, %v428
        %v1383 = vmul.f32 %v1375, %v408
        %v1384 = vmul.f32 %v1375, %v412
        %v1385 = vmul.f32 %v1375, %v416
        %v1386 = vmul.f32 %v1375, %v420
        %v1387 = vmul.f32 %v1375, %v424
        %v1388 = vmul.f32 %v1375, %v428
        %1401 = vrot.lane.b32.xlu0 %v1377, 71
        %v1402 = vpop.permute.xlu0 %1401
        %1403 = vrot.lane.b32.xlu0 %v1378, 71
        %v1404 = vpop.permute.xlu0 %1403
        %1405 = vrot.lane.b32.xlu0 %v1379, 71
        %v1406 = vpop.permute.xlu0 %1405
        %1407 = vrot.lane.b32.xlu0 %v1380, 71
        %v1408 = vpop.permute.xlu0 %1407
        %1409 = vrot.lane.b32.xlu0 %v1381, 71
        %v1410 = vpop.permute.xlu0 %1409
        %1411 = vrot.lane.b32.xlu0 %v1382, 71
        %v1412 = vpop.permute.xlu0 %1411
        %1413 = vrot.lane.b32.xlu0 %v1383, 71
        %v1414 = vpop.permute.xlu0 %1413
        %1415 = vrot.lane.b32.xlu0 %v1384, 71
        %v1416 = vpop.permute.xlu0 %1415
        %1417 = vrot.lane.b32.xlu0 %v1385, 71
        %v1418 = vpop.permute.xlu0 %1417
        %1419 = vrot.lane.b32.xlu0 %v1386, 71
        %v1420 = vpop.permute.xlu0 %1419
        %1421 = vrot.lane.b32.xlu0 %v1387, 71
        %v1422 = vpop.permute.xlu0 %1421
        %1423 = vrot.lane.b32.xlu0 %v1388, 71
        %v1424 = vpop.permute.xlu0 %1423
        %vm1425 = vcmask 580608
        %v1426 = vsel %vm1425, %v1402, %v1404
        %v1427 = vsel %vm1425, %v1404, %v1406
        %v1428 = vsel %vm1425, %v1406, %v1408
        %v1429 = vsel %vm1425, %v1408, %v1410
        %v1430 = vsel %vm1425, %v1410, %v1412
        %v1431 = vsel %vm1425, %v1414, %v1416
        %v1432 = vsel %vm1425, %v1416, %v1418
        %v1433 = vsel %vm1425, %v1418, %v1420
        %v1434 = vsel %vm1425, %v1420, %v1422
        %v1435 = vsel %vm1425, %v1422, %v1424
        %v1448 = vadd.f32 %v1357, %v1426
        %v1449 = vadd.f32 %v1358, %v1427
        %v1450 = vadd.f32 %v1359, %v1428
        %v1451 = vadd.f32 %v1360, %v1429
        %v1452 = vadd.f32 %v1361, %v1430
        %v1453 = vadd.f32 %v1362, %v1412
        %v1454 = vadd.f32 %v1363, %v1431
        %v1455 = vadd.f32 %v1364, %v1432
        %v1456 = vadd.f32 %v1365, %v1433
        %v1457 = vadd.f32 %v1366, %v1434
        %v1458 = vadd.f32 %v1367, %v1435
        %v1459 = vadd.f32 %v1368, %v1424
        %1460 = vset.pattern.permute.xlu0 12
        %1461 = vperm.xlu0 %1460, %v391
        %v1462 = vpop.permute.xlu0 %1461
        %1464 = vset.pattern.permute.xlu0 12
        %1465 = vperm.xlu0 %1464, %v392
        %v1466 = vpop.permute.xlu0 %1465
        %v1468 = vmul.f32 %v1462, %v408
        %v1469 = vmul.f32 %v1462, %v412
        %v1470 = vmul.f32 %v1462, %v416
        %v1471 = vmul.f32 %v1462, %v420
        %v1472 = vmul.f32 %v1462, %v424
        %v1473 = vmul.f32 %v1462, %v428
        %v1474 = vmul.f32 %v1466, %v408
        %v1475 = vmul.f32 %v1466, %v412
        %v1476 = vmul.f32 %v1466, %v416
        %v1477 = vmul.f32 %v1466, %v420
        %v1478 = vmul.f32 %v1466, %v424
        %v1479 = vmul.f32 %v1466, %v428
        %1492 = vrot.lane.b32.xlu0 %v1468, 70
        %v1493 = vpop.permute.xlu0 %1492
        %1494 = vrot.lane.b32.xlu0 %v1469, 70
        %v1495 = vpop.permute.xlu0 %1494
        %1496 = vrot.lane.b32.xlu0 %v1470, 70
        %v1497 = vpop.permute.xlu0 %1496
        %1498 = vrot.lane.b32.xlu0 %v1471, 70
        %v1499 = vpop.permute.xlu0 %1498
        %1500 = vrot.lane.b32.xlu0 %v1472, 70
        %v1501 = vpop.permute.xlu0 %1500
        %1502 = vrot.lane.b32.xlu0 %v1473, 70
        %v1503 = vpop.permute.xlu0 %1502
        %1504 = vrot.lane.b32.xlu0 %v1474, 70
        %v1505 = vpop.permute.xlu0 %1504
        %1506 = vrot.lane.b32.xlu0 %v1475, 70
        %v1507 = vpop.permute.xlu0 %1506
        %1508 = vrot.lane.b32.xlu0 %v1476, 70
        %v1509 = vpop.permute.xlu0 %1508
        %1510 = vrot.lane.b32.xlu0 %v1477, 70
        %v1511 = vpop.permute.xlu0 %1510
        %1512 = vrot.lane.b32.xlu0 %v1478, 70
        %v1513 = vpop.permute.xlu0 %1512
        %1514 = vrot.lane.b32.xlu0 %v1479, 70
        %v1515 = vpop.permute.xlu0 %1514
        %vm1516 = vcmask 572416
        %v1517 = vsel %vm1516, %v1493, %v1495
        %v1518 = vsel %vm1516, %v1495, %v1497
        %v1519 = vsel %vm1516, %v1497, %v1499
        %v1520 = vsel %vm1516, %v1499, %v1501
        %v1521 = vsel %vm1516, %v1501, %v1503
        %v1522 = vsel %vm1516, %v1505, %v1507
        %v1523 = vsel %vm1516, %v1507, %v1509
        %v1524 = vsel %vm1516, %v1509, %v1511
        %v1525 = vsel %vm1516, %v1511, %v1513
        %v1526 = vsel %vm1516, %v1513, %v1515
        %v1539 = vadd.f32 %v1448, %v1517
        %v1540 = vadd.f32 %v1449, %v1518
        %v1541 = vadd.f32 %v1450, %v1519
        %v1542 = vadd.f32 %v1451, %v1520
        %v1543 = vadd.f32 %v1452, %v1521
        %v1544 = vadd.f32 %v1453, %v1503
        %v1545 = vadd.f32 %v1454, %v1522
        %v1546 = vadd.f32 %v1455, %v1523
        %v1547 = vadd.f32 %v1456, %v1524
        %v1548 = vadd.f32 %v1457, %v1525
        %v1549 = vadd.f32 %v1458, %v1526
        %v1550 = vadd.f32 %v1459, %v1515
        %1551 = vset.pattern.permute.xlu0 13
        %1552 = vperm.xlu0 %1551, %v391
        %v1553 = vpop.permute.xlu0 %1552
        %1555 = vset.pattern.permute.xlu0 13
        %1556 = vperm.xlu0 %1555, %v392
        %v1557 = vpop.permute.xlu0 %1556
        %v1559 = vmul.f32 %v1553, %v408
        %v1560 = vmul.f32 %v1553, %v412
        %v1561 = vmul.f32 %v1553, %v416
        %v1562 = vmul.f32 %v1553, %v420
        %v1563 = vmul.f32 %v1553, %v424
        %v1564 = vmul.f32 %v1553, %v428
        %v1565 = vmul.f32 %v1557, %v408
        %v1566 = vmul.f32 %v1557, %v412
        %v1567 = vmul.f32 %v1557, %v416
        %v1568 = vmul.f32 %v1557, %v420
        %v1569 = vmul.f32 %v1557, %v424
        %v1570 = vmul.f32 %v1557, %v428
        %1583 = vrot.lane.b32.xlu0 %v1559, 69
        %v1584 = vpop.permute.xlu0 %1583
        %1585 = vrot.lane.b32.xlu0 %v1560, 69
        %v1586 = vpop.permute.xlu0 %1585
        %1587 = vrot.lane.b32.xlu0 %v1561, 69
        %v1588 = vpop.permute.xlu0 %1587
        %1589 = vrot.lane.b32.xlu0 %v1562, 69
        %v1590 = vpop.permute.xlu0 %1589
        %1591 = vrot.lane.b32.xlu0 %v1563, 69
        %v1592 = vpop.permute.xlu0 %1591
        %1593 = vrot.lane.b32.xlu0 %v1564, 69
        %v1594 = vpop.permute.xlu0 %1593
        %1595 = vrot.lane.b32.xlu0 %v1565, 69
        %v1596 = vpop.permute.xlu0 %1595
        %1597 = vrot.lane.b32.xlu0 %v1566, 69
        %v1598 = vpop.permute.xlu0 %1597
        %1599 = vrot.lane.b32.xlu0 %v1567, 69
        %v1600 = vpop.permute.xlu0 %1599
        %1601 = vrot.lane.b32.xlu0 %v1568, 69
        %v1602 = vpop.permute.xlu0 %1601
        %1603 = vrot.lane.b32.xlu0 %v1569, 69
        %v1604 = vpop.permute.xlu0 %1603
        %1605 = vrot.lane.b32.xlu0 %v1570, 69
        %v1606 = vpop.permute.xlu0 %1605
        %vm1607 = vcmask 564224
        %v1608 = vsel %vm1607, %v1584, %v1586
        %v1609 = vsel %vm1607, %v1586, %v1588
        %v1610 = vsel %vm1607, %v1588, %v1590
        %v1611 = vsel %vm1607, %v1590, %v1592
        %v1612 = vsel %vm1607, %v1592, %v1594
        %v1613 = vsel %vm1607, %v1596, %v1598
        %v1614 = vsel %vm1607, %v1598, %v1600
        %v1615 = vsel %vm1607, %v1600, %v1602
        %v1616 = vsel %vm1607, %v1602, %v1604
        %v1617 = vsel %vm1607, %v1604, %v1606
        %v1630 = vadd.f32 %v1539, %v1608
        %v1631 = vadd.f32 %v1540, %v1609
        %v1632 = vadd.f32 %v1541, %v1610
        %v1633 = vadd.f32 %v1542, %v1611
        %v1634 = vadd.f32 %v1543, %v1612
        %v1635 = vadd.f32 %v1544, %v1594
        %v1636 = vadd.f32 %v1545, %v1613
        %v1637 = vadd.f32 %v1546, %v1614
        %v1638 = vadd.f32 %v1547, %v1615
        %v1639 = vadd.f32 %v1548, %v1616
        %v1640 = vadd.f32 %v1549, %v1617
        %v1641 = vadd.f32 %v1550, %v1606
        %1642 = vset.pattern.permute.xlu0 14
        %1643 = vperm.xlu0 %1642, %v391
        %v1644 = vpop.permute.xlu0 %1643
        %1646 = vset.pattern.permute.xlu0 14
        %1647 = vperm.xlu0 %1646, %v392
        %v1648 = vpop.permute.xlu0 %1647
        %v1650 = vmul.f32 %v1644, %v408
        %v1651 = vmul.f32 %v1644, %v412
        %v1652 = vmul.f32 %v1644, %v416
        %v1653 = vmul.f32 %v1644, %v420
        %v1654 = vmul.f32 %v1644, %v424
        %v1655 = vmul.f32 %v1644, %v428
        %v1656 = vmul.f32 %v1648, %v408
        %v1657 = vmul.f32 %v1648, %v412
        %v1658 = vmul.f32 %v1648, %v416
        %v1659 = vmul.f32 %v1648, %v420
        %v1660 = vmul.f32 %v1648, %v424
        %v1661 = vmul.f32 %v1648, %v428
        %1674 = vrot.lane.b32.xlu0 %v1650, 68
        %v1675 = vpop.permute.xlu0 %1674
        %1676 = vrot.lane.b32.xlu0 %v1651, 68
        %v1677 = vpop.permute.xlu0 %1676
        %1678 = vrot.lane.b32.xlu0 %v1652, 68
        %v1679 = vpop.permute.xlu0 %1678
        %1680 = vrot.lane.b32.xlu0 %v1653, 68
        %v1681 = vpop.permute.xlu0 %1680
        %1682 = vrot.lane.b32.xlu0 %v1654, 68
        %v1683 = vpop.permute.xlu0 %1682
        %1684 = vrot.lane.b32.xlu0 %v1655, 68
        %v1685 = vpop.permute.xlu0 %1684
        %1686 = vrot.lane.b32.xlu0 %v1656, 68
        %v1687 = vpop.permute.xlu0 %1686
        %1688 = vrot.lane.b32.xlu0 %v1657, 68
        %v1689 = vpop.permute.xlu0 %1688
        %1690 = vrot.lane.b32.xlu0 %v1658, 68
        %v1691 = vpop.permute.xlu0 %1690
        %1692 = vrot.lane.b32.xlu0 %v1659, 68
        %v1693 = vpop.permute.xlu0 %1692
        %1694 = vrot.lane.b32.xlu0 %v1660, 68
        %v1695 = vpop.permute.xlu0 %1694
        %1696 = vrot.lane.b32.xlu0 %v1661, 68
        %v1697 = vpop.permute.xlu0 %1696
        %vm1698 = vcmask 556032
        %v1699 = vsel %vm1698, %v1675, %v1677
        %v1700 = vsel %vm1698, %v1677, %v1679
        %v1701 = vsel %vm1698, %v1679, %v1681
        %v1702 = vsel %vm1698, %v1681, %v1683
        %v1703 = vsel %vm1698, %v1683, %v1685
        %v1704 = vsel %vm1698, %v1687, %v1689
        %v1705 = vsel %vm1698, %v1689, %v1691
        %v1706 = vsel %vm1698, %v1691, %v1693
        %v1707 = vsel %vm1698, %v1693, %v1695
        %v1708 = vsel %vm1698, %v1695, %v1697
        %v1721 = vadd.f32 %v1630, %v1699
        %v1722 = vadd.f32 %v1631, %v1700
        %v1723 = vadd.f32 %v1632, %v1701
        %v1724 = vadd.f32 %v1633, %v1702
        %v1725 = vadd.f32 %v1634, %v1703
        %v1726 = vadd.f32 %v1635, %v1685
        %v1727 = vadd.f32 %v1636, %v1704
        %v1728 = vadd.f32 %v1637, %v1705
        %v1729 = vadd.f32 %v1638, %v1706
        %v1730 = vadd.f32 %v1639, %v1707
        %v1731 = vadd.f32 %v1640, %v1708
        %v1732 = vadd.f32 %v1641, %v1697
        %1733 = vset.pattern.permute.xlu0 15
        %1734 = vperm.xlu0 %1733, %v391
        %v1735 = vpop.permute.xlu0 %1734
        %1737 = vset.pattern.permute.xlu0 15
        %1738 = vperm.xlu0 %1737, %v392
        %v1739 = vpop.permute.xlu0 %1738
        %v1741 = vmul.f32 %v1735, %v408
        %v1742 = vmul.f32 %v1735, %v412
        %v1743 = vmul.f32 %v1735, %v416
        %v1744 = vmul.f32 %v1735, %v420
        %v1745 = vmul.f32 %v1735, %v424
        %v1746 = vmul.f32 %v1735, %v428
        %v1747 = vmul.f32 %v1739, %v408
        %v1748 = vmul.f32 %v1739, %v412
        %v1749 = vmul.f32 %v1739, %v416
        %v1750 = vmul.f32 %v1739, %v420
        %v1751 = vmul.f32 %v1739, %v424
        %v1752 = vmul.f32 %v1739, %v428
        %1765 = vrot.lane.b32.xlu0 %v1741, 44
        %v1766 = vpop.permute.xlu0 %1765
        %1767 = vrot.lane.b32.xlu0 %v1742, 44
        %v1768 = vpop.permute.xlu0 %1767
        %1769 = vrot.lane.b32.xlu0 %v1743, 44
        %v1770 = vpop.permute.xlu0 %1769
        %1771 = vrot.lane.b32.xlu0 %v1744, 44
        %v1772 = vpop.permute.xlu0 %1771
        %1773 = vrot.lane.b32.xlu0 %v1745, 44
        %v1774 = vpop.permute.xlu0 %1773
        %1775 = vrot.lane.b32.xlu0 %v1746, 44
        %v1776 = vpop.permute.xlu0 %1775
        %1777 = vrot.lane.b32.xlu0 %v1747, 44
        %v1778 = vpop.permute.xlu0 %1777
        %1779 = vrot.lane.b32.xlu0 %v1748, 44
        %v1780 = vpop.permute.xlu0 %1779
        %1781 = vrot.lane.b32.xlu0 %v1749, 44
        %v1782 = vpop.permute.xlu0 %1781
        %1783 = vrot.lane.b32.xlu0 %v1750, 44
        %v1784 = vpop.permute.xlu0 %1783
        %1785 = vrot.lane.b32.xlu0 %v1751, 44
        %v1786 = vpop.permute.xlu0 %1785
        %1787 = vrot.lane.b32.xlu0 %v1752, 44
        %v1788 = vpop.permute.xlu0 %1787
        %vm1789 = vcmask 359424
        %v1790 = vsel %vm1789, %v1766, %v1768
        %v1791 = vsel %vm1789, %v1768, %v1770
        %v1792 = vsel %vm1789, %v1770, %v1772
        %v1793 = vsel %vm1789, %v1772, %v1774
        %v1794 = vsel %vm1789, %v1774, %v1776
        %v1795 = vsel %vm1789, %v1778, %v1780
        %v1796 = vsel %vm1789, %v1780, %v1782
        %v1797 = vsel %vm1789, %v1782, %v1784
        %v1798 = vsel %vm1789, %v1784, %v1786
        %v1799 = vsel %vm1789, %v1786, %v1788
        %v1812 = vadd.f32 %v1721, %v1790
        %v1813 = vadd.f32 %v1722, %v1791
        %v1814 = vadd.f32 %v1723, %v1792
        %v1815 = vadd.f32 %v1724, %v1793
        %v1816 = vadd.f32 %v1725, %v1794
        %v1817 = vadd.f32 %v1726, %v1776
        %v1818 = vadd.f32 %v1727, %v1795
        %v1819 = vadd.f32 %v1728, %v1796
        %v1820 = vadd.f32 %v1729, %v1797
        %v1821 = vadd.f32 %v1730, %v1798
        %v1822 = vadd.f32 %v1731, %v1799
        %v1823 = vadd.f32 %v1732, %v1788
        %1824 = vset.pattern.permute.xlu0 16
        %1825 = vperm.xlu0 %1824, %v391
        %v1826 = vpop.permute.xlu0 %1825
        %1828 = vset.pattern.permute.xlu0 16
        %1829 = vperm.xlu0 %1828, %v392
        %v1830 = vpop.permute.xlu0 %1829
        %v1832 = vmul.f32 %v1826, %v408
        %v1833 = vmul.f32 %v1826, %v412
        %v1834 = vmul.f32 %v1826, %v416
        %v1835 = vmul.f32 %v1826, %v420
        %v1836 = vmul.f32 %v1826, %v424
        %v1837 = vmul.f32 %v1826, %v428
        %v1838 = vmul.f32 %v1830, %v408
        %v1839 = vmul.f32 %v1830, %v412
        %v1840 = vmul.f32 %v1830, %v416
        %v1841 = vmul.f32 %v1830, %v420
        %v1842 = vmul.f32 %v1830, %v424
        %v1843 = vmul.f32 %v1830, %v428
        %1856 = vrot.lane.b32.xlu0 %v1832, 43
        %v1857 = vpop.permute.xlu0 %1856
        %1858 = vrot.lane.b32.xlu0 %v1833, 43
        %v1859 = vpop.permute.xlu0 %1858
        %1860 = vrot.lane.b32.xlu0 %v1834, 43
        %v1861 = vpop.permute.xlu0 %1860
        %1862 = vrot.lane.b32.xlu0 %v1835, 43
        %v1863 = vpop.permute.xlu0 %1862
        %1864 = vrot.lane.b32.xlu0 %v1836, 43
        %v1865 = vpop.permute.xlu0 %1864
        %1866 = vrot.lane.b32.xlu0 %v1837, 43
        %v1867 = vpop.permute.xlu0 %1866
        %1868 = vrot.lane.b32.xlu0 %v1838, 43
        %v1869 = vpop.permute.xlu0 %1868
        %1870 = vrot.lane.b32.xlu0 %v1839, 43
        %v1871 = vpop.permute.xlu0 %1870
        %1872 = vrot.lane.b32.xlu0 %v1840, 43
        %v1873 = vpop.permute.xlu0 %1872
        %1874 = vrot.lane.b32.xlu0 %v1841, 43
        %v1875 = vpop.permute.xlu0 %1874
        %1876 = vrot.lane.b32.xlu0 %v1842, 43
        %v1877 = vpop.permute.xlu0 %1876
        %1878 = vrot.lane.b32.xlu0 %v1843, 43
        %v1879 = vpop.permute.xlu0 %1878
        %vm1880 = vcmask 351232
        %v1881 = vsel %vm1880, %v1857, %v1859
        %v1882 = vsel %vm1880, %v1859, %v1861
        %v1883 = vsel %vm1880, %v1861, %v1863
        %v1884 = vsel %vm1880, %v1863, %v1865
        %v1885 = vsel %vm1880, %v1865, %v1867
        %v1886 = vsel %vm1880, %v1869, %v1871
        %v1887 = vsel %vm1880, %v1871, %v1873
        %v1888 = vsel %vm1880, %v1873, %v1875
        %v1889 = vsel %vm1880, %v1875, %v1877
        %v1890 = vsel %vm1880, %v1877, %v1879
        %v1903 = vadd.f32 %v1812, %v1881
        %v1904 = vadd.f32 %v1813, %v1882
        %v1905 = vadd.f32 %v1814, %v1883
        %v1906 = vadd.f32 %v1815, %v1884
        %v1907 = vadd.f32 %v1816, %v1885
        %v1908 = vadd.f32 %v1817, %v1867
        %v1909 = vadd.f32 %v1818, %v1886
        %v1910 = vadd.f32 %v1819, %v1887
        %v1911 = vadd.f32 %v1820, %v1888
        %v1912 = vadd.f32 %v1821, %v1889
        %v1913 = vadd.f32 %v1822, %v1890
        %v1914 = vadd.f32 %v1823, %v1879
        %1915 = vset.pattern.permute.xlu0 17
        %1916 = vperm.xlu0 %1915, %v391
        %v1917 = vpop.permute.xlu0 %1916
        %1919 = vset.pattern.permute.xlu0 17
        %1920 = vperm.xlu0 %1919, %v392
        %v1921 = vpop.permute.xlu0 %1920
        %v1923 = vmul.f32 %v1917, %v408
        %v1924 = vmul.f32 %v1917, %v412
        %v1925 = vmul.f32 %v1917, %v416
        %v1926 = vmul.f32 %v1917, %v420
        %v1927 = vmul.f32 %v1917, %v424
        %v1928 = vmul.f32 %v1917, %v428
        %v1929 = vmul.f32 %v1921, %v408
        %v1930 = vmul.f32 %v1921, %v412
        %v1931 = vmul.f32 %v1921, %v416
        %v1932 = vmul.f32 %v1921, %v420
        %v1933 = vmul.f32 %v1921, %v424
        %v1934 = vmul.f32 %v1921, %v428
        %1947 = vrot.lane.b32.xlu0 %v1923, 42
        %v1948 = vpop.permute.xlu0 %1947
        %1949 = vrot.lane.b32.xlu0 %v1924, 42
        %v1950 = vpop.permute.xlu0 %1949
        %1951 = vrot.lane.b32.xlu0 %v1925, 42
        %v1952 = vpop.permute.xlu0 %1951
        %1953 = vrot.lane.b32.xlu0 %v1926, 42
        %v1954 = vpop.permute.xlu0 %1953
        %1955 = vrot.lane.b32.xlu0 %v1927, 42
        %v1956 = vpop.permute.xlu0 %1955
        %1957 = vrot.lane.b32.xlu0 %v1928, 42
        %v1958 = vpop.permute.xlu0 %1957
        %1959 = vrot.lane.b32.xlu0 %v1929, 42
        %v1960 = vpop.permute.xlu0 %1959
        %1961 = vrot.lane.b32.xlu0 %v1930, 42
        %v1962 = vpop.permute.xlu0 %1961
        %1963 = vrot.lane.b32.xlu0 %v1931, 42
        %v1964 = vpop.permute.xlu0 %1963
        %1965 = vrot.lane.b32.xlu0 %v1932, 42
        %v1966 = vpop.permute.xlu0 %1965
        %1967 = vrot.lane.b32.xlu0 %v1933, 42
        %v1968 = vpop.permute.xlu0 %1967
        %1969 = vrot.lane.b32.xlu0 %v1934, 42
        %v1970 = vpop.permute.xlu0 %1969
        %vm1971 = vcmask 343040
        %v1972 = vsel %vm1971, %v1948, %v1950
        %v1973 = vsel %vm1971, %v1950, %v1952
        %v1974 = vsel %vm1971, %v1952, %v1954
        %v1975 = vsel %vm1971, %v1954, %v1956
        %v1976 = vsel %vm1971, %v1956, %v1958
        %v1977 = vsel %vm1971, %v1960, %v1962
        %v1978 = vsel %vm1971, %v1962, %v1964
        %v1979 = vsel %vm1971, %v1964, %v1966
        %v1980 = vsel %vm1971, %v1966, %v1968
        %v1981 = vsel %vm1971, %v1968, %v1970
        %v1994 = vadd.f32 %v1903, %v1972
        %v1995 = vadd.f32 %v1904, %v1973
        %v1996 = vadd.f32 %v1905, %v1974
        %v1997 = vadd.f32 %v1906, %v1975
        %v1998 = vadd.f32 %v1907, %v1976
        %v1999 = vadd.f32 %v1908, %v1958
        %v2000 = vadd.f32 %v1909, %v1977
        %v2001 = vadd.f32 %v1910, %v1978
        %v2002 = vadd.f32 %v1911, %v1979
        %v2003 = vadd.f32 %v1912, %v1980
        %v2004 = vadd.f32 %v1913, %v1981
        %v2005 = vadd.f32 %v1914, %v1970
        %2006 = vset.pattern.permute.xlu0 18
        %2007 = vperm.xlu0 %2006, %v391
        %v2008 = vpop.permute.xlu0 %2007
        %2010 = vset.pattern.permute.xlu0 18
        %2011 = vperm.xlu0 %2010, %v392
        %v2012 = vpop.permute.xlu0 %2011
        %v2014 = vmul.f32 %v2008, %v408
        %v2015 = vmul.f32 %v2008, %v412
        %v2016 = vmul.f32 %v2008, %v416
        %v2017 = vmul.f32 %v2008, %v420
        %v2018 = vmul.f32 %v2008, %v424
        %v2019 = vmul.f32 %v2008, %v428
        %v2020 = vmul.f32 %v2012, %v408
        %v2021 = vmul.f32 %v2012, %v412
        %v2022 = vmul.f32 %v2012, %v416
        %v2023 = vmul.f32 %v2012, %v420
        %v2024 = vmul.f32 %v2012, %v424
        %v2025 = vmul.f32 %v2012, %v428
        %2038 = vrot.lane.b32.xlu0 %v2014, 41
        %v2039 = vpop.permute.xlu0 %2038
        %2040 = vrot.lane.b32.xlu0 %v2015, 41
        %v2041 = vpop.permute.xlu0 %2040
        %2042 = vrot.lane.b32.xlu0 %v2016, 41
        %v2043 = vpop.permute.xlu0 %2042
        %2044 = vrot.lane.b32.xlu0 %v2017, 41
        %v2045 = vpop.permute.xlu0 %2044
        %2046 = vrot.lane.b32.xlu0 %v2018, 41
        %v2047 = vpop.permute.xlu0 %2046
        %2048 = vrot.lane.b32.xlu0 %v2019, 41
        %v2049 = vpop.permute.xlu0 %2048
        %2050 = vrot.lane.b32.xlu0 %v2020, 41
        %v2051 = vpop.permute.xlu0 %2050
        %2052 = vrot.lane.b32.xlu0 %v2021, 41
        %v2053 = vpop.permute.xlu0 %2052
        %2054 = vrot.lane.b32.xlu0 %v2022, 41
        %v2055 = vpop.permute.xlu0 %2054
        %2056 = vrot.lane.b32.xlu0 %v2023, 41
        %v2057 = vpop.permute.xlu0 %2056
        %2058 = vrot.lane.b32.xlu0 %v2024, 41
        %v2059 = vpop.permute.xlu0 %2058
        %2060 = vrot.lane.b32.xlu0 %v2025, 41
        %v2061 = vpop.permute.xlu0 %2060
        %vm2062 = vcmask 334848
        %v2063 = vsel %vm2062, %v2039, %v2041
        %v2064 = vsel %vm2062, %v2041, %v2043
        %v2065 = vsel %vm2062, %v2043, %v2045
        %v2066 = vsel %vm2062, %v2045, %v2047
        %v2067 = vsel %vm2062, %v2047, %v2049
        %v2068 = vsel %vm2062, %v2051, %v2053
        %v2069 = vsel %vm2062, %v2053, %v2055
        %v2070 = vsel %vm2062, %v2055, %v2057
        %v2071 = vsel %vm2062, %v2057, %v2059
        %v2072 = vsel %vm2062, %v2059, %v2061
        %v2085 = vadd.f32 %v1994, %v2063
        %v2086 = vadd.f32 %v1995, %v2064
        %v2087 = vadd.f32 %v1996, %v2065
        %v2088 = vadd.f32 %v1997, %v2066
        %v2089 = vadd.f32 %v1998, %v2067
        %v2090 = vadd.f32 %v1999, %v2049
        %v2091 = vadd.f32 %v2000, %v2068
        %v2092 = vadd.f32 %v2001, %v2069
        %v2093 = vadd.f32 %v2002, %v2070
        %v2094 = vadd.f32 %v2003, %v2071
        %v2095 = vadd.f32 %v2004, %v2072
        %v2096 = vadd.f32 %v2005, %v2061
        %2097 = vset.pattern.permute.xlu0 19
        %2098 = vperm.xlu0 %2097, %v391
        %v2099 = vpop.permute.xlu0 %2098
        %2101 = vset.pattern.permute.xlu0 19
        %2102 = vperm.xlu0 %2101, %v392
        %v2103 = vpop.permute.xlu0 %2102
        %v2105 = vmul.f32 %v2099, %v408
        %v2106 = vmul.f32 %v2099, %v412
        %v2107 = vmul.f32 %v2099, %v416
        %v2108 = vmul.f32 %v2099, %v420
        %v2109 = vmul.f32 %v2099, %v424
        %v2110 = vmul.f32 %v2099, %v428
        %v2111 = vmul.f32 %v2103, %v408
        %v2112 = vmul.f32 %v2103, %v412
        %v2113 = vmul.f32 %v2103, %v416
        %v2114 = vmul.f32 %v2103, %v420
        %v2115 = vmul.f32 %v2103, %v424
        %v2116 = vmul.f32 %v2103, %v428
        %2129 = vrot.lane.b32.xlu0 %v2105, 40
        %v2130 = vpop.permute.xlu0 %2129
        %2131 = vrot.lane.b32.xlu0 %v2106, 40
        %v2132 = vpop.permute.xlu0 %2131
        %2133 = vrot.lane.b32.xlu0 %v2107, 40
        %v2134 = vpop.permute.xlu0 %2133
        %2135 = vrot.lane.b32.xlu0 %v2108, 40
        %v2136 = vpop.permute.xlu0 %2135
        %2137 = vrot.lane.b32.xlu0 %v2109, 40
        %v2138 = vpop.permute.xlu0 %2137
        %2139 = vrot.lane.b32.xlu0 %v2110, 40
        %v2140 = vpop.permute.xlu0 %2139
        %2141 = vrot.lane.b32.xlu0 %v2111, 40
        %v2142 = vpop.permute.xlu0 %2141
        %2143 = vrot.lane.b32.xlu0 %v2112, 40
        %v2144 = vpop.permute.xlu0 %2143
        %2145 = vrot.lane.b32.xlu0 %v2113, 40
        %v2146 = vpop.permute.xlu0 %2145
        %2147 = vrot.lane.b32.xlu0 %v2114, 40
        %v2148 = vpop.permute.xlu0 %2147
        %2149 = vrot.lane.b32.xlu0 %v2115, 40
        %v2150 = vpop.permute.xlu0 %2149
        %2151 = vrot.lane.b32.xlu0 %v2116, 40
        %v2152 = vpop.permute.xlu0 %2151
        %vm2153 = vcmask 326656
        %v2154 = vsel %vm2153, %v2130, %v2132
        %v2155 = vsel %vm2153, %v2132, %v2134
        %v2156 = vsel %vm2153, %v2134, %v2136
        %v2157 = vsel %vm2153, %v2136, %v2138
        %v2158 = vsel %vm2153, %v2138, %v2140
        %v2159 = vsel %vm2153, %v2142, %v2144
        %v2160 = vsel %vm2153, %v2144, %v2146
        %v2161 = vsel %vm2153, %v2146, %v2148
        %v2162 = vsel %vm2153, %v2148, %v2150
        %v2163 = vsel %vm2153, %v2150, %v2152
        %v2176 = vadd.f32 %v2085, %v2154
        %v2177 = vadd.f32 %v2086, %v2155
        %v2178 = vadd.f32 %v2087, %v2156
        %v2179 = vadd.f32 %v2088, %v2157
        %v2180 = vadd.f32 %v2089, %v2158
        %v2181 = vadd.f32 %v2090, %v2140
        %v2182 = vadd.f32 %v2091, %v2159
        %v2183 = vadd.f32 %v2092, %v2160
        %v2184 = vadd.f32 %v2093, %v2161
        %v2185 = vadd.f32 %v2094, %v2162
        %v2186 = vadd.f32 %v2095, %v2163
        %v2187 = vadd.f32 %v2096, %v2152
        %v2188 = vld [vmem:[%s390] sm:$0x7f]
        %2189 = vset.pattern.permute.xlu0 20
        %2190 = vperm.xlu0 %2189, %v391
        %v2191 = vpop.permute.xlu0 %2190
        %2193 = vset.pattern.permute.xlu0 20
        %2194 = vperm.xlu0 %2193, %v392
        %v2195 = vpop.permute.xlu0 %2194
        %v2198 = vlaneseq
        %v2199 = vshrl.u32 %v2198, 7
        %v2200 = vsub.s32 0, %v2199
        %v2201 = vrot.slane %v2188, %v2200
        %v2202 = vlaneseq
        %v2203 = vshrl.u32 %v2202, 7
        %v2204 = vsub.s32 1, %v2203
        %v2205 = vrot.slane %v2188, %v2204
        %v2206 = vlaneseq
        %v2207 = vshrl.u32 %v2206, 7
        %v2208 = vsub.s32 2, %v2207
        %v2209 = vrot.slane %v2188, %v2208
        %v2210 = vlaneseq
        %v2211 = vshrl.u32 %v2210, 7
        %v2212 = vsub.s32 3, %v2211
        %v2213 = vrot.slane %v2188, %v2212
        %v2214 = vlaneseq
        %v2215 = vshrl.u32 %v2214, 7
        %v2216 = vsub.s32 4, %v2215
        %v2217 = vrot.slane %v2188, %v2216
        %v2218 = vlaneseq
        %v2219 = vshrl.u32 %v2218, 7
        %v2220 = vsub.s32 5, %v2219
        %v2221 = vrot.slane %v2188, %v2220
        %v2222 = vlaneseq
        %v2223 = vshrl.u32 %v2222, 7
        %v2224 = vsub.s32 6, %v2223
        %v2225 = vrot.slane %v2188, %v2224
        %v2233 = vmul.f32 %v2191, %v2201
        %v2234 = vmul.f32 %v2191, %v2205
        %v2235 = vmul.f32 %v2191, %v2209
        %v2236 = vmul.f32 %v2191, %v2213
        %v2237 = vmul.f32 %v2191, %v2217
        %v2238 = vmul.f32 %v2191, %v2221
        %v2239 = vmul.f32 %v2191, %v2225
        %v2240 = vmul.f32 %v2195, %v2201
        %v2241 = vmul.f32 %v2195, %v2205
        %v2242 = vmul.f32 %v2195, %v2209
        %v2243 = vmul.f32 %v2195, %v2213
        %v2244 = vmul.f32 %v2195, %v2217
        %v2245 = vmul.f32 %v2195, %v2221
        %v2246 = vmul.f32 %v2195, %v2225
        %2261 = vrot.lane.b32.xlu0 %v2233, 16
        %v2262 = vpop.permute.xlu0 %2261
        %2263 = vrot.lane.b32.xlu0 %v2234, 16
        %v2264 = vpop.permute.xlu0 %2263
        %2265 = vrot.lane.b32.xlu0 %v2235, 16
        %v2266 = vpop.permute.xlu0 %2265
        %2267 = vrot.lane.b32.xlu0 %v2236, 16
        %v2268 = vpop.permute.xlu0 %2267
        %2269 = vrot.lane.b32.xlu0 %v2237, 16
        %v2270 = vpop.permute.xlu0 %2269
        %2271 = vrot.lane.b32.xlu0 %v2238, 16
        %v2272 = vpop.permute.xlu0 %2271
        %2273 = vrot.lane.b32.xlu0 %v2239, 16
        %v2274 = vpop.permute.xlu0 %2273
        %2275 = vrot.lane.b32.xlu0 %v2240, 16
        %v2276 = vpop.permute.xlu0 %2275
        %2277 = vrot.lane.b32.xlu0 %v2241, 16
        %v2278 = vpop.permute.xlu0 %2277
        %2279 = vrot.lane.b32.xlu0 %v2242, 16
        %v2280 = vpop.permute.xlu0 %2279
        %2281 = vrot.lane.b32.xlu0 %v2243, 16
        %v2282 = vpop.permute.xlu0 %2281
        %2283 = vrot.lane.b32.xlu0 %v2244, 16
        %v2284 = vpop.permute.xlu0 %2283
        %2285 = vrot.lane.b32.xlu0 %v2245, 16
        %v2286 = vpop.permute.xlu0 %2285
        %2287 = vrot.lane.b32.xlu0 %v2246, 16
        %v2288 = vpop.permute.xlu0 %2287
        %vm2289 = vcmask 130048
        %v2290 = vsel %vm2289, %v2262, %v2264
        %v2291 = vsel %vm2289, %v2264, %v2266
        %v2292 = vsel %vm2289, %v2266, %v2268
        %v2293 = vsel %vm2289, %v2268, %v2270
        %v2294 = vsel %vm2289, %v2270, %v2272
        %v2295 = vsel %vm2289, %v2272, %v2274
        %v2296 = vsel %vm2289, %v2276, %v2278
        %v2297 = vsel %vm2289, %v2278, %v2280
        %v2298 = vsel %vm2289, %v2280, %v2282
        %v2299 = vsel %vm2289, %v2282, %v2284
        %v2300 = vsel %vm2289, %v2284, %v2286
        %v2301 = vsel %vm2289, %v2286, %v2288
        %v2314 = vadd.f32 %v2176, %v2290
        %v2315 = vadd.f32 %v2177, %v2291
        %v2316 = vadd.f32 %v2178, %v2292
        %v2317 = vadd.f32 %v2179, %v2293
        %v2318 = vadd.f32 %v2180, %v2294
        %v2319 = vadd.f32 %v2181, %v2295
        %v2320 = vadd.f32 %v2182, %v2296
        %v2321 = vadd.f32 %v2183, %v2297
        %v2322 = vadd.f32 %v2184, %v2298
        %v2323 = vadd.f32 %v2185, %v2299
        %v2324 = vadd.f32 %v2186, %v2300
        %v2325 = vadd.f32 %v2187, %v2301
        %2326 = vset.pattern.permute.xlu0 21
        %2327 = vperm.xlu0 %2326, %v391
        %v2328 = vpop.permute.xlu0 %2327
        %2330 = vset.pattern.permute.xlu0 21
        %2331 = vperm.xlu0 %2330, %v392
        %v2332 = vpop.permute.xlu0 %2331
        %v2334 = vmul.f32 %v2328, %v2201
        %v2335 = vmul.f32 %v2328, %v2205
        %v2336 = vmul.f32 %v2328, %v2209
        %v2337 = vmul.f32 %v2328, %v2213
        %v2338 = vmul.f32 %v2328, %v2217
        %v2339 = vmul.f32 %v2328, %v2221
        %v2340 = vmul.f32 %v2328, %v2225
        %v2341 = vmul.f32 %v2332, %v2201
        %v2342 = vmul.f32 %v2332, %v2205
        %v2343 = vmul.f32 %v2332, %v2209
        %v2344 = vmul.f32 %v2332, %v2213
        %v2345 = vmul.f32 %v2332, %v2217
        %v2346 = vmul.f32 %v2332, %v2221
        %v2347 = vmul.f32 %v2332, %v2225
        %2362 = vrot.lane.b32.xlu0 %v2334, 15
        %v2363 = vpop.permute.xlu0 %2362
        %2364 = vrot.lane.b32.xlu0 %v2335, 15
        %v2365 = vpop.permute.xlu0 %2364
        %2366 = vrot.lane.b32.xlu0 %v2336, 15
        %v2367 = vpop.permute.xlu0 %2366
        %2368 = vrot.lane.b32.xlu0 %v2337, 15
        %v2369 = vpop.permute.xlu0 %2368
        %2370 = vrot.lane.b32.xlu0 %v2338, 15
        %v2371 = vpop.permute.xlu0 %2370
        %2372 = vrot.lane.b32.xlu0 %v2339, 15
        %v2373 = vpop.permute.xlu0 %2372
        %2374 = vrot.lane.b32.xlu0 %v2340, 15
        %v2375 = vpop.permute.xlu0 %2374
        %2376 = vrot.lane.b32.xlu0 %v2341, 15
        %v2377 = vpop.permute.xlu0 %2376
        %2378 = vrot.lane.b32.xlu0 %v2342, 15
        %v2379 = vpop.permute.xlu0 %2378
        %2380 = vrot.lane.b32.xlu0 %v2343, 15
        %v2381 = vpop.permute.xlu0 %2380
        %2382 = vrot.lane.b32.xlu0 %v2344, 15
        %v2383 = vpop.permute.xlu0 %2382
        %2384 = vrot.lane.b32.xlu0 %v2345, 15
        %v2385 = vpop.permute.xlu0 %2384
        %2386 = vrot.lane.b32.xlu0 %v2346, 15
        %v2387 = vpop.permute.xlu0 %2386
        %2388 = vrot.lane.b32.xlu0 %v2347, 15
        %v2389 = vpop.permute.xlu0 %2388
        %vm2390 = vcmask 121856
        %v2391 = vsel %vm2390, %v2363, %v2365
        %v2392 = vsel %vm2390, %v2365, %v2367
        %v2393 = vsel %vm2390, %v2367, %v2369
        %v2394 = vsel %vm2390, %v2369, %v2371
        %v2395 = vsel %vm2390, %v2371, %v2373
        %v2396 = vsel %vm2390, %v2373, %v2375
        %v2397 = vsel %vm2390, %v2377, %v2379
        %v2398 = vsel %vm2390, %v2379, %v2381
        %v2399 = vsel %vm2390, %v2381, %v2383
        %v2400 = vsel %vm2390, %v2383, %v2385
        %v2401 = vsel %vm2390, %v2385, %v2387
        %v2402 = vsel %vm2390, %v2387, %v2389
        %v2415 = vadd.f32 %v2314, %v2391
        %v2416 = vadd.f32 %v2315, %v2392
        %v2417 = vadd.f32 %v2316, %v2393
        %v2418 = vadd.f32 %v2317, %v2394
        %v2419 = vadd.f32 %v2318, %v2395
        %v2420 = vadd.f32 %v2319, %v2396
        %v2421 = vadd.f32 %v2320, %v2397
        %v2422 = vadd.f32 %v2321, %v2398
        %v2423 = vadd.f32 %v2322, %v2399
        %v2424 = vadd.f32 %v2323, %v2400
        %v2425 = vadd.f32 %v2324, %v2401
        %v2426 = vadd.f32 %v2325, %v2402
        %2427 = vset.pattern.permute.xlu0 22
        %2428 = vperm.xlu0 %2427, %v391
        %v2429 = vpop.permute.xlu0 %2428
        %2431 = vset.pattern.permute.xlu0 22
        %2432 = vperm.xlu0 %2431, %v392
        %v2433 = vpop.permute.xlu0 %2432
        %v2435 = vmul.f32 %v2429, %v2201
        %v2436 = vmul.f32 %v2429, %v2205
        %v2437 = vmul.f32 %v2429, %v2209
        %v2438 = vmul.f32 %v2429, %v2213
        %v2439 = vmul.f32 %v2429, %v2217
        %v2440 = vmul.f32 %v2429, %v2221
        %v2441 = vmul.f32 %v2429, %v2225
        %v2442 = vmul.f32 %v2433, %v2201
        %v2443 = vmul.f32 %v2433, %v2205
        %v2444 = vmul.f32 %v2433, %v2209
        %v2445 = vmul.f32 %v2433, %v2213
        %v2446 = vmul.f32 %v2433, %v2217
        %v2447 = vmul.f32 %v2433, %v2221
        %v2448 = vmul.f32 %v2433, %v2225
        %2463 = vrot.lane.b32.xlu0 %v2435, 14
        %v2464 = vpop.permute.xlu0 %2463
        %2465 = vrot.lane.b32.xlu0 %v2436, 14
        %v2466 = vpop.permute.xlu0 %2465
        %2467 = vrot.lane.b32.xlu0 %v2437, 14
        %v2468 = vpop.permute.xlu0 %2467
        %2469 = vrot.lane.b32.xlu0 %v2438, 14
        %v2470 = vpop.permute.xlu0 %2469
        %2471 = vrot.lane.b32.xlu0 %v2439, 14
        %v2472 = vpop.permute.xlu0 %2471
        %2473 = vrot.lane.b32.xlu0 %v2440, 14
        %v2474 = vpop.permute.xlu0 %2473
        %2475 = vrot.lane.b32.xlu0 %v2441, 14
        %v2476 = vpop.permute.xlu0 %2475
        %2477 = vrot.lane.b32.xlu0 %v2442, 14
        %v2478 = vpop.permute.xlu0 %2477
        %2479 = vrot.lane.b32.xlu0 %v2443, 14
        %v2480 = vpop.permute.xlu0 %2479
        %2481 = vrot.lane.b32.xlu0 %v2444, 14
        %v2482 = vpop.permute.xlu0 %2481
        %2483 = vrot.lane.b32.xlu0 %v2445, 14
        %v2484 = vpop.permute.xlu0 %2483
        %2485 = vrot.lane.b32.xlu0 %v2446, 14
        %v2486 = vpop.permute.xlu0 %2485
        %2487 = vrot.lane.b32.xlu0 %v2447, 14
        %v2488 = vpop.permute.xlu0 %2487
        %2489 = vrot.lane.b32.xlu0 %v2448, 14
        %v2490 = vpop.permute.xlu0 %2489
        %vm2491 = vcmask 113664
        %v2492 = vsel %vm2491, %v2464, %v2466
        %v2493 = vsel %vm2491, %v2466, %v2468
        %v2494 = vsel %vm2491, %v2468, %v2470
        %v2495 = vsel %vm2491, %v2470, %v2472
        %v2496 = vsel %vm2491, %v2472, %v2474
        %v2497 = vsel %vm2491, %v2474, %v2476
        %v2498 = vsel %vm2491, %v2478, %v2480
        %v2499 = vsel %vm2491, %v2480, %v2482
        %v2500 = vsel %vm2491, %v2482, %v2484
        %v2501 = vsel %vm2491, %v2484, %v2486
        %v2502 = vsel %vm2491, %v2486, %v2488
        %v2503 = vsel %vm2491, %v2488, %v2490
        %v2516 = vadd.f32 %v2415, %v2492
        %v2517 = vadd.f32 %v2416, %v2493
        %v2518 = vadd.f32 %v2417, %v2494
        %v2519 = vadd.f32 %v2418, %v2495
        %v2520 = vadd.f32 %v2419, %v2496
        %v2521 = vadd.f32 %v2420, %v2497
        %v2522 = vadd.f32 %v2421, %v2498
        %v2523 = vadd.f32 %v2422, %v2499
        %v2524 = vadd.f32 %v2423, %v2500
        %v2525 = vadd.f32 %v2424, %v2501
        %v2526 = vadd.f32 %v2425, %v2502
        %v2527 = vadd.f32 %v2426, %v2503
        %2528 = vset.pattern.permute.xlu0 23
        %2529 = vperm.xlu0 %2528, %v391
        %v2530 = vpop.permute.xlu0 %2529
        %2532 = vset.pattern.permute.xlu0 23
        %2533 = vperm.xlu0 %2532, %v392
        %v2534 = vpop.permute.xlu0 %2533
        %v2536 = vmul.f32 %v2530, %v2201
        %v2537 = vmul.f32 %v2530, %v2205
        %v2538 = vmul.f32 %v2530, %v2209
        %v2539 = vmul.f32 %v2530, %v2213
        %v2540 = vmul.f32 %v2530, %v2217
        %v2541 = vmul.f32 %v2530, %v2221
        %v2542 = vmul.f32 %v2530, %v2225
        %v2543 = vmul.f32 %v2534, %v2201
        %v2544 = vmul.f32 %v2534, %v2205
        %v2545 = vmul.f32 %v2534, %v2209
        %v2546 = vmul.f32 %v2534, %v2213
        %v2547 = vmul.f32 %v2534, %v2217
        %v2548 = vmul.f32 %v2534, %v2221
        %v2549 = vmul.f32 %v2534, %v2225
        %2564 = vrot.lane.b32.xlu0 %v2536, 13
        %v2565 = vpop.permute.xlu0 %2564
        %2566 = vrot.lane.b32.xlu0 %v2537, 13
        %v2567 = vpop.permute.xlu0 %2566
        %2568 = vrot.lane.b32.xlu0 %v2538, 13
        %v2569 = vpop.permute.xlu0 %2568
        %2570 = vrot.lane.b32.xlu0 %v2539, 13
        %v2571 = vpop.permute.xlu0 %2570
        %2572 = vrot.lane.b32.xlu0 %v2540, 13
        %v2573 = vpop.permute.xlu0 %2572
        %2574 = vrot.lane.b32.xlu0 %v2541, 13
        %v2575 = vpop.permute.xlu0 %2574
        %2576 = vrot.lane.b32.xlu0 %v2542, 13
        %v2577 = vpop.permute.xlu0 %2576
        %2578 = vrot.lane.b32.xlu0 %v2543, 13
        %v2579 = vpop.permute.xlu0 %2578
        %2580 = vrot.lane.b32.xlu0 %v2544, 13
        %v2581 = vpop.permute.xlu0 %2580
        %2582 = vrot.lane.b32.xlu0 %v2545, 13
        %v2583 = vpop.permute.xlu0 %2582
        %2584 = vrot.lane.b32.xlu0 %v2546, 13
        %v2585 = vpop.permute.xlu0 %2584
        %2586 = vrot.lane.b32.xlu0 %v2547, 13
        %v2587 = vpop.permute.xlu0 %2586
        %2588 = vrot.lane.b32.xlu0 %v2548, 13
        %v2589 = vpop.permute.xlu0 %2588
        %2590 = vrot.lane.b32.xlu0 %v2549, 13
        %v2591 = vpop.permute.xlu0 %2590
        %vm2592 = vcmask 105472
        %v2593 = vsel %vm2592, %v2565, %v2567
        %v2594 = vsel %vm2592, %v2567, %v2569
        %v2595 = vsel %vm2592, %v2569, %v2571
        %v2596 = vsel %vm2592, %v2571, %v2573
        %v2597 = vsel %vm2592, %v2573, %v2575
        %v2598 = vsel %vm2592, %v2575, %v2577
        %v2599 = vsel %vm2592, %v2579, %v2581
        %v2600 = vsel %vm2592, %v2581, %v2583
        %v2601 = vsel %vm2592, %v2583, %v2585
        %v2602 = vsel %vm2592, %v2585, %v2587
        %v2603 = vsel %vm2592, %v2587, %v2589
        %v2604 = vsel %vm2592, %v2589, %v2591
        %v2617 = vadd.f32 %v2516, %v2593
        %v2618 = vadd.f32 %v2517, %v2594
        %v2619 = vadd.f32 %v2518, %v2595
        %v2620 = vadd.f32 %v2519, %v2596
        %v2621 = vadd.f32 %v2520, %v2597
        %v2622 = vadd.f32 %v2521, %v2598
        %v2623 = vadd.f32 %v2522, %v2599
        %v2624 = vadd.f32 %v2523, %v2600
        %v2625 = vadd.f32 %v2524, %v2601
        %v2626 = vadd.f32 %v2525, %v2602
        %v2627 = vadd.f32 %v2526, %v2603
        %v2628 = vadd.f32 %v2527, %v2604
        %2629 = vset.pattern.permute.xlu0 24
        %2630 = vperm.xlu0 %2629, %v391
        %v2631 = vpop.permute.xlu0 %2630
        %2633 = vset.pattern.permute.xlu0 24
        %2634 = vperm.xlu0 %2633, %v392
        %v2635 = vpop.permute.xlu0 %2634
        %v2637 = vmul.f32 %v2631, %v2201
        %v2638 = vmul.f32 %v2631, %v2205
        %v2639 = vmul.f32 %v2631, %v2209
        %v2640 = vmul.f32 %v2631, %v2213
        %v2641 = vmul.f32 %v2631, %v2217
        %v2642 = vmul.f32 %v2631, %v2221
        %v2643 = vmul.f32 %v2631, %v2225
        %v2644 = vmul.f32 %v2635, %v2201
        %v2645 = vmul.f32 %v2635, %v2205
        %v2646 = vmul.f32 %v2635, %v2209
        %v2647 = vmul.f32 %v2635, %v2213
        %v2648 = vmul.f32 %v2635, %v2217
        %v2649 = vmul.f32 %v2635, %v2221
        %v2650 = vmul.f32 %v2635, %v2225
        %2665 = vrot.lane.b32.xlu0 %v2637, 12
        %v2666 = vpop.permute.xlu0 %2665
        %2667 = vrot.lane.b32.xlu0 %v2638, 12
        %v2668 = vpop.permute.xlu0 %2667
        %2669 = vrot.lane.b32.xlu0 %v2639, 12
        %v2670 = vpop.permute.xlu0 %2669
        %2671 = vrot.lane.b32.xlu0 %v2640, 12
        %v2672 = vpop.permute.xlu0 %2671
        %2673 = vrot.lane.b32.xlu0 %v2641, 12
        %v2674 = vpop.permute.xlu0 %2673
        %2675 = vrot.lane.b32.xlu0 %v2642, 12
        %v2676 = vpop.permute.xlu0 %2675
        %2677 = vrot.lane.b32.xlu0 %v2643, 12
        %v2678 = vpop.permute.xlu0 %2677
        %2679 = vrot.lane.b32.xlu0 %v2644, 12
        %v2680 = vpop.permute.xlu0 %2679
        %2681 = vrot.lane.b32.xlu0 %v2645, 12
        %v2682 = vpop.permute.xlu0 %2681
        %2683 = vrot.lane.b32.xlu0 %v2646, 12
        %v2684 = vpop.permute.xlu0 %2683
        %2685 = vrot.lane.b32.xlu0 %v2647, 12
        %v2686 = vpop.permute.xlu0 %2685
        %2687 = vrot.lane.b32.xlu0 %v2648, 12
        %v2688 = vpop.permute.xlu0 %2687
        %2689 = vrot.lane.b32.xlu0 %v2649, 12
        %v2690 = vpop.permute.xlu0 %2689
        %2691 = vrot.lane.b32.xlu0 %v2650, 12
        %v2692 = vpop.permute.xlu0 %2691
        %vm2693 = vcmask 97280
        %v2694 = vsel %vm2693, %v2666, %v2668
        %v2695 = vsel %vm2693, %v2668, %v2670
        %v2696 = vsel %vm2693, %v2670, %v2672
        %v2697 = vsel %vm2693, %v2672, %v2674
        %v2698 = vsel %vm2693, %v2674, %v2676
        %v2699 = vsel %vm2693, %v2676, %v2678
        %v2700 = vsel %vm2693, %v2680, %v2682
        %v2701 = vsel %vm2693, %v2682, %v2684
        %v2702 = vsel %vm2693, %v2684, %v2686
        %v2703 = vsel %vm2693, %v2686, %v2688
        %v2704 = vsel %vm2693, %v2688, %v2690
        %v2705 = vsel %vm2693, %v2690, %v2692
        %v2718 = vadd.f32 %v2617, %v2694
        %v2719 = vadd.f32 %v2618, %v2695
        %v2720 = vadd.f32 %v2619, %v2696
        %v2721 = vadd.f32 %v2620, %v2697
        %v2722 = vadd.f32 %v2621, %v2698
        %v2723 = vadd.f32 %v2622, %v2699
        %v2724 = vadd.f32 %v2623, %v2700
        %v2725 = vadd.f32 %v2624, %v2701
        %v2726 = vadd.f32 %v2625, %v2702
        %v2727 = vadd.f32 %v2626, %v2703
        %v2728 = vadd.f32 %v2627, %v2704
        %v2729 = vadd.f32 %v2628, %v2705
        %2730 = vst [vmem:[#allocation2] sm:$0xff] %v2718
        %2731 = vst [vmem:[#allocation2 + $0x8] sm:$0xff] %v2719
        %2732 = vst [vmem:[#allocation2 + $0x10] sm:$0xff] %v2720
        %2733 = vst [vmem:[#allocation2 + $0x18] sm:$0xff] %v2721
        %2734 = vst [vmem:[#allocation2 + $0x20] sm:$0xff] %v2722
        %vm2735 = vcmask 228352
        %2736 = vst.msk [vmem:[#allocation2 + $0x28] sm:$0xff] %vm2735, %v2723
        %2737 = vst [vmem:[#allocation2 + $0x30] sm:$0x3] %v2724
        %2738 = vst [vmem:[#allocation2 + $0x38] sm:$0x3] %v2725
        %2739 = vst [vmem:[#allocation2 + $0x40] sm:$0x3] %v2726
        %2740 = vst [vmem:[#allocation2 + $0x48] sm:$0x3] %v2727
        %2741 = vst [vmem:[#allocation2 + $0x50] sm:$0x3] %v2728
        %vm2742 = vcmask 222208
        %2743 = vst.msk [vmem:[#allocation2 + $0x58] sm:$0x3] %vm2742, %v2729
        %v2744 = vld [vmem:[#allocation2] sm:$0xff]
        %v2745 = vld [vmem:[#allocation2 + $0x8] sm:$0xff]
        %v2746 = vld [vmem:[#allocation2 + $0x10] sm:$0xff]
        %v2747 = vld [vmem:[#allocation2 + $0x18] sm:$0xff]
        %v2748 = vld [vmem:[#allocation2 + $0x20] sm:$0xff]
        %v2749 = vld [vmem:[#allocation2 + $0x30] sm:$0x3]
        %v2750 = vld [vmem:[#allocation2 + $0x38] sm:$0x3]
        %v2751 = vld [vmem:[#allocation2 + $0x40] sm:$0x3]
        %v2752 = vld [vmem:[#allocation2 + $0x48] sm:$0x3]
        %v2753 = vld [vmem:[#allocation2 + $0x50] sm:$0x3]
        %2764 = vrot.lane.b32.xlu0 %v2744, 127
        %v2765 = vpop.permute.xlu0 %2764
        %2766 = vrot.lane.b32.xlu0 %v2745, 127
        %v2767 = vpop.permute.xlu0 %2766
        %2768 = vrot.lane.b32.xlu0 %v2746, 127
        %v2769 = vpop.permute.xlu0 %2768
        %2770 = vrot.lane.b32.xlu0 %v2747, 127
        %v2771 = vpop.permute.xlu0 %2770
        %2772 = vrot.lane.b32.xlu0 %v2748, 127
        %v2773 = vpop.permute.xlu0 %2772
        %2774 = vrot.lane.b32.xlu0 %v2749, 127
        %v2775 = vpop.permute.xlu0 %2774
        %2776 = vrot.lane.b32.xlu0 %v2750, 127
        %v2777 = vpop.permute.xlu0 %2776
        %2778 = vrot.lane.b32.xlu0 %v2751, 127
        %v2779 = vpop.permute.xlu0 %2778
        %2780 = vrot.lane.b32.xlu0 %v2752, 127
        %v2781 = vpop.permute.xlu0 %2780
        %2782 = vrot.lane.b32.xlu0 %v2753, 127
        %v2783 = vpop.permute.xlu0 %2782
        %v2784 = vsel %vm515, %v2765, %v2767
        %v2785 = vsel %vm515, %v2767, %v2769
        %v2786 = vsel %vm515, %v2769, %v2771
        %v2787 = vsel %vm515, %v2771, %v2773
        %v2788 = vsel %vm515, %v2775, %v2777
        %v2789 = vsel %vm515, %v2777, %v2779
        %v2790 = vsel %vm515, %v2779, %v2781
        %v2791 = vsel %vm515, %v2781, %v2783
        %v2802 = vmax.f32 %v2744, %v2784
        %v2803 = vmax.f32 %v2745, %v2785
        %v2804 = vmax.f32 %v2746, %v2786
        %v2805 = vmax.f32 %v2747, %v2787
        %v2806 = vmax.f32 %v2748, %v2773
        %v2807 = vmax.f32 %v2749, %v2788
        %v2808 = vmax.f32 %v2750, %v2789
        %v2809 = vmax.f32 %v2751, %v2790
        %v2810 = vmax.f32 %v2752, %v2791
        %v2811 = vmax.f32 %v2753, %v2783
        %v2812 = vld [vmem:[#allocation2 + $0x28] sm:$0xff]
        %v2813 = vld [vmem:[#allocation2 + $0x58] sm:$0x3]
        %2816 = vrot.lane.b32.xlu0 %v2812, 127
        %v2817 = vpop.permute.xlu0 %2816
        %2818 = vrot.lane.b32.xlu0 %v2813, 127
        %v2819 = vpop.permute.xlu0 %2818
        %v2820 = vsel %vm515, %v2773, %v2817
        %v2821 = vsel %vm515, %v2783, %v2819
        %v2826 = vmax.f32 %v2748, %v2820
        %v2827 = vmax.f32 %v2812, %v2817
        %v2828 = vmax.f32 %v2753, %v2821
        %v2829 = vmax.f32 %v2813, %v2819
        %2842 = vrot.lane.b32.xlu0 %v2802, 100
        %v2843 = vpop.permute.xlu0 %2842
        %2844 = vrot.lane.b32.xlu0 %v2803, 100
        %v2845 = vpop.permute.xlu0 %2844
        %2846 = vrot.lane.b32.xlu0 %v2804, 100
        %v2847 = vpop.permute.xlu0 %2846
        %2848 = vrot.lane.b32.xlu0 %v2805, 100
        %v2849 = vpop.permute.xlu0 %2848
        %2850 = vrot.lane.b32.xlu0 %v2826, 100
        %v2851 = vpop.permute.xlu0 %2850
        %2852 = vrot.lane.b32.xlu0 %v2827, 100
        %v2853 = vpop.permute.xlu0 %2852
        %2854 = vrot.lane.b32.xlu0 %v2807, 100
        %v2855 = vpop.permute.xlu0 %2854
        %2856 = vrot.lane.b32.xlu0 %v2808, 100
        %v2857 = vpop.permute.xlu0 %2856
        %2858 = vrot.lane.b32.xlu0 %v2809, 100
        %v2859 = vpop.permute.xlu0 %2858
        %2860 = vrot.lane.b32.xlu0 %v2810, 100
        %v2861 = vpop.permute.xlu0 %2860
        %2862 = vrot.lane.b32.xlu0 %v2828, 100
        %v2863 = vpop.permute.xlu0 %2862
        %2864 = vrot.lane.b32.xlu0 %v2829, 100
        %v2865 = vpop.permute.xlu0 %2864
        %v2866 = vsel %vm879, %v2843, %v2845
        %v2867 = vsel %vm879, %v2845, %v2847
        %v2868 = vsel %vm879, %v2847, %v2849
        %v2869 = vsel %vm879, %v2849, %v2851
        %v2870 = vsel %vm879, %v2851, %v2853
        %v2871 = vsel %vm879, %v2855, %v2857
        %v2872 = vsel %vm879, %v2857, %v2859
        %v2873 = vsel %vm879, %v2859, %v2861
        %v2874 = vsel %vm879, %v2861, %v2863
        %v2875 = vsel %vm879, %v2863, %v2865
        %v2886 = vmax.f32 %v2802, %v2866
        %v2887 = vmax.f32 %v2803, %v2867
        %v2888 = vmax.f32 %v2804, %v2868
        %v2889 = vmax.f32 %v2805, %v2869
        %v2890 = vmax.f32 %v2806, %v2870
        %v2891 = vmax.f32 %v2807, %v2871
        %v2892 = vmax.f32 %v2808, %v2872
        %v2893 = vmax.f32 %v2809, %v2873
        %v2894 = vmax.f32 %v2810, %v2874
        %v2895 = vmax.f32 %v2811, %v2875
        %v2896 = vld [vmem:[%s2] sm:$0xff]
        %v2897 = vld [vmem:[%s2 + $0x8] sm:$0x3]
        %2899 = vset.pattern.permute.xlu0 0
        %2900 = vperm.xlu0 %2899, %v2896
        %v2901 = vpop.permute.xlu0 %2900
        %2904 = vset.pattern.permute.xlu0 0
        %2905 = vperm.xlu0 %2904, %v2897
        %v2906 = vpop.permute.xlu0 %2905
        %v2908 = vadd.f32 %v2886, %v2901
        %v2909 = vadd.f32 %v2887, %v2901
        %v2910 = vadd.f32 %v2888, %v2901
        %v2911 = vadd.f32 %v2889, %v2901
        %v2912 = vadd.f32 %v2890, %v2901
        %v2913 = vadd.f32 %v2891, %v2906
        %v2914 = vadd.f32 %v2892, %v2906
        %v2915 = vadd.f32 %v2893, %v2906
        %v2916 = vadd.f32 %v2894, %v2906
        %v2917 = vadd.f32 %v2895, %v2906
        %v2918 = vmax.f32 %v2908, 0.0
        %v2919 = vmax.f32 %v2909, 0.0
        %v2920 = vmax.f32 %v2910, 0.0
        %v2921 = vmax.f32 %v2911, 0.0
        %v2922 = vmax.f32 %v2912, 0.0
        %v2923 = vmax.f32 %v2913, 0.0
        %v2924 = vmax.f32 %v2914, 0.0
        %v2925 = vmax.f32 %v2915, 0.0
        %v2926 = vmax.f32 %v2916, 0.0
        %v2927 = vmax.f32 %v2917, 0.0
        %2928 = vst [vmem:[#allocation3] sm:$0xff] %v2918
        %2929 = vst [vmem:[#allocation3 + $0x8] sm:$0xff] %v2919
        %2930 = vst [vmem:[#allocation3 + $0x10] sm:$0xff] %v2920
        %2931 = vst [vmem:[#allocation3 + $0x18] sm:$0xff] %v2921
        %2932 = vst.msk [vmem:[#allocation3 + $0x20] sm:$0xff] %vm515, %v2922
        %2933 = vst [vmem:[#allocation3 + $0x28] sm:$0x3] %v2923
        %2934 = vst [vmem:[#allocation3 + $0x30] sm:$0x3] %v2924
        %2935 = vst [vmem:[#allocation3 + $0x38] sm:$0x3] %v2925
        %2936 = vst [vmem:[#allocation3 + $0x40] sm:$0x3] %v2926
        %vm2937 = vcmask 1033216
        %2938 = vst.msk [vmem:[#allocation3 + $0x48] sm:$0x3] %vm2937, %v2927
        %v2939 = vld [vmem:[%s3] sm:$0xff]
        %v2940 = vld [vmem:[%s3 + $0x8] sm:$0xff]
        %v2941 = vld [vmem:[%s3 + $0x10] sm:$0xf]
        %v2942 = vld [vmem:[#allocation3] sm:$0xff]
        %v2943 = vld [vmem:[#allocation3 + $0x8] sm:$0xff]
        %v2944 = vld [vmem:[#allocation3 + $0x10] sm:$0xff]
        %v2945 = vld [vmem:[#allocation3 + $0x18] sm:$0xff]
        %v2946 = vld [vmem:[#allocation3 + $0x28] sm:$0x3]
        %v2947 = vld [vmem:[#allocation3 + $0x30] sm:$0x3]
        %v2948 = vld [vmem:[#allocation3 + $0x38] sm:$0x3]
        %v2949 = vld [vmem:[#allocation3 + $0x40] sm:$0x3]
        %s2950 = scalar_lea.vmem %s3, 24
        %v2951 = vld [vmem:[%s2950] sm:$0xff]
        %v2952 = vld [vmem:[%s2950 + $0x8] sm:$0xff]
        %v2953 = vld [vmem:[%s2950 + $0x10] sm:$0xf]
        %2962 = vrot.lane.b32.xlu0 %v2942, 126
        %v2963 = vpop.permute.xlu0 %2962
        %2964 = vrot.lane.b32.xlu0 %v2943, 126
        %v2965 = vpop.permute.xlu0 %2964
        %2966 = vrot.lane.b32.xlu0 %v2944, 126
        %v2967 = vpop.permute.xlu0 %2966
        %2968 = vrot.lane.b32.xlu0 %v2945, 126
        %v2969 = vpop.permute.xlu0 %2968
        %2970 = vrot.lane.b32.xlu0 %v2946, 126
        %v2971 = vpop.permute.xlu0 %2970
        %2972 = vrot.lane.b32.xlu0 %v2947, 126
        %v2973 = vpop.permute.xlu0 %2972
        %2974 = vrot.lane.b32.xlu0 %v2948, 126
        %v2975 = vpop.permute.xlu0 %2974
        %2976 = vrot.lane.b32.xlu0 %v2949, 126
        %v2977 = vpop.permute.xlu0 %2976
        %v2978 = vsel %vm606, %v2963, %v2965
        %v2979 = vsel %vm606, %v2965, %v2967
        %v2980 = vsel %vm606, %v2967, %v2969
        %v2981 = vsel %vm606, %v2971, %v2973
        %v2982 = vsel %vm606, %v2973, %v2975
        %v2983 = vsel %vm606, %v2975, %v2977
        %vm2988 = vcmask 80896
        %v2990 = vsel %vm2988, %v2951, 0
        %v2993 = vsel %vm2988, %v2952, 0
        %v2996 = vsel %vm2988, %v2953, 0
        %vm2998 = vcmask 1041408
        %v2999 = vsel %vm2998, %v2981, 0
        %v3001 = vsel %vm2998, %v2982, 0
        %v3003 = vsel %vm2998, %v2983, 0
        %v3005 = vsel %vm2998, %v2977, 0
        %3007 = vmatprep.subr.mxu0 %v2979
        %3008 = vmatpush1.msra.mxu0 %v2978
        %3009 = vmatprep.subr.mxu0 %v3001
        %3010 = vmatpush1.msra.mxu0 %v2999
        %3011 = vmatprep.subr.mxu0 0.0
        %3012 = vmatpush1.msra.mxu0 0.0
        %3013 = vmatprep.subr.mxu0 0.0
        %3014 = vmatpush1.msra.mxu0 0.0
        %3015 = vmatprep.subr.mxu0 0.0
        %3016 = vmatpush1.msra.mxu0 0.0
        %3017 = vmatprep.subr.mxu0 0.0
        %3018 = vmatpush1.msra.mxu0 0.0
        %3019 = vmatprep.subr.mxu0 0.0
        %3020 = vmatpush1.msra.mxu0 0.0
        %3021 = vmatprep.subr.mxu0 0.0
        %3022 = vmatpush1.msra.mxu0 0.0
        %3023 = vmatprep.subr.mxu0 0.0
        %3024 = vmatpush1.msra.mxu0 0.0
        %3025 = vmatprep.subr.mxu0 0.0
        %3026 = vmatpush1.msra.mxu0 0.0
        %3027 = vmatprep.subr.mxu0 0.0
        %3028 = vmatpush1.msra.mxu0 0.0
        %3029 = vmatprep.subr.mxu0 0.0
        %3030 = vmatpush1.msra.mxu0 0.0
        %3031 = vmatprep.subr.mxu0 0.0
        %3032 = vmatpush1.msra.mxu0 0.0
        %3033 = vmatprep.subr.mxu0 0.0
        %3034 = vmatpush1.msra.mxu0 0.0
        %3035 = vmatprep.subr.mxu0 0.0
        %3036 = vmatpush1.msra.mxu0 0.0
        %3037 = vmatprep.subr.mxu0 0.0
        %3038 = vmatpush1.msra.mxu0 0.0
        %3039 = vmatprep.subr.mxu0 0.0
        %3040 = vmatpush1.msra.mxu0 0.0
        %3041 = vmatprep.subr.mxu0 0.0
        %3042 = vmatpush1.msra.mxu0 0.0
        %3043 = vmatprep.subr.mxu0 0.0
        %3044 = vmatpush1.msra.mxu0 0.0
        %3045 = vmatprep.subr.mxu0 0.0
        %3046 = vmatpush1.msra.mxu0 0.0
        %3047 = vmatprep.subr.mxu0 0.0
        %3048 = vmatpush1.msra.mxu0 0.0
        %3049 = vmatprep.subr.mxu0 0.0
        %3050 = vmatpush1.msra.mxu0 0.0
        %3051 = vmatprep.subr.mxu0 0.0
        %3052 = vmatpush1.msra.mxu0 0.0
        %3053 = vmatprep.subr.mxu0 0.0
        %3054 = vmatpush1.msra.mxu0 0.0
        %3055 = vmatprep.subr.mxu0 0.0
        %3056 = vmatpush1.msra.mxu0 0.0
        %3057 = vmatprep.subr.mxu0 0.0
        %3058 = vmatpush1.msra.mxu0 0.0
        %3059 = vmatprep.subr.mxu0 0.0
        %3060 = vmatpush1.msra.mxu0 0.0
        %3061 = vmatprep.subr.mxu0 0.0
        %3062 = vmatpush1.msra.mxu0 0.0
        %3063 = vmatprep.subr.mxu0 0.0
        %3064 = vmatpush1.msra.mxu0 0.0
        %3065 = vmatprep.subr.mxu0 0.0
        %3066 = vmatpush1.msra.mxu0 0.0
        %3067 = vmatprep.subr.mxu0 0.0
        %3068 = vmatpush1.msra.mxu0 0.0
        %3069 = vmatprep.subr.mxu0 0.0
        %3070 = vmatpush1.msra.mxu0 0.0
        %3071 = vmatprep.mubr.f32.mxu0 0.0
        %3072 = vmatmul.mubr.f32.gmra.mrb[0].mxu0 %v2990
        %v3073 = vpop.f32.mrb[0].mxu0
        %v3074 = vadd.f32 0.0, %v3073
        %v3075 = vpop.f32.mrb[0].mxu0
        %v3076 = vadd.f32 0.0, %v3075
        %3077 = vmatprep.mubr.f32.mxu0 0.0
        %3078 = vmatmul.mubr.f32.gmra.mrb[0].mxu0 %v2993
        %v3079 = vpop.f32.mrb[0].mxu0
        %v3080 = vadd.f32 0.0, %v3079
        %v3081 = vpop.f32.mrb[0].mxu0
        %v3082 = vadd.f32 0.0, %v3081
        %3083 = vmatprep.mubr.f32.mxu0 0.0
        %3084 = vmatmul.mubr.f32.gmra.mrb[0].mxu0 %v2996
        %v3085 = vpop.f32.mrb[0].mxu0
        %v3086 = vadd.f32 0.0, %v3085
        %v3087 = vpop.f32.mrb[0].mxu0
        %v3088 = vadd.f32 0.0, %v3087
        %3089 = vdwg.mxu0
        %3090 = vmatprep.subr.mxu0 %v2969
        %3091 = vmatpush1.msra.mxu0 %v2980
        %3092 = vmatprep.subr.mxu0 %v3005
        %3093 = vmatpush1.msra.mxu0 %v3003
        %3094 = vmatprep.subr.mxu0 0.0
        %3095 = vmatpush1.msra.mxu0 0.0
        %3096 = vmatprep.subr.mxu0 0.0
        %3097 = vmatpush1.msra.mxu0 0.0
        %3098 = vmatprep.subr.mxu0 0.0
        %3099 = vmatpush1.msra.mxu0 0.0
        %3100 = vmatprep.subr.mxu0 0.0
        %3101 = vmatpush1.msra.mxu0 0.0
        %3102 = vmatprep.subr.mxu0 0.0
        %3103 = vmatpush1.msra.mxu0 0.0
        %3104 = vmatprep.subr.mxu0 0.0
        %3105 = vmatpush1.msra.mxu0 0.0
        %3106 = vmatprep.subr.mxu0 0.0
        %3107 = vmatpush1.msra.mxu0 0.0
        %3108 = vmatprep.subr.mxu0 0.0
        %3109 = vmatpush1.msra.mxu0 0.0
        %3110 = vmatprep.subr.mxu0 0.0
        %3111 = vmatpush1.msra.mxu0 0.0
        %3112 = vmatprep.subr.mxu0 0.0
        %3113 = vmatpush1.msra.mxu0 0.0
        %3114 = vmatprep.subr.mxu0 0.0
        %3115 = vmatpush1.msra.mxu0 0.0
        %3116 = vmatprep.subr.mxu0 0.0
        %3117 = vmatpush1.msra.mxu0 0.0
        %3118 = vmatprep.subr.mxu0 0.0
        %3119 = vmatpush1.msra.mxu0 0.0
        %3120 = vmatprep.subr.mxu0 0.0
        %3121 = vmatpush1.msra.mxu0 0.0
        %3122 = vmatprep.subr.mxu0 0.0
        %3123 = vmatpush1.msra.mxu0 0.0
        %3124 = vmatprep.subr.mxu0 0.0
        %3125 = vmatpush1.msra.mxu0 0.0
        %3126 = vmatprep.subr.mxu0 0.0
        %3127 = vmatpush1.msra.mxu0 0.0
        %3128 = vmatprep.subr.mxu0 0.0
        %3129 = vmatpush1.msra.mxu0 0.0
        %3130 = vmatprep.subr.mxu0 0.0
        %3131 = vmatpush1.msra.mxu0 0.0
        %3132 = vmatprep.subr.mxu0 0.0
        %3133 = vmatpush1.msra.mxu0 0.0
        %3134 = vmatprep.subr.mxu0 0.0
        %3135 = vmatpush1.msra.mxu0 0.0
        %3136 = vmatprep.subr.mxu0 0.0
        %3137 = vmatpush1.msra.mxu0 0.0
        %3138 = vmatprep.subr.mxu0 0.0
        %3139 = vmatpush1.msra.mxu0 0.0
        %3140 = vmatprep.subr.mxu0 0.0
        %3141 = vmatpush1.msra.mxu0 0.0
        %3142 = vmatprep.subr.mxu0 0.0
        %3143 = vmatpush1.msra.mxu0 0.0
        %3144 = vmatprep.subr.mxu0 0.0
        %3145 = vmatpush1.msra.mxu0 0.0
        %3146 = vmatprep.subr.mxu0 0.0
        %3147 = vmatpush1.msra.mxu0 0.0
        %3148 = vmatprep.subr.mxu0 0.0
        %3149 = vmatpush1.msra.mxu0 0.0
        %3150 = vmatprep.subr.mxu0 0.0
        %3151 = vmatpush1.msra.mxu0 0.0
        %3152 = vmatprep.subr.mxu0 0.0
        %3153 = vmatpush1.msra.mxu0 0.0
        %3154 = vmatprep.mubr.f32.mxu0 0.0
        %3155 = vmatmul.mubr.f32.gmra.mrb[0].mxu0 %v2990
        %v3156 = vpop.f32.mrb[0].mxu0
        %v3157 = vadd.f32 0.0, %v3156
        %v3158 = vpop.f32.mrb[0].mxu0
        %v3159 = vadd.f32 0.0, %v3158
        %3160 = vmatprep.mubr.f32.mxu0 0.0
        %3161 = vmatmul.mubr.f32.gmra.mrb[0].mxu0 %v2993
        %v3162 = vpop.f32.mrb[0].mxu0
        %v3163 = vadd.f32 0.0, %v3162
        %v3164 = vpop.f32.mrb[0].mxu0
        %v3165 = vadd.f32 0.0, %v3164
        %3166 = vmatprep.mubr.f32.mxu0 0.0
        %3167 = vmatmul.mubr.f32.gmra.mrb[0].mxu0 %v2996
        %v3168 = vpop.f32.mrb[0].mxu0
        %v3169 = vadd.f32 0.0, %v3168
        %v3170 = vpop.f32.mrb[0].mxu0
        %v3171 = vadd.f32 0.0, %v3170
        %3172 = vdwg.mxu0
        %v3174 = vsel %vm2988, %v2939, 0
        %v3177 = vsel %vm2988, %v2940, 0
        %v3180 = vsel %vm2988, %v2941, 0
        %v3182 = vsel %vm2998, %v2946, 0
        %v3184 = vsel %vm2998, %v2947, 0
        %v3186 = vsel %vm2998, %v2948, 0
        %v3188 = vsel %vm2998, %v2949, 0
        %3190 = vmatprep.subr.mxu0 %v2943
        %3191 = vmatpush1.msra.mxu0 %v2942
        %3192 = vmatprep.subr.mxu0 %v3184
        %3193 = vmatpush1.msra.mxu0 %v3182
        %3194 = vmatprep.subr.mxu0 0.0
        %3195 = vmatpush1.msra.mxu0 0.0
        %3196 = vmatprep.subr.mxu0 0.0
        %3197 = vmatpush1.msra.mxu0 0.0
        %3198 = vmatprep.subr.mxu0 0.0
        %3199 = vmatpush1.msra.mxu0 0.0
        %3200 = vmatprep.subr.mxu0 0.0
        %3201 = vmatpush1.msra.mxu0 0.0
        %3202 = vmatprep.subr.mxu0 0.0
        %3203 = vmatpush1.msra.mxu0 0.0
        %3204 = vmatprep.subr.mxu0 0.0
        %3205 = vmatpush1.msra.mxu0 0.0
        %3206 = vmatprep.subr.mxu0 0.0
        %3207 = vmatpush1.msra.mxu0 0.0
        %3208 = vmatprep.subr.mxu0 0.0
        %3209 = vmatpush1.msra.mxu0 0.0
        %3210 = vmatprep.subr.mxu0 0.0
        %3211 = vmatpush1.msra.mxu0 0.0
        %3212 = vmatprep.subr.mxu0 0.0
        %3213 = vmatpush1.msra.mxu0 0.0
        %3214 = vmatprep.subr.mxu0 0.0
        %3215 = vmatpush1.msra.mxu0 0.0
        %3216 = vmatprep.subr.mxu0 0.0
        %3217 = vmatpush1.msra.mxu0 0.0
        %3218 = vmatprep.subr.mxu0 0.0
        %3219 = vmatpush1.msra.mxu0 0.0
        %3220 = vmatprep.subr.mxu0 0.0
        %3221 = vmatpush1.msra.mxu0 0.0
        %3222 = vmatprep.subr.mxu0 0.0
        %3223 = vmatpush1.msra.mxu0 0.0
        %3224 = vmatprep.subr.mxu0 0.0
        %3225 = vmatpush1.msra.mxu0 0.0
        %3226 = vmatprep.subr.mxu0 0.0
        %3227 = vmatpush1.msra.mxu0 0.0
        %3228 = vmatprep.subr.mxu0 0.0
        %3229 = vmatpush1.msra.mxu0 0.0
        %3230 = vmatprep.subr.mxu0 0.0
        %3231 = vmatpush1.msra.mxu0 0.0
        %3232 = vmatprep.subr.mxu0 0.0
        %3233 = vmatpush1.msra.mxu0 0.0
        %3234 = vmatprep.subr.mxu0 0.0
        %3235 = vmatpush1.msra.mxu0 0.0
        %3236 = vmatprep.subr.mxu0 0.0
        %3237 = vmatpush1.msra.mxu0 0.0
        %3238 = vmatprep.subr.mxu0 0.0
        %3239 = vmatpush1.msra.mxu0 0.0
        %3240 = vmatprep.subr.mxu0 0.0
        %3241 = vmatpush1.msra.mxu0 0.0
        %3242 = vmatprep.subr.mxu0 0.0
        %3243 = vmatpush1.msra.mxu0 0.0
        %3244 = vmatprep.subr.mxu0 0.0
        %3245 = vmatpush1.msra.mxu0 0.0
        %3246 = vmatprep.subr.mxu0 0.0
        %3247 = vmatpush1.msra.mxu0 0.0
        %3248 = vmatprep.subr.mxu0 0.0
        %3249 = vmatpush1.msra.mxu0 0.0
        %3250 = vmatprep.subr.mxu0 0.0
        %3251 = vmatpush1.msra.mxu0 0.0
        %3252 = vmatprep.subr.mxu0 0.0
        %3253 = vmatpush1.msra.mxu0 0.0
        %3254 = vmatprep.mubr.f32.mxu0 0.0
        %3255 = vmatmul.mubr.f32.gmra.mrb[0].mxu0 %v3174
        %v3256 = vpop.f32.mrb[0].mxu0
        %v3257 = vadd.f32 %v3074, %v3256
        %v3258 = vpop.f32.mrb[0].mxu0
        %v3259 = vadd.f32 %v3076, %v3258
        %3260 = vmatprep.mubr.f32.mxu0 0.0
        %3261 = vmatmul.mubr.f32.gmra.mrb[0].mxu0 %v3177
        %v3262 = vpop.f32.mrb[0].mxu0
        %v3263 = vadd.f32 %v3080, %v3262
        %v3264 = vpop.f32.mrb[0].mxu0
        %v3265 = vadd.f32 %v3082, %v3264
        %3266 = vmatprep.mubr.f32.mxu0 0.0
        %3267 = vmatmul.mubr.f32.gmra.mrb[0].mxu0 %v3180
        %v3268 = vpop.f32.mrb[0].mxu0
        %v3269 = vadd.f32 %v3086, %v3268
        %v3270 = vpop.f32.mrb[0].mxu0
        %v3271 = vadd.f32 %v3088, %v3270
        %3272 = vdwg.mxu0
        %3273 = vmatprep.subr.mxu0 %v2945
        %3274 = vmatpush1.msra.mxu0 %v2944
        %3275 = vmatprep.subr.mxu0 %v3188
        %3276 = vmatpush1.msra.mxu0 %v3186
        %3277 = vmatprep.subr.mxu0 0.0
        %3278 = vmatpush1.msra.mxu0 0.0
        %3279 = vmatprep.subr.mxu0 0.0
        %3280 = vmatpush1.msra.mxu0 0.0
        %3281 = vmatprep.subr.mxu0 0.0
        %3282 = vmatpush1.msra.mxu0 0.0
        %3283 = vmatprep.subr.mxu0 0.0
        %3284 = vmatpush1.msra.mxu0 0.0
        %3285 = vmatprep.subr.mxu0 0.0
        %3286 = vmatpush1.msra.mxu0 0.0
        %3287 = vmatprep.subr.mxu0 0.0
        %3288 = vmatpush1.msra.mxu0 0.0
        %3289 = vmatprep.subr.mxu0 0.0
        %3290 = vmatpush1.msra.mxu0 0.0
        %3291 = vmatprep.subr.mxu0 0.0
        %3292 = vmatpush1.msra.mxu0 0.0
        %3293 = vmatprep.subr.mxu0 0.0
        %3294 = vmatpush1.msra.mxu0 0.0
        %3295 = vmatprep.subr.mxu0 0.0
        %3296 = vmatpush1.msra.mxu0 0.0
        %3297 = vmatprep.subr.mxu0 0.0
        %3298 = vmatpush1.msra.mxu0 0.0
        %3299 = vmatprep.subr.mxu0 0.0
        %3300 = vmatpush1.msra.mxu0 0.0
        %3301 = vmatprep.subr.mxu0 0.0
        %3302 = vmatpush1.msra.mxu0 0.0
        %3303 = vmatprep.subr.mxu0 0.0
        %3304 = vmatpush1.msra.mxu0 0.0
        %3305 = vmatprep.subr.mxu0 0.0
        %3306 = vmatpush1.msra.mxu0 0.0
        %3307 = vmatprep.subr.mxu0 0.0
        %3308 = vmatpush1.msra.mxu0 0.0
        %3309 = vmatprep.subr.mxu0 0.0
        %3310 = vmatpush1.msra.mxu0 0.0
        %3311 = vmatprep.subr.mxu0 0.0
        %3312 = vmatpush1.msra.mxu0 0.0
        %3313 = vmatprep.subr.mxu0 0.0
        %3314 = vmatpush1.msra.mxu0 0.0
        %3315 = vmatprep.subr.mxu0 0.0
        %3316 = vmatpush1.msra.mxu0 0.0
        %3317 = vmatprep.subr.mxu0 0.0
        %3318 = vmatpush1.msra.mxu0 0.0
        %3319 = vmatprep.subr.mxu0 0.0
        %3320 = vmatpush1.msra.mxu0 0.0
        %3321 = vmatprep.subr.mxu0 0.0
        %3322 = vmatpush1.msra.mxu0 0.0
        %3323 = vmatprep.subr.mxu0 0.0
        %3324 = vmatpush1.msra.mxu0 0.0
        %3325 = vmatprep.subr.mxu0 0.0
        %3326 = vmatpush1.msra.mxu0 0.0
        %3327 = vmatprep.subr.mxu0 0.0
        %3328 = vmatpush1.msra.mxu0 0.0
        %3329 = vmatprep.subr.mxu0 0.0
        %3330 = vmatpush1.msra.mxu0 0.0
        %3331 = vmatprep.subr.mxu0 0.0
        %3332 = vmatpush1.msra.mxu0 0.0
        %3333 = vmatprep.subr.mxu0 0.0
        %3334 = vmatpush1.msra.mxu0 0.0
        %3335 = vmatprep.subr.mxu0 0.0
        %3336 = vmatpush1.msra.mxu0 0.0
        %3337 = vmatprep.mubr.f32.mxu0 0.0
        %3338 = vmatmul.mubr.f32.gmra.mrb[0].mxu0 %v3174
        %v3339 = vpop.f32.mrb[0].mxu0
        %v3340 = vadd.f32 %v3157, %v3339
        %v3341 = vpop.f32.mrb[0].mxu0
        %v3342 = vadd.f32 %v3159, %v3341
        %3343 = vmatprep.mubr.f32.mxu0 0.0
        %3344 = vmatmul.mubr.f32.gmra.mrb[0].mxu0 %v3177
        %v3345 = vpop.f32.mrb[0].mxu0
        %v3346 = vadd.f32 %v3163, %v3345
        %v3347 = vpop.f32.mrb[0].mxu0
        %v3348 = vadd.f32 %v3165, %v3347
        %3349 = vmatprep.mubr.f32.mxu0 0.0
        %3350 = vmatmul.mubr.f32.gmra.mrb[0].mxu0 %v3180
        %v3351 = vpop.f32.mrb[0].mxu0
        %v3352 = vadd.f32 %v3169, %v3351
        %v3353 = vpop.f32.mrb[0].mxu0
        %v3354 = vadd.f32 %v3171, %v3353
        %3355 = vdwg.mxu0
        %s3356 = scalar_lea.vmem %s3, 48
        %v3357 = vld [vmem:[%s3356] sm:$0xff]
        %v3358 = vld [vmem:[%s3356 + $0x8] sm:$0xff]
        %v3359 = vld [vmem:[%s3356 + $0x10] sm:$0xf]
        %3360 = vrot.lane.b32.xlu0 %v2942, 124
        %v3361 = vpop.permute.xlu0 %3360
        %3362 = vrot.lane.b32.xlu0 %v2943, 124
        %v3363 = vpop.permute.xlu0 %3362
        %3364 = vrot.lane.b32.xlu0 %v2944, 124
        %v3365 = vpop.permute.xlu0 %3364
        %3366 = vrot.lane.b32.xlu0 %v2945, 124
        %v3367 = vpop.permute.xlu0 %3366
        %3368 = vrot.lane.b32.xlu0 %v2946, 124
        %v3369 = vpop.permute.xlu0 %3368
        %3370 = vrot.lane.b32.xlu0 %v2947, 124
        %v3371 = vpop.permute.xlu0 %3370
        %3372 = vrot.lane.b32.xlu0 %v2948, 124
        %v3373 = vpop.permute.xlu0 %3372
        %3374 = vrot.lane.b32.xlu0 %v2949, 124
        %v3375 = vpop.permute.xlu0 %3374
        %v3376 = vsel %vm788, %v3361, %v3363
        %v3377 = vsel %vm788, %v3363, %v3365
        %v3378 = vsel %vm788, %v3365, %v3367
        %v3379 = vsel %vm788, %v3369, %v3371
        %v3380 = vsel %vm788, %v3371, %v3373
        %v3381 = vsel %vm788, %v3373, %v3375
        %v3387 = vsel %vm2988, %v3357, 0
        %v3390 = vsel %vm2988, %v3358, 0
        %v3393 = vsel %vm2988, %v3359, 0
        %v3395 = vsel %vm2998, %v3379, 0
        %v3397 = vsel %vm2998, %v3380, 0
        %v3399 = vsel %vm2998, %v3381, 0
        %v3401 = vsel %vm2998, %v3375, 0
        %3403 = vmatprep.subr.mxu0 %v3377
        %3404 = vmatpush1.msra.mxu0 %v3376
        %3405 = vmatprep.subr.mxu0 %v3397
        %3406 = vmatpush1.msra.mxu0 %v3395
        %3407 = vmatprep.subr.mxu0 0.0
        %3408 = vmatpush1.msra.mxu0 0.0
        %3409 = vmatprep.subr.mxu0 0.0
        %3410 = vmatpush1.msra.mxu0 0.0
        %3411 = vmatprep.subr.mxu0 0.0
        %3412 = vmatpush1.msra.mxu0 0.0
        %3413 = vmatprep.subr.mxu0 0.0
        %3414 = vmatpush1.msra.mxu0 0.0
        %3415 = vmatprep.subr.mxu0 0.0
        %3416 = vmatpush1.msra.mxu0 0.0
        %3417 = vmatprep.subr.mxu0 0.0
        %3418 = vmatpush1.msra.mxu0 0.0
        %3419 = vmatprep.subr.mxu0 0.0
        %3420 = vmatpush1.msra.mxu0 0.0
        %3421 = vmatprep.subr.mxu0 0.0
        %3422 = vmatpush1.msra.mxu0 0.0
        %3423 = vmatprep.subr.mxu0 0.0
        %3424 = vmatpush1.msra.mxu0 0.0
        %3425 = vmatprep.subr.mxu0 0.0
        %3426 = vmatpush1.msra.mxu0 0.0
        %3427 = vmatprep.subr.mxu0 0.0
        %3428 = vmatpush1.msra.mxu0 0.0
        %3429 = vmatprep.subr.mxu0 0.0
        %3430 = vmatpush1.msra.mxu0 0.0
        %3431 = vmatprep.subr.mxu0 0.0
        %3432 = vmatpush1.msra.mxu0 0.0
        %3433 = vmatprep.subr.mxu0 0.0
        %3434 = vmatpush1.msra.mxu0 0.0
        %3435 = vmatprep.subr.mxu0 0.0
        %3436 = vmatpush1.msra.mxu0 0.0
        %3437 = vmatprep.subr.mxu0 0.0
        %3438 = vmatpush1.msra.mxu0 0.0
        %3439 = vmatprep.subr.mxu0 0.0
        %3440 = vmatpush1.msra.mxu0 0.0
        %3441 = vmatprep.subr.mxu0 0.0
        %3442 = vmatpush1.msra.mxu0 0.0
        %3443 = vmatprep.subr.mxu0 0.0
        %3444 = vmatpush1.msra.mxu0 0.0
        %3445 = vmatprep.subr.mxu0 0.0
        %3446 = vmatpush1.msra.mxu0 0.0
        %3447 = vmatprep.subr.mxu0 0.0
        %3448 = vmatpush1.msra.mxu0 0.0
        %3449 = vmatprep.subr.mxu0 0.0
        %3450 = vmatpush1.msra.mxu0 0.0
        %3451 = vmatprep.subr.mxu0 0.0
        %3452 = vmatpush1.msra.mxu0 0.0
        %3453 = vmatprep.subr.mxu0 0.0
        %3454 = vmatpush1.msra.mxu0 0.0
        %3455 = vmatprep.subr.mxu0 0.0
        %3456 = vmatpush1.msra.mxu0 0.0
        %3457 = vmatprep.subr.mxu0 0.0
        %3458 = vmatpush1.msra.mxu0 0.0
        %3459 = vmatprep.subr.mxu0 0.0
        %3460 = vmatpush1.msra.mxu0 0.0
        %3461 = vmatprep.subr.mxu0 0.0
        %3462 = vmatpush1.msra.mxu0 0.0
        %3463 = vmatprep.subr.mxu0 0.0
        %3464 = vmatpush1.msra.mxu0 0.0
        %3465 = vmatprep.subr.mxu0 0.0
        %3466 = vmatpush1.msra.mxu0 0.0
        %3467 = vmatprep.mubr.f32.mxu0 0.0
        %3468 = vmatmul.mubr.f32.gmra.mrb[0].mxu0 %v3387
        %v3469 = vpop.f32.mrb[0].mxu0
        %v3470 = vadd.f32 0.0, %v3469
        %v3471 = vpop.f32.mrb[0].mxu0
        %v3472 = vadd.f32 0.0, %v3471
        %3473 = vmatprep.mubr.f32.mxu0 0.0
        %3474 = vmatmul.mubr.f32.gmra.mrb[0].mxu0 %v3390
        %v3475 = vpop.f32.mrb[0].mxu0
        %v3476 = vadd.f32 0.0, %v3475
        %v3477 = vpop.f32.mrb[0].mxu0
        %v3478 = vadd.f32 0.0, %v3477
        %3479 = vmatprep.mubr.f32.mxu0 0.0
        %3480 = vmatmul.mubr.f32.gmra.mrb[0].mxu0 %v3393
        %v3481 = vpop.f32.mrb[0].mxu0
        %v3482 = vadd.f32 0.0, %v3481
        %v3483 = vpop.f32.mrb[0].mxu0
        %v3484 = vadd.f32 0.0, %v3483
        %3485 = vdwg.mxu0
        %3486 = vmatprep.subr.mxu0 %v3367
        %3487 = vmatpush1.msra.mxu0 %v3378
        %3488 = vmatprep.subr.mxu0 %v3401
        %3489 = vmatpush1.msra.mxu0 %v3399
        %3490 = vmatprep.subr.mxu0 0.0
        %3491 = vmatpush1.msra.mxu0 0.0
        %3492 = vmatprep.subr.mxu0 0.0
        %3493 = vmatpush1.msra.mxu0 0.0
        %3494 = vmatprep.subr.mxu0 0.0
        %3495 = vmatpush1.msra.mxu0 0.0
        %3496 = vmatprep.subr.mxu0 0.0
        %3497 = vmatpush1.msra.mxu0 0.0
        %3498 = vmatprep.subr.mxu0 0.0
        %3499 = vmatpush1.msra.mxu0 0.0
        %3500 = vmatprep.subr.mxu0 0.0
        %3501 = vmatpush1.msra.mxu0 0.0
        %3502 = vmatprep.subr.mxu0 0.0
        %3503 = vmatpush1.msra.mxu0 0.0
        %3504 = vmatprep.subr.mxu0 0.0
        %3505 = vmatpush1.msra.mxu0 0.0
        %3506 = vmatprep.subr.mxu0 0.0
        %3507 = vmatpush1.msra.mxu0 0.0
        %3508 = vmatprep.subr.mxu0 0.0
        %3509 = vmatpush1.msra.mxu0 0.0
        %3510 = vmatprep.subr.mxu0 0.0
        %3511 = vmatpush1.msra.mxu0 0.0
        %3512 = vmatprep.subr.mxu0 0.0
        %3513 = vmatpush1.msra.mxu0 0.0
        %3514 = vmatprep.subr.mxu0 0.0
        %3515 = vmatpush1.msra.mxu0 0.0
        %3516 = vmatprep.subr.mxu0 0.0
        %3517 = vmatpush1.msra.mxu0 0.0
        %3518 = vmatprep.subr.mxu0 0.0
        %3519 = vmatpush1.msra.mxu0 0.0
        %3520 = vmatprep.subr.mxu0 0.0
        %3521 = vmatpush1.msra.mxu0 0.0
        %3522 = vmatprep.subr.mxu0 0.0
        %3523 = vmatpush1.msra.mxu0 0.0
        %3524 = vmatprep.subr.mxu0 0.0
        %3525 = vmatpush1.msra.mxu0 0.0
        %3526 = vmatprep.subr.mxu0 0.0
        %3527 = vmatpush1.msra.mxu0 0.0
        %3528 = vmatprep.subr.mxu0 0.0
        %3529 = vmatpush1.msra.mxu0 0.0
        %3530 = vmatprep.subr.mxu0 0.0
        %3531 = vmatpush1.msra.mxu0 0.0
        %3532 = vmatprep.subr.mxu0 0.0
        %3533 = vmatpush1.msra.mxu0 0.0
        %3534 = vmatprep.subr.mxu0 0.0
        %3535 = vmatpush1.msra.mxu0 0.0
        %3536 = vmatprep.subr.mxu0 0.0
        %3537 = vmatpush1.msra.mxu0 0.0
        %3538 = vmatprep.subr.mxu0 0.0
        %3539 = vmatpush1.msra.mxu0 0.0
        %3540 = vmatprep.subr.mxu0 0.0
        %3541 = vmatpush1.msra.mxu0 0.0
        %3542 = vmatprep.subr.mxu0 0.0
        %3543 = vmatpush1.msra.mxu0 0.0
        %3544 = vmatprep.subr.mxu0 0.0
        %3545 = vmatpush1.msra.mxu0 0.0
        %3546 = vmatprep.subr.mxu0 0.0
        %3547 = vmatpush1.msra.mxu0 0.0
        %3548 = vmatprep.subr.mxu0 0.0
        %3549 = vmatpush1.msra.mxu0 0.0
        %3550 = vmatprep.mubr.f32.mxu0 0.0
        %3551 = vmatmul.mubr.f32.gmra.mrb[0].mxu0 %v3387
        %v3552 = vpop.f32.mrb[0].mxu0
        %v3553 = vadd.f32 0.0, %v3552
        %v3554 = vpop.f32.mrb[0].mxu0
        %v3555 = vadd.f32 0.0, %v3554
        %3556 = vmatprep.mubr.f32.mxu0 0.0
        %3557 = vmatmul.mubr.f32.gmra.mrb[0].mxu0 %v3390
        %v3558 = vpop.f32.mrb[0].mxu0
        %v3559 = vadd.f32 0.0, %v3558
        %v3560 = vpop.f32.mrb[0].mxu0
        %v3561 = vadd.f32 0.0, %v3560
        %3562 = vmatprep.mubr.f32.mxu0 0.0
        %3563 = vmatmul.mubr.f32.gmra.mrb[0].mxu0 %v3393
        %v3564 = vpop.f32.mrb[0].mxu0
        %v3565 = vadd.f32 0.0, %v3564
        %v3566 = vpop.f32.mrb[0].mxu0
        %v3567 = vadd.f32 0.0, %v3566
        %3568 = vdwg.mxu0
        %v3569 = vadd.f32 %v3257, %v3470
        %v3570 = vadd.f32 %v3259, %v3472
        %v3571 = vadd.f32 %v3340, %v3553
        %v3572 = vadd.f32 %v3342, %v3555
        %v3573 = vadd.f32 %v3263, %v3476
        %v3574 = vadd.f32 %v3265, %v3478
        %v3575 = vadd.f32 %v3346, %v3559
        %v3576 = vadd.f32 %v3348, %v3561
        %v3577 = vadd.f32 %v3269, %v3482
        %v3578 = vadd.f32 %v3271, %v3484
        %v3579 = vadd.f32 %v3352, %v3565
        %v3580 = vadd.f32 %v3354, %v3567
        %s3581 = scalar_lea.vmem %s3, 72
        %v3582 = vld [vmem:[%s3581] sm:$0xff]
        %v3583 = vld [vmem:[%s3581 + $0x8] sm:$0xff]
        %v3584 = vld [vmem:[%s3581 + $0x10] sm:$0xf]
        %3585 = vrot.lane.b32.xlu0 %v2942, 122
        %v3586 = vpop.permute.xlu0 %3585
        %3587 = vrot.lane.b32.xlu0 %v2943, 122
        %v3588 = vpop.permute.xlu0 %3587
        %3589 = vrot.lane.b32.xlu0 %v2944, 122
        %v3590 = vpop.permute.xlu0 %3589
        %3591 = vrot.lane.b32.xlu0 %v2945, 122
        %v3592 = vpop.permute.xlu0 %3591
        %3593 = vrot.lane.b32.xlu0 %v2946, 122
        %v3594 = vpop.permute.xlu0 %3593
        %3595 = vrot.lane.b32.xlu0 %v2947, 122
        %v3596 = vpop.permute.xlu0 %3595
        %3597 = vrot.lane.b32.xlu0 %v2948, 122
        %v3598 = vpop.permute.xlu0 %3597
        %3599 = vrot.lane.b32.xlu0 %v2949, 122
        %v3600 = vpop.permute.xlu0 %3599
        %vm3601 = vcmask 998400
        %v3602 = vsel %vm3601, %v3586, %v3588
        %v3603 = vsel %vm3601, %v3588, %v3590
        %v3604 = vsel %vm3601, %v3590, %v3592
        %v3605 = vsel %vm3601, %v3594, %v3596
        %v3606 = vsel %vm3601, %v3596, %v3598
        %v3607 = vsel %vm3601, %v3598, %v3600
        %v3613 = vsel %vm2988, %v3582, 0
        %v3616 = vsel %vm2988, %v3583, 0
        %v3619 = vsel %vm2988, %v3584, 0
        %v3621 = vsel %vm2998, %v3605, 0
        %v3623 = vsel %vm2998, %v3606, 0
        %v3625 = vsel %vm2998, %v3607, 0
        %v3627 = vsel %vm2998, %v3600, 0
        %3629 = vmatprep.subr.mxu0 %v3603
        %3630 = vmatpush1.msra.mxu0 %v3602
        %3631 = vmatprep.subr.mxu0 %v3623
        %3632 = vmatpush1.msra.mxu0 %v3621
        %3633 = vmatprep.subr.mxu0 0.0
        %3634 = vmatpush1.msra.mxu0 0.0
        %3635 = vmatprep.subr.mxu0 0.0
        %3636 = vmatpush1.msra.mxu0 0.0
        %3637 = vmatprep.subr.mxu0 0.0
        %3638 = vmatpush1.msra.mxu0 0.0
        %3639 = vmatprep.subr.mxu0 0.0
        %3640 = vmatpush1.msra.mxu0 0.0
        %3641 = vmatprep.subr.mxu0 0.0
        %3642 = vmatpush1.msra.mxu0 0.0
        %3643 = vmatprep.subr.mxu0 0.0
        %3644 = vmatpush1.msra.mxu0 0.0
        %3645 = vmatprep.subr.mxu0 0.0
        %3646 = vmatpush1.msra.mxu0 0.0
        %3647 = vmatprep.subr.mxu0 0.0
        %3648 = vmatpush1.msra.mxu0 0.0
        %3649 = vmatprep.subr.mxu0 0.0
        %3650 = vmatpush1.msra.mxu0 0.0
        %3651 = vmatprep.subr.mxu0 0.0
        %3652 = vmatpush1.msra.mxu0 0.0
        %3653 = vmatprep.subr.mxu0 0.0
        %3654 = vmatpush1.msra.mxu0 0.0
        %3655 = vmatprep.subr.mxu0 0.0
        %3656 = vmatpush1.msra.mxu0 0.0
        %3657 = vmatprep.subr.mxu0 0.0
        %3658 = vmatpush1.msra.mxu0 0.0
        %3659 = vmatprep.subr.mxu0 0.0
        %3660 = vmatpush1.msra.mxu0 0.0
        %3661 = vmatprep.subr.mxu0 0.0
        %3662 = vmatpush1.msra.mxu0 0.0
        %3663 = vmatprep.subr.mxu0 0.0
        %3664 = vmatpush1.msra.mxu0 0.0
        %3665 = vmatprep.subr.mxu0 0.0
        %3666 = vmatpush1.msra.mxu0 0.0
        %3667 = vmatprep.subr.mxu0 0.0
        %3668 = vmatpush1.msra.mxu0 0.0
        %3669 = vmatprep.subr.mxu0 0.0
        %3670 = vmatpush1.msra.mxu0 0.0
        %3671 = vmatprep.subr.mxu0 0.0
        %3672 = vmatpush1.msra.mxu0 0.0
        %3673 = vmatprep.subr.mxu0 0.0
        %3674 = vmatpush1.msra.mxu0 0.0
        %3675 = vmatprep.subr.mxu0 0.0
        %3676 = vmatpush1.msra.mxu0 0.0
        %3677 = vmatprep.subr.mxu0 0.0
        %3678 = vmatpush1.msra.mxu0 0.0
        %3679 = vmatprep.subr.mxu0 0.0
        %3680 = vmatpush1.msra.mxu0 0.0
        %3681 = vmatprep.subr.mxu0 0.0
        %3682 = vmatpush1.msra.mxu0 0.0
        %3683 = vmatprep.subr.mxu0 0.0
        %3684 = vmatpush1.msra.mxu0 0.0
        %3685 = vmatprep.subr.mxu0 0.0
        %3686 = vmatpush1.msra.mxu0 0.0
        %3687 = vmatprep.subr.mxu0 0.0
        %3688 = vmatpush1.msra.mxu0 0.0
        %3689 = vmatprep.subr.mxu0 0.0
        %3690 = vmatpush1.msra.mxu0 0.0
        %3691 = vmatprep.subr.mxu0 0.0
        %3692 = vmatpush1.msra.mxu0 0.0
        %3693 = vmatprep.mubr.f32.mxu0 0.0
        %3694 = vmatmul.mubr.f32.gmra.mrb[0].mxu0 %v3613
        %v3695 = vpop.f32.mrb[0].mxu0
        %v3696 = vadd.f32 0.0, %v3695
        %v3697 = vpop.f32.mrb[0].mxu0
        %v3698 = vadd.f32 0.0, %v3697
        %3699 = vmatprep.mubr.f32.mxu0 0.0
        %3700 = vmatmul.mubr.f32.gmra.mrb[0].mxu0 %v3616
        %v3701 = vpop.f32.mrb[0].mxu0
        %v3702 = vadd.f32 0.0, %v3701
        %v3703 = vpop.f32.mrb[0].mxu0
        %v3704 = vadd.f32 0.0, %v3703
        %3705 = vmatprep.mubr.f32.mxu0 0.0
        %3706 = vmatmul.mubr.f32.gmra.mrb[0].mxu0 %v3619
        %v3707 = vpop.f32.mrb[0].mxu0
        %v3708 = vadd.f32 0.0, %v3707
        %v3709 = vpop.f32.mrb[0].mxu0
        %v3710 = vadd.f32 0.0, %v3709
        %3711 = vdwg.mxu0
        %3712 = vmatprep.subr.mxu0 %v3592
        %3713 = vmatpush1.msra.mxu0 %v3604
        %3714 = vmatprep.subr.mxu0 %v3627
        %3715 = vmatpush1.msra.mxu0 %v3625
        %3716 = vmatprep.subr.mxu0 0.0
        %3717 = vmatpush1.msra.mxu0 0.0
        %3718 = vmatprep.subr.mxu0 0.0
        %3719 = vmatpush1.msra.mxu0 0.0
        %3720 = vmatprep.subr.mxu0 0.0
        %3721 = vmatpush1.msra.mxu0 0.0
        %3722 = vmatprep.subr.mxu0 0.0
        %3723 = vmatpush1.msra.mxu0 0.0
        %3724 = vmatprep.subr.mxu0 0.0
        %3725 = vmatpush1.msra.mxu0 0.0
        %3726 = vmatprep.subr.mxu0 0.0
        %3727 = vmatpush1.msra.mxu0 0.0
        %3728 = vmatprep.subr.mxu0 0.0
        %3729 = vmatpush1.msra.mxu0 0.0
        %3730 = vmatprep.subr.mxu0 0.0
        %3731 = vmatpush1.msra.mxu0 0.0
        %3732 = vmatprep.subr.mxu0 0.0
        %3733 = vmatpush1.msra.mxu0 0.0
        %3734 = vmatprep.subr.mxu0 0.0
        %3735 = vmatpush1.msra.mxu0 0.0
        %3736 = vmatprep.subr.mxu0 0.0
        %3737 = vmatpush1.msra.mxu0 0.0
        %3738 = vmatprep.subr.mxu0 0.0
        %3739 = vmatpush1.msra.mxu0 0.0
        %3740 = vmatprep.subr.mxu0 0.0
        %3741 = vmatpush1.msra.mxu0 0.0
        %3742 = vmatprep.subr.mxu0 0.0
        %3743 = vmatpush1.msra.mxu0 0.0
        %3744 = vmatprep.subr.mxu0 0.0
        %3745 = vmatpush1.msra.mxu0 0.0
        %3746 = vmatprep.subr.mxu0 0.0
        %3747 = vmatpush1.msra.mxu0 0.0
        %3748 = vmatprep.subr.mxu0 0.0
        %3749 = vmatpush1.msra.mxu0 0.0
        %3750 = vmatprep.subr.mxu0 0.0
        %3751 = vmatpush1.msra.mxu0 0.0
        %3752 = vmatprep.subr.mxu0 0.0
        %3753 = vmatpush1.msra.mxu0 0.0
        %3754 = vmatprep.subr.mxu0 0.0
        %3755 = vmatpush1.msra.mxu0 0.0
        %3756 = vmatprep.subr.mxu0 0.0
        %3757 = vmatpush1.msra.mxu0 0.0
        %3758 = vmatprep.subr.mxu0 0.0
        %3759 = vmatpush1.msra.mxu0 0.0
        %3760 = vmatprep.subr.mxu0 0.0
        %3761 = vmatpush1.msra.mxu0 0.0
        %3762 = vmatprep.subr.mxu0 0.0
        %3763 = vmatpush1.msra.mxu0 0.0
        %3764 = vmatprep.subr.mxu0 0.0
        %3765 = vmatpush1.msra.mxu0 0.0
        %3766 = vmatprep.subr.mxu0 0.0
        %3767 = vmatpush1.msra.mxu0 0.0
        %3768 = vmatprep.subr.mxu0 0.0
        %3769 = vmatpush1.msra.mxu0 0.0
        %3770 = vmatprep.subr.mxu0 0.0
        %3771 = vmatpush1.msra.mxu0 0.0
        %3772 = vmatprep.subr.mxu0 0.0
        %3773 = vmatpush1.msra.mxu0 0.0
        %3774 = vmatprep.subr.mxu0 0.0
        %3775 = vmatpush1.msra.mxu0 0.0
        %3776 = vmatprep.mubr.f32.mxu0 0.0
        %3777 = vmatmul.mubr.f32.gmra.mrb[0].mxu0 %v3613
        %v3778 = vpop.f32.mrb[0].mxu0
        %v3779 = vadd.f32 0.0, %v3778
        %v3780 = vpop.f32.mrb[0].mxu0
        %v3781 = vadd.f32 0.0, %v3780
        %3782 = vmatprep.mubr.f32.mxu0 0.0
        %3783 = vmatmul.mubr.f32.gmra.mrb[0].mxu0 %v3616
        %v3784 = vpop.f32.mrb[0].mxu0
        %v3785 = vadd.f32 0.0, %v3784
        %v3786 = vpop.f32.mrb[0].mxu0
        %v3787 = vadd.f32 0.0, %v3786
        %3788 = vmatprep.mubr.f32.mxu0 0.0
        %3789 = vmatmul.mubr.f32.gmra.mrb[0].mxu0 %v3619
        %v3790 = vpop.f32.mrb[0].mxu0
        %v3791 = vadd.f32 0.0, %v3790
        %v3792 = vpop.f32.mrb[0].mxu0
        %v3793 = vadd.f32 0.0, %v3792
        %3794 = vdwg.mxu0
        %v3795 = vadd.f32 %v3569, %v3696
        %v3796 = vadd.f32 %v3570, %v3698
        %v3797 = vadd.f32 %v3571, %v3779
        %v3798 = vadd.f32 %v3572, %v3781
        %v3799 = vadd.f32 %v3573, %v3702
        %v3800 = vadd.f32 %v3574, %v3704
        %v3801 = vadd.f32 %v3575, %v3785
        %v3802 = vadd.f32 %v3576, %v3787
        %v3803 = vadd.f32 %v3577, %v3708
        %v3804 = vadd.f32 %v3578, %v3710
        %v3805 = vadd.f32 %v3579, %v3791
        %v3806 = vadd.f32 %v3580, %v3793
        %s3807 = scalar_lea.vmem %s3, 96
        %v3808 = vld [vmem:[%s3807] sm:$0xff]
        %v3809 = vld [vmem:[%s3807 + $0x8] sm:$0xff]
        %v3810 = vld [vmem:[%s3807 + $0x10] sm:$0xf]
        %3811 = vrot.lane.b32.xlu0 %v2942, 120
        %v3812 = vpop.permute.xlu0 %3811
        %3813 = vrot.lane.b32.xlu0 %v2943, 120
        %v3814 = vpop.permute.xlu0 %3813
        %3815 = vrot.lane.b32.xlu0 %v2944, 120
        %v3816 = vpop.permute.xlu0 %3815
        %3817 = vrot.lane.b32.xlu0 %v2945, 120
        %v3818 = vpop.permute.xlu0 %3817
        %3819 = vrot.lane.b32.xlu0 %v2946, 120
        %v3820 = vpop.permute.xlu0 %3819
        %3821 = vrot.lane.b32.xlu0 %v2947, 120
        %v3822 = vpop.permute.xlu0 %3821
        %3823 = vrot.lane.b32.xlu0 %v2948, 120
        %v3824 = vpop.permute.xlu0 %3823
        %3825 = vrot.lane.b32.xlu0 %v2949, 120
        %v3826 = vpop.permute.xlu0 %3825
        %vm3827 = vcmask 982016
        %v3828 = vsel %vm3827, %v3812, %v3814
        %v3829 = vsel %vm3827, %v3814, %v3816
        %v3830 = vsel %vm3827, %v3816, %v3818
        %v3831 = vsel %vm3827, %v3820, %v3822
        %v3832 = vsel %vm3827, %v3822, %v3824
        %v3833 = vsel %vm3827, %v3824, %v3826
        %v3839 = vsel %vm2988, %v3808, 0
        %v3842 = vsel %vm2988, %v3809, 0
        %v3845 = vsel %vm2988, %v3810, 0
        %v3847 = vsel %vm2998, %v3831, 0
        %v3849 = vsel %vm2998, %v3832, 0
        %v3851 = vsel %vm2998, %v3833, 0
        %v3853 = vsel %vm2998, %v3826, 0
        %3855 = vmatprep.subr.mxu0 %v3829
        %3856 = vmatpush1.msra.mxu0 %v3828
        %3857 = vmatprep.subr.mxu0 %v3849
        %3858 = vmatpush1.msra.mxu0 %v3847
        %3859 = vmatprep.subr.mxu0 0.0
        %3860 = vmatpush1.msra.mxu0 0.0
        %3861 = vmatprep.subr.mxu0 0.0
        %3862 = vmatpush1.msra.mxu0 0.0
        %3863 = vmatprep.subr.mxu0 0.0
        %3864 = vmatpush1.msra.mxu0 0.0
        %3865 = vmatprep.subr.mxu0 0.0
        %3866 = vmatpush1.msra.mxu0 0.0
        %3867 = vmatprep.subr.mxu0 0.0
        %3868 = vmatpush1.msra.mxu0 0.0
        %3869 = vmatprep.subr.mxu0 0.0
        %3870 = vmatpush1.msra.mxu0 0.0
        %3871 = vmatprep.subr.mxu0 0.0
        %3872 = vmatpush1.msra.mxu0 0.0
        %3873 = vmatprep.subr.mxu0 0.0
        %3874 = vmatpush1.msra.mxu0 0.0
        %3875 = vmatprep.subr.mxu0 0.0
        %3876 = vmatpush1.msra.mxu0 0.0
        %3877 = vmatprep.subr.mxu0 0.0
        %3878 = vmatpush1.msra.mxu0 0.0
        %3879 = vmatprep.subr.mxu0 0.0
        %3880 = vmatpush1.msra.mxu0 0.0
        %3881 = vmatprep.subr.mxu0 0.0
        %3882 = vmatpush1.msra.mxu0 0.0
        %3883 = vmatprep.subr.mxu0 0.0
        %3884 = vmatpush1.msra.mxu0 0.0
        %3885 = vmatprep.subr.mxu0 0.0
        %3886 = vmatpush1.msra.mxu0 0.0
        %3887 = vmatprep.subr.mxu0 0.0
        %3888 = vmatpush1.msra.mxu0 0.0
        %3889 = vmatprep.subr.mxu0 0.0
        %3890 = vmatpush1.msra.mxu0 0.0
        %3891 = vmatprep.subr.mxu0 0.0
        %3892 = vmatpush1.msra.mxu0 0.0
        %3893 = vmatprep.subr.mxu0 0.0
        %3894 = vmatpush1.msra.mxu0 0.0
        %3895 = vmatprep.subr.mxu0 0.0
        %3896 = vmatpush1.msra.mxu0 0.0
        %3897 = vmatprep.subr.mxu0 0.0
        %3898 = vmatpush1.msra.mxu0 0.0
        %3899 = vmatprep.subr.mxu0 0.0
        %3900 = vmatpush1.msra.mxu0 0.0
        %3901 = vmatprep.subr.mxu0 0.0
        %3902 = vmatpush1.msra.mxu0 0.0
        %3903 = vmatprep.subr.mxu0 0.0
        %3904 = vmatpush1.msra.mxu0 0.0
        %3905 = vmatprep.subr.mxu0 0.0
        %3906 = vmatpush1.msra.mxu0 0.0
        %3907 = vmatprep.subr.mxu0 0.0
        %3908 = vmatpush1.msra.mxu0 0.0
        %3909 = vmatprep.subr.mxu0 0.0
        %3910 = vmatpush1.msra.mxu0 0.0
        %3911 = vmatprep.subr.mxu0 0.0
        %3912 = vmatpush1.msra.mxu0 0.0
        %3913 = vmatprep.subr.mxu0 0.0
        %3914 = vmatpush1.msra.mxu0 0.0
        %3915 = vmatprep.subr.mxu0 0.0
        %3916 = vmatpush1.msra.mxu0 0.0
        %3917 = vmatprep.subr.mxu0 0.0
        %3918 = vmatpush1.msra.mxu0 0.0
        %3919 = vmatprep.mubr.f32.mxu0 0.0
        %3920 = vmatmul.mubr.f32.gmra.mrb[0].mxu0 %v3839
        %v3921 = vpop.f32.mrb[0].mxu0
        %v3922 = vadd.f32 0.0, %v3921
        %v3923 = vpop.f32.mrb[0].mxu0
        %v3924 = vadd.f32 0.0, %v3923
        %3925 = vmatprep.mubr.f32.mxu0 0.0
        %3926 = vmatmul.mubr.f32.gmra.mrb[0].mxu0 %v3842
        %v3927 = vpop.f32.mrb[0].mxu0
        %v3928 = vadd.f32 0.0, %v3927
        %v3929 = vpop.f32.mrb[0].mxu0
        %v3930 = vadd.f32 0.0, %v3929
        %3931 = vmatprep.mubr.f32.mxu0 0.0
        %3932 = vmatmul.mubr.f32.gmra.mrb[0].mxu0 %v3845
        %v3933 = vpop.f32.mrb[0].mxu0
        %v3934 = vadd.f32 0.0, %v3933
        %v3935 = vpop.f32.mrb[0].mxu0
        %v3936 = vadd.f32 0.0, %v3935
        %3937 = vdwg.mxu0
        %3938 = vmatprep.subr.mxu0 %v3818
        %3939 = vmatpush1.msra.mxu0 %v3830
        %3940 = vmatprep.subr.mxu0 %v3853
        %3941 = vmatpush1.msra.mxu0 %v3851
        %3942 = vmatprep.subr.mxu0 0.0
        %3943 = vmatpush1.msra.mxu0 0.0
        %3944 = vmatprep.subr.mxu0 0.0
        %3945 = vmatpush1.msra.mxu0 0.0
        %3946 = vmatprep.subr.mxu0 0.0
        %3947 = vmatpush1.msra.mxu0 0.0
        %3948 = vmatprep.subr.mxu0 0.0
        %3949 = vmatpush1.msra.mxu0 0.0
        %3950 = vmatprep.subr.mxu0 0.0
        %3951 = vmatpush1.msra.mxu0 0.0
        %3952 = vmatprep.subr.mxu0 0.0
        %3953 = vmatpush1.msra.mxu0 0.0
        %3954 = vmatprep.subr.mxu0 0.0
        %3955 = vmatpush1.msra.mxu0 0.0
        %3956 = vmatprep.subr.mxu0 0.0
        %3957 = vmatpush1.msra.mxu0 0.0
        %3958 = vmatprep.subr.mxu0 0.0
        %3959 = vmatpush1.msra.mxu0 0.0
        %3960 = vmatprep.subr.mxu0 0.0
        %3961 = vmatpush1.msra.mxu0 0.0
        %3962 = vmatprep.subr.mxu0 0.0
        %3963 = vmatpush1.msra.mxu0 0.0
        %3964 = vmatprep.subr.mxu0 0.0
        %3965 = vmatpush1.msra.mxu0 0.0
        %3966 = vmatprep.subr.mxu0 0.0
        %3967 = vmatpush1.msra.mxu0 0.0
        %3968 = vmatprep.subr.mxu0 0.0
        %3969 = vmatpush1.msra.mxu0 0.0
        %3970 = vmatprep.subr.mxu0 0.0
        %3971 = vmatpush1.msra.mxu0 0.0
        %3972 = vmatprep.subr.mxu0 0.0
        %3973 = vmatpush1.msra.mxu0 0.0
        %3974 = vmatprep.subr.mxu0 0.0
        %3975 = vmatpush1.msra.mxu0 0.0
        %3976 = vmatprep.subr.mxu0 0.0
        %3977 = vmatpush1.msra.mxu0 0.0
        %3978 = vmatprep.subr.mxu0 0.0
        %3979 = vmatpush1.msra.mxu0 0.0
        %3980 = vmatprep.subr.mxu0 0.0
        %3981 = vmatpush1.msra.mxu0 0.0
        %3982 = vmatprep.subr.mxu0 0.0
        %3983 = vmatpush1.msra.mxu0 0.0
        %3984 = vmatprep.subr.mxu0 0.0
        %3985 = vmatpush1.msra.mxu0 0.0
        %3986 = vmatprep.subr.mxu0 0.0
        %3987 = vmatpush1.msra.mxu0 0.0
        %3988 = vmatprep.subr.mxu0 0.0
        %3989 = vmatpush1.msra.mxu0 0.0
        %3990 = vmatprep.subr.mxu0 0.0
        %3991 = vmatpush1.msra.mxu0 0.0
        %3992 = vmatprep.subr.mxu0 0.0
        %3993 = vmatpush1.msra.mxu0 0.0
        %3994 = vmatprep.subr.mxu0 0.0
        %3995 = vmatpush1.msra.mxu0 0.0
        %3996 = vmatprep.subr.mxu0 0.0
        %3997 = vmatpush1.msra.mxu0 0.0
        %3998 = vmatprep.subr.mxu0 0.0
        %3999 = vmatpush1.msra.mxu0 0.0
        %4000 = vmatprep.subr.mxu0 0.0
        %4001 = vmatpush1.msra.mxu0 0.0
        %4002 = vmatprep.mubr.f32.mxu0 0.0
        %4003 = vmatmul.mubr.f32.gmra.mrb[0].mxu0 %v3839
        %v4004 = vpop.f32.mrb[0].mxu0
        %v4005 = vadd.f32 0.0, %v4004
        %v4006 = vpop.f32.mrb[0].mxu0
        %v4007 = vadd.f32 0.0, %v4006
        %4008 = vmatprep.mubr.f32.mxu0 0.0
        %4009 = vmatmul.mubr.f32.gmra.mrb[0].mxu0 %v3842
        %v4010 = vpop.f32.mrb[0].mxu0
        %v4011 = vadd.f32 0.0, %v4010
        %v4012 = vpop.f32.mrb[0].mxu0
        %v4013 = vadd.f32 0.0, %v4012
        %4014 = vmatprep.mubr.f32.mxu0 0.0
        %4015 = vmatmul.mubr.f32.gmra.mrb[0].mxu0 %v3845
        %v4016 = vpop.f32.mrb[0].mxu0
        %v4017 = vadd.f32 0.0, %v4016
        %v4018 = vpop.f32.mrb[0].mxu0
        %v4019 = vadd.f32 0.0, %v4018
        %4020 = vdwg.mxu0
        %v4021 = vadd.f32 %v3795, %v3922
        %v4022 = vadd.f32 %v3796, %v3924
        %v4023 = vadd.f32 %v3797, %v4005
        %v4024 = vadd.f32 %v3798, %v4007
        %v4025 = vadd.f32 %v3799, %v3928
        %v4026 = vadd.f32 %v3800, %v3930
        %v4027 = vadd.f32 %v3801, %v4011
        %v4028 = vadd.f32 %v3802, %v4013
        %v4029 = vadd.f32 %v3803, %v3934
        %v4030 = vadd.f32 %v3804, %v3936
        %v4031 = vadd.f32 %v3805, %v4017
        %v4032 = vadd.f32 %v3806, %v4019
        %s4033 = scalar_lea.vmem %s3, 120
        %v4034 = vld [vmem:[%s4033] sm:$0xff]
        %v4035 = vld [vmem:[%s4033 + $0x8] sm:$0xff]
        %v4036 = vld [vmem:[%s4033 + $0x10] sm:$0xf]
        %4037 = vrot.lane.b32.xlu0 %v2942, 72
        %v4038 = vpop.permute.xlu0 %4037
        %4039 = vrot.lane.b32.xlu0 %v2943, 72
        %v4040 = vpop.permute.xlu0 %4039
        %4041 = vrot.lane.b32.xlu0 %v2944, 72
        %v4042 = vpop.permute.xlu0 %4041
        %4043 = vrot.lane.b32.xlu0 %v2945, 72
        %v4044 = vpop.permute.xlu0 %4043
        %4045 = vrot.lane.b32.xlu0 %v2946, 72
        %v4046 = vpop.permute.xlu0 %4045
        %4047 = vrot.lane.b32.xlu0 %v2947, 72
        %v4048 = vpop.permute.xlu0 %4047
        %4049 = vrot.lane.b32.xlu0 %v2948, 72
        %v4050 = vpop.permute.xlu0 %4049
        %4051 = vrot.lane.b32.xlu0 %v2949, 72
        %v4052 = vpop.permute.xlu0 %4051
        %v4053 = vsel %vm1334, %v4038, %v4040
        %v4054 = vsel %vm1334, %v4040, %v4042
        %v4055 = vsel %vm1334, %v4042, %v4044
        %v4056 = vsel %vm1334, %v4046, %v4048
        %v4057 = vsel %vm1334, %v4048, %v4050
        %v4058 = vsel %vm1334, %v4050, %v4052
        %v4064 = vsel %vm2988, %v4034, 0
        %v4067 = vsel %vm2988, %v4035, 0
        %v4070 = vsel %vm2988, %v4036, 0
        %v4072 = vsel %vm2998, %v4056, 0
        %v4074 = vsel %vm2998, %v4057, 0
        %v4076 = vsel %vm2998, %v4058, 0
        %v4078 = vsel %vm2998, %v4052, 0
        %4080 = vmatprep.subr.mxu0 %v4054
        %4081 = vmatpush1.msra.mxu0 %v4053
        %4082 = vmatprep.subr.mxu0 %v4074
        %4083 = vmatpush1.msra.mxu0 %v4072
        %4084 = vmatprep.subr.mxu0 0.0
        %4085 = vmatpush1.msra.mxu0 0.0
        %4086 = vmatprep.subr.mxu0 0.0
        %4087 = vmatpush1.msra.mxu0 0.0
        %4088 = vmatprep.subr.mxu0 0.0
        %4089 = vmatpush1.msra.mxu0 0.0
        %4090 = vmatprep.subr.mxu0 0.0
        %4091 = vmatpush1.msra.mxu0 0.0
        %4092 = vmatprep.subr.mxu0 0.0
        %4093 = vmatpush1.msra.mxu0 0.0
        %4094 = vmatprep.subr.mxu0 0.0
        %4095 = vmatpush1.msra.mxu0 0.0
        %4096 = vmatprep.subr.mxu0 0.0
        %4097 = vmatpush1.msra.mxu0 0.0
        %4098 = vmatprep.subr.mxu0 0.0
        %4099 = vmatpush1.msra.mxu0 0.0
        %4100 = vmatprep.subr.mxu0 0.0
        %4101 = vmatpush1.msra.mxu0 0.0
        %4102 = vmatprep.subr.mxu0 0.0
        %4103 = vmatpush1.msra.mxu0 0.0
        %4104 = vmatprep.subr.mxu0 0.0
        %4105 = vmatpush1.msra.mxu0 0.0
        %4106 = vmatprep.subr.mxu0 0.0
        %4107 = vmatpush1.msra.mxu0 0.0
        %4108 = vmatprep.subr.mxu0 0.0
        %4109 = vmatpush1.msra.mxu0 0.0
        %4110 = vmatprep.subr.mxu0 0.0
        %4111 = vmatpush1.msra.mxu0 0.0
        %4112 = vmatprep.subr.mxu0 0.0
        %4113 = vmatpush1.msra.mxu0 0.0
        %4114 = vmatprep.subr.mxu0 0.0
        %4115 = vmatpush1.msra.mxu0 0.0
        %4116 = vmatprep.subr.mxu0 0.0
        %4117 = vmatpush1.msra.mxu0 0.0
        %4118 = vmatprep.subr.mxu0 0.0
        %4119 = vmatpush1.msra.mxu0 0.0
        %4120 = vmatprep.subr.mxu0 0.0
        %4121 = vmatpush1.msra.mxu0 0.0
        %4122 = vmatprep.subr.mxu0 0.0
        %4123 = vmatpush1.msra.mxu0 0.0
        %4124 = vmatprep.subr.mxu0 0.0
        %4125 = vmatpush1.msra.mxu0 0.0
        %4126 = vmatprep.subr.mxu0 0.0
        %4127 = vmatpush1.msra.mxu0 0.0
        %4128 = vmatprep.subr.mxu0 0.0
        %4129 = vmatpush1.msra.mxu0 0.0
        %4130 = vmatprep.subr.mxu0 0.0
        %4131 = vmatpush1.msra.mxu0 0.0
        %4132 = vmatprep.subr.mxu0 0.0
        %4133 = vmatpush1.msra.mxu0 0.0
        %4134 = vmatprep.subr.mxu0 0.0
        %4135 = vmatpush1.msra.mxu0 0.0
        %4136 = vmatprep.subr.mxu0 0.0
        %4137 = vmatpush1.msra.mxu0 0.0
        %4138 = vmatprep.subr.mxu0 0.0
        %4139 = vmatpush1.msra.mxu0 0.0
        %4140 = vmatprep.subr.mxu0 0.0
        %4141 = vmatpush1.msra.mxu0 0.0
        %4142 = vmatprep.subr.mxu0 0.0
        %4143 = vmatpush1.msra.mxu0 0.0
        %4144 = vmatprep.mubr.f32.mxu0 0.0
        %4145 = vmatmul.mubr.f32.gmra.mrb[0].mxu0 %v4064
        %v4146 = vpop.f32.mrb[0].mxu0
        %v4147 = vadd.f32 0.0, %v4146
        %v4148 = vpop.f32.mrb[0].mxu0
        %v4149 = vadd.f32 0.0, %v4148
        %4150 = vmatprep.mubr.f32.mxu0 0.0
        %4151 = vmatmul.mubr.f32.gmra.mrb[0].mxu0 %v4067
        %v4152 = vpop.f32.mrb[0].mxu0
        %v4153 = vadd.f32 0.0, %v4152
        %v4154 = vpop.f32.mrb[0].mxu0
        %v4155 = vadd.f32 0.0, %v4154
        %4156 = vmatprep.mubr.f32.mxu0 0.0
        %4157 = vmatmul.mubr.f32.gmra.mrb[0].mxu0 %v4070
        %v4158 = vpop.f32.mrb[0].mxu0
        %v4159 = vadd.f32 0.0, %v4158
        %v4160 = vpop.f32.mrb[0].mxu0
        %v4161 = vadd.f32 0.0, %v4160
        %4162 = vdwg.mxu0
        %4163 = vmatprep.subr.mxu0 %v4044
        %4164 = vmatpush1.msra.mxu0 %v4055
        %4165 = vmatprep.subr.mxu0 %v4078
        %4166 = vmatpush1.msra.mxu0 %v4076
        %4167 = vmatprep.subr.mxu0 0.0
        %4168 = vmatpush1.msra.mxu0 0.0
        %4169 = vmatprep.subr.mxu0 0.0
        %4170 = vmatpush1.msra.mxu0 0.0
        %4171 = vmatprep.subr.mxu0 0.0
        %4172 = vmatpush1.msra.mxu0 0.0
        %4173 = vmatprep.subr.mxu0 0.0
        %4174 = vmatpush1.msra.mxu0 0.0
        %4175 = vmatprep.subr.mxu0 0.0
        %4176 = vmatpush1.msra.mxu0 0.0
        %4177 = vmatprep.subr.mxu0 0.0
        %4178 = vmatpush1.msra.mxu0 0.0
        %4179 = vmatprep.subr.mxu0 0.0
        %4180 = vmatpush1.msra.mxu0 0.0
        %4181 = vmatprep.subr.mxu0 0.0
        %4182 = vmatpush1.msra.mxu0 0.0
        %4183 = vmatprep.subr.mxu0 0.0
        %4184 = vmatpush1.msra.mxu0 0.0
        %4185 = vmatprep.subr.mxu0 0.0
        %4186 = vmatpush1.msra.mxu0 0.0
        %4187 = vmatprep.subr.mxu0 0.0
        %4188 = vmatpush1.msra.mxu0 0.0
        %4189 = vmatprep.subr.mxu0 0.0
        %4190 = vmatpush1.msra.mxu0 0.0
        %4191 = vmatprep.subr.mxu0 0.0
        %4192 = vmatpush1.msra.mxu0 0.0
        %4193 = vmatprep.subr.mxu0 0.0
        %4194 = vmatpush1.msra.mxu0 0.0
        %4195 = vmatprep.subr.mxu0 0.0
        %4196 = vmatpush1.msra.mxu0 0.0
        %4197 = vmatprep.subr.mxu0 0.0
        %4198 = vmatpush1.msra.mxu0 0.0
        %4199 = vmatprep.subr.mxu0 0.0
        %4200 = vmatpush1.msra.mxu0 0.0
        %4201 = vmatprep.subr.mxu0 0.0
        %4202 = vmatpush1.msra.mxu0 0.0
        %4203 = vmatprep.subr.mxu0 0.0
        %4204 = vmatpush1.msra.mxu0 0.0
        %4205 = vmatprep.subr.mxu0 0.0
        %4206 = vmatpush1.msra.mxu0 0.0
        %4207 = vmatprep.subr.mxu0 0.0
        %4208 = vmatpush1.msra.mxu0 0.0
        %4209 = vmatprep.subr.mxu0 0.0
        %4210 = vmatpush1.msra.mxu0 0.0
        %4211 = vmatprep.subr.mxu0 0.0
        %4212 = vmatpush1.msra.mxu0 0.0
        %4213 = vmatprep.subr.mxu0 0.0
        %4214 = vmatpush1.msra.mxu0 0.0
        %4215 = vmatprep.subr.mxu0 0.0
        %4216 = vmatpush1.msra.mxu0 0.0
        %4217 = vmatprep.subr.mxu0 0.0
        %4218 = vmatpush1.msra.mxu0 0.0
        %4219 = vmatprep.subr.mxu0 0.0
        %4220 = vmatpush1.msra.mxu0 0.0
        %4221 = vmatprep.subr.mxu0 0.0
        %4222 = vmatpush1.msra.mxu0 0.0
        %4223 = vmatprep.subr.mxu0 0.0
        %4224 = vmatpush1.msra.mxu0 0.0
        %4225 = vmatprep.subr.mxu0 0.0
        %4226 = vmatpush1.msra.mxu0 0.0
        %4227 = vmatprep.mubr.f32.mxu0 0.0
        %4228 = vmatmul.mubr.f32.gmra.mrb[0].mxu0 %v4064
        %v4229 = vpop.f32.mrb[0].mxu0
        %v4230 = vadd.f32 0.0, %v4229
        %v4231 = vpop.f32.mrb[0].mxu0
        %v4232 = vadd.f32 0.0, %v4231
        %4233 = vmatprep.mubr.f32.mxu0 0.0
        %4234 = vmatmul.mubr.f32.gmra.mrb[0].mxu0 %v4067
        %v4235 = vpop.f32.mrb[0].mxu0
        %v4236 = vadd.f32 0.0, %v4235
        %v4237 = vpop.f32.mrb[0].mxu0
        %v4238 = vadd.f32 0.0, %v4237
        %4239 = vmatprep.mubr.f32.mxu0 0.0
        %4240 = vmatmul.mubr.f32.gmra.mrb[0].mxu0 %v4070
        %v4241 = vpop.f32.mrb[0].mxu0
        %v4242 = vadd.f32 0.0, %v4241
        %v4243 = vpop.f32.mrb[0].mxu0
        %v4244 = vadd.f32 0.0, %v4243
        %4245 = vdwg.mxu0
        %v4246 = vadd.f32 %v4021, %v4147
        %v4247 = vadd.f32 %v4022, %v4149
        %v4248 = vadd.f32 %v4023, %v4230
        %v4249 = vadd.f32 %v4024, %v4232
        %v4250 = vadd.f32 %v4025, %v4153
        %v4251 = vadd.f32 %v4026, %v4155
        %v4252 = vadd.f32 %v4027, %v4236
        %v4253 = vadd.f32 %v4028, %v4238
        %v4254 = vadd.f32 %v4029, %v4159
        %v4255 = vadd.f32 %v4030, %v4161
        %v4256 = vadd.f32 %v4031, %v4242
        %v4257 = vadd.f32 %v4032, %v4244
        %s4258 = scalar_lea.vmem %s3, 144
        %v4259 = vld [vmem:[%s4258] sm:$0xff]
        %v4260 = vld [vmem:[%s4258 + $0x8] sm:$0xff]
        %v4261 = vld [vmem:[%s4258 + $0x10] sm:$0xf]
        %4262 = vrot.lane.b32.xlu0 %v2942, 70
        %v4263 = vpop.permute.xlu0 %4262
        %4264 = vrot.lane.b32.xlu0 %v2943, 70
        %v4265 = vpop.permute.xlu0 %4264
        %4266 = vrot.lane.b32.xlu0 %v2944, 70
        %v4267 = vpop.permute.xlu0 %4266
        %4268 = vrot.lane.b32.xlu0 %v2945, 70
        %v4269 = vpop.permute.xlu0 %4268
        %4270 = vrot.lane.b32.xlu0 %v2946, 70
        %v4271 = vpop.permute.xlu0 %4270
        %4272 = vrot.lane.b32.xlu0 %v2947, 70
        %v4273 = vpop.permute.xlu0 %4272
        %4274 = vrot.lane.b32.xlu0 %v2948, 70
        %v4275 = vpop.permute.xlu0 %4274
        %4276 = vrot.lane.b32.xlu0 %v2949, 70
        %v4277 = vpop.permute.xlu0 %4276
        %v4278 = vsel %vm1516, %v4263, %v4265
        %v4279 = vsel %vm1516, %v4265, %v4267
        %v4280 = vsel %vm1516, %v4267, %v4269
        %v4281 = vsel %vm1516, %v4271, %v4273
        %v4282 = vsel %vm1516, %v4273, %v4275
        %v4283 = vsel %vm1516, %v4275, %v4277
        %v4289 = vsel %vm2988, %v4259, 0
        %v4292 = vsel %vm2988, %v4260, 0
        %v4295 = vsel %vm2988, %v4261, 0
        %v4297 = vsel %vm2998, %v4281, 0
        %v4299 = vsel %vm2998, %v4282, 0
        %v4301 = vsel %vm2998, %v4283, 0
        %v4303 = vsel %vm2998, %v4277, 0
        %4305 = vmatprep.subr.mxu0 %v4279
        %4306 = vmatpush1.msra.mxu0 %v4278
        %4307 = vmatprep.subr.mxu0 %v4299
        %4308 = vmatpush1.msra.mxu0 %v4297
        %4309 = vmatprep.subr.mxu0 0.0
        %4310 = vmatpush1.msra.mxu0 0.0
        %4311 = vmatprep.subr.mxu0 0.0
        %4312 = vmatpush1.msra.mxu0 0.0
        %4313 = vmatprep.subr.mxu0 0.0
        %4314 = vmatpush1.msra.mxu0 0.0
        %4315 = vmatprep.subr.mxu0 0.0
        %4316 = vmatpush1.msra.mxu0 0.0
        %4317 = vmatprep.subr.mxu0 0.0
        %4318 = vmatpush1.msra.mxu0 0.0
        %4319 = vmatprep.subr.mxu0 0.0
        %4320 = vmatpush1.msra.mxu0 0.0
        %4321 = vmatprep.subr.mxu0 0.0
        %4322 = vmatpush1.msra.mxu0 0.0
        %4323 = vmatprep.subr.mxu0 0.0
        %4324 = vmatpush1.msra.mxu0 0.0
        %4325 = vmatprep.subr.mxu0 0.0
        %4326 = vmatpush1.msra.mxu0 0.0
        %4327 = vmatprep.subr.mxu0 0.0
        %4328 = vmatpush1.msra.mxu0 0.0
        %4329 = vmatprep.subr.mxu0 0.0
        %4330 = vmatpush1.msra.mxu0 0.0
        %4331 = vmatprep.subr.mxu0 0.0
        %4332 = vmatpush1.msra.mxu0 0.0
        %4333 = vmatprep.subr.mxu0 0.0
        %4334 = vmatpush1.msra.mxu0 0.0
        %4335 = vmatprep.subr.mxu0 0.0
        %4336 = vmatpush1.msra.mxu0 0.0
        %4337 = vmatprep.subr.mxu0 0.0
        %4338 = vmatpush1.msra.mxu0 0.0
        %4339 = vmatprep.subr.mxu0 0.0
        %4340 = vmatpush1.msra.mxu0 0.0
        %4341 = vmatprep.subr.mxu0 0.0
        %4342 = vmatpush1.msra.mxu0 0.0
        %4343 = vmatprep.subr.mxu0 0.0
        %4344 = vmatpush1.msra.mxu0 0.0
        %4345 = vmatprep.subr.mxu0 0.0
        %4346 = vmatpush1.msra.mxu0 0.0
        %4347 = vmatprep.subr.mxu0 0.0
        %4348 = vmatpush1.msra.mxu0 0.0
        %4349 = vmatprep.subr.mxu0 0.0
        %4350 = vmatpush1.msra.mxu0 0.0
        %4351 = vmatprep.subr.mxu0 0.0
        %4352 = vmatpush1.msra.mxu0 0.0
        %4353 = vmatprep.subr.mxu0 0.0
        %4354 = vmatpush1.msra.mxu0 0.0
        %4355 = vmatprep.subr.mxu0 0.0
        %4356 = vmatpush1.msra.mxu0 0.0
        %4357 = vmatprep.subr.mxu0 0.0
        %4358 = vmatpush1.msra.mxu0 0.0
        %4359 = vmatprep.subr.mxu0 0.0
        %4360 = vmatpush1.msra.mxu0 0.0
        %4361 = vmatprep.subr.mxu0 0.0
        %4362 = vmatpush1.msra.mxu0 0.0
        %4363 = vmatprep.subr.mxu0 0.0
        %4364 = vmatpush1.msra.mxu0 0.0
        %4365 = vmatprep.subr.mxu0 0.0
        %4366 = vmatpush1.msra.mxu0 0.0
        %4367 = vmatprep.subr.mxu0 0.0
        %4368 = vmatpush1.msra.mxu0 0.0
        %4369 = vmatprep.mubr.f32.mxu0 0.0
        %4370 = vmatmul.mubr.f32.gmra.mrb[0].mxu0 %v4289
        %v4371 = vpop.f32.mrb[0].mxu0
        %v4372 = vadd.f32 0.0, %v4371
        %v4373 = vpop.f32.mrb[0].mxu0
        %v4374 = vadd.f32 0.0, %v4373
        %4375 = vmatprep.mubr.f32.mxu0 0.0
        %4376 = vmatmul.mubr.f32.gmra.mrb[0].mxu0 %v4292
        %v4377 = vpop.f32.mrb[0].mxu0
        %v4378 = vadd.f32 0.0, %v4377
        %v4379 = vpop.f32.mrb[0].mxu0
        %v4380 = vadd.f32 0.0, %v4379
        %4381 = vmatprep.mubr.f32.mxu0 0.0
        %4382 = vmatmul.mubr.f32.gmra.mrb[0].mxu0 %v4295
        %v4383 = vpop.f32.mrb[0].mxu0
        %v4384 = vadd.f32 0.0, %v4383
        %v4385 = vpop.f32.mrb[0].mxu0
        %v4386 = vadd.f32 0.0, %v4385
        %4387 = vdwg.mxu0
        %4388 = vmatprep.subr.mxu0 %v4269
        %4389 = vmatpush1.msra.mxu0 %v4280
        %4390 = vmatprep.subr.mxu0 %v4303
        %4391 = vmatpush1.msra.mxu0 %v4301
        %4392 = vmatprep.subr.mxu0 0.0
        %4393 = vmatpush1.msra.mxu0 0.0
        %4394 = vmatprep.subr.mxu0 0.0
        %4395 = vmatpush1.msra.mxu0 0.0
        %4396 = vmatprep.subr.mxu0 0.0
        %4397 = vmatpush1.msra.mxu0 0.0
        %4398 = vmatprep.subr.mxu0 0.0
        %4399 = vmatpush1.msra.mxu0 0.0
        %4400 = vmatprep.subr.mxu0 0.0
        %4401 = vmatpush1.msra.mxu0 0.0
        %4402 = vmatprep.subr.mxu0 0.0
        %4403 = vmatpush1.msra.mxu0 0.0
        %4404 = vmatprep.subr.mxu0 0.0
        %4405 = vmatpush1.msra.mxu0 0.0
        %4406 = vmatprep.subr.mxu0 0.0
        %4407 = vmatpush1.msra.mxu0 0.0
        %4408 = vmatprep.subr.mxu0 0.0
        %4409 = vmatpush1.msra.mxu0 0.0
        %4410 = vmatprep.subr.mxu0 0.0
        %4411 = vmatpush1.msra.mxu0 0.0
        %4412 = vmatprep.subr.mxu0 0.0
        %4413 = vmatpush1.msra.mxu0 0.0
        %4414 = vmatprep.subr.mxu0 0.0
        %4415 = vmatpush1.msra.mxu0 0.0
        %4416 = vmatprep.subr.mxu0 0.0
        %4417 = vmatpush1.msra.mxu0 0.0
        %4418 = vmatprep.subr.mxu0 0.0
        %4419 = vmatpush1.msra.mxu0 0.0
        %4420 = vmatprep.subr.mxu0 0.0
        %4421 = vmatpush1.msra.mxu0 0.0
        %4422 = vmatprep.subr.mxu0 0.0
        %4423 = vmatpush1.msra.mxu0 0.0
        %4424 = vmatprep.subr.mxu0 0.0
        %4425 = vmatpush1.msra.mxu0 0.0
        %4426 = vmatprep.subr.mxu0 0.0
        %4427 = vmatpush1.msra.mxu0 0.0
        %4428 = vmatprep.subr.mxu0 0.0
        %4429 = vmatpush1.msra.mxu0 0.0
        %4430 = vmatprep.subr.mxu0 0.0
        %4431 = vmatpush1.msra.mxu0 0.0
        %4432 = vmatprep.subr.mxu0 0.0
        %4433 = vmatpush1.msra.mxu0 0.0
        %4434 = vmatprep.subr.mxu0 0.0
        %4435 = vmatpush1.msra.mxu0 0.0
        %4436 = vmatprep.subr.mxu0 0.0
        %4437 = vmatpush1.msra.mxu0 0.0
        %4438 = vmatprep.subr.mxu0 0.0
        %4439 = vmatpush1.msra.mxu0 0.0
        %4440 = vmatprep.subr.mxu0 0.0
        %4441 = vmatpush1.msra.mxu0 0.0
        %4442 = vmatprep.subr.mxu0 0.0
        %4443 = vmatpush1.msra.mxu0 0.0
        %4444 = vmatprep.subr.mxu0 0.0
        %4445 = vmatpush1.msra.mxu0 0.0
        %4446 = vmatprep.subr.mxu0 0.0
        %4447 = vmatpush1.msra.mxu0 0.0
        %4448 = vmatprep.subr.mxu0 0.0
        %4449 = vmatpush1.msra.mxu0 0.0
        %4450 = vmatprep.subr.mxu0 0.0
        %4451 = vmatpush1.msra.mxu0 0.0
        %4452 = vmatprep.mubr.f32.mxu0 0.0
        %4453 = vmatmul.mubr.f32.gmra.mrb[0].mxu0 %v4289
        %v4454 = vpop.f32.mrb[0].mxu0
        %v4455 = vadd.f32 0.0, %v4454
        %v4456 = vpop.f32.mrb[0].mxu0
        %v4457 = vadd.f32 0.0, %v4456
        %4458 = vmatprep.mubr.f32.mxu0 0.0
        %4459 = vmatmul.mubr.f32.gmra.mrb[0].mxu0 %v4292
        %v4460 = vpop.f32.mrb[0].mxu0
        %v4461 = vadd.f32 0.0, %v4460
        %v4462 = vpop.f32.mrb[0].mxu0
        %v4463 = vadd.f32 0.0, %v4462
        %4464 = vmatprep.mubr.f32.mxu0 0.0
        %4465 = vmatmul.mubr.f32.gmra.mrb[0].mxu0 %v4295
        %v4466 = vpop.f32.mrb[0].mxu0
        %v4467 = vadd.f32 0.0, %v4466
        %v4468 = vpop.f32.mrb[0].mxu0
        %v4469 = vadd.f32 0.0, %v4468
        %4470 = vdwg.mxu0
        %v4471 = vadd.f32 %v4246, %v4372
        %v4472 = vadd.f32 %v4247, %v4374
        %v4473 = vadd.f32 %v4248, %v4455
        %v4474 = vadd.f32 %v4249, %v4457
        %v4475 = vadd.f32 %v4250, %v4378
        %v4476 = vadd.f32 %v4251, %v4380
        %v4477 = vadd.f32 %v4252, %v4461
        %v4478 = vadd.f32 %v4253, %v4463
        %v4479 = vadd.f32 %v4254, %v4384
        %v4480 = vadd.f32 %v4255, %v4386
        %v4481 = vadd.f32 %v4256, %v4467
        %v4482 = vadd.f32 %v4257, %v4469
        %s4483 = scalar_lea.vmem %s3, 168
        %v4484 = vld [vmem:[%s4483] sm:$0xff]
        %v4485 = vld [vmem:[%s4483 + $0x8] sm:$0xff]
        %v4486 = vld [vmem:[%s4483 + $0x10] sm:$0xf]
        %4487 = vrot.lane.b32.xlu0 %v2942, 68
        %v4488 = vpop.permute.xlu0 %4487
        %4489 = vrot.lane.b32.xlu0 %v2943, 68
        %v4490 = vpop.permute.xlu0 %4489
        %4491 = vrot.lane.b32.xlu0 %v2944, 68
        %v4492 = vpop.permute.xlu0 %4491
        %4493 = vrot.lane.b32.xlu0 %v2945, 68
        %v4494 = vpop.permute.xlu0 %4493
        %4495 = vrot.lane.b32.xlu0 %v2946, 68
        %v4496 = vpop.permute.xlu0 %4495
        %4497 = vrot.lane.b32.xlu0 %v2947, 68
        %v4498 = vpop.permute.xlu0 %4497
        %4499 = vrot.lane.b32.xlu0 %v2948, 68
        %v4500 = vpop.permute.xlu0 %4499
        %4501 = vrot.lane.b32.xlu0 %v2949, 68
        %v4502 = vpop.permute.xlu0 %4501
        %v4503 = vsel %vm1698, %v4488, %v4490
        %v4504 = vsel %vm1698, %v4490, %v4492
        %v4505 = vsel %vm1698, %v4492, %v4494
        %v4506 = vsel %vm1698, %v4496, %v4498
        %v4507 = vsel %vm1698, %v4498, %v4500
        %v4508 = vsel %vm1698, %v4500, %v4502
        %v4514 = vsel %vm2988, %v4484, 0
        %v4517 = vsel %vm2988, %v4485, 0
        %v4520 = vsel %vm2988, %v4486, 0
        %v4522 = vsel %vm2998, %v4506, 0
        %v4524 = vsel %vm2998, %v4507, 0
        %v4526 = vsel %vm2998, %v4508, 0
        %v4528 = vsel %vm2998, %v4502, 0
        %4530 = vmatprep.subr.mxu0 %v4504
        %4531 = vmatpush1.msra.mxu0 %v4503
        %4532 = vmatprep.subr.mxu0 %v4524
        %4533 = vmatpush1.msra.mxu0 %v4522
        %4534 = vmatprep.subr.mxu0 0.0
        %4535 = vmatpush1.msra.mxu0 0.0
        %4536 = vmatprep.subr.mxu0 0.0
        %4537 = vmatpush1.msra.mxu0 0.0
        %4538 = vmatprep.subr.mxu0 0.0
        %4539 = vmatpush1.msra.mxu0 0.0
        %4540 = vmatprep.subr.mxu0 0.0
        %4541 = vmatpush1.msra.mxu0 0.0
        %4542 = vmatprep.subr.mxu0 0.0
        %4543 = vmatpush1.msra.mxu0 0.0
        %4544 = vmatprep.subr.mxu0 0.0
        %4545 = vmatpush1.msra.mxu0 0.0
        %4546 = vmatprep.subr.mxu0 0.0
        %4547 = vmatpush1.msra.mxu0 0.0
        %4548 = vmatprep.subr.mxu0 0.0
        %4549 = vmatpush1.msra.mxu0 0.0
        %4550 = vmatprep.subr.mxu0 0.0
        %4551 = vmatpush1.msra.mxu0 0.0
        %4552 = vmatprep.subr.mxu0 0.0
        %4553 = vmatpush1.msra.mxu0 0.0
        %4554 = vmatprep.subr.mxu0 0.0
        %4555 = vmatpush1.msra.mxu0 0.0
        %4556 = vmatprep.subr.mxu0 0.0
        %4557 = vmatpush1.msra.mxu0 0.0
        %4558 = vmatprep.subr.mxu0 0.0
        %4559 = vmatpush1.msra.mxu0 0.0
        %4560 = vmatprep.subr.mxu0 0.0
        %4561 = vmatpush1.msra.mxu0 0.0
        %4562 = vmatprep.subr.mxu0 0.0
        %4563 = vmatpush1.msra.mxu0 0.0
        %4564 = vmatprep.subr.mxu0 0.0
        %4565 = vmatpush1.msra.mxu0 0.0
        %4566 = vmatprep.subr.mxu0 0.0
        %4567 = vmatpush1.msra.mxu0 0.0
        %4568 = vmatprep.subr.mxu0 0.0
        %4569 = vmatpush1.msra.mxu0 0.0
        %4570 = vmatprep.subr.mxu0 0.0
        %4571 = vmatpush1.msra.mxu0 0.0
        %4572 = vmatprep.subr.mxu0 0.0
        %4573 = vmatpush1.msra.mxu0 0.0
        %4574 = vmatprep.subr.mxu0 0.0
        %4575 = vmatpush1.msra.mxu0 0.0
        %4576 = vmatprep.subr.mxu0 0.0
        %4577 = vmatpush1.msra.mxu0 0.0
        %4578 = vmatprep.subr.mxu0 0.0
        %4579 = vmatpush1.msra.mxu0 0.0
        %4580 = vmatprep.subr.mxu0 0.0
        %4581 = vmatpush1.msra.mxu0 0.0
        %4582 = vmatprep.subr.mxu0 0.0
        %4583 = vmatpush1.msra.mxu0 0.0
        %4584 = vmatprep.subr.mxu0 0.0
        %4585 = vmatpush1.msra.mxu0 0.0
        %4586 = vmatprep.subr.mxu0 0.0
        %4587 = vmatpush1.msra.mxu0 0.0
        %4588 = vmatprep.subr.mxu0 0.0
        %4589 = vmatpush1.msra.mxu0 0.0
        %4590 = vmatprep.subr.mxu0 0.0
        %4591 = vmatpush1.msra.mxu0 0.0
        %4592 = vmatprep.subr.mxu0 0.0
        %4593 = vmatpush1.msra.mxu0 0.0
        %4594 = vmatprep.mubr.f32.mxu0 0.0
        %4595 = vmatmul.mubr.f32.gmra.mrb[0].mxu0 %v4514
        %v4596 = vpop.f32.mrb[0].mxu0
        %v4597 = vadd.f32 0.0, %v4596
        %v4598 = vpop.f32.mrb[0].mxu0
        %v4599 = vadd.f32 0.0, %v4598
        %4600 = vmatprep.mubr.f32.mxu0 0.0
        %4601 = vmatmul.mubr.f32.gmra.mrb[0].mxu0 %v4517
        %v4602 = vpop.f32.mrb[0].mxu0
        %v4603 = vadd.f32 0.0, %v4602
        %v4604 = vpop.f32.mrb[0].mxu0
        %v4605 = vadd.f32 0.0, %v4604
        %4606 = vmatprep.mubr.f32.mxu0 0.0
        %4607 = vmatmul.mubr.f32.gmra.mrb[0].mxu0 %v4520
        %v4608 = vpop.f32.mrb[0].mxu0
        %v4609 = vadd.f32 0.0, %v4608
        %v4610 = vpop.f32.mrb[0].mxu0
        %v4611 = vadd.f32 0.0, %v4610
        %4612 = vdwg.mxu0
        %4613 = vmatprep.subr.mxu0 %v4494
        %4614 = vmatpush1.msra.mxu0 %v4505
        %4615 = vmatprep.subr.mxu0 %v4528
        %4616 = vmatpush1.msra.mxu0 %v4526
        %4617 = vmatprep.subr.mxu0 0.0
        %4618 = vmatpush1.msra.mxu0 0.0
        %4619 = vmatprep.subr.mxu0 0.0
        %4620 = vmatpush1.msra.mxu0 0.0
        %4621 = vmatprep.subr.mxu0 0.0
        %4622 = vmatpush1.msra.mxu0 0.0
        %4623 = vmatprep.subr.mxu0 0.0
        %4624 = vmatpush1.msra.mxu0 0.0
        %4625 = vmatprep.subr.mxu0 0.0
        %4626 = vmatpush1.msra.mxu0 0.0
        %4627 = vmatprep.subr.mxu0 0.0
        %4628 = vmatpush1.msra.mxu0 0.0
        %4629 = vmatprep.subr.mxu0 0.0
        %4630 = vmatpush1.msra.mxu0 0.0
        %4631 = vmatprep.subr.mxu0 0.0
        %4632 = vmatpush1.msra.mxu0 0.0
        %4633 = vmatprep.subr.mxu0 0.0
        %4634 = vmatpush1.msra.mxu0 0.0
        %4635 = vmatprep.subr.mxu0 0.0
        %4636 = vmatpush1.msra.mxu0 0.0
        %4637 = vmatprep.subr.mxu0 0.0
        %4638 = vmatpush1.msra.mxu0 0.0
        %4639 = vmatprep.subr.mxu0 0.0
        %4640 = vmatpush1.msra.mxu0 0.0
        %4641 = vmatprep.subr.mxu0 0.0
        %4642 = vmatpush1.msra.mxu0 0.0
        %4643 = vmatprep.subr.mxu0 0.0
        %4644 = vmatpush1.msra.mxu0 0.0
        %4645 = vmatprep.subr.mxu0 0.0
        %4646 = vmatpush1.msra.mxu0 0.0
        %4647 = vmatprep.subr.mxu0 0.0
        %4648 = vmatpush1.msra.mxu0 0.0
        %4649 = vmatprep.subr.mxu0 0.0
        %4650 = vmatpush1.msra.mxu0 0.0
        %4651 = vmatprep.subr.mxu0 0.0
        %4652 = vmatpush1.msra.mxu0 0.0
        %4653 = vmatprep.subr.mxu0 0.0
        %4654 = vmatpush1.msra.mxu0 0.0
        %4655 = vmatprep.subr.mxu0 0.0
        %4656 = vmatpush1.msra.mxu0 0.0
        %4657 = vmatprep.subr.mxu0 0.0
        %4658 = vmatpush1.msra.mxu0 0.0
        %4659 = vmatprep.subr.mxu0 0.0
        %4660 = vmatpush1.msra.mxu0 0.0
        %4661 = vmatprep.subr.mxu0 0.0
        %4662 = vmatpush1.msra.mxu0 0.0
        %4663 = vmatprep.subr.mxu0 0.0
        %4664 = vmatpush1.msra.mxu0 0.0
        %4665 = vmatprep.subr.mxu0 0.0
        %4666 = vmatpush1.msra.mxu0 0.0
        %4667 = vmatprep.subr.mxu0 0.0
        %4668 = vmatpush1.msra.mxu0 0.0
        %4669 = vmatprep.subr.mxu0 0.0
        %4670 = vmatpush1.msra.mxu0 0.0
        %4671 = vmatprep.subr.mxu0 0.0
        %4672 = vmatpush1.msra.mxu0 0.0
        %4673 = vmatprep.subr.mxu0 0.0
        %4674 = vmatpush1.msra.mxu0 0.0
        %4675 = vmatprep.subr.mxu0 0.0
        %4676 = vmatpush1.msra.mxu0 0.0
        %4677 = vmatprep.mubr.f32.mxu0 0.0
        %4678 = vmatmul.mubr.f32.gmra.mrb[0].mxu0 %v4514
        %v4679 = vpop.f32.mrb[0].mxu0
        %v4680 = vadd.f32 0.0, %v4679
        %v4681 = vpop.f32.mrb[0].mxu0
        %v4682 = vadd.f32 0.0, %v4681
        %4683 = vmatprep.mubr.f32.mxu0 0.0
        %4684 = vmatmul.mubr.f32.gmra.mrb[0].mxu0 %v4517
        %v4685 = vpop.f32.mrb[0].mxu0
        %v4686 = vadd.f32 0.0, %v4685
        %v4687 = vpop.f32.mrb[0].mxu0
        %v4688 = vadd.f32 0.0, %v4687
        %4689 = vmatprep.mubr.f32.mxu0 0.0
        %4690 = vmatmul.mubr.f32.gmra.mrb[0].mxu0 %v4520
        %v4691 = vpop.f32.mrb[0].mxu0
        %v4692 = vadd.f32 0.0, %v4691
        %v4693 = vpop.f32.mrb[0].mxu0
        %v4694 = vadd.f32 0.0, %v4693
        %4695 = vdwg.mxu0
        %v4696 = vadd.f32 %v4471, %v4597
        %v4697 = vadd.f32 %v4472, %v4599
        %v4698 = vadd.f32 %v4473, %v4680
        %v4699 = vadd.f32 %v4474, %v4682
        %v4700 = vadd.f32 %v4475, %v4603
        %v4701 = vadd.f32 %v4476, %v4605
        %v4702 = vadd.f32 %v4477, %v4686
        %v4703 = vadd.f32 %v4478, %v4688
        %v4704 = vadd.f32 %v4479, %v4609
        %v4705 = vadd.f32 %v4480, %v4611
        %v4706 = vadd.f32 %v4481, %v4692
        %v4707 = vadd.f32 %v4482, %v4694
        %s4708 = scalar_lea.vmem %s3, 192
        %v4709 = vld [vmem:[%s4708] sm:$0xff]
        %v4710 = vld [vmem:[%s4708 + $0x8] sm:$0xff]
        %v4711 = vld [vmem:[%s4708 + $0x10] sm:$0xf]
        %4712 = vrot.lane.b32.xlu0 %v2942, 66
        %v4713 = vpop.permute.xlu0 %4712
        %4714 = vrot.lane.b32.xlu0 %v2943, 66
        %v4715 = vpop.permute.xlu0 %4714
        %4716 = vrot.lane.b32.xlu0 %v2944, 66
        %v4717 = vpop.permute.xlu0 %4716
        %4718 = vrot.lane.b32.xlu0 %v2945, 66
        %v4719 = vpop.permute.xlu0 %4718
        %4720 = vrot.lane.b32.xlu0 %v2946, 66
        %v4721 = vpop.permute.xlu0 %4720
        %4722 = vrot.lane.b32.xlu0 %v2947, 66
        %v4723 = vpop.permute.xlu0 %4722
        %4724 = vrot.lane.b32.xlu0 %v2948, 66
        %v4725 = vpop.permute.xlu0 %4724
        %4726 = vrot.lane.b32.xlu0 %v2949, 66
        %v4727 = vpop.permute.xlu0 %4726
        %vm4728 = vcmask 539648
        %v4729 = vsel %vm4728, %v4713, %v4715
        %v4730 = vsel %vm4728, %v4715, %v4717
        %v4731 = vsel %vm4728, %v4717, %v4719
        %v4732 = vsel %vm4728, %v4721, %v4723
        %v4733 = vsel %vm4728, %v4723, %v4725
        %v4734 = vsel %vm4728, %v4725, %v4727
        %v4740 = vsel %vm2988, %v4709, 0
        %v4743 = vsel %vm2988, %v4710, 0
        %v4746 = vsel %vm2988, %v4711, 0
        %v4748 = vsel %vm2998, %v4732, 0
        %v4750 = vsel %vm2998, %v4733, 0
        %v4752 = vsel %vm2998, %v4734, 0
        %v4754 = vsel %vm2998, %v4727, 0
        %4756 = vmatprep.subr.mxu0 %v4730
        %4757 = vmatpush1.msra.mxu0 %v4729
        %4758 = vmatprep.subr.mxu0 %v4750
        %4759 = vmatpush1.msra.mxu0 %v4748
        %4760 = vmatprep.subr.mxu0 0.0
        %4761 = vmatpush1.msra.mxu0 0.0
        %4762 = vmatprep.subr.mxu0 0.0
        %4763 = vmatpush1.msra.mxu0 0.0
        %4764 = vmatprep.subr.mxu0 0.0
        %4765 = vmatpush1.msra.mxu0 0.0
        %4766 = vmatprep.subr.mxu0 0.0
        %4767 = vmatpush1.msra.mxu0 0.0
        %4768 = vmatprep.subr.mxu0 0.0
        %4769 = vmatpush1.msra.mxu0 0.0
        %4770 = vmatprep.subr.mxu0 0.0
        %4771 = vmatpush1.msra.mxu0 0.0
        %4772 = vmatprep.subr.mxu0 0.0
        %4773 = vmatpush1.msra.mxu0 0.0
        %4774 = vmatprep.subr.mxu0 0.0
        %4775 = vmatpush1.msra.mxu0 0.0
        %4776 = vmatprep.subr.mxu0 0.0
        %4777 = vmatpush1.msra.mxu0 0.0
        %4778 = vmatprep.subr.mxu0 0.0
        %4779 = vmatpush1.msra.mxu0 0.0
        %4780 = vmatprep.subr.mxu0 0.0
        %4781 = vmatpush1.msra.mxu0 0.0
        %4782 = vmatprep.subr.mxu0 0.0
        %4783 = vmatpush1.msra.mxu0 0.0
        %4784 = vmatprep.subr.mxu0 0.0
        %4785 = vmatpush1.msra.mxu0 0.0
        %4786 = vmatprep.subr.mxu0 0.0
        %4787 = vmatpush1.msra.mxu0 0.0
        %4788 = vmatprep.subr.mxu0 0.0
        %4789 = vmatpush1.msra.mxu0 0.0
        %4790 = vmatprep.subr.mxu0 0.0
        %4791 = vmatpush1.msra.mxu0 0.0
        %4792 = vmatprep.subr.mxu0 0.0
        %4793 = vmatpush1.msra.mxu0 0.0
        %4794 = vmatprep.subr.mxu0 0.0
        %4795 = vmatpush1.msra.mxu0 0.0
        %4796 = vmatprep.subr.mxu0 0.0
        %4797 = vmatpush1.msra.mxu0 0.0
        %4798 = vmatprep.subr.mxu0 0.0
        %4799 = vmatpush1.msra.mxu0 0.0
        %4800 = vmatprep.subr.mxu0 0.0
        %4801 = vmatpush1.msra.mxu0 0.0
        %4802 = vmatprep.subr.mxu0 0.0
        %4803 = vmatpush1.msra.mxu0 0.0
        %4804 = vmatprep.subr.mxu0 0.0
        %4805 = vmatpush1.msra.mxu0 0.0
        %4806 = vmatprep.subr.mxu0 0.0
        %4807 = vmatpush1.msra.mxu0 0.0
        %4808 = vmatprep.subr.mxu0 0.0
        %4809 = vmatpush1.msra.mxu0 0.0
        %4810 = vmatprep.subr.mxu0 0.0
        %4811 = vmatpush1.msra.mxu0 0.0
        %4812 = vmatprep.subr.mxu0 0.0
        %4813 = vmatpush1.msra.mxu0 0.0
        %4814 = vmatprep.subr.mxu0 0.0
        %4815 = vmatpush1.msra.mxu0 0.0
        %4816 = vmatprep.subr.mxu0 0.0
        %4817 = vmatpush1.msra.mxu0 0.0
        %4818 = vmatprep.subr.mxu0 0.0
        %4819 = vmatpush1.msra.mxu0 0.0
        %4820 = vmatprep.mubr.f32.mxu0 0.0
        %4821 = vmatmul.mubr.f32.gmra.mrb[0].mxu0 %v4740
        %v4822 = vpop.f32.mrb[0].mxu0
        %v4823 = vadd.f32 0.0, %v4822
        %v4824 = vpop.f32.mrb[0].mxu0
        %v4825 = vadd.f32 0.0, %v4824
        %4826 = vmatprep.mubr.f32.mxu0 0.0
        %4827 = vmatmul.mubr.f32.gmra.mrb[0].mxu0 %v4743
        %v4828 = vpop.f32.mrb[0].mxu0
        %v4829 = vadd.f32 0.0, %v4828
        %v4830 = vpop.f32.mrb[0].mxu0
        %v4831 = vadd.f32 0.0, %v4830
        %4832 = vmatprep.mubr.f32.mxu0 0.0
        %4833 = vmatmul.mubr.f32.gmra.mrb[0].mxu0 %v4746
        %v4834 = vpop.f32.mrb[0].mxu0
        %v4835 = vadd.f32 0.0, %v4834
        %v4836 = vpop.f32.mrb[0].mxu0
        %v4837 = vadd.f32 0.0, %v4836
        %4838 = vdwg.mxu0
        %4839 = vmatprep.subr.mxu0 %v4719
        %4840 = vmatpush1.msra.mxu0 %v4731
        %4841 = vmatprep.subr.mxu0 %v4754
        %4842 = vmatpush1.msra.mxu0 %v4752
        %4843 = vmatprep.subr.mxu0 0.0
        %4844 = vmatpush1.msra.mxu0 0.0
        %4845 = vmatprep.subr.mxu0 0.0
        %4846 = vmatpush1.msra.mxu0 0.0
        %4847 = vmatprep.subr.mxu0 0.0
        %4848 = vmatpush1.msra.mxu0 0.0
        %4849 = vmatprep.subr.mxu0 0.0
        %4850 = vmatpush1.msra.mxu0 0.0
        %4851 = vmatprep.subr.mxu0 0.0
        %4852 = vmatpush1.msra.mxu0 0.0
        %4853 = vmatprep.subr.mxu0 0.0
        %4854 = vmatpush1.msra.mxu0 0.0
        %4855 = vmatprep.subr.mxu0 0.0
        %4856 = vmatpush1.msra.mxu0 0.0
        %4857 = vmatprep.subr.mxu0 0.0
        %4858 = vmatpush1.msra.mxu0 0.0
        %4859 = vmatprep.subr.mxu0 0.0
        %4860 = vmatpush1.msra.mxu0 0.0
        %4861 = vmatprep.subr.mxu0 0.0
        %4862 = vmatpush1.msra.mxu0 0.0
        %4863 = vmatprep.subr.mxu0 0.0
        %4864 = vmatpush1.msra.mxu0 0.0
        %4865 = vmatprep.subr.mxu0 0.0
        %4866 = vmatpush1.msra.mxu0 0.0
        %4867 = vmatprep.subr.mxu0 0.0
        %4868 = vmatpush1.msra.mxu0 0.0
        %4869 = vmatprep.subr.mxu0 0.0
        %4870 = vmatpush1.msra.mxu0 0.0
        %4871 = vmatprep.subr.mxu0 0.0
        %4872 = vmatpush1.msra.mxu0 0.0
        %4873 = vmatprep.subr.mxu0 0.0
        %4874 = vmatpush1.msra.mxu0 0.0
        %4875 = vmatprep.subr.mxu0 0.0
        %4876 = vmatpush1.msra.mxu0 0.0
        %4877 = vmatprep.subr.mxu0 0.0
        %4878 = vmatpush1.msra.mxu0 0.0
        %4879 = vmatprep.subr.mxu0 0.0
        %4880 = vmatpush1.msra.mxu0 0.0
        %4881 = vmatprep.subr.mxu0 0.0
        %4882 = vmatpush1.msra.mxu0 0.0
        %4883 = vmatprep.subr.mxu0 0.0
        %4884 = vmatpush1.msra.mxu0 0.0
        %4885 = vmatprep.subr.mxu0 0.0
        %4886 = vmatpush1.msra.mxu0 0.0
        %4887 = vmatprep.subr.mxu0 0.0
        %4888 = vmatpush1.msra.mxu0 0.0
        %4889 = vmatprep.subr.mxu0 0.0
        %4890 = vmatpush1.msra.mxu0 0.0
        %4891 = vmatprep.subr.mxu0 0.0
        %4892 = vmatpush1.msra.mxu0 0.0
        %4893 = vmatprep.subr.mxu0 0.0
        %4894 = vmatpush1.msra.mxu0 0.0
        %4895 = vmatprep.subr.mxu0 0.0
        %4896 = vmatpush1.msra.mxu0 0.0
        %4897 = vmatprep.subr.mxu0 0.0
        %4898 = vmatpush1.msra.mxu0 0.0
        %4899 = vmatprep.subr.mxu0 0.0
        %4900 = vmatpush1.msra.mxu0 0.0
        %4901 = vmatprep.subr.mxu0 0.0
        %4902 = vmatpush1.msra.mxu0 0.0
        %4903 = vmatprep.mubr.f32.mxu0 0.0
        %4904 = vmatmul.mubr.f32.gmra.mrb[0].mxu0 %v4740
        %v4905 = vpop.f32.mrb[0].mxu0
        %v4906 = vadd.f32 0.0, %v4905
        %v4907 = vpop.f32.mrb[0].mxu0
        %v4908 = vadd.f32 0.0, %v4907
        %4909 = vmatprep.mubr.f32.mxu0 0.0
        %4910 = vmatmul.mubr.f32.gmra.mrb[0].mxu0 %v4743
        %v4911 = vpop.f32.mrb[0].mxu0
        %v4912 = vadd.f32 0.0, %v4911
        %v4913 = vpop.f32.mrb[0].mxu0
        %v4914 = vadd.f32 0.0, %v4913
        %4915 = vmatprep.mubr.f32.mxu0 0.0
        %4916 = vmatmul.mubr.f32.gmra.mrb[0].mxu0 %v4746
        %v4917 = vpop.f32.mrb[0].mxu0
        %v4918 = vadd.f32 0.0, %v4917
        %v4919 = vpop.f32.mrb[0].mxu0
        %v4920 = vadd.f32 0.0, %v4919
        %4921 = vdwg.mxu0
        %v4922 = vadd.f32 %v4696, %v4823
        %v4923 = vadd.f32 %v4697, %v4825
        %v4924 = vadd.f32 %v4698, %v4906
        %v4925 = vadd.f32 %v4699, %v4908
        %v4926 = vadd.f32 %v4700, %v4829
        %v4927 = vadd.f32 %v4701, %v4831
        %v4928 = vadd.f32 %v4702, %v4912
        %v4929 = vadd.f32 %v4703, %v4914
        %v4930 = vadd.f32 %v4704, %v4835
        %v4931 = vadd.f32 %v4705, %v4837
        %v4932 = vadd.f32 %v4706, %v4918
        %v4933 = vadd.f32 %v4707, %v4920
        %s4934 = scalar_lea.vmem %s3, 216
        %v4935 = vld [vmem:[%s4934] sm:$0xff]
        %v4936 = vld [vmem:[%s4934 + $0x8] sm:$0xff]
        %v4937 = vld [vmem:[%s4934 + $0x10] sm:$0xf]
        %4938 = vrot.lane.b32.xlu0 %v2942, 64
        %v4939 = vpop.permute.xlu0 %4938
        %4940 = vrot.lane.b32.xlu0 %v2943, 64
        %v4941 = vpop.permute.xlu0 %4940
        %4942 = vrot.lane.b32.xlu0 %v2944, 64
        %v4943 = vpop.permute.xlu0 %4942
        %4944 = vrot.lane.b32.xlu0 %v2945, 64
        %v4945 = vpop.permute.xlu0 %4944
        %4946 = vrot.lane.b32.xlu0 %v2946, 64
        %v4947 = vpop.permute.xlu0 %4946
        %4948 = vrot.lane.b32.xlu0 %v2947, 64
        %v4949 = vpop.permute.xlu0 %4948
        %4950 = vrot.lane.b32.xlu0 %v2948, 64
        %v4951 = vpop.permute.xlu0 %4950
        %4952 = vrot.lane.b32.xlu0 %v2949, 64
        %v4953 = vpop.permute.xlu0 %4952
        %vm4954 = vcmask 523264
        %v4955 = vsel %vm4954, %v4939, %v4941
        %v4956 = vsel %vm4954, %v4941, %v4943
        %v4957 = vsel %vm4954, %v4943, %v4945
        %v4958 = vsel %vm4954, %v4947, %v4949
        %v4959 = vsel %vm4954, %v4949, %v4951
        %v4960 = vsel %vm4954, %v4951, %v4953
        %v4966 = vsel %vm2988, %v4935, 0
        %v4969 = vsel %vm2988, %v4936, 0
        %v4972 = vsel %vm2988, %v4937, 0
        %v4974 = vsel %vm2998, %v4958, 0
        %v4976 = vsel %vm2998, %v4959, 0
        %v4978 = vsel %vm2998, %v4960, 0
        %v4980 = vsel %vm2998, %v4953, 0
        %4982 = vmatprep.subr.mxu0 %v4956
        %4983 = vmatpush1.msra.mxu0 %v4955
        %4984 = vmatprep.subr.mxu0 %v4976
        %4985 = vmatpush1.msra.mxu0 %v4974
        %4986 = vmatprep.subr.mxu0 0.0
        %4987 = vmatpush1.msra.mxu0 0.0
        %4988 = vmatprep.subr.mxu0 0.0
        %4989 = vmatpush1.msra.mxu0 0.0
        %4990 = vmatprep.subr.mxu0 0.0
        %4991 = vmatpush1.msra.mxu0 0.0
        %4992 = vmatprep.subr.mxu0 0.0
        %4993 = vmatpush1.msra.mxu0 0.0
        %4994 = vmatprep.subr.mxu0 0.0
        %4995 = vmatpush1.msra.mxu0 0.0
        %4996 = vmatprep.subr.mxu0 0.0
        %4997 = vmatpush1.msra.mxu0 0.0
        %4998 = vmatprep.subr.mxu0 0.0
        %4999 = vmatpush1.msra.mxu0 0.0
        %5000 = vmatprep.subr.mxu0 0.0
        %5001 = vmatpush1.msra.mxu0 0.0
        %5002 = vmatprep.subr.mxu0 0.0
        %5003 = vmatpush1.msra.mxu0 0.0
        %5004 = vmatprep.subr.mxu0 0.0
        %5005 = vmatpush1.msra.mxu0 0.0
        %5006 = vmatprep.subr.mxu0 0.0
        %5007 = vmatpush1.msra.mxu0 0.0
        %5008 = vmatprep.subr.mxu0 0.0
        %5009 = vmatpush1.msra.mxu0 0.0
        %5010 = vmatprep.subr.mxu0 0.0
        %5011 = vmatpush1.msra.mxu0 0.0
        %5012 = vmatprep.subr.mxu0 0.0
        %5013 = vmatpush1.msra.mxu0 0.0
        %5014 = vmatprep.subr.mxu0 0.0
        %5015 = vmatpush1.msra.mxu0 0.0
        %5016 = vmatprep.subr.mxu0 0.0
        %5017 = vmatpush1.msra.mxu0 0.0
        %5018 = vmatprep.subr.mxu0 0.0
        %5019 = vmatpush1.msra.mxu0 0.0
        %5020 = vmatprep.subr.mxu0 0.0
        %5021 = vmatpush1.msra.mxu0 0.0
        %5022 = vmatprep.subr.mxu0 0.0
        %5023 = vmatpush1.msra.mxu0 0.0
        %5024 = vmatprep.subr.mxu0 0.0
        %5025 = vmatpush1.msra.mxu0 0.0
        %5026 = vmatprep.subr.mxu0 0.0
        %5027 = vmatpush1.msra.mxu0 0.0
        %5028 = vmatprep.subr.mxu0 0.0
        %5029 = vmatpush1.msra.mxu0 0.0
        %5030 = vmatprep.subr.mxu0 0.0
        %5031 = vmatpush1.msra.mxu0 0.0
        %5032 = vmatprep.subr.mxu0 0.0
        %5033 = vmatpush1.msra.mxu0 0.0
        %5034 = vmatprep.subr.mxu0 0.0
        %5035 = vmatpush1.msra.mxu0 0.0
        %5036 = vmatprep.subr.mxu0 0.0
        %5037 = vmatpush1.msra.mxu0 0.0
        %5038 = vmatprep.subr.mxu0 0.0
        %5039 = vmatpush1.msra.mxu0 0.0
        %5040 = vmatprep.subr.mxu0 0.0
        %5041 = vmatpush1.msra.mxu0 0.0
        %5042 = vmatprep.subr.mxu0 0.0
        %5043 = vmatpush1.msra.mxu0 0.0
        %5044 = vmatprep.subr.mxu0 0.0
        %5045 = vmatpush1.msra.mxu0 0.0
        %5046 = vmatprep.mubr.f32.mxu0 0.0
        %5047 = vmatmul.mubr.f32.gmra.mrb[0].mxu0 %v4966
        %v5048 = vpop.f32.mrb[0].mxu0
        %v5049 = vadd.f32 0.0, %v5048
        %v5050 = vpop.f32.mrb[0].mxu0
        %v5051 = vadd.f32 0.0, %v5050
        %5052 = vmatprep.mubr.f32.mxu0 0.0
        %5053 = vmatmul.mubr.f32.gmra.mrb[0].mxu0 %v4969
        %v5054 = vpop.f32.mrb[0].mxu0
        %v5055 = vadd.f32 0.0, %v5054
        %v5056 = vpop.f32.mrb[0].mxu0
        %v5057 = vadd.f32 0.0, %v5056
        %5058 = vmatprep.mubr.f32.mxu0 0.0
        %5059 = vmatmul.mubr.f32.gmra.mrb[0].mxu0 %v4972
        %v5060 = vpop.f32.mrb[0].mxu0
        %v5061 = vadd.f32 0.0, %v5060
        %v5062 = vpop.f32.mrb[0].mxu0
        %v5063 = vadd.f32 0.0, %v5062
        %5064 = vdwg.mxu0
        %5065 = vmatprep.subr.mxu0 %v4945
        %5066 = vmatpush1.msra.mxu0 %v4957
        %5067 = vmatprep.subr.mxu0 %v4980
        %5068 = vmatpush1.msra.mxu0 %v4978
        %5069 = vmatprep.subr.mxu0 0.0
        %5070 = vmatpush1.msra.mxu0 0.0
        %5071 = vmatprep.subr.mxu0 0.0
        %5072 = vmatpush1.msra.mxu0 0.0
        %5073 = vmatprep.subr.mxu0 0.0
        %5074 = vmatpush1.msra.mxu0 0.0
        %5075 = vmatprep.subr.mxu0 0.0
        %5076 = vmatpush1.msra.mxu0 0.0
        %5077 = vmatprep.subr.mxu0 0.0
        %5078 = vmatpush1.msra.mxu0 0.0
        %5079 = vmatprep.subr.mxu0 0.0
        %5080 = vmatpush1.msra.mxu0 0.0
        %5081 = vmatprep.subr.mxu0 0.0
        %5082 = vmatpush1.msra.mxu0 0.0
        %5083 = vmatprep.subr.mxu0 0.0
        %5084 = vmatpush1.msra.mxu0 0.0
        %5085 = vmatprep.subr.mxu0 0.0
        %5086 = vmatpush1.msra.mxu0 0.0
        %5087 = vmatprep.subr.mxu0 0.0
        %5088 = vmatpush1.msra.mxu0 0.0
        %5089 = vmatprep.subr.mxu0 0.0
        %5090 = vmatpush1.msra.mxu0 0.0
        %5091 = vmatprep.subr.mxu0 0.0
        %5092 = vmatpush1.msra.mxu0 0.0
        %5093 = vmatprep.subr.mxu0 0.0
        %5094 = vmatpush1.msra.mxu0 0.0
        %5095 = vmatprep.subr.mxu0 0.0
        %5096 = vmatpush1.msra.mxu0 0.0
        %5097 = vmatprep.subr.mxu0 0.0
        %5098 = vmatpush1.msra.mxu0 0.0
        %5099 = vmatprep.subr.mxu0 0.0
        %5100 = vmatpush1.msra.mxu0 0.0
        %5101 = vmatprep.subr.mxu0 0.0
        %5102 = vmatpush1.msra.mxu0 0.0
        %5103 = vmatprep.subr.mxu0 0.0
        %5104 = vmatpush1.msra.mxu0 0.0
        %5105 = vmatprep.subr.mxu0 0.0
        %5106 = vmatpush1.msra.mxu0 0.0
        %5107 = vmatprep.subr.mxu0 0.0
        %5108 = vmatpush1.msra.mxu0 0.0
        %5109 = vmatprep.subr.mxu0 0.0
        %5110 = vmatpush1.msra.mxu0 0.0
        %5111 = vmatprep.subr.mxu0 0.0
        %5112 = vmatpush1.msra.mxu0 0.0
        %5113 = vmatprep.subr.mxu0 0.0
        %5114 = vmatpush1.msra.mxu0 0.0
        %5115 = vmatprep.subr.mxu0 0.0
        %5116 = vmatpush1.msra.mxu0 0.0
        %5117 = vmatprep.subr.mxu0 0.0
        %5118 = vmatpush1.msra.mxu0 0.0
        %5119 = vmatprep.subr.mxu0 0.0
        %5120 = vmatpush1.msra.mxu0 0.0
        %5121 = vmatprep.subr.mxu0 0.0
        %5122 = vmatpush1.msra.mxu0 0.0
        %5123 = vmatprep.subr.mxu0 0.0
        %5124 = vmatpush1.msra.mxu0 0.0
        %5125 = vmatprep.subr.mxu0 0.0
        %5126 = vmatpush1.msra.mxu0 0.0
        %5127 = vmatprep.subr.mxu0 0.0
        %5128 = vmatpush1.msra.mxu0 0.0
        %5129 = vmatprep.mubr.f32.mxu0 0.0
        %5130 = vmatmul.mubr.f32.gmra.mrb[0].mxu0 %v4966
        %v5131 = vpop.f32.mrb[0].mxu0
        %v5132 = vadd.f32 0.0, %v5131
        %v5133 = vpop.f32.mrb[0].mxu0
        %v5134 = vadd.f32 0.0, %v5133
        %5135 = vmatprep.mubr.f32.mxu0 0.0
        %5136 = vmatmul.mubr.f32.gmra.mrb[0].mxu0 %v4969
        %v5137 = vpop.f32.mrb[0].mxu0
        %v5138 = vadd.f32 0.0, %v5137
        %v5139 = vpop.f32.mrb[0].mxu0
        %v5140 = vadd.f32 0.0, %v5139
        %5141 = vmatprep.mubr.f32.mxu0 0.0
        %5142 = vmatmul.mubr.f32.gmra.mrb[0].mxu0 %v4972
        %v5143 = vpop.f32.mrb[0].mxu0
        %v5144 = vadd.f32 0.0, %v5143
        %v5145 = vpop.f32.mrb[0].mxu0
        %v5146 = vadd.f32 0.0, %v5145
        %5147 = vdwg.mxu0
        %v5148 = vadd.f32 %v4922, %v5049
        %v5149 = vadd.f32 %v4923, %v5051
        %v5150 = vadd.f32 %v4924, %v5132
        %v5151 = vadd.f32 %v4925, %v5134
        %v5152 = vadd.f32 %v4926, %v5055
        %v5153 = vadd.f32 %v4927, %v5057
        %v5154 = vadd.f32 %v4928, %v5138
        %v5155 = vadd.f32 %v4929, %v5140
        %v5156 = vadd.f32 %v4930, %v5061
        %v5157 = vadd.f32 %v4931, %v5063
        %v5158 = vadd.f32 %v4932, %v5144
        %v5159 = vadd.f32 %v4933, %v5146
        %s5160 = scalar_lea.vmem %s3, 240
        %v5161 = vld [vmem:[%s5160] sm:$0xff]
        %v5162 = vld [vmem:[%s5160 + $0x8] sm:$0xff]
        %v5163 = vld [vmem:[%s5160 + $0x10] sm:$0xf]
        %v5164 = vld [vmem:[#allocation3] sm:$0xff]
        %v5165 = vld [vmem:[#allocation3 + $0x8] sm:$0xff]
        %v5166 = vld [vmem:[#allocation3 + $0x10] sm:$0xff]
        %v5167 = vld [vmem:[#allocation3 + $0x18] sm:$0xff]
        %v5168 = vld [vmem:[#allocation3 + $0x20] sm:$0xff]
        %v5169 = vld [vmem:[#allocation3 + $0x28] sm:$0x3]
        %v5170 = vld [vmem:[#allocation3 + $0x30] sm:$0x3]
        %v5171 = vld [vmem:[#allocation3 + $0x38] sm:$0x3]
        %v5172 = vld [vmem:[#allocation3 + $0x40] sm:$0x3]
        %v5173 = vld [vmem:[#allocation3 + $0x48] sm:$0x3]
        %5184 = vrot.lane.b32.xlu0 %v5164, 16
        %v5185 = vpop.permute.xlu0 %5184
        %5186 = vrot.lane.b32.xlu0 %v5165, 16
        %v5187 = vpop.permute.xlu0 %5186
        %5188 = vrot.lane.b32.xlu0 %v5166, 16
        %v5189 = vpop.permute.xlu0 %5188
        %5190 = vrot.lane.b32.xlu0 %v5167, 16
        %v5191 = vpop.permute.xlu0 %5190
        %5192 = vrot.lane.b32.xlu0 %v5168, 16
        %v5193 = vpop.permute.xlu0 %5192
        %5194 = vrot.lane.b32.xlu0 %v5169, 16
        %v5195 = vpop.permute.xlu0 %5194
        %5196 = vrot.lane.b32.xlu0 %v5170, 16
        %v5197 = vpop.permute.xlu0 %5196
        %5198 = vrot.lane.b32.xlu0 %v5171, 16
        %v5199 = vpop.permute.xlu0 %5198
        %5200 = vrot.lane.b32.xlu0 %v5172, 16
        %v5201 = vpop.permute.xlu0 %5200
        %5202 = vrot.lane.b32.xlu0 %v5173, 16
        %v5203 = vpop.permute.xlu0 %5202
        %v5204 = vsel %vm2289, %v5185, %v5187
        %v5205 = vsel %vm2289, %v5187, %v5189
        %v5206 = vsel %vm2289, %v5189, %v5191
        %v5207 = vsel %vm2289, %v5191, %v5193
        %v5208 = vsel %vm2289, %v5195, %v5197
        %v5209 = vsel %vm2289, %v5197, %v5199
        %v5210 = vsel %vm2289, %v5199, %v5201
        %v5211 = vsel %vm2289, %v5201, %v5203
        %v5217 = vsel %vm2988, %v5161, 0
        %v5220 = vsel %vm2988, %v5162, 0
        %v5223 = vsel %vm2988, %v5163, 0
        %v5225 = vsel %vm2998, %v5208, 0
        %v5227 = vsel %vm2998, %v5209, 0
        %v5229 = vsel %vm2998, %v5210, 0
        %v5231 = vsel %vm2998, %v5211, 0
        %5233 = vmatprep.subr.mxu0 %v5205
        %5234 = vmatpush1.msra.mxu0 %v5204
        %5235 = vmatprep.subr.mxu0 %v5227
        %5236 = vmatpush1.msra.mxu0 %v5225
        %5237 = vmatprep.subr.mxu0 0.0
        %5238 = vmatpush1.msra.mxu0 0.0
        %5239 = vmatprep.subr.mxu0 0.0
        %5240 = vmatpush1.msra.mxu0 0.0
        %5241 = vmatprep.subr.mxu0 0.0
        %5242 = vmatpush1.msra.mxu0 0.0
        %5243 = vmatprep.subr.mxu0 0.0
        %5244 = vmatpush1.msra.mxu0 0.0
        %5245 = vmatprep.subr.mxu0 0.0
        %5246 = vmatpush1.msra.mxu0 0.0
        %5247 = vmatprep.subr.mxu0 0.0
        %5248 = vmatpush1.msra.mxu0 0.0
        %5249 = vmatprep.subr.mxu0 0.0
        %5250 = vmatpush1.msra.mxu0 0.0
        %5251 = vmatprep.subr.mxu0 0.0
        %5252 = vmatpush1.msra.mxu0 0.0
        %5253 = vmatprep.subr.mxu0 0.0
        %5254 = vmatpush1.msra.mxu0 0.0
        %5255 = vmatprep.subr.mxu0 0.0
        %5256 = vmatpush1.msra.mxu0 0.0
        %5257 = vmatprep.subr.mxu0 0.0
        %5258 = vmatpush1.msra.mxu0 0.0
        %5259 = vmatprep.subr.mxu0 0.0
        %5260 = vmatpush1.msra.mxu0 0.0
        %5261 = vmatprep.subr.mxu0 0.0
        %5262 = vmatpush1.msra.mxu0 0.0
        %5263 = vmatprep.subr.mxu0 0.0
        %5264 = vmatpush1.msra.mxu0 0.0
        %5265 = vmatprep.subr.mxu0 0.0
        %5266 = vmatpush1.msra.mxu0 0.0
        %5267 = vmatprep.subr.mxu0 0.0
        %5268 = vmatpush1.msra.mxu0 0.0
        %5269 = vmatprep.subr.mxu0 0.0
        %5270 = vmatpush1.msra.mxu0 0.0
        %5271 = vmatprep.subr.mxu0 0.0
        %5272 = vmatpush1.msra.mxu0 0.0
        %5273 = vmatprep.subr.mxu0 0.0
        %5274 = vmatpush1.msra.mxu0 0.0
        %5275 = vmatprep.subr.mxu0 0.0
        %5276 = vmatpush1.msra.mxu0 0.0
        %5277 = vmatprep.subr.mxu0 0.0
        %5278 = vmatpush1.msra.mxu0 0.0
        %5279 = vmatprep.subr.mxu0 0.0
        %5280 = vmatpush1.msra.mxu0 0.0
        %5281 = vmatprep.subr.mxu0 0.0
        %5282 = vmatpush1.msra.mxu0 0.0
        %5283 = vmatprep.subr.mxu0 0.0
        %5284 = vmatpush1.msra.mxu0 0.0
        %5285 = vmatprep.subr.mxu0 0.0
        %5286 = vmatpush1.msra.mxu0 0.0
        %5287 = vmatprep.subr.mxu0 0.0
        %5288 = vmatpush1.msra.mxu0 0.0
        %5289 = vmatprep.subr.mxu0 0.0
        %5290 = vmatpush1.msra.mxu0 0.0
        %5291 = vmatprep.subr.mxu0 0.0
        %5292 = vmatpush1.msra.mxu0 0.0
        %5293 = vmatprep.subr.mxu0 0.0
        %5294 = vmatpush1.msra.mxu0 0.0
        %5295 = vmatprep.subr.mxu0 0.0
        %5296 = vmatpush1.msra.mxu0 0.0
        %5297 = vmatprep.mubr.f32.mxu0 0.0
        %5298 = vmatmul.mubr.f32.gmra.mrb[0].mxu0 %v5217
        %v5299 = vpop.f32.mrb[0].mxu0
        %v5300 = vadd.f32 0.0, %v5299
        %v5301 = vpop.f32.mrb[0].mxu0
        %v5302 = vadd.f32 0.0, %v5301
        %5303 = vmatprep.mubr.f32.mxu0 0.0
        %5304 = vmatmul.mubr.f32.gmra.mrb[0].mxu0 %v5220
        %v5305 = vpop.f32.mrb[0].mxu0
        %v5306 = vadd.f32 0.0, %v5305
        %v5307 = vpop.f32.mrb[0].mxu0
        %v5308 = vadd.f32 0.0, %v5307
        %5309 = vmatprep.mubr.f32.mxu0 0.0
        %5310 = vmatmul.mubr.f32.gmra.mrb[0].mxu0 %v5223
        %v5311 = vpop.f32.mrb[0].mxu0
        %v5312 = vadd.f32 0.0, %v5311
        %v5313 = vpop.f32.mrb[0].mxu0
        %v5314 = vadd.f32 0.0, %v5313
        %5315 = vdwg.mxu0
        %5316 = vmatprep.subr.mxu0 %v5207
        %5317 = vmatpush1.msra.mxu0 %v5206
        %5318 = vmatprep.subr.mxu0 %v5231
        %5319 = vmatpush1.msra.mxu0 %v5229
        %5320 = vmatprep.subr.mxu0 0.0
        %5321 = vmatpush1.msra.mxu0 0.0
        %5322 = vmatprep.subr.mxu0 0.0
        %5323 = vmatpush1.msra.mxu0 0.0
        %5324 = vmatprep.subr.mxu0 0.0
        %5325 = vmatpush1.msra.mxu0 0.0
        %5326 = vmatprep.subr.mxu0 0.0
        %5327 = vmatpush1.msra.mxu0 0.0
        %5328 = vmatprep.subr.mxu0 0.0
        %5329 = vmatpush1.msra.mxu0 0.0
        %5330 = vmatprep.subr.mxu0 0.0
        %5331 = vmatpush1.msra.mxu0 0.0
        %5332 = vmatprep.subr.mxu0 0.0
        %5333 = vmatpush1.msra.mxu0 0.0
        %5334 = vmatprep.subr.mxu0 0.0
        %5335 = vmatpush1.msra.mxu0 0.0
        %5336 = vmatprep.subr.mxu0 0.0
        %5337 = vmatpush1.msra.mxu0 0.0
        %5338 = vmatprep.subr.mxu0 0.0
        %5339 = vmatpush1.msra.mxu0 0.0
        %5340 = vmatprep.subr.mxu0 0.0
        %5341 = vmatpush1.msra.mxu0 0.0
        %5342 = vmatprep.subr.mxu0 0.0
        %5343 = vmatpush1.msra.mxu0 0.0
        %5344 = vmatprep.subr.mxu0 0.0
        %5345 = vmatpush1.msra.mxu0 0.0
        %5346 = vmatprep.subr.mxu0 0.0
        %5347 = vmatpush1.msra.mxu0 0.0
        %5348 = vmatprep.subr.mxu0 0.0
        %5349 = vmatpush1.msra.mxu0 0.0
        %5350 = vmatprep.subr.mxu0 0.0
        %5351 = vmatpush1.msra.mxu0 0.0
        %5352 = vmatprep.subr.mxu0 0.0
        %5353 = vmatpush1.msra.mxu0 0.0
        %5354 = vmatprep.subr.mxu0 0.0
        %5355 = vmatpush1.msra.mxu0 0.0
        %5356 = vmatprep.subr.mxu0 0.0
        %5357 = vmatpush1.msra.mxu0 0.0
        %5358 = vmatprep.subr.mxu0 0.0
        %5359 = vmatpush1.msra.mxu0 0.0
        %5360 = vmatprep.subr.mxu0 0.0
        %5361 = vmatpush1.msra.mxu0 0.0
        %5362 = vmatprep.subr.mxu0 0.0
        %5363 = vmatpush1.msra.mxu0 0.0
        %5364 = vmatprep.subr.mxu0 0.0
        %5365 = vmatpush1.msra.mxu0 0.0
        %5366 = vmatprep.subr.mxu0 0.0
        %5367 = vmatpush1.msra.mxu0 0.0
        %5368 = vmatprep.subr.mxu0 0.0
        %5369 = vmatpush1.msra.mxu0 0.0
        %5370 = vmatprep.subr.mxu0 0.0
        %5371 = vmatpush1.msra.mxu0 0.0
        %5372 = vmatprep.subr.mxu0 0.0
        %5373 = vmatpush1.msra.mxu0 0.0
        %5374 = vmatprep.subr.mxu0 0.0
        %5375 = vmatpush1.msra.mxu0 0.0
        %5376 = vmatprep.subr.mxu0 0.0
        %5377 = vmatpush1.msra.mxu0 0.0
        %5378 = vmatprep.subr.mxu0 0.0
        %5379 = vmatpush1.msra.mxu0 0.0
        %5380 = vmatprep.mubr.f32.mxu0 0.0
        %5381 = vmatmul.mubr.f32.gmra.mrb[0].mxu0 %v5217
        %v5382 = vpop.f32.mrb[0].mxu0
        %v5383 = vadd.f32 0.0, %v5382
        %v5384 = vpop.f32.mrb[0].mxu0
        %v5385 = vadd.f32 0.0, %v5384
        %5386 = vmatprep.mubr.f32.mxu0 0.0
        %5387 = vmatmul.mubr.f32.gmra.mrb[0].mxu0 %v5220
        %v5388 = vpop.f32.mrb[0].mxu0
        %v5389 = vadd.f32 0.0, %v5388
        %v5390 = vpop.f32.mrb[0].mxu0
        %v5391 = vadd.f32 0.0, %v5390
        %5392 = vmatprep.mubr.f32.mxu0 0.0
        %5393 = vmatmul.mubr.f32.gmra.mrb[0].mxu0 %v5223
        %v5394 = vpop.f32.mrb[0].mxu0
        %v5395 = vadd.f32 0.0, %v5394
        %v5396 = vpop.f32.mrb[0].mxu0
        %v5397 = vadd.f32 0.0, %v5396
        %5398 = vdwg.mxu0
        %v5399 = vadd.f32 %v5148, %v5300
        %v5400 = vadd.f32 %v5149, %v5302
        %v5401 = vadd.f32 %v5150, %v5383
        %v5402 = vadd.f32 %v5151, %v5385
        %v5403 = vadd.f32 %v5152, %v5306
        %v5404 = vadd.f32 %v5153, %v5308
        %v5405 = vadd.f32 %v5154, %v5389
        %v5406 = vadd.f32 %v5155, %v5391
        %v5407 = vadd.f32 %v5156, %v5312
        %v5408 = vadd.f32 %v5157, %v5314
        %v5409 = vadd.f32 %v5158, %v5395
        %v5410 = vadd.f32 %v5159, %v5397
        %s5411 = scalar_lea.vmem %s3, 264
        %v5412 = vld [vmem:[%s5411] sm:$0xff]
        %v5413 = vld [vmem:[%s5411 + $0x8] sm:$0xff]
        %v5414 = vld [vmem:[%s5411 + $0x10] sm:$0xf]
        %5415 = vrot.lane.b32.xlu0 %v5164, 14
        %v5416 = vpop.permute.xlu0 %5415
        %5417 = vrot.lane.b32.xlu0 %v5165, 14
        %v5418 = vpop.permute.xlu0 %5417
        %5419 = vrot.lane.b32.xlu0 %v5166, 14
        %v5420 = vpop.permute.xlu0 %5419
        %5421 = vrot.lane.b32.xlu0 %v5167, 14
        %v5422 = vpop.permute.xlu0 %5421
        %5423 = vrot.lane.b32.xlu0 %v5168, 14
        %v5424 = vpop.permute.xlu0 %5423
        %5425 = vrot.lane.b32.xlu0 %v5169, 14
        %v5426 = vpop.permute.xlu0 %5425
        %5427 = vrot.lane.b32.xlu0 %v5170, 14
        %v5428 = vpop.permute.xlu0 %5427
        %5429 = vrot.lane.b32.xlu0 %v5171, 14
        %v5430 = vpop.permute.xlu0 %5429
        %5431 = vrot.lane.b32.xlu0 %v5172, 14
        %v5432 = vpop.permute.xlu0 %5431
        %5433 = vrot.lane.b32.xlu0 %v5173, 14
        %v5434 = vpop.permute.xlu0 %5433
        %v5435 = vsel %vm2491, %v5416, %v5418
        %v5436 = vsel %vm2491, %v5418, %v5420
        %v5437 = vsel %vm2491, %v5420, %v5422
        %v5438 = vsel %vm2491, %v5422, %v5424
        %v5439 = vsel %vm2491, %v5426, %v5428
        %v5440 = vsel %vm2491, %v5428, %v5430
        %v5441 = vsel %vm2491, %v5430, %v5432
        %v5442 = vsel %vm2491, %v5432, %v5434
        %v5448 = vsel %vm2988, %v5412, 0
        %v5451 = vsel %vm2988, %v5413, 0
        %v5454 = vsel %vm2988, %v5414, 0
        %v5456 = vsel %vm2998, %v5439, 0
        %v5458 = vsel %vm2998, %v5440, 0
        %v5460 = vsel %vm2998, %v5441, 0
        %v5462 = vsel %vm2998, %v5442, 0
        %5464 = vmatprep.subr.mxu0 %v5436
        %5465 = vmatpush1.msra.mxu0 %v5435
        %5466 = vmatprep.subr.mxu0 %v5458
        %5467 = vmatpush1.msra.mxu0 %v5456
        %5468 = vmatprep.subr.mxu0 0.0
        %5469 = vmatpush1.msra.mxu0 0.0
        %5470 = vmatprep.subr.mxu0 0.0
        %5471 = vmatpush1.msra.mxu0 0.0
        %5472 = vmatprep.subr.mxu0 0.0
        %5473 = vmatpush1.msra.mxu0 0.0
        %5474 = vmatprep.subr.mxu0 0.0
        %5475 = vmatpush1.msra.mxu0 0.0
        %5476 = vmatprep.subr.mxu0 0.0
        %5477 = vmatpush1.msra.mxu0 0.0
        %5478 = vmatprep.subr.mxu0 0.0
        %5479 = vmatpush1.msra.mxu0 0.0
        %5480 = vmatprep.subr.mxu0 0.0
        %5481 = vmatpush1.msra.mxu0 0.0
        %5482 = vmatprep.subr.mxu0 0.0
        %5483 = vmatpush1.msra.mxu0 0.0
        %5484 = vmatprep.subr.mxu0 0.0
        %5485 = vmatpush1.msra.mxu0 0.0
        %5486 = vmatprep.subr.mxu0 0.0
        %5487 = vmatpush1.msra.mxu0 0.0
        %5488 = vmatprep.subr.mxu0 0.0
        %5489 = vmatpush1.msra.mxu0 0.0
        %5490 = vmatprep.subr.mxu0 0.0
        %5491 = vmatpush1.msra.mxu0 0.0
        %5492 = vmatprep.subr.mxu0 0.0
        %5493 = vmatpush1.msra.mxu0 0.0
        %5494 = vmatprep.subr.mxu0 0.0
        %5495 = vmatpush1.msra.mxu0 0.0
        %5496 = vmatprep.subr.mxu0 0.0
        %5497 = vmatpush1.msra.mxu0 0.0
        %5498 = vmatprep.subr.mxu0 0.0
        %5499 = vmatpush1.msra.mxu0 0.0
        %5500 = vmatprep.subr.mxu0 0.0
        %5501 = vmatpush1.msra.mxu0 0.0
        %5502 = vmatprep.subr.mxu0 0.0
        %5503 = vmatpush1.msra.mxu0 0.0
        %5504 = vmatprep.subr.mxu0 0.0
        %5505 = vmatpush1.msra.mxu0 0.0
        %5506 = vmatprep.subr.mxu0 0.0
        %5507 = vmatpush1.msra.mxu0 0.0
        %5508 = vmatprep.subr.mxu0 0.0
        %5509 = vmatpush1.msra.mxu0 0.0
        %5510 = vmatprep.subr.mxu0 0.0
        %5511 = vmatpush1.msra.mxu0 0.0
        %5512 = vmatprep.subr.mxu0 0.0
        %5513 = vmatpush1.msra.mxu0 0.0
        %5514 = vmatprep.subr.mxu0 0.0
        %5515 = vmatpush1.msra.mxu0 0.0
        %5516 = vmatprep.subr.mxu0 0.0
        %5517 = vmatpush1.msra.mxu0 0.0
        %5518 = vmatprep.subr.mxu0 0.0
        %5519 = vmatpush1.msra.mxu0 0.0
        %5520 = vmatprep.subr.mxu0 0.0
        %5521 = vmatpush1.msra.mxu0 0.0
        %5522 = vmatprep.subr.mxu0 0.0
        %5523 = vmatpush1.msra.mxu0 0.0
        %5524 = vmatprep.subr.mxu0 0.0
        %5525 = vmatpush1.msra.mxu0 0.0
        %5526 = vmatprep.subr.mxu0 0.0
        %5527 = vmatpush1.msra.mxu0 0.0
        %5528 = vmatprep.mubr.f32.mxu0 0.0
        %5529 = vmatmul.mubr.f32.gmra.mrb[0].mxu0 %v5448
        %v5530 = vpop.f32.mrb[0].mxu0
        %v5531 = vadd.f32 0.0, %v5530
        %v5532 = vpop.f32.mrb[0].mxu0
        %v5533 = vadd.f32 0.0, %v5532
        %5534 = vmatprep.mubr.f32.mxu0 0.0
        %5535 = vmatmul.mubr.f32.gmra.mrb[0].mxu0 %v5451
        %v5536 = vpop.f32.mrb[0].mxu0
        %v5537 = vadd.f32 0.0, %v5536
        %v5538 = vpop.f32.mrb[0].mxu0
        %v5539 = vadd.f32 0.0, %v5538
        %5540 = vmatprep.mubr.f32.mxu0 0.0
        %5541 = vmatmul.mubr.f32.gmra.mrb[0].mxu0 %v5454
        %v5542 = vpop.f32.mrb[0].mxu0
        %v5543 = vadd.f32 0.0, %v5542
        %v5544 = vpop.f32.mrb[0].mxu0
        %v5545 = vadd.f32 0.0, %v5544
        %5546 = vdwg.mxu0
        %5547 = vmatprep.subr.mxu0 %v5438
        %5548 = vmatpush1.msra.mxu0 %v5437
        %5549 = vmatprep.subr.mxu0 %v5462
        %5550 = vmatpush1.msra.mxu0 %v5460
        %5551 = vmatprep.subr.mxu0 0.0
        %5552 = vmatpush1.msra.mxu0 0.0
        %5553 = vmatprep.subr.mxu0 0.0
        %5554 = vmatpush1.msra.mxu0 0.0
        %5555 = vmatprep.subr.mxu0 0.0
        %5556 = vmatpush1.msra.mxu0 0.0
        %5557 = vmatprep.subr.mxu0 0.0
        %5558 = vmatpush1.msra.mxu0 0.0
        %5559 = vmatprep.subr.mxu0 0.0
        %5560 = vmatpush1.msra.mxu0 0.0
        %5561 = vmatprep.subr.mxu0 0.0
        %5562 = vmatpush1.msra.mxu0 0.0
        %5563 = vmatprep.subr.mxu0 0.0
        %5564 = vmatpush1.msra.mxu0 0.0
        %5565 = vmatprep.subr.mxu0 0.0
        %5566 = vmatpush1.msra.mxu0 0.0
        %5567 = vmatprep.subr.mxu0 0.0
        %5568 = vmatpush1.msra.mxu0 0.0
        %5569 = vmatprep.subr.mxu0 0.0
        %5570 = vmatpush1.msra.mxu0 0.0
        %5571 = vmatprep.subr.mxu0 0.0
        %5572 = vmatpush1.msra.mxu0 0.0
        %5573 = vmatprep.subr.mxu0 0.0
        %5574 = vmatpush1.msra.mxu0 0.0
        %5575 = vmatprep.subr.mxu0 0.0
        %5576 = vmatpush1.msra.mxu0 0.0
        %5577 = vmatprep.subr.mxu0 0.0
        %5578 = vmatpush1.msra.mxu0 0.0
        %5579 = vmatprep.subr.mxu0 0.0
        %5580 = vmatpush1.msra.mxu0 0.0
        %5581 = vmatprep.subr.mxu0 0.0
        %5582 = vmatpush1.msra.mxu0 0.0
        %5583 = vmatprep.subr.mxu0 0.0
        %5584 = vmatpush1.msra.mxu0 0.0
        %5585 = vmatprep.subr.mxu0 0.0
        %5586 = vmatpush1.msra.mxu0 0.0
        %5587 = vmatprep.subr.mxu0 0.0
        %5588 = vmatpush1.msra.mxu0 0.0
        %5589 = vmatprep.subr.mxu0 0.0
        %5590 = vmatpush1.msra.mxu0 0.0
        %5591 = vmatprep.subr.mxu0 0.0
        %5592 = vmatpush1.msra.mxu0 0.0
        %5593 = vmatprep.subr.mxu0 0.0
        %5594 = vmatpush1.msra.mxu0 0.0
        %5595 = vmatprep.subr.mxu0 0.0
        %5596 = vmatpush1.msra.mxu0 0.0
        %5597 = vmatprep.subr.mxu0 0.0
        %5598 = vmatpush1.msra.mxu0 0.0
        %5599 = vmatprep.subr.mxu0 0.0
        %5600 = vmatpush1.msra.mxu0 0.0
        %5601 = vmatprep.subr.mxu0 0.0
        %5602 = vmatpush1.msra.mxu0 0.0
        %5603 = vmatprep.subr.mxu0 0.0
        %5604 = vmatpush1.msra.mxu0 0.0
        %5605 = vmatprep.subr.mxu0 0.0
        %5606 = vmatpush1.msra.mxu0 0.0
        %5607 = vmatprep.subr.mxu0 0.0
        %5608 = vmatpush1.msra.mxu0 0.0
        %5609 = vmatprep.subr.mxu0 0.0
        %5610 = vmatpush1.msra.mxu0 0.0
        %5611 = vmatprep.mubr.f32.mxu0 0.0
        %5612 = vmatmul.mubr.f32.gmra.mrb[0].mxu0 %v5448
        %v5613 = vpop.f32.mrb[0].mxu0
        %v5614 = vadd.f32 0.0, %v5613
        %v5615 = vpop.f32.mrb[0].mxu0
        %v5616 = vadd.f32 0.0, %v5615
        %5617 = vmatprep.mubr.f32.mxu0 0.0
        %5618 = vmatmul.mubr.f32.gmra.mrb[0].mxu0 %v5451
        %v5619 = vpop.f32.mrb[0].mxu0
        %v5620 = vadd.f32 0.0, %v5619
        %v5621 = vpop.f32.mrb[0].mxu0
        %v5622 = vadd.f32 0.0, %v5621
        %5623 = vmatprep.mubr.f32.mxu0 0.0
        %5624 = vmatmul.mubr.f32.gmra.mrb[0].mxu0 %v5454
        %v5625 = vpop.f32.mrb[0].mxu0
        %v5626 = vadd.f32 0.0, %v5625
        %v5627 = vpop.f32.mrb[0].mxu0
        %v5628 = vadd.f32 0.0, %v5627
        %5629 = vdwg.mxu0
        %v5630 = vadd.f32 %v5399, %v5531
        %v5631 = vadd.f32 %v5400, %v5533
        %v5632 = vadd.f32 %v5401, %v5614
        %v5633 = vadd.f32 %v5402, %v5616
        %v5634 = vadd.f32 %v5403, %v5537
        %v5635 = vadd.f32 %v5404, %v5539
        %v5636 = vadd.f32 %v5405, %v5620
        %v5637 = vadd.f32 %v5406, %v5622
        %v5638 = vadd.f32 %v5407, %v5543
        %v5639 = vadd.f32 %v5408, %v5545
        %v5640 = vadd.f32 %v5409, %v5626
        %v5641 = vadd.f32 %v5410, %v5628
        %s5642 = scalar_lea.vmem %s3, 288
        %v5643 = vld [vmem:[%s5642] sm:$0xff]
        %v5644 = vld [vmem:[%s5642 + $0x8] sm:$0xff]
        %v5645 = vld [vmem:[%s5642 + $0x10] sm:$0xf]
        %5646 = vrot.lane.b32.xlu0 %v5164, 12
        %v5647 = vpop.permute.xlu0 %5646
        %5648 = vrot.lane.b32.xlu0 %v5165, 12
        %v5649 = vpop.permute.xlu0 %5648
        %5650 = vrot.lane.b32.xlu0 %v5166, 12
        %v5651 = vpop.permute.xlu0 %5650
        %5652 = vrot.lane.b32.xlu0 %v5167, 12
        %v5653 = vpop.permute.xlu0 %5652
        %5654 = vrot.lane.b32.xlu0 %v5168, 12
        %v5655 = vpop.permute.xlu0 %5654
        %5656 = vrot.lane.b32.xlu0 %v5169, 12
        %v5657 = vpop.permute.xlu0 %5656
        %5658 = vrot.lane.b32.xlu0 %v5170, 12
        %v5659 = vpop.permute.xlu0 %5658
        %5660 = vrot.lane.b32.xlu0 %v5171, 12
        %v5661 = vpop.permute.xlu0 %5660
        %5662 = vrot.lane.b32.xlu0 %v5172, 12
        %v5663 = vpop.permute.xlu0 %5662
        %5664 = vrot.lane.b32.xlu0 %v5173, 12
        %v5665 = vpop.permute.xlu0 %5664
        %v5666 = vsel %vm2693, %v5647, %v5649
        %v5667 = vsel %vm2693, %v5649, %v5651
        %v5668 = vsel %vm2693, %v5651, %v5653
        %v5669 = vsel %vm2693, %v5653, %v5655
        %v5670 = vsel %vm2693, %v5657, %v5659
        %v5671 = vsel %vm2693, %v5659, %v5661
        %v5672 = vsel %vm2693, %v5661, %v5663
        %v5673 = vsel %vm2693, %v5663, %v5665
        %v5679 = vsel %vm2988, %v5643, 0
        %v5682 = vsel %vm2988, %v5644, 0
        %v5685 = vsel %vm2988, %v5645, 0
        %v5687 = vsel %vm2998, %v5670, 0
        %v5689 = vsel %vm2998, %v5671, 0
        %v5691 = vsel %vm2998, %v5672, 0
        %v5693 = vsel %vm2998, %v5673, 0
        %5695 = vmatprep.subr.mxu0 %v5667
        %5696 = vmatpush1.msra.mxu0 %v5666
        %5697 = vmatprep.subr.mxu0 %v5689
        %5698 = vmatpush1.msra.mxu0 %v5687
        %5699 = vmatprep.subr.mxu0 0.0
        %5700 = vmatpush1.msra.mxu0 0.0
        %5701 = vmatprep.subr.mxu0 0.0
        %5702 = vmatpush1.msra.mxu0 0.0
        %5703 = vmatprep.subr.mxu0 0.0
        %5704 = vmatpush1.msra.mxu0 0.0
        %5705 = vmatprep.subr.mxu0 0.0
        %5706 = vmatpush1.msra.mxu0 0.0
        %5707 = vmatprep.subr.mxu0 0.0
        %5708 = vmatpush1.msra.mxu0 0.0
        %5709 = vmatprep.subr.mxu0 0.0
        %5710 = vmatpush1.msra.mxu0 0.0
        %5711 = vmatprep.subr.mxu0 0.0
        %5712 = vmatpush1.msra.mxu0 0.0
        %5713 = vmatprep.subr.mxu0 0.0
        %5714 = vmatpush1.msra.mxu0 0.0
        %5715 = vmatprep.subr.mxu0 0.0
        %5716 = vmatpush1.msra.mxu0 0.0
        %5717 = vmatprep.subr.mxu0 0.0
        %5718 = vmatpush1.msra.mxu0 0.0
        %5719 = vmatprep.subr.mxu0 0.0
        %5720 = vmatpush1.msra.mxu0 0.0
        %5721 = vmatprep.subr.mxu0 0.0
        %5722 = vmatpush1.msra.mxu0 0.0
        %5723 = vmatprep.subr.mxu0 0.0
        %5724 = vmatpush1.msra.mxu0 0.0
        %5725 = vmatprep.subr.mxu0 0.0
        %5726 = vmatpush1.msra.mxu0 0.0
        %5727 = vmatprep.subr.mxu0 0.0
        %5728 = vmatpush1.msra.mxu0 0.0
        %5729 = vmatprep.subr.mxu0 0.0
        %5730 = vmatpush1.msra.mxu0 0.0
        %5731 = vmatprep.subr.mxu0 0.0
        %5732 = vmatpush1.msra.mxu0 0.0
        %5733 = vmatprep.subr.mxu0 0.0
        %5734 = vmatpush1.msra.mxu0 0.0
        %5735 = vmatprep.subr.mxu0 0.0
        %5736 = vmatpush1.msra.mxu0 0.0
        %5737 = vmatprep.subr.mxu0 0.0
        %5738 = vmatpush1.msra.mxu0 0.0
        %5739 = vmatprep.subr.mxu0 0.0
        %5740 = vmatpush1.msra.mxu0 0.0
        %5741 = vmatprep.subr.mxu0 0.0
        %5742 = vmatpush1.msra.mxu0 0.0
        %5743 = vmatprep.subr.mxu0 0.0
        %5744 = vmatpush1.msra.mxu0 0.0
        %5745 = vmatprep.subr.mxu0 0.0
        %5746 = vmatpush1.msra.mxu0 0.0
        %5747 = vmatprep.subr.mxu0 0.0
        %5748 = vmatpush1.msra.mxu0 0.0
        %5749 = vmatprep.subr.mxu0 0.0
        %5750 = vmatpush1.msra.mxu0 0.0
        %5751 = vmatprep.subr.mxu0 0.0
        %5752 = vmatpush1.msra.mxu0 0.0
        %5753 = vmatprep.subr.mxu0 0.0
        %5754 = vmatpush1.msra.mxu0 0.0
        %5755 = vmatprep.subr.mxu0 0.0
        %5756 = vmatpush1.msra.mxu0 0.0
        %5757 = vmatprep.subr.mxu0 0.0
        %5758 = vmatpush1.msra.mxu0 0.0
        %5759 = vmatprep.mubr.f32.mxu0 0.0
        %5760 = vmatmul.mubr.f32.gmra.mrb[0].mxu0 %v5679
        %v5761 = vpop.f32.mrb[0].mxu0
        %v5762 = vadd.f32 0.0, %v5761
        %v5763 = vpop.f32.mrb[0].mxu0
        %v5764 = vadd.f32 0.0, %v5763
        %5765 = vmatprep.mubr.f32.mxu0 0.0
        %5766 = vmatmul.mubr.f32.gmra.mrb[0].mxu0 %v5682
        %v5767 = vpop.f32.mrb[0].mxu0
        %v5768 = vadd.f32 0.0, %v5767
        %v5769 = vpop.f32.mrb[0].mxu0
        %v5770 = vadd.f32 0.0, %v5769
        %5771 = vmatprep.mubr.f32.mxu0 0.0
        %5772 = vmatmul.mubr.f32.gmra.mrb[0].mxu0 %v5685
        %v5773 = vpop.f32.mrb[0].mxu0
        %v5774 = vadd.f32 0.0, %v5773
        %v5775 = vpop.f32.mrb[0].mxu0
        %v5776 = vadd.f32 0.0, %v5775
        %5777 = vdwg.mxu0
        %5778 = vmatprep.subr.mxu0 %v5669
        %5779 = vmatpush1.msra.mxu0 %v5668
        %5780 = vmatprep.subr.mxu0 %v5693
        %5781 = vmatpush1.msra.mxu0 %v5691
        %5782 = vmatprep.subr.mxu0 0.0
        %5783 = vmatpush1.msra.mxu0 0.0
        %5784 = vmatprep.subr.mxu0 0.0
        %5785 = vmatpush1.msra.mxu0 0.0
        %5786 = vmatprep.subr.mxu0 0.0
        %5787 = vmatpush1.msra.mxu0 0.0
        %5788 = vmatprep.subr.mxu0 0.0
        %5789 = vmatpush1.msra.mxu0 0.0
        %5790 = vmatprep.subr.mxu0 0.0
        %5791 = vmatpush1.msra.mxu0 0.0
        %5792 = vmatprep.subr.mxu0 0.0
        %5793 = vmatpush1.msra.mxu0 0.0
        %5794 = vmatprep.subr.mxu0 0.0
        %5795 = vmatpush1.msra.mxu0 0.0
        %5796 = vmatprep.subr.mxu0 0.0
        %5797 = vmatpush1.msra.mxu0 0.0
        %5798 = vmatprep.subr.mxu0 0.0
        %5799 = vmatpush1.msra.mxu0 0.0
        %5800 = vmatprep.subr.mxu0 0.0
        %5801 = vmatpush1.msra.mxu0 0.0
        %5802 = vmatprep.subr.mxu0 0.0
        %5803 = vmatpush1.msra.mxu0 0.0
        %5804 = vmatprep.subr.mxu0 0.0
        %5805 = vmatpush1.msra.mxu0 0.0
        %5806 = vmatprep.subr.mxu0 0.0
        %5807 = vmatpush1.msra.mxu0 0.0
        %5808 = vmatprep.subr.mxu0 0.0
        %5809 = vmatpush1.msra.mxu0 0.0
        %5810 = vmatprep.subr.mxu0 0.0
        %5811 = vmatpush1.msra.mxu0 0.0
        %5812 = vmatprep.subr.mxu0 0.0
        %5813 = vmatpush1.msra.mxu0 0.0
        %5814 = vmatprep.subr.mxu0 0.0
        %5815 = vmatpush1.msra.mxu0 0.0
        %5816 = vmatprep.subr.mxu0 0.0
        %5817 = vmatpush1.msra.mxu0 0.0
        %5818 = vmatprep.subr.mxu0 0.0
        %5819 = vmatpush1.msra.mxu0 0.0
        %5820 = vmatprep.subr.mxu0 0.0
        %5821 = vmatpush1.msra.mxu0 0.0
        %5822 = vmatprep.subr.mxu0 0.0
        %5823 = vmatpush1.msra.mxu0 0.0
        %5824 = vmatprep.subr.mxu0 0.0
        %5825 = vmatpush1.msra.mxu0 0.0
        %5826 = vmatprep.subr.mxu0 0.0
        %5827 = vmatpush1.msra.mxu0 0.0
        %5828 = vmatprep.subr.mxu0 0.0
        %5829 = vmatpush1.msra.mxu0 0.0
        %5830 = vmatprep.subr.mxu0 0.0
        %5831 = vmatpush1.msra.mxu0 0.0
        %5832 = vmatprep.subr.mxu0 0.0
        %5833 = vmatpush1.msra.mxu0 0.0
        %5834 = vmatprep.subr.mxu0 0.0
        %5835 = vmatpush1.msra.mxu0 0.0
        %5836 = vmatprep.subr.mxu0 0.0
        %5837 = vmatpush1.msra.mxu0 0.0
        %5838 = vmatprep.subr.mxu0 0.0
        %5839 = vmatpush1.msra.mxu0 0.0
        %5840 = vmatprep.subr.mxu0 0.0
        %5841 = vmatpush1.msra.mxu0 0.0
        %5842 = vmatprep.mubr.f32.mxu0 0.0
        %5843 = vmatmul.mubr.f32.gmra.mrb[0].mxu0 %v5679
        %v5844 = vpop.f32.mrb[0].mxu0
        %v5845 = vadd.f32 0.0, %v5844
        %v5846 = vpop.f32.mrb[0].mxu0
        %v5847 = vadd.f32 0.0, %v5846
        %5848 = vmatprep.mubr.f32.mxu0 0.0
        %5849 = vmatmul.mubr.f32.gmra.mrb[0].mxu0 %v5682
        %v5850 = vpop.f32.mrb[0].mxu0
        %v5851 = vadd.f32 0.0, %v5850
        %v5852 = vpop.f32.mrb[0].mxu0
        %v5853 = vadd.f32 0.0, %v5852
        %5854 = vmatprep.mubr.f32.mxu0 0.0
        %5855 = vmatmul.mubr.f32.gmra.mrb[0].mxu0 %v5685
        %v5856 = vpop.f32.mrb[0].mxu0
        %v5857 = vadd.f32 0.0, %v5856
        %v5858 = vpop.f32.mrb[0].mxu0
        %v5859 = vadd.f32 0.0, %v5858
        %5860 = vdwg.mxu0
        %v5861 = vadd.f32 %v5630, %v5762
        %v5862 = vadd.f32 %v5631, %v5764
        %v5863 = vadd.f32 %v5632, %v5845
        %v5864 = vadd.f32 %v5633, %v5847
        %v5865 = vadd.f32 %v5634, %v5768
        %v5866 = vadd.f32 %v5635, %v5770
        %v5867 = vadd.f32 %v5636, %v5851
        %v5868 = vadd.f32 %v5637, %v5853
        %v5869 = vadd.f32 %v5638, %v5774
        %v5870 = vadd.f32 %v5639, %v5776
        %v5871 = vadd.f32 %v5640, %v5857
        %v5872 = vadd.f32 %v5641, %v5859
        %s5873 = scalar_lea.vmem %s3, 312
        %v5874 = vld [vmem:[%s5873] sm:$0xff]
        %v5875 = vld [vmem:[%s5873 + $0x8] sm:$0xff]
        %v5876 = vld [vmem:[%s5873 + $0x10] sm:$0xf]
        %5877 = vrot.lane.b32.xlu0 %v5164, 10
        %v5878 = vpop.permute.xlu0 %5877
        %5879 = vrot.lane.b32.xlu0 %v5165, 10
        %v5880 = vpop.permute.xlu0 %5879
        %5881 = vrot.lane.b32.xlu0 %v5166, 10
        %v5882 = vpop.permute.xlu0 %5881
        %5883 = vrot.lane.b32.xlu0 %v5167, 10
        %v5884 = vpop.permute.xlu0 %5883
        %5885 = vrot.lane.b32.xlu0 %v5168, 10
        %v5886 = vpop.permute.xlu0 %5885
        %5887 = vrot.lane.b32.xlu0 %v5169, 10
        %v5888 = vpop.permute.xlu0 %5887
        %5889 = vrot.lane.b32.xlu0 %v5170, 10
        %v5890 = vpop.permute.xlu0 %5889
        %5891 = vrot.lane.b32.xlu0 %v5171, 10
        %v5892 = vpop.permute.xlu0 %5891
        %5893 = vrot.lane.b32.xlu0 %v5172, 10
        %v5894 = vpop.permute.xlu0 %5893
        %5895 = vrot.lane.b32.xlu0 %v5173, 10
        %v5896 = vpop.permute.xlu0 %5895
        %v5897 = vsel %vm2988, %v5878, %v5880
        %v5898 = vsel %vm2988, %v5880, %v5882
        %v5899 = vsel %vm2988, %v5882, %v5884
        %v5900 = vsel %vm2988, %v5884, %v5886
        %v5901 = vsel %vm2988, %v5888, %v5890
        %v5902 = vsel %vm2988, %v5890, %v5892
        %v5903 = vsel %vm2988, %v5892, %v5894
        %v5904 = vsel %vm2988, %v5894, %v5896
        %v5910 = vsel %vm2988, %v5874, 0
        %v5913 = vsel %vm2988, %v5875, 0
        %v5916 = vsel %vm2988, %v5876, 0
        %v5918 = vsel %vm2998, %v5901, 0
        %v5920 = vsel %vm2998, %v5902, 0
        %v5922 = vsel %vm2998, %v5903, 0
        %v5924 = vsel %vm2998, %v5904, 0
        %5926 = vmatprep.subr.mxu0 %v5898
        %5927 = vmatpush1.msra.mxu0 %v5897
        %5928 = vmatprep.subr.mxu0 %v5920
        %5929 = vmatpush1.msra.mxu0 %v5918
        %5930 = vmatprep.subr.mxu0 0.0
        %5931 = vmatpush1.msra.mxu0 0.0
        %5932 = vmatprep.subr.mxu0 0.0
        %5933 = vmatpush1.msra.mxu0 0.0
        %5934 = vmatprep.subr.mxu0 0.0
        %5935 = vmatpush1.msra.mxu0 0.0
        %5936 = vmatprep.subr.mxu0 0.0
        %5937 = vmatpush1.msra.mxu0 0.0
        %5938 = vmatprep.subr.mxu0 0.0
        %5939 = vmatpush1.msra.mxu0 0.0
        %5940 = vmatprep.subr.mxu0 0.0
        %5941 = vmatpush1.msra.mxu0 0.0
        %5942 = vmatprep.subr.mxu0 0.0
        %5943 = vmatpush1.msra.mxu0 0.0
        %5944 = vmatprep.subr.mxu0 0.0
        %5945 = vmatpush1.msra.mxu0 0.0
        %5946 = vmatprep.subr.mxu0 0.0
        %5947 = vmatpush1.msra.mxu0 0.0
        %5948 = vmatprep.subr.mxu0 0.0
        %5949 = vmatpush1.msra.mxu0 0.0
        %5950 = vmatprep.subr.mxu0 0.0
        %5951 = vmatpush1.msra.mxu0 0.0
        %5952 = vmatprep.subr.mxu0 0.0
        %5953 = vmatpush1.msra.mxu0 0.0
        %5954 = vmatprep.subr.mxu0 0.0
        %5955 = vmatpush1.msra.mxu0 0.0
        %5956 = vmatprep.subr.mxu0 0.0
        %5957 = vmatpush1.msra.mxu0 0.0
        %5958 = vmatprep.subr.mxu0 0.0
        %5959 = vmatpush1.msra.mxu0 0.0
        %5960 = vmatprep.subr.mxu0 0.0
        %5961 = vmatpush1.msra.mxu0 0.0
        %5962 = vmatprep.subr.mxu0 0.0
        %5963 = vmatpush1.msra.mxu0 0.0
        %5964 = vmatprep.subr.mxu0 0.0
        %5965 = vmatpush1.msra.mxu0 0.0
        %5966 = vmatprep.subr.mxu0 0.0
        %5967 = vmatpush1.msra.mxu0 0.0
        %5968 = vmatprep.subr.mxu0 0.0
        %5969 = vmatpush1.msra.mxu0 0.0
        %5970 = vmatprep.subr.mxu0 0.0
        %5971 = vmatpush1.msra.mxu0 0.0
        %5972 = vmatprep.subr.mxu0 0.0
        %5973 = vmatpush1.msra.mxu0 0.0
        %5974 = vmatprep.subr.mxu0 0.0
        %5975 = vmatpush1.msra.mxu0 0.0
        %5976 = vmatprep.subr.mxu0 0.0
        %5977 = vmatpush1.msra.mxu0 0.0
        %5978 = vmatprep.subr.mxu0 0.0
        %5979 = vmatpush1.msra.mxu0 0.0
        %5980 = vmatprep.subr.mxu0 0.0
        %5981 = vmatpush1.msra.mxu0 0.0
        %5982 = vmatprep.subr.mxu0 0.0
        %5983 = vmatpush1.msra.mxu0 0.0
        %5984 = vmatprep.subr.mxu0 0.0
        %5985 = vmatpush1.msra.mxu0 0.0
        %5986 = vmatprep.subr.mxu0 0.0
        %5987 = vmatpush1.msra.mxu0 0.0
        %5988 = vmatprep.subr.mxu0 0.0
        %5989 = vmatpush1.msra.mxu0 0.0
        %5990 = vmatprep.mubr.f32.mxu0 0.0
        %5991 = vmatmul.mubr.f32.gmra.mrb[0].mxu0 %v5910
        %v5992 = vpop.f32.mrb[0].mxu0
        %v5993 = vadd.f32 0.0, %v5992
        %v5994 = vpop.f32.mrb[0].mxu0
        %v5995 = vadd.f32 0.0, %v5994
        %5996 = vmatprep.mubr.f32.mxu0 0.0
        %5997 = vmatmul.mubr.f32.gmra.mrb[0].mxu0 %v5913
        %v5998 = vpop.f32.mrb[0].mxu0
        %v5999 = vadd.f32 0.0, %v5998
        %v6000 = vpop.f32.mrb[0].mxu0
        %v6001 = vadd.f32 0.0, %v6000
        %6002 = vmatprep.mubr.f32.mxu0 0.0
        %6003 = vmatmul.mubr.f32.gmra.mrb[0].mxu0 %v5916
        %v6004 = vpop.f32.mrb[0].mxu0
        %v6005 = vadd.f32 0.0, %v6004
        %v6006 = vpop.f32.mrb[0].mxu0
        %v6007 = vadd.f32 0.0, %v6006
        %6008 = vdwg.mxu0
        %6009 = vmatprep.subr.mxu0 %v5900
        %6010 = vmatpush1.msra.mxu0 %v5899
        %6011 = vmatprep.subr.mxu0 %v5924
        %6012 = vmatpush1.msra.mxu0 %v5922
        %6013 = vmatprep.subr.mxu0 0.0
        %6014 = vmatpush1.msra.mxu0 0.0
        %6015 = vmatprep.subr.mxu0 0.0
        %6016 = vmatpush1.msra.mxu0 0.0
        %6017 = vmatprep.subr.mxu0 0.0
        %6018 = vmatpush1.msra.mxu0 0.0
        %6019 = vmatprep.subr.mxu0 0.0
        %6020 = vmatpush1.msra.mxu0 0.0
        %6021 = vmatprep.subr.mxu0 0.0
        %6022 = vmatpush1.msra.mxu0 0.0
        %6023 = vmatprep.subr.mxu0 0.0
        %6024 = vmatpush1.msra.mxu0 0.0
        %6025 = vmatprep.subr.mxu0 0.0
        %6026 = vmatpush1.msra.mxu0 0.0
        %6027 = vmatprep.subr.mxu0 0.0
        %6028 = vmatpush1.msra.mxu0 0.0
        %6029 = vmatprep.subr.mxu0 0.0
        %6030 = vmatpush1.msra.mxu0 0.0
        %6031 = vmatprep.subr.mxu0 0.0
        %6032 = vmatpush1.msra.mxu0 0.0
        %6033 = vmatprep.subr.mxu0 0.0
        %6034 = vmatpush1.msra.mxu0 0.0
        %6035 = vmatprep.subr.mxu0 0.0
        %6036 = vmatpush1.msra.mxu0 0.0
        %6037 = vmatprep.subr.mxu0 0.0
        %6038 = vmatpush1.msra.mxu0 0.0
        %6039 = vmatprep.subr.mxu0 0.0
        %6040 = vmatpush1.msra.mxu0 0.0
        %6041 = vmatprep.subr.mxu0 0.0
        %6042 = vmatpush1.msra.mxu0 0.0
        %6043 = vmatprep.subr.mxu0 0.0
        %6044 = vmatpush1.msra.mxu0 0.0
        %6045 = vmatprep.subr.mxu0 0.0
        %6046 = vmatpush1.msra.mxu0 0.0
        %6047 = vmatprep.subr.mxu0 0.0
        %6048 = vmatpush1.msra.mxu0 0.0
        %6049 = vmatprep.subr.mxu0 0.0
        %6050 = vmatpush1.msra.mxu0 0.0
        %6051 = vmatprep.subr.mxu0 0.0
        %6052 = vmatpush1.msra.mxu0 0.0
        %6053 = vmatprep.subr.mxu0 0.0
        %6054 = vmatpush1.msra.mxu0 0.0
        %6055 = vmatprep.subr.mxu0 0.0
        %6056 = vmatpush1.msra.mxu0 0.0
        %6057 = vmatprep.subr.mxu0 0.0
        %6058 = vmatpush1.msra.mxu0 0.0
        %6059 = vmatprep.subr.mxu0 0.0
        %6060 = vmatpush1.msra.mxu0 0.0
        %6061 = vmatprep.subr.mxu0 0.0
        %6062 = vmatpush1.msra.mxu0 0.0
        %6063 = vmatprep.subr.mxu0 0.0
        %6064 = vmatpush1.msra.mxu0 0.0
        %6065 = vmatprep.subr.mxu0 0.0
        %6066 = vmatpush1.msra.mxu0 0.0
        %6067 = vmatprep.subr.mxu0 0.0
        %6068 = vmatpush1.msra.mxu0 0.0
        %6069 = vmatprep.subr.mxu0 0.0
        %6070 = vmatpush1.msra.mxu0 0.0
        %6071 = vmatprep.subr.mxu0 0.0
        %6072 = vmatpush1.msra.mxu0 0.0
        %6073 = vmatprep.mubr.f32.mxu0 0.0
        %6074 = vmatmul.mubr.f32.gmra.mrb[0].mxu0 %v5910
        %v6075 = vpop.f32.mrb[0].mxu0
        %v6076 = vadd.f32 0.0, %v6075
        %v6077 = vpop.f32.mrb[0].mxu0
        %v6078 = vadd.f32 0.0, %v6077
        %6079 = vmatprep.mubr.f32.mxu0 0.0
        %6080 = vmatmul.mubr.f32.gmra.mrb[0].mxu0 %v5913
        %v6081 = vpop.f32.mrb[0].mxu0
        %v6082 = vadd.f32 0.0, %v6081
        %v6083 = vpop.f32.mrb[0].mxu0
        %v6084 = vadd.f32 0.0, %v6083
        %6085 = vmatprep.mubr.f32.mxu0 0.0
        %6086 = vmatmul.mubr.f32.gmra.mrb[0].mxu0 %v5916
        %v6087 = vpop.f32.mrb[0].mxu0
        %v6088 = vadd.f32 0.0, %v6087
        %v6089 = vpop.f32.mrb[0].mxu0
        %v6090 = vadd.f32 0.0, %v6089
        %6091 = vdwg.mxu0
        %v6092 = vadd.f32 %v5861, %v5993
        %v6093 = vadd.f32 %v5862, %v5995
        %v6094 = vadd.f32 %v5863, %v6076
        %v6095 = vadd.f32 %v5864, %v6078
        %v6096 = vadd.f32 %v5865, %v5999
        %v6097 = vadd.f32 %v5866, %v6001
        %v6098 = vadd.f32 %v5867, %v6082
        %v6099 = vadd.f32 %v5868, %v6084
        %v6100 = vadd.f32 %v5869, %v6005
        %v6101 = vadd.f32 %v5870, %v6007
        %v6102 = vadd.f32 %v5871, %v6088
        %v6103 = vadd.f32 %v5872, %v6090
        %s6104 = scalar_lea.vmem %s3, 336
        %v6105 = vld [vmem:[%s6104] sm:$0xff]
        %v6106 = vld [vmem:[%s6104 + $0x8] sm:$0xff]
        %v6107 = vld [vmem:[%s6104 + $0x10] sm:$0xf]
        %6108 = vrot.lane.b32.xlu0 %v5164, 8
        %v6109 = vpop.permute.xlu0 %6108
        %6110 = vrot.lane.b32.xlu0 %v5165, 8
        %v6111 = vpop.permute.xlu0 %6110
        %6112 = vrot.lane.b32.xlu0 %v5166, 8
        %v6113 = vpop.permute.xlu0 %6112
        %6114 = vrot.lane.b32.xlu0 %v5167, 8
        %v6115 = vpop.permute.xlu0 %6114
        %6116 = vrot.lane.b32.xlu0 %v5168, 8
        %v6117 = vpop.permute.xlu0 %6116
        %6118 = vrot.lane.b32.xlu0 %v5169, 8
        %v6119 = vpop.permute.xlu0 %6118
        %6120 = vrot.lane.b32.xlu0 %v5170, 8
        %v6121 = vpop.permute.xlu0 %6120
        %6122 = vrot.lane.b32.xlu0 %v5171, 8
        %v6123 = vpop.permute.xlu0 %6122
        %6124 = vrot.lane.b32.xlu0 %v5172, 8
        %v6125 = vpop.permute.xlu0 %6124
        %6126 = vrot.lane.b32.xlu0 %v5173, 8
        %v6127 = vpop.permute.xlu0 %6126
        %vm6128 = vcmask 64512
        %v6129 = vsel %vm6128, %v6109, %v6111
        %v6130 = vsel %vm6128, %v6111, %v6113
        %v6131 = vsel %vm6128, %v6113, %v6115
        %v6132 = vsel %vm6128, %v6115, %v6117
        %v6133 = vsel %vm6128, %v6119, %v6121
        %v6134 = vsel %vm6128, %v6121, %v6123
        %v6135 = vsel %vm6128, %v6123, %v6125
        %v6136 = vsel %vm6128, %v6125, %v6127
        %v6142 = vsel %vm2988, %v6105, 0
        %v6145 = vsel %vm2988, %v6106, 0
        %v6148 = vsel %vm2988, %v6107, 0
        %v6150 = vsel %vm2998, %v6133, 0
        %v6152 = vsel %vm2998, %v6134, 0
        %v6154 = vsel %vm2998, %v6135, 0
        %v6156 = vsel %vm2998, %v6136, 0
        %6158 = vmatprep.subr.mxu0 %v6130
        %6159 = vmatpush1.msra.mxu0 %v6129
        %6160 = vmatprep.subr.mxu0 %v6152
        %6161 = vmatpush1.msra.mxu0 %v6150
        %6162 = vmatprep.subr.mxu0 0.0
        %6163 = vmatpush1.msra.mxu0 0.0
        %6164 = vmatprep.subr.mxu0 0.0
        %6165 = vmatpush1.msra.mxu0 0.0
        %6166 = vmatprep.subr.mxu0 0.0
        %6167 = vmatpush1.msra.mxu0 0.0
        %6168 = vmatprep.subr.mxu0 0.0
        %6169 = vmatpush1.msra.mxu0 0.0
        %6170 = vmatprep.subr.mxu0 0.0
        %6171 = vmatpush1.msra.mxu0 0.0
        %6172 = vmatprep.subr.mxu0 0.0
        %6173 = vmatpush1.msra.mxu0 0.0
        %6174 = vmatprep.subr.mxu0 0.0
        %6175 = vmatpush1.msra.mxu0 0.0
        %6176 = vmatprep.subr.mxu0 0.0
        %6177 = vmatpush1.msra.mxu0 0.0
        %6178 = vmatprep.subr.mxu0 0.0
        %6179 = vmatpush1.msra.mxu0 0.0
        %6180 = vmatprep.subr.mxu0 0.0
        %6181 = vmatpush1.msra.mxu0 0.0
        %6182 = vmatprep.subr.mxu0 0.0
        %6183 = vmatpush1.msra.mxu0 0.0
        %6184 = vmatprep.subr.mxu0 0.0
        %6185 = vmatpush1.msra.mxu0 0.0
        %6186 = vmatprep.subr.mxu0 0.0
        %6187 = vmatpush1.msra.mxu0 0.0
        %6188 = vmatprep.subr.mxu0 0.0
        %6189 = vmatpush1.msra.mxu0 0.0
        %6190 = vmatprep.subr.mxu0 0.0
        %6191 = vmatpush1.msra.mxu0 0.0
        %6192 = vmatprep.subr.mxu0 0.0
        %6193 = vmatpush1.msra.mxu0 0.0
        %6194 = vmatprep.subr.mxu0 0.0
        %6195 = vmatpush1.msra.mxu0 0.0
        %6196 = vmatprep.subr.mxu0 0.0
        %6197 = vmatpush1.msra.mxu0 0.0
        %6198 = vmatprep.subr.mxu0 0.0
        %6199 = vmatpush1.msra.mxu0 0.0
        %6200 = vmatprep.subr.mxu0 0.0
        %6201 = vmatpush1.msra.mxu0 0.0
        %6202 = vmatprep.subr.mxu0 0.0
        %6203 = vmatpush1.msra.mxu0 0.0
        %6204 = vmatprep.subr.mxu0 0.0
        %6205 = vmatpush1.msra.mxu0 0.0
        %6206 = vmatprep.subr.mxu0 0.0
        %6207 = vmatpush1.msra.mxu0 0.0
        %6208 = vmatprep.subr.mxu0 0.0
        %6209 = vmatpush1.msra.mxu0 0.0
        %6210 = vmatprep.subr.mxu0 0.0
        %6211 = vmatpush1.msra.mxu0 0.0
        %6212 = vmatprep.subr.mxu0 0.0
        %6213 = vmatpush1.msra.mxu0 0.0
        %6214 = vmatprep.subr.mxu0 0.0
        %6215 = vmatpush1.msra.mxu0 0.0
        %6216 = vmatprep.subr.mxu0 0.0
        %6217 = vmatpush1.msra.mxu0 0.0
        %6218 = vmatprep.subr.mxu0 0.0
        %6219 = vmatpush1.msra.mxu0 0.0
        %6220 = vmatprep.subr.mxu0 0.0
        %6221 = vmatpush1.msra.mxu0 0.0
        %6222 = vmatprep.mubr.f32.mxu0 0.0
        %6223 = vmatmul.mubr.f32.gmra.mrb[0].mxu0 %v6142
        %v6224 = vpop.f32.mrb[0].mxu0
        %v6225 = vadd.f32 0.0, %v6224
        %v6226 = vpop.f32.mrb[0].mxu0
        %v6227 = vadd.f32 0.0, %v6226
        %6228 = vmatprep.mubr.f32.mxu0 0.0
        %6229 = vmatmul.mubr.f32.gmra.mrb[0].mxu0 %v6145
        %v6230 = vpop.f32.mrb[0].mxu0
        %v6231 = vadd.f32 0.0, %v6230
        %v6232 = vpop.f32.mrb[0].mxu0
        %v6233 = vadd.f32 0.0, %v6232
        %6234 = vmatprep.mubr.f32.mxu0 0.0
        %6235 = vmatmul.mubr.f32.gmra.mrb[0].mxu0 %v6148
        %v6236 = vpop.f32.mrb[0].mxu0
        %v6237 = vadd.f32 0.0, %v6236
        %v6238 = vpop.f32.mrb[0].mxu0
        %v6239 = vadd.f32 0.0, %v6238
        %6240 = vdwg.mxu0
        %6241 = vmatprep.subr.mxu0 %v6132
        %6242 = vmatpush1.msra.mxu0 %v6131
        %6243 = vmatprep.subr.mxu0 %v6156
        %6244 = vmatpush1.msra.mxu0 %v6154
        %6245 = vmatprep.subr.mxu0 0.0
        %6246 = vmatpush1.msra.mxu0 0.0
        %6247 = vmatprep.subr.mxu0 0.0
        %6248 = vmatpush1.msra.mxu0 0.0
        %6249 = vmatprep.subr.mxu0 0.0
        %6250 = vmatpush1.msra.mxu0 0.0
        %6251 = vmatprep.subr.mxu0 0.0
        %6252 = vmatpush1.msra.mxu0 0.0
        %6253 = vmatprep.subr.mxu0 0.0
        %6254 = vmatpush1.msra.mxu0 0.0
        %6255 = vmatprep.subr.mxu0 0.0
        %6256 = vmatpush1.msra.mxu0 0.0
        %6257 = vmatprep.subr.mxu0 0.0
        %6258 = vmatpush1.msra.mxu0 0.0
        %6259 = vmatprep.subr.mxu0 0.0
        %6260 = vmatpush1.msra.mxu0 0.0
        %6261 = vmatprep.subr.mxu0 0.0
        %6262 = vmatpush1.msra.mxu0 0.0
        %6263 = vmatprep.subr.mxu0 0.0
        %6264 = vmatpush1.msra.mxu0 0.0
        %6265 = vmatprep.subr.mxu0 0.0
        %6266 = vmatpush1.msra.mxu0 0.0
        %6267 = vmatprep.subr.mxu0 0.0
        %6268 = vmatpush1.msra.mxu0 0.0
        %6269 = vmatprep.subr.mxu0 0.0
        %6270 = vmatpush1.msra.mxu0 0.0
        %6271 = vmatprep.subr.mxu0 0.0
        %6272 = vmatpush1.msra.mxu0 0.0
        %6273 = vmatprep.subr.mxu0 0.0
        %6274 = vmatpush1.msra.mxu0 0.0
        %6275 = vmatprep.subr.mxu0 0.0
        %6276 = vmatpush1.msra.mxu0 0.0
        %6277 = vmatprep.subr.mxu0 0.0
        %6278 = vmatpush1.msra.mxu0 0.0
        %6279 = vmatprep.subr.mxu0 0.0
        %6280 = vmatpush1.msra.mxu0 0.0
        %6281 = vmatprep.subr.mxu0 0.0
        %6282 = vmatpush1.msra.mxu0 0.0
        %6283 = vmatprep.subr.mxu0 0.0
        %6284 = vmatpush1.msra.mxu0 0.0
        %6285 = vmatprep.subr.mxu0 0.0
        %6286 = vmatpush1.msra.mxu0 0.0
        %6287 = vmatprep.subr.mxu0 0.0
        %6288 = vmatpush1.msra.mxu0 0.0
        %6289 = vmatprep.subr.mxu0 0.0
        %6290 = vmatpush1.msra.mxu0 0.0
        %6291 = vmatprep.subr.mxu0 0.0
        %6292 = vmatpush1.msra.mxu0 0.0
        %6293 = vmatprep.subr.mxu0 0.0
        %6294 = vmatpush1.msra.mxu0 0.0
        %6295 = vmatprep.subr.mxu0 0.0
        %6296 = vmatpush1.msra.mxu0 0.0
        %6297 = vmatprep.subr.mxu0 0.0
        %6298 = vmatpush1.msra.mxu0 0.0
        %6299 = vmatprep.subr.mxu0 0.0
        %6300 = vmatpush1.msra.mxu0 0.0
        %6301 = vmatprep.subr.mxu0 0.0
        %6302 = vmatpush1.msra.mxu0 0.0
        %6303 = vmatprep.subr.mxu0 0.0
        %6304 = vmatpush1.msra.mxu0 0.0
        %6305 = vmatprep.mubr.f32.mxu0 0.0
        %6306 = vmatmul.mubr.f32.gmra.mrb[0].mxu0 %v6142
        %v6307 = vpop.f32.mrb[0].mxu0
        %v6308 = vadd.f32 0.0, %v6307
        %v6309 = vpop.f32.mrb[0].mxu0
        %v6310 = vadd.f32 0.0, %v6309
        %6311 = vmatprep.mubr.f32.mxu0 0.0
        %6312 = vmatmul.mubr.f32.gmra.mrb[0].mxu0 %v6145
        %v6313 = vpop.f32.mrb[0].mxu0
        %v6314 = vadd.f32 0.0, %v6313
        %v6315 = vpop.f32.mrb[0].mxu0
        %v6316 = vadd.f32 0.0, %v6315
        %6317 = vmatprep.mubr.f32.mxu0 0.0
        %6318 = vmatmul.mubr.f32.gmra.mrb[0].mxu0 %v6148
        %v6319 = vpop.f32.mrb[0].mxu0
        %v6320 = vadd.f32 0.0, %v6319
        %v6321 = vpop.f32.mrb[0].mxu0
        %v6322 = vadd.f32 0.0, %v6321
        %6323 = vdwg.mxu0
        %v6324 = vadd.f32 %v6092, %v6225
        %v6325 = vadd.f32 %v6093, %v6227
        %v6326 = vadd.f32 %v6094, %v6308
        %v6327 = vadd.f32 %v6095, %v6310
        %v6328 = vadd.f32 %v6096, %v6231
        %v6329 = vadd.f32 %v6097, %v6233
        %v6330 = vadd.f32 %v6098, %v6314
        %v6331 = vadd.f32 %v6099, %v6316
        %v6332 = vadd.f32 %v6100, %v6237
        %v6333 = vadd.f32 %v6101, %v6239
        %v6334 = vadd.f32 %v6102, %v6320
        %v6335 = vadd.f32 %v6103, %v6322
        %s6336 = scalar_lea.vmem %s3, 360
        %v6337 = vld [vmem:[%s6336] sm:$0xff]
        %v6338 = vld [vmem:[%s6336 + $0x8] sm:$0xff]
        %v6339 = vld [vmem:[%s6336 + $0x10] sm:$0xf]
        %6340 = vrot.lane.b32.xlu0 %v5165, 88
        %v6341 = vpop.permute.xlu0 %6340
        %6342 = vrot.lane.b32.xlu0 %v5166, 88
        %v6343 = vpop.permute.xlu0 %6342
        %6344 = vrot.lane.b32.xlu0 %v5167, 88
        %v6345 = vpop.permute.xlu0 %6344
        %6346 = vrot.lane.b32.xlu0 %v5168, 88
        %v6347 = vpop.permute.xlu0 %6346
        %6348 = vrot.lane.b32.xlu0 %v5170, 88
        %v6349 = vpop.permute.xlu0 %6348
        %6350 = vrot.lane.b32.xlu0 %v5171, 88
        %v6351 = vpop.permute.xlu0 %6350
        %6352 = vrot.lane.b32.xlu0 %v5172, 88
        %v6353 = vpop.permute.xlu0 %6352
        %6354 = vrot.lane.b32.xlu0 %v5173, 88
        %v6355 = vpop.permute.xlu0 %6354
        %vm6356 = vcmask 719872
        %v6357 = vsel %vm6356, %v6341, %v6343
        %v6358 = vsel %vm6356, %v6343, %v6345
        %v6359 = vsel %vm6356, %v6345, %v6347
        %v6360 = vsel %vm6356, %v6349, %v6351
        %v6361 = vsel %vm6356, %v6351, %v6353
        %v6362 = vsel %vm6356, %v6353, %v6355
        %v6368 = vsel %vm2988, %v6337, 0
        %v6371 = vsel %vm2988, %v6338, 0
        %v6374 = vsel %vm2988, %v6339, 0
        %v6376 = vsel %vm2998, %v6360, 0
        %v6378 = vsel %vm2998, %v6361, 0
        %v6380 = vsel %vm2998, %v6362, 0
        %v6382 = vsel %vm2998, %v6355, 0
        %6384 = vmatprep.subr.mxu0 %v6358
        %6385 = vmatpush1.msra.mxu0 %v6357
        %6386 = vmatprep.subr.mxu0 %v6378
        %6387 = vmatpush1.msra.mxu0 %v6376
        %6388 = vmatprep.subr.mxu0 0.0
        %6389 = vmatpush1.msra.mxu0 0.0
        %6390 = vmatprep.subr.mxu0 0.0
        %6391 = vmatpush1.msra.mxu0 0.0
        %6392 = vmatprep.subr.mxu0 0.0
        %6393 = vmatpush1.msra.mxu0 0.0
        %6394 = vmatprep.subr.mxu0 0.0
        %6395 = vmatpush1.msra.mxu0 0.0
        %6396 = vmatprep.subr.mxu0 0.0
        %6397 = vmatpush1.msra.mxu0 0.0
        %6398 = vmatprep.subr.mxu0 0.0
        %6399 = vmatpush1.msra.mxu0 0.0
        %6400 = vmatprep.subr.mxu0 0.0
        %6401 = vmatpush1.msra.mxu0 0.0
        %6402 = vmatprep.subr.mxu0 0.0
        %6403 = vmatpush1.msra.mxu0 0.0
        %6404 = vmatprep.subr.mxu0 0.0
        %6405 = vmatpush1.msra.mxu0 0.0
        %6406 = vmatprep.subr.mxu0 0.0
        %6407 = vmatpush1.msra.mxu0 0.0
        %6408 = vmatprep.subr.mxu0 0.0
        %6409 = vmatpush1.msra.mxu0 0.0
        %6410 = vmatprep.subr.mxu0 0.0
        %6411 = vmatpush1.msra.mxu0 0.0
        %6412 = vmatprep.subr.mxu0 0.0
        %6413 = vmatpush1.msra.mxu0 0.0
        %6414 = vmatprep.subr.mxu0 0.0
        %6415 = vmatpush1.msra.mxu0 0.0
        %6416 = vmatprep.subr.mxu0 0.0
        %6417 = vmatpush1.msra.mxu0 0.0
        %6418 = vmatprep.subr.mxu0 0.0
        %6419 = vmatpush1.msra.mxu0 0.0
        %6420 = vmatprep.subr.mxu0 0.0
        %6421 = vmatpush1.msra.mxu0 0.0
        %6422 = vmatprep.subr.mxu0 0.0
        %6423 = vmatpush1.msra.mxu0 0.0
        %6424 = vmatprep.subr.mxu0 0.0
        %6425 = vmatpush1.msra.mxu0 0.0
        %6426 = vmatprep.subr.mxu0 0.0
        %6427 = vmatpush1.msra.mxu0 0.0
        %6428 = vmatprep.subr.mxu0 0.0
        %6429 = vmatpush1.msra.mxu0 0.0
        %6430 = vmatprep.subr.mxu0 0.0
        %6431 = vmatpush1.msra.mxu0 0.0
        %6432 = vmatprep.subr.mxu0 0.0
        %6433 = vmatpush1.msra.mxu0 0.0
        %6434 = vmatprep.subr.mxu0 0.0
        %6435 = vmatpush1.msra.mxu0 0.0
        %6436 = vmatprep.subr.mxu0 0.0
        %6437 = vmatpush1.msra.mxu0 0.0
        %6438 = vmatprep.subr.mxu0 0.0
        %6439 = vmatpush1.msra.mxu0 0.0
        %6440 = vmatprep.subr.mxu0 0.0
        %6441 = vmatpush1.msra.mxu0 0.0
        %6442 = vmatprep.subr.mxu0 0.0
        %6443 = vmatpush1.msra.mxu0 0.0
        %6444 = vmatprep.subr.mxu0 0.0
        %6445 = vmatpush1.msra.mxu0 0.0
        %6446 = vmatprep.subr.mxu0 0.0
        %6447 = vmatpush1.msra.mxu0 0.0
        %6448 = vmatprep.mubr.f32.mxu0 0.0
        %6449 = vmatmul.mubr.f32.gmra.mrb[0].mxu0 %v6368
        %v6450 = vpop.f32.mrb[0].mxu0
        %v6451 = vadd.f32 0.0, %v6450
        %v6452 = vpop.f32.mrb[0].mxu0
        %v6453 = vadd.f32 0.0, %v6452
        %6454 = vmatprep.mubr.f32.mxu0 0.0
        %6455 = vmatmul.mubr.f32.gmra.mrb[0].mxu0 %v6371
        %v6456 = vpop.f32.mrb[0].mxu0
        %v6457 = vadd.f32 0.0, %v6456
        %v6458 = vpop.f32.mrb[0].mxu0
        %v6459 = vadd.f32 0.0, %v6458
        %6460 = vmatprep.mubr.f32.mxu0 0.0
        %6461 = vmatmul.mubr.f32.gmra.mrb[0].mxu0 %v6374
        %v6462 = vpop.f32.mrb[0].mxu0
        %v6463 = vadd.f32 0.0, %v6462
        %v6464 = vpop.f32.mrb[0].mxu0
        %v6465 = vadd.f32 0.0, %v6464
        %6466 = vdwg.mxu0
        %6467 = vmatprep.subr.mxu0 %v6347
        %6468 = vmatpush1.msra.mxu0 %v6359
        %6469 = vmatprep.subr.mxu0 %v6382
        %6470 = vmatpush1.msra.mxu0 %v6380
        %6471 = vmatprep.subr.mxu0 0.0
        %6472 = vmatpush1.msra.mxu0 0.0
        %6473 = vmatprep.subr.mxu0 0.0
        %6474 = vmatpush1.msra.mxu0 0.0
        %6475 = vmatprep.subr.mxu0 0.0
        %6476 = vmatpush1.msra.mxu0 0.0
        %6477 = vmatprep.subr.mxu0 0.0
        %6478 = vmatpush1.msra.mxu0 0.0
        %6479 = vmatprep.subr.mxu0 0.0
        %6480 = vmatpush1.msra.mxu0 0.0
        %6481 = vmatprep.subr.mxu0 0.0
        %6482 = vmatpush1.msra.mxu0 0.0
        %6483 = vmatprep.subr.mxu0 0.0
        %6484 = vmatpush1.msra.mxu0 0.0
        %6485 = vmatprep.subr.mxu0 0.0
        %6486 = vmatpush1.msra.mxu0 0.0
        %6487 = vmatprep.subr.mxu0 0.0
        %6488 = vmatpush1.msra.mxu0 0.0
        %6489 = vmatprep.subr.mxu0 0.0
        %6490 = vmatpush1.msra.mxu0 0.0
        %6491 = vmatprep.subr.mxu0 0.0
        %6492 = vmatpush1.msra.mxu0 0.0
        %6493 = vmatprep.subr.mxu0 0.0
        %6494 = vmatpush1.msra.mxu0 0.0
        %6495 = vmatprep.subr.mxu0 0.0
        %6496 = vmatpush1.msra.mxu0 0.0
        %6497 = vmatprep.subr.mxu0 0.0
        %6498 = vmatpush1.msra.mxu0 0.0
        %6499 = vmatprep.subr.mxu0 0.0
        %6500 = vmatpush1.msra.mxu0 0.0
        %6501 = vmatprep.subr.mxu0 0.0
        %6502 = vmatpush1.msra.mxu0 0.0
        %6503 = vmatprep.subr.mxu0 0.0
        %6504 = vmatpush1.msra.mxu0 0.0
        %6505 = vmatprep.subr.mxu0 0.0
        %6506 = vmatpush1.msra.mxu0 0.0
        %6507 = vmatprep.subr.mxu0 0.0
        %6508 = vmatpush1.msra.mxu0 0.0
        %6509 = vmatprep.subr.mxu0 0.0
        %6510 = vmatpush1.msra.mxu0 0.0
        %6511 = vmatprep.subr.mxu0 0.0
        %6512 = vmatpush1.msra.mxu0 0.0
        %6513 = vmatprep.subr.mxu0 0.0
        %6514 = vmatpush1.msra.mxu0 0.0
        %6515 = vmatprep.subr.mxu0 0.0
        %6516 = vmatpush1.msra.mxu0 0.0
        %6517 = vmatprep.subr.mxu0 0.0
        %6518 = vmatpush1.msra.mxu0 0.0
        %6519 = vmatprep.subr.mxu0 0.0
        %6520 = vmatpush1.msra.mxu0 0.0
        %6521 = vmatprep.subr.mxu0 0.0
        %6522 = vmatpush1.msra.mxu0 0.0
        %6523 = vmatprep.subr.mxu0 0.0
        %6524 = vmatpush1.msra.mxu0 0.0
        %6525 = vmatprep.subr.mxu0 0.0
        %6526 = vmatpush1.msra.mxu0 0.0
        %6527 = vmatprep.subr.mxu0 0.0
        %6528 = vmatpush1.msra.mxu0 0.0
        %6529 = vmatprep.subr.mxu0 0.0
        %6530 = vmatpush1.msra.mxu0 0.0
        %6531 = vmatprep.mubr.f32.mxu0 0.0
        %6532 = vmatmul.mubr.f32.gmra.mrb[0].mxu0 %v6368
        %v6533 = vpop.f32.mrb[0].mxu0
        %v6534 = vadd.f32 0.0, %v6533
        %v6535 = vpop.f32.mrb[0].mxu0
        %v6536 = vadd.f32 0.0, %v6535
        %6537 = vmatprep.mubr.f32.mxu0 0.0
        %6538 = vmatmul.mubr.f32.gmra.mrb[0].mxu0 %v6371
        %v6539 = vpop.f32.mrb[0].mxu0
        %v6540 = vadd.f32 0.0, %v6539
        %v6541 = vpop.f32.mrb[0].mxu0
        %v6542 = vadd.f32 0.0, %v6541
        %6543 = vmatprep.mubr.f32.mxu0 0.0
        %6544 = vmatmul.mubr.f32.gmra.mrb[0].mxu0 %v6374
        %v6545 = vpop.f32.mrb[0].mxu0
        %v6546 = vadd.f32 0.0, %v6545
        %v6547 = vpop.f32.mrb[0].mxu0
        %v6548 = vadd.f32 0.0, %v6547
        %6549 = vdwg.mxu0
        %v6550 = vadd.f32 %v6324, %v6451
        %v6551 = vadd.f32 %v6325, %v6453
        %v6552 = vadd.f32 %v6326, %v6534
        %v6553 = vadd.f32 %v6327, %v6536
        %v6554 = vadd.f32 %v6328, %v6457
        %v6555 = vadd.f32 %v6329, %v6459
        %v6556 = vadd.f32 %v6330, %v6540
        %v6557 = vadd.f32 %v6331, %v6542
        %v6558 = vadd.f32 %v6332, %v6463
        %v6559 = vadd.f32 %v6333, %v6465
        %v6560 = vadd.f32 %v6334, %v6546
        %v6561 = vadd.f32 %v6335, %v6548
        %s6562 = scalar_lea.vmem %s3, 384
        %v6563 = vld [vmem:[%s6562] sm:$0xff]
        %v6564 = vld [vmem:[%s6562 + $0x8] sm:$0xff]
        %v6565 = vld [vmem:[%s6562 + $0x10] sm:$0xf]
        %6566 = vrot.lane.b32.xlu0 %v5165, 86
        %v6567 = vpop.permute.xlu0 %6566
        %6568 = vrot.lane.b32.xlu0 %v5166, 86
        %v6569 = vpop.permute.xlu0 %6568
        %6570 = vrot.lane.b32.xlu0 %v5167, 86
        %v6571 = vpop.permute.xlu0 %6570
        %6572 = vrot.lane.b32.xlu0 %v5168, 86
        %v6573 = vpop.permute.xlu0 %6572
        %6574 = vrot.lane.b32.xlu0 %v5170, 86
        %v6575 = vpop.permute.xlu0 %6574
        %6576 = vrot.lane.b32.xlu0 %v5171, 86
        %v6577 = vpop.permute.xlu0 %6576
        %6578 = vrot.lane.b32.xlu0 %v5172, 86
        %v6579 = vpop.permute.xlu0 %6578
        %6580 = vrot.lane.b32.xlu0 %v5173, 86
        %v6581 = vpop.permute.xlu0 %6580
        %vm6582 = vcmask 703488
        %v6583 = vsel %vm6582, %v6567, %v6569
        %v6584 = vsel %vm6582, %v6569, %v6571
        %v6585 = vsel %vm6582, %v6571, %v6573
        %v6586 = vsel %vm6582, %v6575, %v6577
        %v6587 = vsel %vm6582, %v6577, %v6579
        %v6588 = vsel %vm6582, %v6579, %v6581
        %v6594 = vsel %vm2988, %v6563, 0
        %v6597 = vsel %vm2988, %v6564, 0
        %v6600 = vsel %vm2988, %v6565, 0
        %v6602 = vsel %vm2998, %v6586, 0
        %v6604 = vsel %vm2998, %v6587, 0
        %v6606 = vsel %vm2998, %v6588, 0
        %v6608 = vsel %vm2998, %v6581, 0
        %6610 = vmatprep.subr.mxu0 %v6584
        %6611 = vmatpush1.msra.mxu0 %v6583
        %6612 = vmatprep.subr.mxu0 %v6604
        %6613 = vmatpush1.msra.mxu0 %v6602
        %6614 = vmatprep.subr.mxu0 0.0
        %6615 = vmatpush1.msra.mxu0 0.0
        %6616 = vmatprep.subr.mxu0 0.0
        %6617 = vmatpush1.msra.mxu0 0.0
        %6618 = vmatprep.subr.mxu0 0.0
        %6619 = vmatpush1.msra.mxu0 0.0
        %6620 = vmatprep.subr.mxu0 0.0
        %6621 = vmatpush1.msra.mxu0 0.0
        %6622 = vmatprep.subr.mxu0 0.0
        %6623 = vmatpush1.msra.mxu0 0.0
        %6624 = vmatprep.subr.mxu0 0.0
        %6625 = vmatpush1.msra.mxu0 0.0
        %6626 = vmatprep.subr.mxu0 0.0
        %6627 = vmatpush1.msra.mxu0 0.0
        %6628 = vmatprep.subr.mxu0 0.0
        %6629 = vmatpush1.msra.mxu0 0.0
        %6630 = vmatprep.subr.mxu0 0.0
        %6631 = vmatpush1.msra.mxu0 0.0
        %6632 = vmatprep.subr.mxu0 0.0
        %6633 = vmatpush1.msra.mxu0 0.0
        %6634 = vmatprep.subr.mxu0 0.0
        %6635 = vmatpush1.msra.mxu0 0.0
        %6636 = vmatprep.subr.mxu0 0.0
        %6637 = vmatpush1.msra.mxu0 0.0
        %6638 = vmatprep.subr.mxu0 0.0
        %6639 = vmatpush1.msra.mxu0 0.0
        %6640 = vmatprep.subr.mxu0 0.0
        %6641 = vmatpush1.msra.mxu0 0.0
        %6642 = vmatprep.subr.mxu0 0.0
        %6643 = vmatpush1.msra.mxu0 0.0
        %6644 = vmatprep.subr.mxu0 0.0
        %6645 = vmatpush1.msra.mxu0 0.0
        %6646 = vmatprep.subr.mxu0 0.0
        %6647 = vmatpush1.msra.mxu0 0.0
        %6648 = vmatprep.subr.mxu0 0.0
        %6649 = vmatpush1.msra.mxu0 0.0
        %6650 = vmatprep.subr.mxu0 0.0
        %6651 = vmatpush1.msra.mxu0 0.0
        %6652 = vmatprep.subr.mxu0 0.0
        %6653 = vmatpush1.msra.mxu0 0.0
        %6654 = vmatprep.subr.mxu0 0.0
        %6655 = vmatpush1.msra.mxu0 0.0
        %6656 = vmatprep.subr.mxu0 0.0
        %6657 = vmatpush1.msra.mxu0 0.0
        %6658 = vmatprep.subr.mxu0 0.0
        %6659 = vmatpush1.msra.mxu0 0.0
        %6660 = vmatprep.subr.mxu0 0.0
        %6661 = vmatpush1.msra.mxu0 0.0
        %6662 = vmatprep.subr.mxu0 0.0
        %6663 = vmatpush1.msra.mxu0 0.0
        %6664 = vmatprep.subr.mxu0 0.0
        %6665 = vmatpush1.msra.mxu0 0.0
        %6666 = vmatprep.subr.mxu0 0.0
        %6667 = vmatpush1.msra.mxu0 0.0
        %6668 = vmatprep.subr.mxu0 0.0
        %6669 = vmatpush1.msra.mxu0 0.0
        %6670 = vmatprep.subr.mxu0 0.0
        %6671 = vmatpush1.msra.mxu0 0.0
        %6672 = vmatprep.subr.mxu0 0.0
        %6673 = vmatpush1.msra.mxu0 0.0
        %6674 = vmatprep.mubr.f32.mxu0 0.0
        %6675 = vmatmul.mubr.f32.gmra.mrb[0].mxu0 %v6594
        %v6676 = vpop.f32.mrb[0].mxu0
        %v6677 = vadd.f32 0.0, %v6676
        %v6678 = vpop.f32.mrb[0].mxu0
        %v6679 = vadd.f32 0.0, %v6678
        %6680 = vmatprep.mubr.f32.mxu0 0.0
        %6681 = vmatmul.mubr.f32.gmra.mrb[0].mxu0 %v6597
        %v6682 = vpop.f32.mrb[0].mxu0
        %v6683 = vadd.f32 0.0, %v6682
        %v6684 = vpop.f32.mrb[0].mxu0
        %v6685 = vadd.f32 0.0, %v6684
        %6686 = vmatprep.mubr.f32.mxu0 0.0
        %6687 = vmatmul.mubr.f32.gmra.mrb[0].mxu0 %v6600
        %v6688 = vpop.f32.mrb[0].mxu0
        %v6689 = vadd.f32 0.0, %v6688
        %v6690 = vpop.f32.mrb[0].mxu0
        %v6691 = vadd.f32 0.0, %v6690
        %6692 = vdwg.mxu0
        %6693 = vmatprep.subr.mxu0 %v6573
        %6694 = vmatpush1.msra.mxu0 %v6585
        %6695 = vmatprep.subr.mxu0 %v6608
        %6696 = vmatpush1.msra.mxu0 %v6606
        %6697 = vmatprep.subr.mxu0 0.0
        %6698 = vmatpush1.msra.mxu0 0.0
        %6699 = vmatprep.subr.mxu0 0.0
        %6700 = vmatpush1.msra.mxu0 0.0
        %6701 = vmatprep.subr.mxu0 0.0
        %6702 = vmatpush1.msra.mxu0 0.0
        %6703 = vmatprep.subr.mxu0 0.0
        %6704 = vmatpush1.msra.mxu0 0.0
        %6705 = vmatprep.subr.mxu0 0.0
        %6706 = vmatpush1.msra.mxu0 0.0
        %6707 = vmatprep.subr.mxu0 0.0
        %6708 = vmatpush1.msra.mxu0 0.0
        %6709 = vmatprep.subr.mxu0 0.0
        %6710 = vmatpush1.msra.mxu0 0.0
        %6711 = vmatprep.subr.mxu0 0.0
        %6712 = vmatpush1.msra.mxu0 0.0
        %6713 = vmatprep.subr.mxu0 0.0
        %6714 = vmatpush1.msra.mxu0 0.0
        %6715 = vmatprep.subr.mxu0 0.0
        %6716 = vmatpush1.msra.mxu0 0.0
        %6717 = vmatprep.subr.mxu0 0.0
        %6718 = vmatpush1.msra.mxu0 0.0
        %6719 = vmatprep.subr.mxu0 0.0
        %6720 = vmatpush1.msra.mxu0 0.0
        %6721 = vmatprep.subr.mxu0 0.0
        %6722 = vmatpush1.msra.mxu0 0.0
        %6723 = vmatprep.subr.mxu0 0.0
        %6724 = vmatpush1.msra.mxu0 0.0
        %6725 = vmatprep.subr.mxu0 0.0
        %6726 = vmatpush1.msra.mxu0 0.0
        %6727 = vmatprep.subr.mxu0 0.0
        %6728 = vmatpush1.msra.mxu0 0.0
        %6729 = vmatprep.subr.mxu0 0.0
        %6730 = vmatpush1.msra.mxu0 0.0
        %6731 = vmatprep.subr.mxu0 0.0
        %6732 = vmatpush1.msra.mxu0 0.0
        %6733 = vmatprep.subr.mxu0 0.0
        %6734 = vmatpush1.msra.mxu0 0.0
        %6735 = vmatprep.subr.mxu0 0.0
        %6736 = vmatpush1.msra.mxu0 0.0
        %6737 = vmatprep.subr.mxu0 0.0
        %6738 = vmatpush1.msra.mxu0 0.0
        %6739 = vmatprep.subr.mxu0 0.0
        %6740 = vmatpush1.msra.mxu0 0.0
        %6741 = vmatprep.subr.mxu0 0.0
        %6742 = vmatpush1.msra.mxu0 0.0
        %6743 = vmatprep.subr.mxu0 0.0
        %6744 = vmatpush1.msra.mxu0 0.0
        %6745 = vmatprep.subr.mxu0 0.0
        %6746 = vmatpush1.msra.mxu0 0.0
        %6747 = vmatprep.subr.mxu0 0.0
        %6748 = vmatpush1.msra.mxu0 0.0
        %6749 = vmatprep.subr.mxu0 0.0
        %6750 = vmatpush1.msra.mxu0 0.0
        %6751 = vmatprep.subr.mxu0 0.0
        %6752 = vmatpush1.msra.mxu0 0.0
        %6753 = vmatprep.subr.mxu0 0.0
        %6754 = vmatpush1.msra.mxu0 0.0
        %6755 = vmatprep.subr.mxu0 0.0
        %6756 = vmatpush1.msra.mxu0 0.0
        %6757 = vmatprep.mubr.f32.mxu0 0.0
        %6758 = vmatmul.mubr.f32.gmra.mrb[0].mxu0 %v6594
        %v6759 = vpop.f32.mrb[0].mxu0
        %v6760 = vadd.f32 0.0, %v6759
        %v6761 = vpop.f32.mrb[0].mxu0
        %v6762 = vadd.f32 0.0, %v6761
        %6763 = vmatprep.mubr.f32.mxu0 0.0
        %6764 = vmatmul.mubr.f32.gmra.mrb[0].mxu0 %v6597
        %v6765 = vpop.f32.mrb[0].mxu0
        %v6766 = vadd.f32 0.0, %v6765
        %v6767 = vpop.f32.mrb[0].mxu0
        %v6768 = vadd.f32 0.0, %v6767
        %6769 = vmatprep.mubr.f32.mxu0 0.0
        %6770 = vmatmul.mubr.f32.gmra.mrb[0].mxu0 %v6600
        %v6771 = vpop.f32.mrb[0].mxu0
        %v6772 = vadd.f32 0.0, %v6771
        %v6773 = vpop.f32.mrb[0].mxu0
        %v6774 = vadd.f32 0.0, %v6773
        %6775 = vdwg.mxu0
        %v6776 = vadd.f32 %v6550, %v6677
        %v6777 = vadd.f32 %v6551, %v6679
        %v6778 = vadd.f32 %v6552, %v6760
        %v6779 = vadd.f32 %v6553, %v6762
        %v6780 = vadd.f32 %v6554, %v6683
        %v6781 = vadd.f32 %v6555, %v6685
        %v6782 = vadd.f32 %v6556, %v6766
        %v6783 = vadd.f32 %v6557, %v6768
        %v6784 = vadd.f32 %v6558, %v6689
        %v6785 = vadd.f32 %v6559, %v6691
        %v6786 = vadd.f32 %v6560, %v6772
        %v6787 = vadd.f32 %v6561, %v6774
        %s6788 = scalar_lea.vmem %s3, 408
        %v6789 = vld [vmem:[%s6788] sm:$0xff]
        %v6790 = vld [vmem:[%s6788 + $0x8] sm:$0xff]
        %v6791 = vld [vmem:[%s6788 + $0x10] sm:$0xf]
        %6792 = vrot.lane.b32.xlu0 %v5165, 84
        %v6793 = vpop.permute.xlu0 %6792
        %6794 = vrot.lane.b32.xlu0 %v5166, 84
        %v6795 = vpop.permute.xlu0 %6794
        %6796 = vrot.lane.b32.xlu0 %v5167, 84
        %v6797 = vpop.permute.xlu0 %6796
        %6798 = vrot.lane.b32.xlu0 %v5168, 84
        %v6799 = vpop.permute.xlu0 %6798
        %6800 = vrot.lane.b32.xlu0 %v5170, 84
        %v6801 = vpop.permute.xlu0 %6800
        %6802 = vrot.lane.b32.xlu0 %v5171, 84
        %v6803 = vpop.permute.xlu0 %6802
        %6804 = vrot.lane.b32.xlu0 %v5172, 84
        %v6805 = vpop.permute.xlu0 %6804
        %6806 = vrot.lane.b32.xlu0 %v5173, 84
        %v6807 = vpop.permute.xlu0 %6806
        %vm6808 = vcmask 687104
        %v6809 = vsel %vm6808, %v6793, %v6795
        %v6810 = vsel %vm6808, %v6795, %v6797
        %v6811 = vsel %vm6808, %v6797, %v6799
        %v6812 = vsel %vm6808, %v6801, %v6803
        %v6813 = vsel %vm6808, %v6803, %v6805
        %v6814 = vsel %vm6808, %v6805, %v6807
        %v6820 = vsel %vm2988, %v6789, 0
        %v6823 = vsel %vm2988, %v6790, 0
        %v6826 = vsel %vm2988, %v6791, 0
        %v6828 = vsel %vm2998, %v6812, 0
        %v6830 = vsel %vm2998, %v6813, 0
        %v6832 = vsel %vm2998, %v6814, 0
        %v6834 = vsel %vm2998, %v6807, 0
        %6836 = vmatprep.subr.mxu0 %v6810
        %6837 = vmatpush1.msra.mxu0 %v6809
        %6838 = vmatprep.subr.mxu0 %v6830
        %6839 = vmatpush1.msra.mxu0 %v6828
        %6840 = vmatprep.subr.mxu0 0.0
        %6841 = vmatpush1.msra.mxu0 0.0
        %6842 = vmatprep.subr.mxu0 0.0
        %6843 = vmatpush1.msra.mxu0 0.0
        %6844 = vmatprep.subr.mxu0 0.0
        %6845 = vmatpush1.msra.mxu0 0.0
        %6846 = vmatprep.subr.mxu0 0.0
        %6847 = vmatpush1.msra.mxu0 0.0
        %6848 = vmatprep.subr.mxu0 0.0
        %6849 = vmatpush1.msra.mxu0 0.0
        %6850 = vmatprep.subr.mxu0 0.0
        %6851 = vmatpush1.msra.mxu0 0.0
        %6852 = vmatprep.subr.mxu0 0.0
        %6853 = vmatpush1.msra.mxu0 0.0
        %6854 = vmatprep.subr.mxu0 0.0
        %6855 = vmatpush1.msra.mxu0 0.0
        %6856 = vmatprep.subr.mxu0 0.0
        %6857 = vmatpush1.msra.mxu0 0.0
        %6858 = vmatprep.subr.mxu0 0.0
        %6859 = vmatpush1.msra.mxu0 0.0
        %6860 = vmatprep.subr.mxu0 0.0
        %6861 = vmatpush1.msra.mxu0 0.0
        %6862 = vmatprep.subr.mxu0 0.0
        %6863 = vmatpush1.msra.mxu0 0.0
        %6864 = vmatprep.subr.mxu0 0.0
        %6865 = vmatpush1.msra.mxu0 0.0
        %6866 = vmatprep.subr.mxu0 0.0
        %6867 = vmatpush1.msra.mxu0 0.0
        %6868 = vmatprep.subr.mxu0 0.0
        %6869 = vmatpush1.msra.mxu0 0.0
        %6870 = vmatprep.subr.mxu0 0.0
        %6871 = vmatpush1.msra.mxu0 0.0
        %6872 = vmatprep.subr.mxu0 0.0
        %6873 = vmatpush1.msra.mxu0 0.0
        %6874 = vmatprep.subr.mxu0 0.0
        %6875 = vmatpush1.msra.mxu0 0.0
        %6876 = vmatprep.subr.mxu0 0.0
        %6877 = vmatpush1.msra.mxu0 0.0
        %6878 = vmatprep.subr.mxu0 0.0
        %6879 = vmatpush1.msra.mxu0 0.0
        %6880 = vmatprep.subr.mxu0 0.0
        %6881 = vmatpush1.msra.mxu0 0.0
        %6882 = vmatprep.subr.mxu0 0.0
        %6883 = vmatpush1.msra.mxu0 0.0
        %6884 = vmatprep.subr.mxu0 0.0
        %6885 = vmatpush1.msra.mxu0 0.0
        %6886 = vmatprep.subr.mxu0 0.0
        %6887 = vmatpush1.msra.mxu0 0.0
        %6888 = vmatprep.subr.mxu0 0.0
        %6889 = vmatpush1.msra.mxu0 0.0
        %6890 = vmatprep.subr.mxu0 0.0
        %6891 = vmatpush1.msra.mxu0 0.0
        %6892 = vmatprep.subr.mxu0 0.0
        %6893 = vmatpush1.msra.mxu0 0.0
        %6894 = vmatprep.subr.mxu0 0.0
        %6895 = vmatpush1.msra.mxu0 0.0
        %6896 = vmatprep.subr.mxu0 0.0
        %6897 = vmatpush1.msra.mxu0 0.0
        %6898 = vmatprep.subr.mxu0 0.0
        %6899 = vmatpush1.msra.mxu0 0.0
        %6900 = vmatprep.mubr.f32.mxu0 0.0
        %6901 = vmatmul.mubr.f32.gmra.mrb[0].mxu0 %v6820
        %v6902 = vpop.f32.mrb[0].mxu0
        %v6903 = vadd.f32 0.0, %v6902
        %v6904 = vpop.f32.mrb[0].mxu0
        %v6905 = vadd.f32 0.0, %v6904
        %6906 = vmatprep.mubr.f32.mxu0 0.0
        %6907 = vmatmul.mubr.f32.gmra.mrb[0].mxu0 %v6823
        %v6908 = vpop.f32.mrb[0].mxu0
        %v6909 = vadd.f32 0.0, %v6908
        %v6910 = vpop.f32.mrb[0].mxu0
        %v6911 = vadd.f32 0.0, %v6910
        %6912 = vmatprep.mubr.f32.mxu0 0.0
        %6913 = vmatmul.mubr.f32.gmra.mrb[0].mxu0 %v6826
        %v6914 = vpop.f32.mrb[0].mxu0
        %v6915 = vadd.f32 0.0, %v6914
        %v6916 = vpop.f32.mrb[0].mxu0
        %v6917 = vadd.f32 0.0, %v6916
        %6918 = vdwg.mxu0
        %6919 = vmatprep.subr.mxu0 %v6799
        %6920 = vmatpush1.msra.mxu0 %v6811
        %6921 = vmatprep.subr.mxu0 %v6834
        %6922 = vmatpush1.msra.mxu0 %v6832
        %6923 = vmatprep.subr.mxu0 0.0
        %6924 = vmatpush1.msra.mxu0 0.0
        %6925 = vmatprep.subr.mxu0 0.0
        %6926 = vmatpush1.msra.mxu0 0.0
        %6927 = vmatprep.subr.mxu0 0.0
        %6928 = vmatpush1.msra.mxu0 0.0
        %6929 = vmatprep.subr.mxu0 0.0
        %6930 = vmatpush1.msra.mxu0 0.0
        %6931 = vmatprep.subr.mxu0 0.0
        %6932 = vmatpush1.msra.mxu0 0.0
        %6933 = vmatprep.subr.mxu0 0.0
        %6934 = vmatpush1.msra.mxu0 0.0
        %6935 = vmatprep.subr.mxu0 0.0
        %6936 = vmatpush1.msra.mxu0 0.0
        %6937 = vmatprep.subr.mxu0 0.0
        %6938 = vmatpush1.msra.mxu0 0.0
        %6939 = vmatprep.subr.mxu0 0.0
        %6940 = vmatpush1.msra.mxu0 0.0
        %6941 = vmatprep.subr.mxu0 0.0
        %6942 = vmatpush1.msra.mxu0 0.0
        %6943 = vmatprep.subr.mxu0 0.0
        %6944 = vmatpush1.msra.mxu0 0.0
        %6945 = vmatprep.subr.mxu0 0.0
        %6946 = vmatpush1.msra.mxu0 0.0
        %6947 = vmatprep.subr.mxu0 0.0
        %6948 = vmatpush1.msra.mxu0 0.0
        %6949 = vmatprep.subr.mxu0 0.0
        %6950 = vmatpush1.msra.mxu0 0.0
        %6951 = vmatprep.subr.mxu0 0.0
        %6952 = vmatpush1.msra.mxu0 0.0
        %6953 = vmatprep.subr.mxu0 0.0
        %6954 = vmatpush1.msra.mxu0 0.0
        %6955 = vmatprep.subr.mxu0 0.0
        %6956 = vmatpush1.msra.mxu0 0.0
        %6957 = vmatprep.subr.mxu0 0.0
        %6958 = vmatpush1.msra.mxu0 0.0
        %6959 = vmatprep.subr.mxu0 0.0
        %6960 = vmatpush1.msra.mxu0 0.0
        %6961 = vmatprep.subr.mxu0 0.0
        %6962 = vmatpush1.msra.mxu0 0.0
        %6963 = vmatprep.subr.mxu0 0.0
        %6964 = vmatpush1.msra.mxu0 0.0
        %6965 = vmatprep.subr.mxu0 0.0
        %6966 = vmatpush1.msra.mxu0 0.0
        %6967 = vmatprep.subr.mxu0 0.0
        %6968 = vmatpush1.msra.mxu0 0.0
        %6969 = vmatprep.subr.mxu0 0.0
        %6970 = vmatpush1.msra.mxu0 0.0
        %6971 = vmatprep.subr.mxu0 0.0
        %6972 = vmatpush1.msra.mxu0 0.0
        %6973 = vmatprep.subr.mxu0 0.0
        %6974 = vmatpush1.msra.mxu0 0.0
        %6975 = vmatprep.subr.mxu0 0.0
        %6976 = vmatpush1.msra.mxu0 0.0
        %6977 = vmatprep.subr.mxu0 0.0
        %6978 = vmatpush1.msra.mxu0 0.0
        %6979 = vmatprep.subr.mxu0 0.0
        %6980 = vmatpush1.msra.mxu0 0.0
        %6981 = vmatprep.subr.mxu0 0.0
        %6982 = vmatpush1.msra.mxu0 0.0
        %6983 = vmatprep.mubr.f32.mxu0 0.0
        %6984 = vmatmul.mubr.f32.gmra.mrb[0].mxu0 %v6820
        %v6985 = vpop.f32.mrb[0].mxu0
        %v6986 = vadd.f32 0.0, %v6985
        %v6987 = vpop.f32.mrb[0].mxu0
        %v6988 = vadd.f32 0.0, %v6987
        %6989 = vmatprep.mubr.f32.mxu0 0.0
        %6990 = vmatmul.mubr.f32.gmra.mrb[0].mxu0 %v6823
        %v6991 = vpop.f32.mrb[0].mxu0
        %v6992 = vadd.f32 0.0, %v6991
        %v6993 = vpop.f32.mrb[0].mxu0
        %v6994 = vadd.f32 0.0, %v6993
        %6995 = vmatprep.mubr.f32.mxu0 0.0
        %6996 = vmatmul.mubr.f32.gmra.mrb[0].mxu0 %v6826
        %v6997 = vpop.f32.mrb[0].mxu0
        %v6998 = vadd.f32 0.0, %v6997
        %v6999 = vpop.f32.mrb[0].mxu0
        %v7000 = vadd.f32 0.0, %v6999
        %7001 = vdwg.mxu0
        %v7002 = vadd.f32 %v6776, %v6903
        %v7003 = vadd.f32 %v6777, %v6905
        %v7004 = vadd.f32 %v6778, %v6986
        %v7005 = vadd.f32 %v6779, %v6988
        %v7006 = vadd.f32 %v6780, %v6909
        %v7007 = vadd.f32 %v6781, %v6911
        %v7008 = vadd.f32 %v6782, %v6992
        %v7009 = vadd.f32 %v6783, %v6994
        %v7010 = vadd.f32 %v6784, %v6915
        %v7011 = vadd.f32 %v6785, %v6917
        %v7012 = vadd.f32 %v6786, %v6998
        %v7013 = vadd.f32 %v6787, %v7000
        %s7014 = scalar_lea.vmem %s3, 432
        %v7015 = vld [vmem:[%s7014] sm:$0xff]
        %v7016 = vld [vmem:[%s7014 + $0x8] sm:$0xff]
        %v7017 = vld [vmem:[%s7014 + $0x10] sm:$0xf]
        %7018 = vrot.lane.b32.xlu0 %v5165, 82
        %v7019 = vpop.permute.xlu0 %7018
        %7020 = vrot.lane.b32.xlu0 %v5166, 82
        %v7021 = vpop.permute.xlu0 %7020
        %7022 = vrot.lane.b32.xlu0 %v5167, 82
        %v7023 = vpop.permute.xlu0 %7022
        %7024 = vrot.lane.b32.xlu0 %v5168, 82
        %v7025 = vpop.permute.xlu0 %7024
        %7026 = vrot.lane.b32.xlu0 %v5170, 82
        %v7027 = vpop.permute.xlu0 %7026
        %7028 = vrot.lane.b32.xlu0 %v5171, 82
        %v7029 = vpop.permute.xlu0 %7028
        %7030 = vrot.lane.b32.xlu0 %v5172, 82
        %v7031 = vpop.permute.xlu0 %7030
        %7032 = vrot.lane.b32.xlu0 %v5173, 82
        %v7033 = vpop.permute.xlu0 %7032
        %vm7034 = vcmask 670720
        %v7035 = vsel %vm7034, %v7019, %v7021
        %v7036 = vsel %vm7034, %v7021, %v7023
        %v7037 = vsel %vm7034, %v7023, %v7025
        %v7038 = vsel %vm7034, %v7027, %v7029
        %v7039 = vsel %vm7034, %v7029, %v7031
        %v7040 = vsel %vm7034, %v7031, %v7033
        %v7046 = vsel %vm2988, %v7015, 0
        %v7049 = vsel %vm2988, %v7016, 0
        %v7052 = vsel %vm2988, %v7017, 0
        %v7054 = vsel %vm2998, %v7038, 0
        %v7056 = vsel %vm2998, %v7039, 0
        %v7058 = vsel %vm2998, %v7040, 0
        %v7060 = vsel %vm2998, %v7033, 0
        %7062 = vmatprep.subr.mxu0 %v7036
        %7063 = vmatpush1.msra.mxu0 %v7035
        %7064 = vmatprep.subr.mxu0 %v7056
        %7065 = vmatpush1.msra.mxu0 %v7054
        %7066 = vmatprep.subr.mxu0 0.0
        %7067 = vmatpush1.msra.mxu0 0.0
        %7068 = vmatprep.subr.mxu0 0.0
        %7069 = vmatpush1.msra.mxu0 0.0
        %7070 = vmatprep.subr.mxu0 0.0
        %7071 = vmatpush1.msra.mxu0 0.0
        %7072 = vmatprep.subr.mxu0 0.0
        %7073 = vmatpush1.msra.mxu0 0.0
        %7074 = vmatprep.subr.mxu0 0.0
        %7075 = vmatpush1.msra.mxu0 0.0
        %7076 = vmatprep.subr.mxu0 0.0
        %7077 = vmatpush1.msra.mxu0 0.0
        %7078 = vmatprep.subr.mxu0 0.0
        %7079 = vmatpush1.msra.mxu0 0.0
        %7080 = vmatprep.subr.mxu0 0.0
        %7081 = vmatpush1.msra.mxu0 0.0
        %7082 = vmatprep.subr.mxu0 0.0
        %7083 = vmatpush1.msra.mxu0 0.0
        %7084 = vmatprep.subr.mxu0 0.0
        %7085 = vmatpush1.msra.mxu0 0.0
        %7086 = vmatprep.subr.mxu0 0.0
        %7087 = vmatpush1.msra.mxu0 0.0
        %7088 = vmatprep.subr.mxu0 0.0
        %7089 = vmatpush1.msra.mxu0 0.0
        %7090 = vmatprep.subr.mxu0 0.0
        %7091 = vmatpush1.msra.mxu0 0.0
        %7092 = vmatprep.subr.mxu0 0.0
        %7093 = vmatpush1.msra.mxu0 0.0
        %7094 = vmatprep.subr.mxu0 0.0
        %7095 = vmatpush1.msra.mxu0 0.0
        %7096 = vmatprep.subr.mxu0 0.0
        %7097 = vmatpush1.msra.mxu0 0.0
        %7098 = vmatprep.subr.mxu0 0.0
        %7099 = vmatpush1.msra.mxu0 0.0
        %7100 = vmatprep.subr.mxu0 0.0
        %7101 = vmatpush1.msra.mxu0 0.0
        %7102 = vmatprep.subr.mxu0 0.0
        %7103 = vmatpush1.msra.mxu0 0.0
        %7104 = vmatprep.subr.mxu0 0.0
        %7105 = vmatpush1.msra.mxu0 0.0
        %7106 = vmatprep.subr.mxu0 0.0
        %7107 = vmatpush1.msra.mxu0 0.0
        %7108 = vmatprep.subr.mxu0 0.0
        %7109 = vmatpush1.msra.mxu0 0.0
        %7110 = vmatprep.subr.mxu0 0.0
        %7111 = vmatpush1.msra.mxu0 0.0
        %7112 = vmatprep.subr.mxu0 0.0
        %7113 = vmatpush1.msra.mxu0 0.0
        %7114 = vmatprep.subr.mxu0 0.0
        %7115 = vmatpush1.msra.mxu0 0.0
        %7116 = vmatprep.subr.mxu0 0.0
        %7117 = vmatpush1.msra.mxu0 0.0
        %7118 = vmatprep.subr.mxu0 0.0
        %7119 = vmatpush1.msra.mxu0 0.0
        %7120 = vmatprep.subr.mxu0 0.0
        %7121 = vmatpush1.msra.mxu0 0.0
        %7122 = vmatprep.subr.mxu0 0.0
        %7123 = vmatpush1.msra.mxu0 0.0
        %7124 = vmatprep.subr.mxu0 0.0
        %7125 = vmatpush1.msra.mxu0 0.0
        %7126 = vmatprep.mubr.f32.mxu0 0.0
        %7127 = vmatmul.mubr.f32.gmra.mrb[0].mxu0 %v7046
        %v7128 = vpop.f32.mrb[0].mxu0
        %v7129 = vadd.f32 0.0, %v7128
        %v7130 = vpop.f32.mrb[0].mxu0
        %v7131 = vadd.f32 0.0, %v7130
        %7132 = vmatprep.mubr.f32.mxu0 0.0
        %7133 = vmatmul.mubr.f32.gmra.mrb[0].mxu0 %v7049
        %v7134 = vpop.f32.mrb[0].mxu0
        %v7135 = vadd.f32 0.0, %v7134
        %v7136 = vpop.f32.mrb[0].mxu0
        %v7137 = vadd.f32 0.0, %v7136
        %7138 = vmatprep.mubr.f32.mxu0 0.0
        %7139 = vmatmul.mubr.f32.gmra.mrb[0].mxu0 %v7052
        %v7140 = vpop.f32.mrb[0].mxu0
        %v7141 = vadd.f32 0.0, %v7140
        %v7142 = vpop.f32.mrb[0].mxu0
        %v7143 = vadd.f32 0.0, %v7142
        %7144 = vdwg.mxu0
        %7145 = vmatprep.subr.mxu0 %v7025
        %7146 = vmatpush1.msra.mxu0 %v7037
        %7147 = vmatprep.subr.mxu0 %v7060
        %7148 = vmatpush1.msra.mxu0 %v7058
        %7149 = vmatprep.subr.mxu0 0.0
        %7150 = vmatpush1.msra.mxu0 0.0
        %7151 = vmatprep.subr.mxu0 0.0
        %7152 = vmatpush1.msra.mxu0 0.0
        %7153 = vmatprep.subr.mxu0 0.0
        %7154 = vmatpush1.msra.mxu0 0.0
        %7155 = vmatprep.subr.mxu0 0.0
        %7156 = vmatpush1.msra.mxu0 0.0
        %7157 = vmatprep.subr.mxu0 0.0
        %7158 = vmatpush1.msra.mxu0 0.0
        %7159 = vmatprep.subr.mxu0 0.0
        %7160 = vmatpush1.msra.mxu0 0.0
        %7161 = vmatprep.subr.mxu0 0.0
        %7162 = vmatpush1.msra.mxu0 0.0
        %7163 = vmatprep.subr.mxu0 0.0
        %7164 = vmatpush1.msra.mxu0 0.0
        %7165 = vmatprep.subr.mxu0 0.0
        %7166 = vmatpush1.msra.mxu0 0.0
        %7167 = vmatprep.subr.mxu0 0.0
        %7168 = vmatpush1.msra.mxu0 0.0
        %7169 = vmatprep.subr.mxu0 0.0
        %7170 = vmatpush1.msra.mxu0 0.0
        %7171 = vmatprep.subr.mxu0 0.0
        %7172 = vmatpush1.msra.mxu0 0.0
        %7173 = vmatprep.subr.mxu0 0.0
        %7174 = vmatpush1.msra.mxu0 0.0
        %7175 = vmatprep.subr.mxu0 0.0
        %7176 = vmatpush1.msra.mxu0 0.0
        %7177 = vmatprep.subr.mxu0 0.0
        %7178 = vmatpush1.msra.mxu0 0.0
        %7179 = vmatprep.subr.mxu0 0.0
        %7180 = vmatpush1.msra.mxu0 0.0
        %7181 = vmatprep.subr.mxu0 0.0
        %7182 = vmatpush1.msra.mxu0 0.0
        %7183 = vmatprep.subr.mxu0 0.0
        %7184 = vmatpush1.msra.mxu0 0.0
        %7185 = vmatprep.subr.mxu0 0.0
        %7186 = vmatpush1.msra.mxu0 0.0
        %7187 = vmatprep.subr.mxu0 0.0
        %7188 = vmatpush1.msra.mxu0 0.0
        %7189 = vmatprep.subr.mxu0 0.0
        %7190 = vmatpush1.msra.mxu0 0.0
        %7191 = vmatprep.subr.mxu0 0.0
        %7192 = vmatpush1.msra.mxu0 0.0
        %7193 = vmatprep.subr.mxu0 0.0
        %7194 = vmatpush1.msra.mxu0 0.0
        %7195 = vmatprep.subr.mxu0 0.0
        %7196 = vmatpush1.msra.mxu0 0.0
        %7197 = vmatprep.subr.mxu0 0.0
        %7198 = vmatpush1.msra.mxu0 0.0
        %7199 = vmatprep.subr.mxu0 0.0
        %7200 = vmatpush1.msra.mxu0 0.0
        %7201 = vmatprep.subr.mxu0 0.0
        %7202 = vmatpush1.msra.mxu0 0.0
        %7203 = vmatprep.subr.mxu0 0.0
        %7204 = vmatpush1.msra.mxu0 0.0
        %7205 = vmatprep.subr.mxu0 0.0
        %7206 = vmatpush1.msra.mxu0 0.0
        %7207 = vmatprep.subr.mxu0 0.0
        %7208 = vmatpush1.msra.mxu0 0.0
        %7209 = vmatprep.mubr.f32.mxu0 0.0
        %7210 = vmatmul.mubr.f32.gmra.mrb[0].mxu0 %v7046
        %v7211 = vpop.f32.mrb[0].mxu0
        %v7212 = vadd.f32 0.0, %v7211
        %v7213 = vpop.f32.mrb[0].mxu0
        %v7214 = vadd.f32 0.0, %v7213
        %7215 = vmatprep.mubr.f32.mxu0 0.0
        %7216 = vmatmul.mubr.f32.gmra.mrb[0].mxu0 %v7049
        %v7217 = vpop.f32.mrb[0].mxu0
        %v7218 = vadd.f32 0.0, %v7217
        %v7219 = vpop.f32.mrb[0].mxu0
        %v7220 = vadd.f32 0.0, %v7219
        %7221 = vmatprep.mubr.f32.mxu0 0.0
        %7222 = vmatmul.mubr.f32.gmra.mrb[0].mxu0 %v7052
        %v7223 = vpop.f32.mrb[0].mxu0
        %v7224 = vadd.f32 0.0, %v7223
        %v7225 = vpop.f32.mrb[0].mxu0
        %v7226 = vadd.f32 0.0, %v7225
        %7227 = vdwg.mxu0
        %v7228 = vadd.f32 %v7002, %v7129
        %v7229 = vadd.f32 %v7003, %v7131
        %v7230 = vadd.f32 %v7004, %v7212
        %v7231 = vadd.f32 %v7005, %v7214
        %v7232 = vadd.f32 %v7006, %v7135
        %v7233 = vadd.f32 %v7007, %v7137
        %v7234 = vadd.f32 %v7008, %v7218
        %v7235 = vadd.f32 %v7009, %v7220
        %v7236 = vadd.f32 %v7010, %v7141
        %v7237 = vadd.f32 %v7011, %v7143
        %v7238 = vadd.f32 %v7012, %v7224
        %v7239 = vadd.f32 %v7013, %v7226
        %s7240 = scalar_lea.vmem %s3, 456
        %v7241 = vld [vmem:[%s7240] sm:$0xff]
        %v7242 = vld [vmem:[%s7240 + $0x8] sm:$0xff]
        %v7243 = vld [vmem:[%s7240 + $0x10] sm:$0xf]
        %7244 = vrot.lane.b32.xlu0 %v5165, 80
        %v7245 = vpop.permute.xlu0 %7244
        %7246 = vrot.lane.b32.xlu0 %v5166, 80
        %v7247 = vpop.permute.xlu0 %7246
        %7248 = vrot.lane.b32.xlu0 %v5167, 80
        %v7249 = vpop.permute.xlu0 %7248
        %7250 = vrot.lane.b32.xlu0 %v5168, 80
        %v7251 = vpop.permute.xlu0 %7250
        %7252 = vrot.lane.b32.xlu0 %v5170, 80
        %v7253 = vpop.permute.xlu0 %7252
        %7254 = vrot.lane.b32.xlu0 %v5171, 80
        %v7255 = vpop.permute.xlu0 %7254
        %7256 = vrot.lane.b32.xlu0 %v5172, 80
        %v7257 = vpop.permute.xlu0 %7256
        %7258 = vrot.lane.b32.xlu0 %v5173, 80
        %v7259 = vpop.permute.xlu0 %7258
        %vm7260 = vcmask 654336
        %v7261 = vsel %vm7260, %v7245, %v7247
        %v7262 = vsel %vm7260, %v7247, %v7249
        %v7263 = vsel %vm7260, %v7249, %v7251
        %v7264 = vsel %vm7260, %v7253, %v7255
        %v7265 = vsel %vm7260, %v7255, %v7257
        %v7266 = vsel %vm7260, %v7257, %v7259
        %v7272 = vsel %vm2988, %v7241, 0
        %v7275 = vsel %vm2988, %v7242, 0
        %v7278 = vsel %vm2988, %v7243, 0
        %v7280 = vsel %vm2998, %v7264, 0
        %v7282 = vsel %vm2998, %v7265, 0
        %v7284 = vsel %vm2998, %v7266, 0
        %v7286 = vsel %vm2998, %v7259, 0
        %7288 = vmatprep.subr.mxu0 %v7262
        %7289 = vmatpush1.msra.mxu0 %v7261
        %7290 = vmatprep.subr.mxu0 %v7282
        %7291 = vmatpush1.msra.mxu0 %v7280
        %7292 = vmatprep.subr.mxu0 0.0
        %7293 = vmatpush1.msra.mxu0 0.0
        %7294 = vmatprep.subr.mxu0 0.0
        %7295 = vmatpush1.msra.mxu0 0.0
        %7296 = vmatprep.subr.mxu0 0.0
        %7297 = vmatpush1.msra.mxu0 0.0
        %7298 = vmatprep.subr.mxu0 0.0
        %7299 = vmatpush1.msra.mxu0 0.0
        %7300 = vmatprep.subr.mxu0 0.0
        %7301 = vmatpush1.msra.mxu0 0.0
        %7302 = vmatprep.subr.mxu0 0.0
        %7303 = vmatpush1.msra.mxu0 0.0
        %7304 = vmatprep.subr.mxu0 0.0
        %7305 = vmatpush1.msra.mxu0 0.0
        %7306 = vmatprep.subr.mxu0 0.0
        %7307 = vmatpush1.msra.mxu0 0.0
        %7308 = vmatprep.subr.mxu0 0.0
        %7309 = vmatpush1.msra.mxu0 0.0
        %7310 = vmatprep.subr.mxu0 0.0
        %7311 = vmatpush1.msra.mxu0 0.0
        %7312 = vmatprep.subr.mxu0 0.0
        %7313 = vmatpush1.msra.mxu0 0.0
        %7314 = vmatprep.subr.mxu0 0.0
        %7315 = vmatpush1.msra.mxu0 0.0
        %7316 = vmatprep.subr.mxu0 0.0
        %7317 = vmatpush1.msra.mxu0 0.0
        %7318 = vmatprep.subr.mxu0 0.0
        %7319 = vmatpush1.msra.mxu0 0.0
        %7320 = vmatprep.subr.mxu0 0.0
        %7321 = vmatpush1.msra.mxu0 0.0
        %7322 = vmatprep.subr.mxu0 0.0
        %7323 = vmatpush1.msra.mxu0 0.0
        %7324 = vmatprep.subr.mxu0 0.0
        %7325 = vmatpush1.msra.mxu0 0.0
        %7326 = vmatprep.subr.mxu0 0.0
        %7327 = vmatpush1.msra.mxu0 0.0
        %7328 = vmatprep.subr.mxu0 0.0
        %7329 = vmatpush1.msra.mxu0 0.0
        %7330 = vmatprep.subr.mxu0 0.0
        %7331 = vmatpush1.msra.mxu0 0.0
        %7332 = vmatprep.subr.mxu0 0.0
        %7333 = vmatpush1.msra.mxu0 0.0
        %7334 = vmatprep.subr.mxu0 0.0
        %7335 = vmatpush1.msra.mxu0 0.0
        %7336 = vmatprep.subr.mxu0 0.0
        %7337 = vmatpush1.msra.mxu0 0.0
        %7338 = vmatprep.subr.mxu0 0.0
        %7339 = vmatpush1.msra.mxu0 0.0
        %7340 = vmatprep.subr.mxu0 0.0
        %7341 = vmatpush1.msra.mxu0 0.0
        %7342 = vmatprep.subr.mxu0 0.0
        %7343 = vmatpush1.msra.mxu0 0.0
        %7344 = vmatprep.subr.mxu0 0.0
        %7345 = vmatpush1.msra.mxu0 0.0
        %7346 = vmatprep.subr.mxu0 0.0
        %7347 = vmatpush1.msra.mxu0 0.0
        %7348 = vmatprep.subr.mxu0 0.0
        %7349 = vmatpush1.msra.mxu0 0.0
        %7350 = vmatprep.subr.mxu0 0.0
        %7351 = vmatpush1.msra.mxu0 0.0
        %7352 = vmatprep.mubr.f32.mxu0 0.0
        %7353 = vmatmul.mubr.f32.gmra.mrb[0].mxu0 %v7272
        %v7354 = vpop.f32.mrb[0].mxu0
        %v7355 = vadd.f32 0.0, %v7354
        %v7356 = vpop.f32.mrb[0].mxu0
        %v7357 = vadd.f32 0.0, %v7356
        %7358 = vmatprep.mubr.f32.mxu0 0.0
        %7359 = vmatmul.mubr.f32.gmra.mrb[0].mxu0 %v7275
        %v7360 = vpop.f32.mrb[0].mxu0
        %v7361 = vadd.f32 0.0, %v7360
        %v7362 = vpop.f32.mrb[0].mxu0
        %v7363 = vadd.f32 0.0, %v7362
        %7364 = vmatprep.mubr.f32.mxu0 0.0
        %7365 = vmatmul.mubr.f32.gmra.mrb[0].mxu0 %v7278
        %v7366 = vpop.f32.mrb[0].mxu0
        %v7367 = vadd.f32 0.0, %v7366
        %v7368 = vpop.f32.mrb[0].mxu0
        %v7369 = vadd.f32 0.0, %v7368
        %7370 = vdwg.mxu0
        %7371 = vmatprep.subr.mxu0 %v7251
        %7372 = vmatpush1.msra.mxu0 %v7263
        %7373 = vmatprep.subr.mxu0 %v7286
        %7374 = vmatpush1.msra.mxu0 %v7284
        %7375 = vmatprep.subr.mxu0 0.0
        %7376 = vmatpush1.msra.mxu0 0.0
        %7377 = vmatprep.subr.mxu0 0.0
        %7378 = vmatpush1.msra.mxu0 0.0
        %7379 = vmatprep.subr.mxu0 0.0
        %7380 = vmatpush1.msra.mxu0 0.0
        %7381 = vmatprep.subr.mxu0 0.0
        %7382 = vmatpush1.msra.mxu0 0.0
        %7383 = vmatprep.subr.mxu0 0.0
        %7384 = vmatpush1.msra.mxu0 0.0
        %7385 = vmatprep.subr.mxu0 0.0
        %7386 = vmatpush1.msra.mxu0 0.0
        %7387 = vmatprep.subr.mxu0 0.0
        %7388 = vmatpush1.msra.mxu0 0.0
        %7389 = vmatprep.subr.mxu0 0.0
        %7390 = vmatpush1.msra.mxu0 0.0
        %7391 = vmatprep.subr.mxu0 0.0
        %7392 = vmatpush1.msra.mxu0 0.0
        %7393 = vmatprep.subr.mxu0 0.0
        %7394 = vmatpush1.msra.mxu0 0.0
        %7395 = vmatprep.subr.mxu0 0.0
        %7396 = vmatpush1.msra.mxu0 0.0
        %7397 = vmatprep.subr.mxu0 0.0
        %7398 = vmatpush1.msra.mxu0 0.0
        %7399 = vmatprep.subr.mxu0 0.0
        %7400 = vmatpush1.msra.mxu0 0.0
        %7401 = vmatprep.subr.mxu0 0.0
        %7402 = vmatpush1.msra.mxu0 0.0
        %7403 = vmatprep.subr.mxu0 0.0
        %7404 = vmatpush1.msra.mxu0 0.0
        %7405 = vmatprep.subr.mxu0 0.0
        %7406 = vmatpush1.msra.mxu0 0.0
        %7407 = vmatprep.subr.mxu0 0.0
        %7408 = vmatpush1.msra.mxu0 0.0
        %7409 = vmatprep.subr.mxu0 0.0
        %7410 = vmatpush1.msra.mxu0 0.0
        %7411 = vmatprep.subr.mxu0 0.0
        %7412 = vmatpush1.msra.mxu0 0.0
        %7413 = vmatprep.subr.mxu0 0.0
        %7414 = vmatpush1.msra.mxu0 0.0
        %7415 = vmatprep.subr.mxu0 0.0
        %7416 = vmatpush1.msra.mxu0 0.0
        %7417 = vmatprep.subr.mxu0 0.0
        %7418 = vmatpush1.msra.mxu0 0.0
        %7419 = vmatprep.subr.mxu0 0.0
        %7420 = vmatpush1.msra.mxu0 0.0
        %7421 = vmatprep.subr.mxu0 0.0
        %7422 = vmatpush1.msra.mxu0 0.0
        %7423 = vmatprep.subr.mxu0 0.0
        %7424 = vmatpush1.msra.mxu0 0.0
        %7425 = vmatprep.subr.mxu0 0.0
        %7426 = vmatpush1.msra.mxu0 0.0
        %7427 = vmatprep.subr.mxu0 0.0
        %7428 = vmatpush1.msra.mxu0 0.0
        %7429 = vmatprep.subr.mxu0 0.0
        %7430 = vmatpush1.msra.mxu0 0.0
        %7431 = vmatprep.subr.mxu0 0.0
        %7432 = vmatpush1.msra.mxu0 0.0
        %7433 = vmatprep.subr.mxu0 0.0
        %7434 = vmatpush1.msra.mxu0 0.0
        %7435 = vmatprep.mubr.f32.mxu0 0.0
        %7436 = vmatmul.mubr.f32.gmra.mrb[0].mxu0 %v7272
        %v7437 = vpop.f32.mrb[0].mxu0
        %v7438 = vadd.f32 0.0, %v7437
        %v7439 = vpop.f32.mrb[0].mxu0
        %v7440 = vadd.f32 0.0, %v7439
        %7441 = vmatprep.mubr.f32.mxu0 0.0
        %7442 = vmatmul.mubr.f32.gmra.mrb[0].mxu0 %v7275
        %v7443 = vpop.f32.mrb[0].mxu0
        %v7444 = vadd.f32 0.0, %v7443
        %v7445 = vpop.f32.mrb[0].mxu0
        %v7446 = vadd.f32 0.0, %v7445
        %7447 = vmatprep.mubr.f32.mxu0 0.0
        %7448 = vmatmul.mubr.f32.gmra.mrb[0].mxu0 %v7278
        %v7449 = vpop.f32.mrb[0].mxu0
        %v7450 = vadd.f32 0.0, %v7449
        %v7451 = vpop.f32.mrb[0].mxu0
        %v7452 = vadd.f32 0.0, %v7451
        %7453 = vdwg.mxu0
        %v7454 = vadd.f32 %v7228, %v7355
        %v7455 = vadd.f32 %v7229, %v7357
        %v7456 = vadd.f32 %v7230, %v7438
        %v7457 = vadd.f32 %v7231, %v7440
        %v7458 = vadd.f32 %v7232, %v7361
        %v7459 = vadd.f32 %v7233, %v7363
        %v7460 = vadd.f32 %v7234, %v7444
        %v7461 = vadd.f32 %v7235, %v7446
        %v7462 = vadd.f32 %v7236, %v7367
        %v7463 = vadd.f32 %v7237, %v7369
        %v7464 = vadd.f32 %v7238, %v7450
        %v7465 = vadd.f32 %v7239, %v7452
        %s7466 = scalar_lea.vmem %s3, 480
        %v7467 = vld [vmem:[%s7466] sm:$0xff]
        %v7468 = vld [vmem:[%s7466 + $0x8] sm:$0xff]
        %v7469 = vld [vmem:[%s7466 + $0x10] sm:$0xf]
        %7470 = vrot.lane.b32.xlu0 %v5165, 32
        %v7471 = vpop.permute.xlu0 %7470
        %7472 = vrot.lane.b32.xlu0 %v5166, 32
        %v7473 = vpop.permute.xlu0 %7472
        %7474 = vrot.lane.b32.xlu0 %v5167, 32
        %v7475 = vpop.permute.xlu0 %7474
        %7476 = vrot.lane.b32.xlu0 %v5168, 32
        %v7477 = vpop.permute.xlu0 %7476
        %7478 = vrot.lane.b32.xlu0 %v5170, 32
        %v7479 = vpop.permute.xlu0 %7478
        %7480 = vrot.lane.b32.xlu0 %v5171, 32
        %v7481 = vpop.permute.xlu0 %7480
        %7482 = vrot.lane.b32.xlu0 %v5172, 32
        %v7483 = vpop.permute.xlu0 %7482
        %7484 = vrot.lane.b32.xlu0 %v5173, 32
        %v7485 = vpop.permute.xlu0 %7484
        %vm7486 = vcmask 261120
        %v7487 = vsel %vm7486, %v7471, %v7473
        %v7488 = vsel %vm7486, %v7473, %v7475
        %v7489 = vsel %vm7486, %v7475, %v7477
        %v7490 = vsel %vm7486, %v7479, %v7481
        %v7491 = vsel %vm7486, %v7481, %v7483
        %v7492 = vsel %vm7486, %v7483, %v7485
        %v7498 = vsel %vm2988, %v7467, 0
        %v7501 = vsel %vm2988, %v7468, 0
        %v7504 = vsel %vm2988, %v7469, 0
        %v7506 = vsel %vm2998, %v7490, 0
        %v7508 = vsel %vm2998, %v7491, 0
        %v7510 = vsel %vm2998, %v7492, 0
        %v7512 = vsel %vm2998, %v7485, 0
        %7514 = vmatprep.subr.mxu0 %v7488
        %7515 = vmatpush1.msra.mxu0 %v7487
        %7516 = vmatprep.subr.mxu0 %v7508
        %7517 = vmatpush1.msra.mxu0 %v7506
        %7518 = vmatprep.subr.mxu0 0.0
        %7519 = vmatpush1.msra.mxu0 0.0
        %7520 = vmatprep.subr.mxu0 0.0
        %7521 = vmatpush1.msra.mxu0 0.0
        %7522 = vmatprep.subr.mxu0 0.0
        %7523 = vmatpush1.msra.mxu0 0.0
        %7524 = vmatprep.subr.mxu0 0.0
        %7525 = vmatpush1.msra.mxu0 0.0
        %7526 = vmatprep.subr.mxu0 0.0
        %7527 = vmatpush1.msra.mxu0 0.0
        %7528 = vmatprep.subr.mxu0 0.0
        %7529 = vmatpush1.msra.mxu0 0.0
        %7530 = vmatprep.subr.mxu0 0.0
        %7531 = vmatpush1.msra.mxu0 0.0
        %7532 = vmatprep.subr.mxu0 0.0
        %7533 = vmatpush1.msra.mxu0 0.0
        %7534 = vmatprep.subr.mxu0 0.0
        %7535 = vmatpush1.msra.mxu0 0.0
        %7536 = vmatprep.subr.mxu0 0.0
        %7537 = vmatpush1.msra.mxu0 0.0
        %7538 = vmatprep.subr.mxu0 0.0
        %7539 = vmatpush1.msra.mxu0 0.0
        %7540 = vmatprep.subr.mxu0 0.0
        %7541 = vmatpush1.msra.mxu0 0.0
        %7542 = vmatprep.subr.mxu0 0.0
        %7543 = vmatpush1.msra.mxu0 0.0
        %7544 = vmatprep.subr.mxu0 0.0
        %7545 = vmatpush1.msra.mxu0 0.0
        %7546 = vmatprep.subr.mxu0 0.0
        %7547 = vmatpush1.msra.mxu0 0.0
        %7548 = vmatprep.subr.mxu0 0.0
        %7549 = vmatpush1.msra.mxu0 0.0
        %7550 = vmatprep.subr.mxu0 0.0
        %7551 = vmatpush1.msra.mxu0 0.0
        %7552 = vmatprep.subr.mxu0 0.0
        %7553 = vmatpush1.msra.mxu0 0.0
        %7554 = vmatprep.subr.mxu0 0.0
        %7555 = vmatpush1.msra.mxu0 0.0
        %7556 = vmatprep.subr.mxu0 0.0
        %7557 = vmatpush1.msra.mxu0 0.0
        %7558 = vmatprep.subr.mxu0 0.0
        %7559 = vmatpush1.msra.mxu0 0.0
        %7560 = vmatprep.subr.mxu0 0.0
        %7561 = vmatpush1.msra.mxu0 0.0
        %7562 = vmatprep.subr.mxu0 0.0
        %7563 = vmatpush1.msra.mxu0 0.0
        %7564 = vmatprep.subr.mxu0 0.0
        %7565 = vmatpush1.msra.mxu0 0.0
        %7566 = vmatprep.subr.mxu0 0.0
        %7567 = vmatpush1.msra.mxu0 0.0
        %7568 = vmatprep.subr.mxu0 0.0
        %7569 = vmatpush1.msra.mxu0 0.0
        %7570 = vmatprep.subr.mxu0 0.0
        %7571 = vmatpush1.msra.mxu0 0.0
        %7572 = vmatprep.subr.mxu0 0.0
        %7573 = vmatpush1.msra.mxu0 0.0
        %7574 = vmatprep.subr.mxu0 0.0
        %7575 = vmatpush1.msra.mxu0 0.0
        %7576 = vmatprep.subr.mxu0 0.0
        %7577 = vmatpush1.msra.mxu0 0.0
        %7578 = vmatprep.mubr.f32.mxu0 0.0
        %7579 = vmatmul.mubr.f32.gmra.mrb[0].mxu0 %v7498
        %v7580 = vpop.f32.mrb[0].mxu0
        %v7581 = vadd.f32 0.0, %v7580
        %v7582 = vpop.f32.mrb[0].mxu0
        %v7583 = vadd.f32 0.0, %v7582
        %7584 = vmatprep.mubr.f32.mxu0 0.0
        %7585 = vmatmul.mubr.f32.gmra.mrb[0].mxu0 %v7501
        %v7586 = vpop.f32.mrb[0].mxu0
        %v7587 = vadd.f32 0.0, %v7586
        %v7588 = vpop.f32.mrb[0].mxu0
        %v7589 = vadd.f32 0.0, %v7588
        %7590 = vmatprep.mubr.f32.mxu0 0.0
        %7591 = vmatmul.mubr.f32.gmra.mrb[0].mxu0 %v7504
        %v7592 = vpop.f32.mrb[0].mxu0
        %v7593 = vadd.f32 0.0, %v7592
        %v7594 = vpop.f32.mrb[0].mxu0
        %v7595 = vadd.f32 0.0, %v7594
        %7596 = vdwg.mxu0
        %7597 = vmatprep.subr.mxu0 %v7477
        %7598 = vmatpush1.msra.mxu0 %v7489
        %7599 = vmatprep.subr.mxu0 %v7512
        %7600 = vmatpush1.msra.mxu0 %v7510
        %7601 = vmatprep.subr.mxu0 0.0
        %7602 = vmatpush1.msra.mxu0 0.0
        %7603 = vmatprep.subr.mxu0 0.0
        %7604 = vmatpush1.msra.mxu0 0.0
        %7605 = vmatprep.subr.mxu0 0.0
        %7606 = vmatpush1.msra.mxu0 0.0
        %7607 = vmatprep.subr.mxu0 0.0
        %7608 = vmatpush1.msra.mxu0 0.0
        %7609 = vmatprep.subr.mxu0 0.0
        %7610 = vmatpush1.msra.mxu0 0.0
        %7611 = vmatprep.subr.mxu0 0.0
        %7612 = vmatpush1.msra.mxu0 0.0
        %7613 = vmatprep.subr.mxu0 0.0
        %7614 = vmatpush1.msra.mxu0 0.0
        %7615 = vmatprep.subr.mxu0 0.0
        %7616 = vmatpush1.msra.mxu0 0.0
        %7617 = vmatprep.subr.mxu0 0.0
        %7618 = vmatpush1.msra.mxu0 0.0
        %7619 = vmatprep.subr.mxu0 0.0
        %7620 = vmatpush1.msra.mxu0 0.0
        %7621 = vmatprep.subr.mxu0 0.0
        %7622 = vmatpush1.msra.mxu0 0.0
        %7623 = vmatprep.subr.mxu0 0.0
        %7624 = vmatpush1.msra.mxu0 0.0
        %7625 = vmatprep.subr.mxu0 0.0
        %7626 = vmatpush1.msra.mxu0 0.0
        %7627 = vmatprep.subr.mxu0 0.0
        %7628 = vmatpush1.msra.mxu0 0.0
        %7629 = vmatprep.subr.mxu0 0.0
        %7630 = vmatpush1.msra.mxu0 0.0
        %7631 = vmatprep.subr.mxu0 0.0
        %7632 = vmatpush1.msra.mxu0 0.0
        %7633 = vmatprep.subr.mxu0 0.0
        %7634 = vmatpush1.msra.mxu0 0.0
        %7635 = vmatprep.subr.mxu0 0.0
        %7636 = vmatpush1.msra.mxu0 0.0
        %7637 = vmatprep.subr.mxu0 0.0
        %7638 = vmatpush1.msra.mxu0 0.0
        %7639 = vmatprep.subr.mxu0 0.0
        %7640 = vmatpush1.msra.mxu0 0.0
        %7641 = vmatprep.subr.mxu0 0.0
        %7642 = vmatpush1.msra.mxu0 0.0
        %7643 = vmatprep.subr.mxu0 0.0
        %7644 = vmatpush1.msra.mxu0 0.0
        %7645 = vmatprep.subr.mxu0 0.0
        %7646 = vmatpush1.msra.mxu0 0.0
        %7647 = vmatprep.subr.mxu0 0.0
        %7648 = vmatpush1.msra.mxu0 0.0
        %7649 = vmatprep.subr.mxu0 0.0
        %7650 = vmatpush1.msra.mxu0 0.0
        %7651 = vmatprep.subr.mxu0 0.0
        %7652 = vmatpush1.msra.mxu0 0.0
        %7653 = vmatprep.subr.mxu0 0.0
        %7654 = vmatpush1.msra.mxu0 0.0
        %7655 = vmatprep.subr.mxu0 0.0
        %7656 = vmatpush1.msra.mxu0 0.0
        %7657 = vmatprep.subr.mxu0 0.0
        %7658 = vmatpush1.msra.mxu0 0.0
        %7659 = vmatprep.subr.mxu0 0.0
        %7660 = vmatpush1.msra.mxu0 0.0
        %7661 = vmatprep.mubr.f32.mxu0 0.0
        %7662 = vmatmul.mubr.f32.gmra.mrb[0].mxu0 %v7498
        %v7663 = vpop.f32.mrb[0].mxu0
        %v7664 = vadd.f32 0.0, %v7663
        %v7665 = vpop.f32.mrb[0].mxu0
        %v7666 = vadd.f32 0.0, %v7665
        %7667 = vmatprep.mubr.f32.mxu0 0.0
        %7668 = vmatmul.mubr.f32.gmra.mrb[0].mxu0 %v7501
        %v7669 = vpop.f32.mrb[0].mxu0
        %v7670 = vadd.f32 0.0, %v7669
        %v7671 = vpop.f32.mrb[0].mxu0
        %v7672 = vadd.f32 0.0, %v7671
        %7673 = vmatprep.mubr.f32.mxu0 0.0
        %7674 = vmatmul.mubr.f32.gmra.mrb[0].mxu0 %v7504
        %v7675 = vpop.f32.mrb[0].mxu0
        %v7676 = vadd.f32 0.0, %v7675
        %v7677 = vpop.f32.mrb[0].mxu0
        %v7678 = vadd.f32 0.0, %v7677
        %7679 = vdwg.mxu0
        %v7680 = vadd.f32 %v7454, %v7581
        %v7681 = vadd.f32 %v7455, %v7583
        %v7682 = vadd.f32 %v7456, %v7664
        %v7683 = vadd.f32 %v7457, %v7666
        %v7684 = vadd.f32 %v7458, %v7587
        %v7685 = vadd.f32 %v7459, %v7589
        %v7686 = vadd.f32 %v7460, %v7670
        %v7687 = vadd.f32 %v7461, %v7672
        %v7688 = vadd.f32 %v7462, %v7593
        %v7689 = vadd.f32 %v7463, %v7595
        %v7690 = vadd.f32 %v7464, %v7676
        %v7691 = vadd.f32 %v7465, %v7678
        %s7692 = scalar_lea.vmem %s3, 504
        %v7693 = vld [vmem:[%s7692] sm:$0xff]
        %v7694 = vld [vmem:[%s7692 + $0x8] sm:$0xff]
        %v7695 = vld [vmem:[%s7692 + $0x10] sm:$0xf]
        %7696 = vrot.lane.b32.xlu0 %v5165, 30
        %v7697 = vpop.permute.xlu0 %7696
        %7698 = vrot.lane.b32.xlu0 %v5166, 30
        %v7699 = vpop.permute.xlu0 %7698
        %7700 = vrot.lane.b32.xlu0 %v5167, 30
        %v7701 = vpop.permute.xlu0 %7700
        %7702 = vrot.lane.b32.xlu0 %v5168, 30
        %v7703 = vpop.permute.xlu0 %7702
        %7704 = vrot.lane.b32.xlu0 %v5170, 30
        %v7705 = vpop.permute.xlu0 %7704
        %7706 = vrot.lane.b32.xlu0 %v5171, 30
        %v7707 = vpop.permute.xlu0 %7706
        %7708 = vrot.lane.b32.xlu0 %v5172, 30
        %v7709 = vpop.permute.xlu0 %7708
        %7710 = vrot.lane.b32.xlu0 %v5173, 30
        %v7711 = vpop.permute.xlu0 %7710
        %vm7712 = vcmask 244736
        %v7713 = vsel %vm7712, %v7697, %v7699
        %v7714 = vsel %vm7712, %v7699, %v7701
        %v7715 = vsel %vm7712, %v7701, %v7703
        %v7716 = vsel %vm7712, %v7705, %v7707
        %v7717 = vsel %vm7712, %v7707, %v7709
        %v7718 = vsel %vm7712, %v7709, %v7711
        %v7724 = vsel %vm2988, %v7693, 0
        %v7727 = vsel %vm2988, %v7694, 0
        %v7730 = vsel %vm2988, %v7695, 0
        %v7732 = vsel %vm2998, %v7716, 0
        %v7734 = vsel %vm2998, %v7717, 0
        %v7736 = vsel %vm2998, %v7718, 0
        %v7738 = vsel %vm2998, %v7711, 0
        %7740 = vmatprep.subr.mxu0 %v7714
        %7741 = vmatpush1.msra.mxu0 %v7713
        %7742 = vmatprep.subr.mxu0 %v7734
        %7743 = vmatpush1.msra.mxu0 %v7732
        %7744 = vmatprep.subr.mxu0 0.0
        %7745 = vmatpush1.msra.mxu0 0.0
        %7746 = vmatprep.subr.mxu0 0.0
        %7747 = vmatpush1.msra.mxu0 0.0
        %7748 = vmatprep.subr.mxu0 0.0
        %7749 = vmatpush1.msra.mxu0 0.0
        %7750 = vmatprep.subr.mxu0 0.0
        %7751 = vmatpush1.msra.mxu0 0.0
        %7752 = vmatprep.subr.mxu0 0.0
        %7753 = vmatpush1.msra.mxu0 0.0
        %7754 = vmatprep.subr.mxu0 0.0
        %7755 = vmatpush1.msra.mxu0 0.0
        %7756 = vmatprep.subr.mxu0 0.0
        %7757 = vmatpush1.msra.mxu0 0.0
        %7758 = vmatprep.subr.mxu0 0.0
        %7759 = vmatpush1.msra.mxu0 0.0
        %7760 = vmatprep.subr.mxu0 0.0
        %7761 = vmatpush1.msra.mxu0 0.0
        %7762 = vmatprep.subr.mxu0 0.0
        %7763 = vmatpush1.msra.mxu0 0.0
        %7764 = vmatprep.subr.mxu0 0.0
        %7765 = vmatpush1.msra.mxu0 0.0
        %7766 = vmatprep.subr.mxu0 0.0
        %7767 = vmatpush1.msra.mxu0 0.0
        %7768 = vmatprep.subr.mxu0 0.0
        %7769 = vmatpush1.msra.mxu0 0.0
        %7770 = vmatprep.subr.mxu0 0.0
        %7771 = vmatpush1.msra.mxu0 0.0
        %7772 = vmatprep.subr.mxu0 0.0
        %7773 = vmatpush1.msra.mxu0 0.0
        %7774 = vmatprep.subr.mxu0 0.0
        %7775 = vmatpush1.msra.mxu0 0.0
        %7776 = vmatprep.subr.mxu0 0.0
        %7777 = vmatpush1.msra.mxu0 0.0
        %7778 = vmatprep.subr.mxu0 0.0
        %7779 = vmatpush1.msra.mxu0 0.0
        %7780 = vmatprep.subr.mxu0 0.0
        %7781 = vmatpush1.msra.mxu0 0.0
        %7782 = vmatprep.subr.mxu0 0.0
        %7783 = vmatpush1.msra.mxu0 0.0
        %7784 = vmatprep.subr.mxu0 0.0
        %7785 = vmatpush1.msra.mxu0 0.0
        %7786 = vmatprep.subr.mxu0 0.0
        %7787 = vmatpush1.msra.mxu0 0.0
        %7788 = vmatprep.subr.mxu0 0.0
        %7789 = vmatpush1.msra.mxu0 0.0
        %7790 = vmatprep.subr.mxu0 0.0
        %7791 = vmatpush1.msra.mxu0 0.0
        %7792 = vmatprep.subr.mxu0 0.0
        %7793 = vmatpush1.msra.mxu0 0.0
        %7794 = vmatprep.subr.mxu0 0.0
        %7795 = vmatpush1.msra.mxu0 0.0
        %7796 = vmatprep.subr.mxu0 0.0
        %7797 = vmatpush1.msra.mxu0 0.0
        %7798 = vmatprep.subr.mxu0 0.0
        %7799 = vmatpush1.msra.mxu0 0.0
        %7800 = vmatprep.subr.mxu0 0.0
        %7801 = vmatpush1.msra.mxu0 0.0
        %7802 = vmatprep.subr.mxu0 0.0
        %7803 = vmatpush1.msra.mxu0 0.0
        %7804 = vmatprep.mubr.f32.mxu0 0.0
        %7805 = vmatmul.mubr.f32.gmra.mrb[0].mxu0 %v7724
        %v7806 = vpop.f32.mrb[0].mxu0
        %v7807 = vadd.f32 0.0, %v7806
        %v7808 = vpop.f32.mrb[0].mxu0
        %v7809 = vadd.f32 0.0, %v7808
        %7810 = vmatprep.mubr.f32.mxu0 0.0
        %7811 = vmatmul.mubr.f32.gmra.mrb[0].mxu0 %v7727
        %v7812 = vpop.f32.mrb[0].mxu0
        %v7813 = vadd.f32 0.0, %v7812
        %v7814 = vpop.f32.mrb[0].mxu0
        %v7815 = vadd.f32 0.0, %v7814
        %7816 = vmatprep.mubr.f32.mxu0 0.0
        %7817 = vmatmul.mubr.f32.gmra.mrb[0].mxu0 %v7730
        %v7818 = vpop.f32.mrb[0].mxu0
        %v7819 = vadd.f32 0.0, %v7818
        %v7820 = vpop.f32.mrb[0].mxu0
        %v7821 = vadd.f32 0.0, %v7820
        %7822 = vdwg.mxu0
        %7823 = vmatprep.subr.mxu0 %v7703
        %7824 = vmatpush1.msra.mxu0 %v7715
        %7825 = vmatprep.subr.mxu0 %v7738
        %7826 = vmatpush1.msra.mxu0 %v7736
        %7827 = vmatprep.subr.mxu0 0.0
        %7828 = vmatpush1.msra.mxu0 0.0
        %7829 = vmatprep.subr.mxu0 0.0
        %7830 = vmatpush1.msra.mxu0 0.0
        %7831 = vmatprep.subr.mxu0 0.0
        %7832 = vmatpush1.msra.mxu0 0.0
        %7833 = vmatprep.subr.mxu0 0.0
        %7834 = vmatpush1.msra.mxu0 0.0
        %7835 = vmatprep.subr.mxu0 0.0
        %7836 = vmatpush1.msra.mxu0 0.0
        %7837 = vmatprep.subr.mxu0 0.0
        %7838 = vmatpush1.msra.mxu0 0.0
        %7839 = vmatprep.subr.mxu0 0.0
        %7840 = vmatpush1.msra.mxu0 0.0
        %7841 = vmatprep.subr.mxu0 0.0
        %7842 = vmatpush1.msra.mxu0 0.0
        %7843 = vmatprep.subr.mxu0 0.0
        %7844 = vmatpush1.msra.mxu0 0.0
        %7845 = vmatprep.subr.mxu0 0.0
        %7846 = vmatpush1.msra.mxu0 0.0
        %7847 = vmatprep.subr.mxu0 0.0
        %7848 = vmatpush1.msra.mxu0 0.0
        %7849 = vmatprep.subr.mxu0 0.0
        %7850 = vmatpush1.msra.mxu0 0.0
        %7851 = vmatprep.subr.mxu0 0.0
        %7852 = vmatpush1.msra.mxu0 0.0
        %7853 = vmatprep.subr.mxu0 0.0
        %7854 = vmatpush1.msra.mxu0 0.0
        %7855 = vmatprep.subr.mxu0 0.0
        %7856 = vmatpush1.msra.mxu0 0.0
        %7857 = vmatprep.subr.mxu0 0.0
        %7858 = vmatpush1.msra.mxu0 0.0
        %7859 = vmatprep.subr.mxu0 0.0
        %7860 = vmatpush1.msra.mxu0 0.0
        %7861 = vmatprep.subr.mxu0 0.0
        %7862 = vmatpush1.msra.mxu0 0.0
        %7863 = vmatprep.subr.mxu0 0.0
        %7864 = vmatpush1.msra.mxu0 0.0
        %7865 = vmatprep.subr.mxu0 0.0
        %7866 = vmatpush1.msra.mxu0 0.0
        %7867 = vmatprep.subr.mxu0 0.0
        %7868 = vmatpush1.msra.mxu0 0.0
        %7869 = vmatprep.subr.mxu0 0.0
        %7870 = vmatpush1.msra.mxu0 0.0
        %7871 = vmatprep.subr.mxu0 0.0
        %7872 = vmatpush1.msra.mxu0 0.0
        %7873 = vmatprep.subr.mxu0 0.0
        %7874 = vmatpush1.msra.mxu0 0.0
        %7875 = vmatprep.subr.mxu0 0.0
        %7876 = vmatpush1.msra.mxu0 0.0
        %7877 = vmatprep.subr.mxu0 0.0
        %7878 = vmatpush1.msra.mxu0 0.0
        %7879 = vmatprep.subr.mxu0 0.0
        %7880 = vmatpush1.msra.mxu0 0.0
        %7881 = vmatprep.subr.mxu0 0.0
        %7882 = vmatpush1.msra.mxu0 0.0
        %7883 = vmatprep.subr.mxu0 0.0
        %7884 = vmatpush1.msra.mxu0 0.0
        %7885 = vmatprep.subr.mxu0 0.0
        %7886 = vmatpush1.msra.mxu0 0.0
        %7887 = vmatprep.mubr.f32.mxu0 0.0
        %7888 = vmatmul.mubr.f32.gmra.mrb[0].mxu0 %v7724
        %v7889 = vpop.f32.mrb[0].mxu0
        %v7890 = vadd.f32 0.0, %v7889
        %v7891 = vpop.f32.mrb[0].mxu0
        %v7892 = vadd.f32 0.0, %v7891
        %7893 = vmatprep.mubr.f32.mxu0 0.0
        %7894 = vmatmul.mubr.f32.gmra.mrb[0].mxu0 %v7727
        %v7895 = vpop.f32.mrb[0].mxu0
        %v7896 = vadd.f32 0.0, %v7895
        %v7897 = vpop.f32.mrb[0].mxu0
        %v7898 = vadd.f32 0.0, %v7897
        %7899 = vmatprep.mubr.f32.mxu0 0.0
        %7900 = vmatmul.mubr.f32.gmra.mrb[0].mxu0 %v7730
        %v7901 = vpop.f32.mrb[0].mxu0
        %v7902 = vadd.f32 0.0, %v7901
        %v7903 = vpop.f32.mrb[0].mxu0
        %v7904 = vadd.f32 0.0, %v7903
        %7905 = vdwg.mxu0
        %v7906 = vadd.f32 %v7680, %v7807
        %v7907 = vadd.f32 %v7681, %v7809
        %v7908 = vadd.f32 %v7682, %v7890
        %v7909 = vadd.f32 %v7683, %v7892
        %v7910 = vadd.f32 %v7684, %v7813
        %v7911 = vadd.f32 %v7685, %v7815
        %v7912 = vadd.f32 %v7686, %v7896
        %v7913 = vadd.f32 %v7687, %v7898
        %v7914 = vadd.f32 %v7688, %v7819
        %v7915 = vadd.f32 %v7689, %v7821
        %v7916 = vadd.f32 %v7690, %v7902
        %v7917 = vadd.f32 %v7691, %v7904
        %s7918 = scalar_lea.vmem %s3, 528
        %v7919 = vld [vmem:[%s7918] sm:$0xff]
        %v7920 = vld [vmem:[%s7918 + $0x8] sm:$0xff]
        %v7921 = vld [vmem:[%s7918 + $0x10] sm:$0xf]
        %7922 = vrot.lane.b32.xlu0 %v5165, 28
        %v7923 = vpop.permute.xlu0 %7922
        %7924 = vrot.lane.b32.xlu0 %v5166, 28
        %v7925 = vpop.permute.xlu0 %7924
        %7926 = vrot.lane.b32.xlu0 %v5167, 28
        %v7927 = vpop.permute.xlu0 %7926
        %7928 = vrot.lane.b32.xlu0 %v5168, 28
        %v7929 = vpop.permute.xlu0 %7928
        %7930 = vrot.lane.b32.xlu0 %v5170, 28
        %v7931 = vpop.permute.xlu0 %7930
        %7932 = vrot.lane.b32.xlu0 %v5171, 28
        %v7933 = vpop.permute.xlu0 %7932
        %7934 = vrot.lane.b32.xlu0 %v5172, 28
        %v7935 = vpop.permute.xlu0 %7934
        %7936 = vrot.lane.b32.xlu0 %v5173, 28
        %v7937 = vpop.permute.xlu0 %7936
        %v7938 = vsel %vm2735, %v7923, %v7925
        %v7939 = vsel %vm2735, %v7925, %v7927
        %v7940 = vsel %vm2735, %v7927, %v7929
        %v7941 = vsel %vm2735, %v7931, %v7933
        %v7942 = vsel %vm2735, %v7933, %v7935
        %v7943 = vsel %vm2735, %v7935, %v7937
        %v7949 = vsel %vm2988, %v7919, 0
        %v7952 = vsel %vm2988, %v7920, 0
        %v7955 = vsel %vm2988, %v7921, 0
        %v7957 = vsel %vm2998, %v7941, 0
        %v7959 = vsel %vm2998, %v7942, 0
        %v7961 = vsel %vm2998, %v7943, 0
        %v7963 = vsel %vm2998, %v7937, 0
        %7965 = vmatprep.subr.mxu0 %v7939
        %7966 = vmatpush1.msra.mxu0 %v7938
        %7967 = vmatprep.subr.mxu0 %v7959
        %7968 = vmatpush1.msra.mxu0 %v7957
        %7969 = vmatprep.subr.mxu0 0.0
        %7970 = vmatpush1.msra.mxu0 0.0
        %7971 = vmatprep.subr.mxu0 0.0
        %7972 = vmatpush1.msra.mxu0 0.0
        %7973 = vmatprep.subr.mxu0 0.0
        %7974 = vmatpush1.msra.mxu0 0.0
        %7975 = vmatprep.subr.mxu0 0.0
        %7976 = vmatpush1.msra.mxu0 0.0
        %7977 = vmatprep.subr.mxu0 0.0
        %7978 = vmatpush1.msra.mxu0 0.0
        %7979 = vmatprep.subr.mxu0 0.0
        %7980 = vmatpush1.msra.mxu0 0.0
        %7981 = vmatprep.subr.mxu0 0.0
        %7982 = vmatpush1.msra.mxu0 0.0
        %7983 = vmatprep.subr.mxu0 0.0
        %7984 = vmatpush1.msra.mxu0 0.0
        %7985 = vmatprep.subr.mxu0 0.0
        %7986 = vmatpush1.msra.mxu0 0.0
        %7987 = vmatprep.subr.mxu0 0.0
        %7988 = vmatpush1.msra.mxu0 0.0
        %7989 = vmatprep.subr.mxu0 0.0
        %7990 = vmatpush1.msra.mxu0 0.0
        %7991 = vmatprep.subr.mxu0 0.0
        %7992 = vmatpush1.msra.mxu0 0.0
        %7993 = vmatprep.subr.mxu0 0.0
        %7994 = vmatpush1.msra.mxu0 0.0
        %7995 = vmatprep.subr.mxu0 0.0
        %7996 = vmatpush1.msra.mxu0 0.0
        %7997 = vmatprep.subr.mxu0 0.0
        %7998 = vmatpush1.msra.mxu0 0.0
        %7999 = vmatprep.subr.mxu0 0.0
        %8000 = vmatpush1.msra.mxu0 0.0
        %8001 = vmatprep.subr.mxu0 0.0
        %8002 = vmatpush1.msra.mxu0 0.0
        %8003 = vmatprep.subr.mxu0 0.0
        %8004 = vmatpush1.msra.mxu0 0.0
        %8005 = vmatprep.subr.mxu0 0.0
        %8006 = vmatpush1.msra.mxu0 0.0
        %8007 = vmatprep.subr.mxu0 0.0
        %8008 = vmatpush1.msra.mxu0 0.0
        %8009 = vmatprep.subr.mxu0 0.0
        %8010 = vmatpush1.msra.mxu0 0.0
        %8011 = vmatprep.subr.mxu0 0.0
        %8012 = vmatpush1.msra.mxu0 0.0
        %8013 = vmatprep.subr.mxu0 0.0
        %8014 = vmatpush1.msra.mxu0 0.0
        %8015 = vmatprep.subr.mxu0 0.0
        %8016 = vmatpush1.msra.mxu0 0.0
        %8017 = vmatprep.subr.mxu0 0.0
        %8018 = vmatpush1.msra.mxu0 0.0
        %8019 = vmatprep.subr.mxu0 0.0
        %8020 = vmatpush1.msra.mxu0 0.0
        %8021 = vmatprep.subr.mxu0 0.0
        %8022 = vmatpush1.msra.mxu0 0.0
        %8023 = vmatprep.subr.mxu0 0.0
        %8024 = vmatpush1.msra.mxu0 0.0
        %8025 = vmatprep.subr.mxu0 0.0
        %8026 = vmatpush1.msra.mxu0 0.0
        %8027 = vmatprep.subr.mxu0 0.0
        %8028 = vmatpush1.msra.mxu0 0.0
        %8029 = vmatprep.mubr.f32.mxu0 0.0
        %8030 = vmatmul.mubr.f32.gmra.mrb[0].mxu0 %v7949
        %v8031 = vpop.f32.mrb[0].mxu0
        %v8032 = vadd.f32 0.0, %v8031
        %v8033 = vpop.f32.mrb[0].mxu0
        %v8034 = vadd.f32 0.0, %v8033
        %8035 = vmatprep.mubr.f32.mxu0 0.0
        %8036 = vmatmul.mubr.f32.gmra.mrb[0].mxu0 %v7952
        %v8037 = vpop.f32.mrb[0].mxu0
        %v8038 = vadd.f32 0.0, %v8037
        %v8039 = vpop.f32.mrb[0].mxu0
        %v8040 = vadd.f32 0.0, %v8039
        %8041 = vmatprep.mubr.f32.mxu0 0.0
        %8042 = vmatmul.mubr.f32.gmra.mrb[0].mxu0 %v7955
        %v8043 = vpop.f32.mrb[0].mxu0
        %v8044 = vadd.f32 0.0, %v8043
        %v8045 = vpop.f32.mrb[0].mxu0
        %v8046 = vadd.f32 0.0, %v8045
        %8047 = vdwg.mxu0
        %8048 = vmatprep.subr.mxu0 %v7929
        %8049 = vmatpush1.msra.mxu0 %v7940
        %8050 = vmatprep.subr.mxu0 %v7963
        %8051 = vmatpush1.msra.mxu0 %v7961
        %8052 = vmatprep.subr.mxu0 0.0
        %8053 = vmatpush1.msra.mxu0 0.0
        %8054 = vmatprep.subr.mxu0 0.0
        %8055 = vmatpush1.msra.mxu0 0.0
        %8056 = vmatprep.subr.mxu0 0.0
        %8057 = vmatpush1.msra.mxu0 0.0
        %8058 = vmatprep.subr.mxu0 0.0
        %8059 = vmatpush1.msra.mxu0 0.0
        %8060 = vmatprep.subr.mxu0 0.0
        %8061 = vmatpush1.msra.mxu0 0.0
        %8062 = vmatprep.subr.mxu0 0.0
        %8063 = vmatpush1.msra.mxu0 0.0
        %8064 = vmatprep.subr.mxu0 0.0
        %8065 = vmatpush1.msra.mxu0 0.0
        %8066 = vmatprep.subr.mxu0 0.0
        %8067 = vmatpush1.msra.mxu0 0.0
        %8068 = vmatprep.subr.mxu0 0.0
        %8069 = vmatpush1.msra.mxu0 0.0
        %8070 = vmatprep.subr.mxu0 0.0
        %8071 = vmatpush1.msra.mxu0 0.0
        %8072 = vmatprep.subr.mxu0 0.0
        %8073 = vmatpush1.msra.mxu0 0.0
        %8074 = vmatprep.subr.mxu0 0.0
        %8075 = vmatpush1.msra.mxu0 0.0
        %8076 = vmatprep.subr.mxu0 0.0
        %8077 = vmatpush1.msra.mxu0 0.0
        %8078 = vmatprep.subr.mxu0 0.0
        %8079 = vmatpush1.msra.mxu0 0.0
        %8080 = vmatprep.subr.mxu0 0.0
        %8081 = vmatpush1.msra.mxu0 0.0
        %8082 = vmatprep.subr.mxu0 0.0
        %8083 = vmatpush1.msra.mxu0 0.0
        %8084 = vmatprep.subr.mxu0 0.0
        %8085 = vmatpush1.msra.mxu0 0.0
        %8086 = vmatprep.subr.mxu0 0.0
        %8087 = vmatpush1.msra.mxu0 0.0
        %8088 = vmatprep.subr.mxu0 0.0
        %8089 = vmatpush1.msra.mxu0 0.0
        %8090 = vmatprep.subr.mxu0 0.0
        %8091 = vmatpush1.msra.mxu0 0.0
        %8092 = vmatprep.subr.mxu0 0.0
        %8093 = vmatpush1.msra.mxu0 0.0
        %8094 = vmatprep.subr.mxu0 0.0
        %8095 = vmatpush1.msra.mxu0 0.0
        %8096 = vmatprep.subr.mxu0 0.0
        %8097 = vmatpush1.msra.mxu0 0.0
        %8098 = vmatprep.subr.mxu0 0.0
        %8099 = vmatpush1.msra.mxu0 0.0
        %8100 = vmatprep.subr.mxu0 0.0
        %8101 = vmatpush1.msra.mxu0 0.0
        %8102 = vmatprep.subr.mxu0 0.0
        %8103 = vmatpush1.msra.mxu0 0.0
        %8104 = vmatprep.subr.mxu0 0.0
        %8105 = vmatpush1.msra.mxu0 0.0
        %8106 = vmatprep.subr.mxu0 0.0
        %8107 = vmatpush1.msra.mxu0 0.0
        %8108 = vmatprep.subr.mxu0 0.0
        %8109 = vmatpush1.msra.mxu0 0.0
        %8110 = vmatprep.subr.mxu0 0.0
        %8111 = vmatpush1.msra.mxu0 0.0
        %8112 = vmatprep.mubr.f32.mxu0 0.0
        %8113 = vmatmul.mubr.f32.gmra.mrb[0].mxu0 %v7949
        %v8114 = vpop.f32.mrb[0].mxu0
        %v8115 = vadd.f32 0.0, %v8114
        %v8116 = vpop.f32.mrb[0].mxu0
        %v8117 = vadd.f32 0.0, %v8116
        %8118 = vmatprep.mubr.f32.mxu0 0.0
        %8119 = vmatmul.mubr.f32.gmra.mrb[0].mxu0 %v7952
        %v8120 = vpop.f32.mrb[0].mxu0
        %v8121 = vadd.f32 0.0, %v8120
        %v8122 = vpop.f32.mrb[0].mxu0
        %v8123 = vadd.f32 0.0, %v8122
        %8124 = vmatprep.mubr.f32.mxu0 0.0
        %8125 = vmatmul.mubr.f32.gmra.mrb[0].mxu0 %v7955
        %v8126 = vpop.f32.mrb[0].mxu0
        %v8127 = vadd.f32 0.0, %v8126
        %v8128 = vpop.f32.mrb[0].mxu0
        %v8129 = vadd.f32 0.0, %v8128
        %8130 = vdwg.mxu0
        %v8131 = vadd.f32 %v7906, %v8032
        %v8132 = vadd.f32 %v7907, %v8034
        %v8133 = vadd.f32 %v7908, %v8115
        %v8134 = vadd.f32 %v7909, %v8117
        %v8135 = vadd.f32 %v7910, %v8038
        %v8136 = vadd.f32 %v7911, %v8040
        %v8137 = vadd.f32 %v7912, %v8121
        %v8138 = vadd.f32 %v7913, %v8123
        %v8139 = vadd.f32 %v7914, %v8044
        %v8140 = vadd.f32 %v7915, %v8046
        %v8141 = vadd.f32 %v7916, %v8127
        %v8142 = vadd.f32 %v7917, %v8129
        %s8143 = scalar_lea.vmem %s3, 552
        %v8144 = vld [vmem:[%s8143] sm:$0xff]
        %v8145 = vld [vmem:[%s8143 + $0x8] sm:$0xff]
        %v8146 = vld [vmem:[%s8143 + $0x10] sm:$0xf]
        %8147 = vrot.lane.b32.xlu0 %v5165, 26
        %v8148 = vpop.permute.xlu0 %8147
        %8149 = vrot.lane.b32.xlu0 %v5166, 26
        %v8150 = vpop.permute.xlu0 %8149
        %8151 = vrot.lane.b32.xlu0 %v5167, 26
        %v8152 = vpop.permute.xlu0 %8151
        %8153 = vrot.lane.b32.xlu0 %v5168, 26
        %v8154 = vpop.permute.xlu0 %8153
        %8155 = vrot.lane.b32.xlu0 %v5170, 26
        %v8156 = vpop.permute.xlu0 %8155
        %8157 = vrot.lane.b32.xlu0 %v5171, 26
        %v8158 = vpop.permute.xlu0 %8157
        %8159 = vrot.lane.b32.xlu0 %v5172, 26
        %v8160 = vpop.permute.xlu0 %8159
        %8161 = vrot.lane.b32.xlu0 %v5173, 26
        %v8162 = vpop.permute.xlu0 %8161
        %vm8163 = vcmask 211968
        %v8164 = vsel %vm8163, %v8148, %v8150
        %v8165 = vsel %vm8163, %v8150, %v8152
        %v8166 = vsel %vm8163, %v8152, %v8154
        %v8167 = vsel %vm8163, %v8156, %v8158
        %v8168 = vsel %vm8163, %v8158, %v8160
        %v8169 = vsel %vm8163, %v8160, %v8162
        %v8175 = vsel %vm2988, %v8144, 0
        %v8178 = vsel %vm2988, %v8145, 0
        %v8181 = vsel %vm2988, %v8146, 0
        %v8183 = vsel %vm2998, %v8167, 0
        %v8185 = vsel %vm2998, %v8168, 0
        %v8187 = vsel %vm2998, %v8169, 0
        %v8189 = vsel %vm2998, %v8162, 0
        %8191 = vmatprep.subr.mxu0 %v8165
        %8192 = vmatpush1.msra.mxu0 %v8164
        %8193 = vmatprep.subr.mxu0 %v8185
        %8194 = vmatpush1.msra.mxu0 %v8183
        %8195 = vmatprep.subr.mxu0 0.0
        %8196 = vmatpush1.msra.mxu0 0.0
        %8197 = vmatprep.subr.mxu0 0.0
        %8198 = vmatpush1.msra.mxu0 0.0
        %8199 = vmatprep.subr.mxu0 0.0
        %8200 = vmatpush1.msra.mxu0 0.0
        %8201 = vmatprep.subr.mxu0 0.0
        %8202 = vmatpush1.msra.mxu0 0.0
        %8203 = vmatprep.subr.mxu0 0.0
        %8204 = vmatpush1.msra.mxu0 0.0
        %8205 = vmatprep.subr.mxu0 0.0
        %8206 = vmatpush1.msra.mxu0 0.0
        %8207 = vmatprep.subr.mxu0 0.0
        %8208 = vmatpush1.msra.mxu0 0.0
        %8209 = vmatprep.subr.mxu0 0.0
        %8210 = vmatpush1.msra.mxu0 0.0
        %8211 = vmatprep.subr.mxu0 0.0
        %8212 = vmatpush1.msra.mxu0 0.0
        %8213 = vmatprep.subr.mxu0 0.0
        %8214 = vmatpush1.msra.mxu0 0.0
        %8215 = vmatprep.subr.mxu0 0.0
        %8216 = vmatpush1.msra.mxu0 0.0
        %8217 = vmatprep.subr.mxu0 0.0
        %8218 = vmatpush1.msra.mxu0 0.0
        %8219 = vmatprep.subr.mxu0 0.0
        %8220 = vmatpush1.msra.mxu0 0.0
        %8221 = vmatprep.subr.mxu0 0.0
        %8222 = vmatpush1.msra.mxu0 0.0
        %8223 = vmatprep.subr.mxu0 0.0
        %8224 = vmatpush1.msra.mxu0 0.0
        %8225 = vmatprep.subr.mxu0 0.0
        %8226 = vmatpush1.msra.mxu0 0.0
        %8227 = vmatprep.subr.mxu0 0.0
        %8228 = vmatpush1.msra.mxu0 0.0
        %8229 = vmatprep.subr.mxu0 0.0
        %8230 = vmatpush1.msra.mxu0 0.0
        %8231 = vmatprep.subr.mxu0 0.0
        %8232 = vmatpush1.msra.mxu0 0.0
        %8233 = vmatprep.subr.mxu0 0.0
        %8234 = vmatpush1.msra.mxu0 0.0
        %8235 = vmatprep.subr.mxu0 0.0
        %8236 = vmatpush1.msra.mxu0 0.0
        %8237 = vmatprep.subr.mxu0 0.0
        %8238 = vmatpush1.msra.mxu0 0.0
        %8239 = vmatprep.subr.mxu0 0.0
        %8240 = vmatpush1.msra.mxu0 0.0
        %8241 = vmatprep.subr.mxu0 0.0
        %8242 = vmatpush1.msra.mxu0 0.0
        %8243 = vmatprep.subr.mxu0 0.0
        %8244 = vmatpush1.msra.mxu0 0.0
        %8245 = vmatprep.subr.mxu0 0.0
        %8246 = vmatpush1.msra.mxu0 0.0
        %8247 = vmatprep.subr.mxu0 0.0
        %8248 = vmatpush1.msra.mxu0 0.0
        %8249 = vmatprep.subr.mxu0 0.0
        %8250 = vmatpush1.msra.mxu0 0.0
        %8251 = vmatprep.subr.mxu0 0.0
        %8252 = vmatpush1.msra.mxu0 0.0
        %8253 = vmatprep.subr.mxu0 0.0
        %8254 = vmatpush1.msra.mxu0 0.0
        %8255 = vmatprep.mubr.f32.mxu0 0.0
        %8256 = vmatmul.mubr.f32.gmra.mrb[0].mxu0 %v8175
        %v8257 = vpop.f32.mrb[0].mxu0
        %v8258 = vadd.f32 0.0, %v8257
        %v8259 = vpop.f32.mrb[0].mxu0
        %v8260 = vadd.f32 0.0, %v8259
        %8261 = vmatprep.mubr.f32.mxu0 0.0
        %8262 = vmatmul.mubr.f32.gmra.mrb[0].mxu0 %v8178
        %v8263 = vpop.f32.mrb[0].mxu0
        %v8264 = vadd.f32 0.0, %v8263
        %v8265 = vpop.f32.mrb[0].mxu0
        %v8266 = vadd.f32 0.0, %v8265
        %8267 = vmatprep.mubr.f32.mxu0 0.0
        %8268 = vmatmul.mubr.f32.gmra.mrb[0].mxu0 %v8181
        %v8269 = vpop.f32.mrb[0].mxu0
        %v8270 = vadd.f32 0.0, %v8269
        %v8271 = vpop.f32.mrb[0].mxu0
        %v8272 = vadd.f32 0.0, %v8271
        %8273 = vdwg.mxu0
        %8274 = vmatprep.subr.mxu0 %v8154
        %8275 = vmatpush1.msra.mxu0 %v8166
        %8276 = vmatprep.subr.mxu0 %v8189
        %8277 = vmatpush1.msra.mxu0 %v8187
        %8278 = vmatprep.subr.mxu0 0.0
        %8279 = vmatpush1.msra.mxu0 0.0
        %8280 = vmatprep.subr.mxu0 0.0
        %8281 = vmatpush1.msra.mxu0 0.0
        %8282 = vmatprep.subr.mxu0 0.0
        %8283 = vmatpush1.msra.mxu0 0.0
        %8284 = vmatprep.subr.mxu0 0.0
        %8285 = vmatpush1.msra.mxu0 0.0
        %8286 = vmatprep.subr.mxu0 0.0
        %8287 = vmatpush1.msra.mxu0 0.0
        %8288 = vmatprep.subr.mxu0 0.0
        %8289 = vmatpush1.msra.mxu0 0.0
        %8290 = vmatprep.subr.mxu0 0.0
        %8291 = vmatpush1.msra.mxu0 0.0
        %8292 = vmatprep.subr.mxu0 0.0
        %8293 = vmatpush1.msra.mxu0 0.0
        %8294 = vmatprep.subr.mxu0 0.0
        %8295 = vmatpush1.msra.mxu0 0.0
        %8296 = vmatprep.subr.mxu0 0.0
        %8297 = vmatpush1.msra.mxu0 0.0
        %8298 = vmatprep.subr.mxu0 0.0
        %8299 = vmatpush1.msra.mxu0 0.0
        %8300 = vmatprep.subr.mxu0 0.0
        %8301 = vmatpush1.msra.mxu0 0.0
        %8302 = vmatprep.subr.mxu0 0.0
        %8303 = vmatpush1.msra.mxu0 0.0
        %8304 = vmatprep.subr.mxu0 0.0
        %8305 = vmatpush1.msra.mxu0 0.0
        %8306 = vmatprep.subr.mxu0 0.0
        %8307 = vmatpush1.msra.mxu0 0.0
        %8308 = vmatprep.subr.mxu0 0.0
        %8309 = vmatpush1.msra.mxu0 0.0
        %8310 = vmatprep.subr.mxu0 0.0
        %8311 = vmatpush1.msra.mxu0 0.0
        %8312 = vmatprep.subr.mxu0 0.0
        %8313 = vmatpush1.msra.mxu0 0.0
        %8314 = vmatprep.subr.mxu0 0.0
        %8315 = vmatpush1.msra.mxu0 0.0
        %8316 = vmatprep.subr.mxu0 0.0
        %8317 = vmatpush1.msra.mxu0 0.0
        %8318 = vmatprep.subr.mxu0 0.0
        %8319 = vmatpush1.msra.mxu0 0.0
        %8320 = vmatprep.subr.mxu0 0.0
        %8321 = vmatpush1.msra.mxu0 0.0
        %8322 = vmatprep.subr.mxu0 0.0
        %8323 = vmatpush1.msra.mxu0 0.0
        %8324 = vmatprep.subr.mxu0 0.0
        %8325 = vmatpush1.msra.mxu0 0.0
        %8326 = vmatprep.subr.mxu0 0.0
        %8327 = vmatpush1.msra.mxu0 0.0
        %8328 = vmatprep.subr.mxu0 0.0
        %8329 = vmatpush1.msra.mxu0 0.0
        %8330 = vmatprep.subr.mxu0 0.0
        %8331 = vmatpush1.msra.mxu0 0.0
        %8332 = vmatprep.subr.mxu0 0.0
        %8333 = vmatpush1.msra.mxu0 0.0
        %8334 = vmatprep.subr.mxu0 0.0
        %8335 = vmatpush1.msra.mxu0 0.0
        %8336 = vmatprep.subr.mxu0 0.0
        %8337 = vmatpush1.msra.mxu0 0.0
        %8338 = vmatprep.mubr.f32.mxu0 0.0
        %8339 = vmatmul.mubr.f32.gmra.mrb[0].mxu0 %v8175
        %v8340 = vpop.f32.mrb[0].mxu0
        %v8341 = vadd.f32 0.0, %v8340
        %v8342 = vpop.f32.mrb[0].mxu0
        %v8343 = vadd.f32 0.0, %v8342
        %8344 = vmatprep.mubr.f32.mxu0 0.0
        %8345 = vmatmul.mubr.f32.gmra.mrb[0].mxu0 %v8178
        %v8346 = vpop.f32.mrb[0].mxu0
        %v8347 = vadd.f32 0.0, %v8346
        %v8348 = vpop.f32.mrb[0].mxu0
        %v8349 = vadd.f32 0.0, %v8348
        %8350 = vmatprep.mubr.f32.mxu0 0.0
        %8351 = vmatmul.mubr.f32.gmra.mrb[0].mxu0 %v8181
        %v8352 = vpop.f32.mrb[0].mxu0
        %v8353 = vadd.f32 0.0, %v8352
        %v8354 = vpop.f32.mrb[0].mxu0
        %v8355 = vadd.f32 0.0, %v8354
        %8356 = vdwg.mxu0
        %v8357 = vadd.f32 %v8131, %v8258
        %v8358 = vadd.f32 %v8132, %v8260
        %v8359 = vadd.f32 %v8133, %v8341
        %v8360 = vadd.f32 %v8134, %v8343
        %v8361 = vadd.f32 %v8135, %v8264
        %v8362 = vadd.f32 %v8136, %v8266
        %v8363 = vadd.f32 %v8137, %v8347
        %v8364 = vadd.f32 %v8138, %v8349
        %v8365 = vadd.f32 %v8139, %v8270
        %v8366 = vadd.f32 %v8140, %v8272
        %v8367 = vadd.f32 %v8141, %v8353
        %v8368 = vadd.f32 %v8142, %v8355
        %s8369 = scalar_lea.vmem %s3, 576
        %v8370 = vld [vmem:[%s8369] sm:$0xff]
        %v8371 = vld [vmem:[%s8369 + $0x8] sm:$0xff]
        %v8372 = vld [vmem:[%s8369 + $0x10] sm:$0xf]
        %8373 = vrot.lane.b32.xlu0 %v5165, 24
        %v8374 = vpop.permute.xlu0 %8373
        %8375 = vrot.lane.b32.xlu0 %v5166, 24
        %v8376 = vpop.permute.xlu0 %8375
        %8377 = vrot.lane.b32.xlu0 %v5167, 24
        %v8378 = vpop.permute.xlu0 %8377
        %8379 = vrot.lane.b32.xlu0 %v5168, 24
        %v8380 = vpop.permute.xlu0 %8379
        %8381 = vrot.lane.b32.xlu0 %v5170, 24
        %v8382 = vpop.permute.xlu0 %8381
        %8383 = vrot.lane.b32.xlu0 %v5171, 24
        %v8384 = vpop.permute.xlu0 %8383
        %8385 = vrot.lane.b32.xlu0 %v5172, 24
        %v8386 = vpop.permute.xlu0 %8385
        %8387 = vrot.lane.b32.xlu0 %v5173, 24
        %v8388 = vpop.permute.xlu0 %8387
        %vm8389 = vcmask 195584
        %v8390 = vsel %vm8389, %v8374, %v8376
        %v8391 = vsel %vm8389, %v8376, %v8378
        %v8392 = vsel %vm8389, %v8378, %v8380
        %v8393 = vsel %vm8389, %v8382, %v8384
        %v8394 = vsel %vm8389, %v8384, %v8386
        %v8395 = vsel %vm8389, %v8386, %v8388
        %v8401 = vsel %vm2988, %v8370, 0
        %v8404 = vsel %vm2988, %v8371, 0
        %v8407 = vsel %vm2988, %v8372, 0
        %v8409 = vsel %vm2998, %v8393, 0
        %v8411 = vsel %vm2998, %v8394, 0
        %v8413 = vsel %vm2998, %v8395, 0
        %v8415 = vsel %vm2998, %v8388, 0
        %8417 = vmatprep.subr.mxu0 %v8391
        %8418 = vmatpush1.msra.mxu0 %v8390
        %8419 = vmatprep.subr.mxu0 %v8411
        %8420 = vmatpush1.msra.mxu0 %v8409
        %8421 = vmatprep.subr.mxu0 0.0
        %8422 = vmatpush1.msra.mxu0 0.0
        %8423 = vmatprep.subr.mxu0 0.0
        %8424 = vmatpush1.msra.mxu0 0.0
        %8425 = vmatprep.subr.mxu0 0.0
        %8426 = vmatpush1.msra.mxu0 0.0
        %8427 = vmatprep.subr.mxu0 0.0
        %8428 = vmatpush1.msra.mxu0 0.0
        %8429 = vmatprep.subr.mxu0 0.0
        %8430 = vmatpush1.msra.mxu0 0.0
        %8431 = vmatprep.subr.mxu0 0.0
        %8432 = vmatpush1.msra.mxu0 0.0
        %8433 = vmatprep.subr.mxu0 0.0
        %8434 = vmatpush1.msra.mxu0 0.0
        %8435 = vmatprep.subr.mxu0 0.0
        %8436 = vmatpush1.msra.mxu0 0.0
        %8437 = vmatprep.subr.mxu0 0.0
        %8438 = vmatpush1.msra.mxu0 0.0
        %8439 = vmatprep.subr.mxu0 0.0
        %8440 = vmatpush1.msra.mxu0 0.0
        %8441 = vmatprep.subr.mxu0 0.0
        %8442 = vmatpush1.msra.mxu0 0.0
        %8443 = vmatprep.subr.mxu0 0.0
        %8444 = vmatpush1.msra.mxu0 0.0
        %8445 = vmatprep.subr.mxu0 0.0
        %8446 = vmatpush1.msra.mxu0 0.0
        %8447 = vmatprep.subr.mxu0 0.0
        %8448 = vmatpush1.msra.mxu0 0.0
        %8449 = vmatprep.subr.mxu0 0.0
        %8450 = vmatpush1.msra.mxu0 0.0
        %8451 = vmatprep.subr.mxu0 0.0
        %8452 = vmatpush1.msra.mxu0 0.0
        %8453 = vmatprep.subr.mxu0 0.0
        %8454 = vmatpush1.msra.mxu0 0.0
        %8455 = vmatprep.subr.mxu0 0.0
        %8456 = vmatpush1.msra.mxu0 0.0
        %8457 = vmatprep.subr.mxu0 0.0
        %8458 = vmatpush1.msra.mxu0 0.0
        %8459 = vmatprep.subr.mxu0 0.0
        %8460 = vmatpush1.msra.mxu0 0.0
        %8461 = vmatprep.subr.mxu0 0.0
        %8462 = vmatpush1.msra.mxu0 0.0
        %8463 = vmatprep.subr.mxu0 0.0
        %8464 = vmatpush1.msra.mxu0 0.0
        %8465 = vmatprep.subr.mxu0 0.0
        %8466 = vmatpush1.msra.mxu0 0.0
        %8467 = vmatprep.subr.mxu0 0.0
        %8468 = vmatpush1.msra.mxu0 0.0
        %8469 = vmatprep.subr.mxu0 0.0
        %8470 = vmatpush1.msra.mxu0 0.0
        %8471 = vmatprep.subr.mxu0 0.0
        %8472 = vmatpush1.msra.mxu0 0.0
        %8473 = vmatprep.subr.mxu0 0.0
        %8474 = vmatpush1.msra.mxu0 0.0
        %8475 = vmatprep.subr.mxu0 0.0
        %8476 = vmatpush1.msra.mxu0 0.0
        %8477 = vmatprep.subr.mxu0 0.0
        %8478 = vmatpush1.msra.mxu0 0.0
        %8479 = vmatprep.subr.mxu0 0.0
        %8480 = vmatpush1.msra.mxu0 0.0
        %8481 = vmatprep.mubr.f32.mxu0 0.0
        %8482 = vmatmul.mubr.f32.gmra.mrb[0].mxu0 %v8401
        %v8483 = vpop.f32.mrb[0].mxu0
        %v8484 = vadd.f32 0.0, %v8483
        %v8485 = vpop.f32.mrb[0].mxu0
        %v8486 = vadd.f32 0.0, %v8485
        %8487 = vmatprep.mubr.f32.mxu0 0.0
        %8488 = vmatmul.mubr.f32.gmra.mrb[0].mxu0 %v8404
        %v8489 = vpop.f32.mrb[0].mxu0
        %v8490 = vadd.f32 0.0, %v8489
        %v8491 = vpop.f32.mrb[0].mxu0
        %v8492 = vadd.f32 0.0, %v8491
        %8493 = vmatprep.mubr.f32.mxu0 0.0
        %8494 = vmatmul.mubr.f32.gmra.mrb[0].mxu0 %v8407
        %v8495 = vpop.f32.mrb[0].mxu0
        %v8496 = vadd.f32 0.0, %v8495
        %v8497 = vpop.f32.mrb[0].mxu0
        %v8498 = vadd.f32 0.0, %v8497
        %8499 = vdwg.mxu0
        %8500 = vmatprep.subr.mxu0 %v8380
        %8501 = vmatpush1.msra.mxu0 %v8392
        %8502 = vmatprep.subr.mxu0 %v8415
        %8503 = vmatpush1.msra.mxu0 %v8413
        %8504 = vmatprep.subr.mxu0 0.0
        %8505 = vmatpush1.msra.mxu0 0.0
        %8506 = vmatprep.subr.mxu0 0.0
        %8507 = vmatpush1.msra.mxu0 0.0
        %8508 = vmatprep.subr.mxu0 0.0
        %8509 = vmatpush1.msra.mxu0 0.0
        %8510 = vmatprep.subr.mxu0 0.0
        %8511 = vmatpush1.msra.mxu0 0.0
        %8512 = vmatprep.subr.mxu0 0.0
        %8513 = vmatpush1.msra.mxu0 0.0
        %8514 = vmatprep.subr.mxu0 0.0
        %8515 = vmatpush1.msra.mxu0 0.0
        %8516 = vmatprep.subr.mxu0 0.0
        %8517 = vmatpush1.msra.mxu0 0.0
        %8518 = vmatprep.subr.mxu0 0.0
        %8519 = vmatpush1.msra.mxu0 0.0
        %8520 = vmatprep.subr.mxu0 0.0
        %8521 = vmatpush1.msra.mxu0 0.0
        %8522 = vmatprep.subr.mxu0 0.0
        %8523 = vmatpush1.msra.mxu0 0.0
        %8524 = vmatprep.subr.mxu0 0.0
        %8525 = vmatpush1.msra.mxu0 0.0
        %8526 = vmatprep.subr.mxu0 0.0
        %8527 = vmatpush1.msra.mxu0 0.0
        %8528 = vmatprep.subr.mxu0 0.0
        %8529 = vmatpush1.msra.mxu0 0.0
        %8530 = vmatprep.subr.mxu0 0.0
        %8531 = vmatpush1.msra.mxu0 0.0
        %8532 = vmatprep.subr.mxu0 0.0
        %8533 = vmatpush1.msra.mxu0 0.0
        %8534 = vmatprep.subr.mxu0 0.0
        %8535 = vmatpush1.msra.mxu0 0.0
        %8536 = vmatprep.subr.mxu0 0.0
        %8537 = vmatpush1.msra.mxu0 0.0
        %8538 = vmatprep.subr.mxu0 0.0
        %8539 = vmatpush1.msra.mxu0 0.0
        %8540 = vmatprep.subr.mxu0 0.0
        %8541 = vmatpush1.msra.mxu0 0.0
        %8542 = vmatprep.subr.mxu0 0.0
        %8543 = vmatpush1.msra.mxu0 0.0
        %8544 = vmatprep.subr.mxu0 0.0
        %8545 = vmatpush1.msra.mxu0 0.0
        %8546 = vmatprep.subr.mxu0 0.0
        %8547 = vmatpush1.msra.mxu0 0.0
        %8548 = vmatprep.subr.mxu0 0.0
        %8549 = vmatpush1.msra.mxu0 0.0
        %8550 = vmatprep.subr.mxu0 0.0
        %8551 = vmatpush1.msra.mxu0 0.0
        %8552 = vmatprep.subr.mxu0 0.0
        %8553 = vmatpush1.msra.mxu0 0.0
        %8554 = vmatprep.subr.mxu0 0.0
        %8555 = vmatpush1.msra.mxu0 0.0
        %8556 = vmatprep.subr.mxu0 0.0
        %8557 = vmatpush1.msra.mxu0 0.0
        %8558 = vmatprep.subr.mxu0 0.0
        %8559 = vmatpush1.msra.mxu0 0.0
        %8560 = vmatprep.subr.mxu0 0.0
        %8561 = vmatpush1.msra.mxu0 0.0
        %8562 = vmatprep.subr.mxu0 0.0
        %8563 = vmatpush1.msra.mxu0 0.0
        %8564 = vmatprep.mubr.f32.mxu0 0.0
        %8565 = vmatmul.mubr.f32.gmra.mrb[0].mxu0 %v8401
        %v8566 = vpop.f32.mrb[0].mxu0
        %v8567 = vadd.f32 0.0, %v8566
        %v8568 = vpop.f32.mrb[0].mxu0
        %v8569 = vadd.f32 0.0, %v8568
        %8570 = vmatprep.mubr.f32.mxu0 0.0
        %8571 = vmatmul.mubr.f32.gmra.mrb[0].mxu0 %v8404
        %v8572 = vpop.f32.mrb[0].mxu0
        %v8573 = vadd.f32 0.0, %v8572
        %v8574 = vpop.f32.mrb[0].mxu0
        %v8575 = vadd.f32 0.0, %v8574
        %8576 = vmatprep.mubr.f32.mxu0 0.0
        %8577 = vmatmul.mubr.f32.gmra.mrb[0].mxu0 %v8407
        %v8578 = vpop.f32.mrb[0].mxu0
        %v8579 = vadd.f32 0.0, %v8578
        %v8580 = vpop.f32.mrb[0].mxu0
        %v8581 = vadd.f32 0.0, %v8580
        %8582 = vdwg.mxu0
        %v8583 = vadd.f32 %v8357, %v8484
        %v8584 = vadd.f32 %v8358, %v8486
        %v8585 = vadd.f32 %v8359, %v8567
        %v8586 = vadd.f32 %v8360, %v8569
        %v8587 = vadd.f32 %v8361, %v8490
        %v8588 = vadd.f32 %v8362, %v8492
        %v8589 = vadd.f32 %v8363, %v8573
        %v8590 = vadd.f32 %v8364, %v8575
        %v8591 = vadd.f32 %v8365, %v8496
        %v8592 = vadd.f32 %v8366, %v8498
        %v8593 = vadd.f32 %v8367, %v8579
        %v8594 = vadd.f32 %v8368, %v8581
        %8595 = vst [vmem:[#allocation4] sm:$0xff] %v8583
        %8596 = vst [vmem:[#allocation4 + $0x8] sm:$0xff] %v8584
        %8597 = vst [vmem:[#allocation4 + $0x10] sm:$0xff] %v8585
        %vm8598 = vcmask 187392
        %8599 = vst.msk [vmem:[#allocation4 + $0x18] sm:$0xff] %vm8598, %v8586
        %8600 = vst [vmem:[#allocation4 + $0x20] sm:$0xff] %v8587
        %8601 = vst [vmem:[#allocation4 + $0x28] sm:$0xff] %v8588
        %8602 = vst [vmem:[#allocation4 + $0x30] sm:$0xff] %v8589
        %8603 = vst.msk [vmem:[#allocation4 + $0x38] sm:$0xff] %vm8598, %v8590
        %8604 = vst [vmem:[#allocation4 + $0x40] sm:$0xf] %v8591
        %8605 = vst [vmem:[#allocation4 + $0x48] sm:$0xf] %v8592
        %8606 = vst [vmem:[#allocation4 + $0x50] sm:$0xf] %v8593
        %vm8607 = vcmask 183296
        %8608 = vst.msk [vmem:[#allocation4 + $0x58] sm:$0xf] %vm8607, %v8594
        %v8609 = vld [vmem:[#allocation4] sm:$0xff]
        %v8610 = vld [vmem:[#allocation4 + $0x8] sm:$0xff]
        %v8611 = vld [vmem:[#allocation4 + $0x10] sm:$0xff]
        %v8612 = vld [vmem:[#allocation4 + $0x20] sm:$0xff]
        %v8613 = vld [vmem:[#allocation4 + $0x28] sm:$0xff]
        %v8614 = vld [vmem:[#allocation4 + $0x30] sm:$0xff]
        %v8615 = vld [vmem:[#allocation4 + $0x40] sm:$0xf]
        %v8616 = vld [vmem:[#allocation4 + $0x48] sm:$0xf]
        %v8617 = vld [vmem:[#allocation4 + $0x50] sm:$0xf]
        %8627 = vrot.lane.b32.xlu0 %v8609, 126
        %v8628 = vpop.permute.xlu0 %8627
        %8629 = vrot.lane.b32.xlu0 %v8610, 126
        %v8630 = vpop.permute.xlu0 %8629
        %8631 = vrot.lane.b32.xlu0 %v8611, 126
        %v8632 = vpop.permute.xlu0 %8631
        %8633 = vrot.lane.b32.xlu0 %v8612, 126
        %v8634 = vpop.permute.xlu0 %8633
        %8635 = vrot.lane.b32.xlu0 %v8613, 126
        %v8636 = vpop.permute.xlu0 %8635
        %8637 = vrot.lane.b32.xlu0 %v8614, 126
        %v8638 = vpop.permute.xlu0 %8637
        %8639 = vrot.lane.b32.xlu0 %v8615, 126
        %v8640 = vpop.permute.xlu0 %8639
        %8641 = vrot.lane.b32.xlu0 %v8616, 126
        %v8642 = vpop.permute.xlu0 %8641
        %8643 = vrot.lane.b32.xlu0 %v8617, 126
        %v8644 = vpop.permute.xlu0 %8643
        %v8645 = vsel %vm606, %v8628, %v8630
        %v8646 = vsel %vm606, %v8630, %v8632
        %v8647 = vsel %vm606, %v8634, %v8636
        %v8648 = vsel %vm606, %v8636, %v8638
        %v8649 = vsel %vm606, %v8640, %v8642
        %v8650 = vsel %vm606, %v8642, %v8644
        %v8660 = vmax.f32 %v8609, %v8645
        %v8661 = vmax.f32 %v8610, %v8646
        %v8662 = vmax.f32 %v8611, %v8632
        %v8663 = vmax.f32 %v8612, %v8647
        %v8664 = vmax.f32 %v8613, %v8648
        %v8665 = vmax.f32 %v8614, %v8638
        %v8666 = vmax.f32 %v8615, %v8649
        %v8667 = vmax.f32 %v8616, %v8650
        %v8668 = vmax.f32 %v8617, %v8644
        %v8669 = vld [vmem:[#allocation4 + $0x18] sm:$0xff]
        %v8670 = vld [vmem:[#allocation4 + $0x38] sm:$0xff]
        %v8671 = vld [vmem:[#allocation4 + $0x58] sm:$0xf]
        %8675 = vrot.lane.b32.xlu0 %v8669, 126
        %v8676 = vpop.permute.xlu0 %8675
        %8677 = vrot.lane.b32.xlu0 %v8670, 126
        %v8678 = vpop.permute.xlu0 %8677
        %8679 = vrot.lane.b32.xlu0 %v8671, 126
        %v8680 = vpop.permute.xlu0 %8679
        %v8681 = vsel %vm606, %v8632, %v8676
        %v8682 = vsel %vm606, %v8638, %v8678
        %v8683 = vsel %vm606, %v8644, %v8680
        %v8690 = vmax.f32 %v8611, %v8681
        %v8691 = vmax.f32 %v8669, %v8676
        %v8692 = vmax.f32 %v8614, %v8682
        %v8693 = vmax.f32 %v8670, %v8678
        %v8694 = vmax.f32 %v8617, %v8683
        %v8695 = vmax.f32 %v8671, %v8680
        %8708 = vrot.lane.b32.xlu0 %v8660, 72
        %v8709 = vpop.permute.xlu0 %8708
        %8710 = vrot.lane.b32.xlu0 %v8661, 72
        %v8711 = vpop.permute.xlu0 %8710
        %8712 = vrot.lane.b32.xlu0 %v8690, 72
        %v8713 = vpop.permute.xlu0 %8712
        %8714 = vrot.lane.b32.xlu0 %v8691, 72
        %v8715 = vpop.permute.xlu0 %8714
        %8716 = vrot.lane.b32.xlu0 %v8663, 72
        %v8717 = vpop.permute.xlu0 %8716
        %8718 = vrot.lane.b32.xlu0 %v8664, 72
        %v8719 = vpop.permute.xlu0 %8718
        %8720 = vrot.lane.b32.xlu0 %v8692, 72
        %v8721 = vpop.permute.xlu0 %8720
        %8722 = vrot.lane.b32.xlu0 %v8693, 72
        %v8723 = vpop.permute.xlu0 %8722
        %8724 = vrot.lane.b32.xlu0 %v8666, 72
        %v8725 = vpop.permute.xlu0 %8724
        %8726 = vrot.lane.b32.xlu0 %v8667, 72
        %v8727 = vpop.permute.xlu0 %8726
        %8728 = vrot.lane.b32.xlu0 %v8694, 72
        %v8729 = vpop.permute.xlu0 %8728
        %8730 = vrot.lane.b32.xlu0 %v8695, 72
        %v8731 = vpop.permute.xlu0 %8730
        %v8732 = vsel %vm1334, %v8709, %v8711
        %v8733 = vsel %vm1334, %v8711, %v8713
        %v8734 = vsel %vm1334, %v8713, %v8715
        %v8735 = vsel %vm1334, %v8717, %v8719
        %v8736 = vsel %vm1334, %v8719, %v8721
        %v8737 = vsel %vm1334, %v8721, %v8723
        %v8738 = vsel %vm1334, %v8725, %v8727
        %v8739 = vsel %vm1334, %v8727, %v8729
        %v8740 = vsel %vm1334, %v8729, %v8731
        %v8750 = vmax.f32 %v8660, %v8732
        %v8751 = vmax.f32 %v8661, %v8733
        %v8752 = vmax.f32 %v8662, %v8734
        %v8753 = vmax.f32 %v8663, %v8735
        %v8754 = vmax.f32 %v8664, %v8736
        %v8755 = vmax.f32 %v8665, %v8737
        %v8756 = vmax.f32 %v8666, %v8738
        %v8757 = vmax.f32 %v8667, %v8739
        %v8758 = vmax.f32 %v8668, %v8740
        %v8759 = vld [vmem:[%s4] sm:$0xff]
        %v8760 = vld [vmem:[%s4 + $0x8] sm:$0xff]
        %v8761 = vld [vmem:[%s4 + $0x10] sm:$0xf]
        %8763 = vset.pattern.permute.xlu0 0
        %8764 = vperm.xlu0 %8763, %v8759
        %v8765 = vpop.permute.xlu0 %8764
        %8768 = vset.pattern.permute.xlu0 0
        %8769 = vperm.xlu0 %8768, %v8760
        %v8770 = vpop.permute.xlu0 %8769
        %8773 = vset.pattern.permute.xlu0 0
        %8774 = vperm.xlu0 %8773, %v8761
        %v8775 = vpop.permute.xlu0 %8774
        %v8777 = vadd.f32 %v8750, %v8765
        %v8778 = vadd.f32 %v8751, %v8765
        %v8779 = vadd.f32 %v8752, %v8765
        %v8780 = vadd.f32 %v8753, %v8770
        %v8781 = vadd.f32 %v8754, %v8770
        %v8782 = vadd.f32 %v8755, %v8770
        %v8783 = vadd.f32 %v8756, %v8775
        %v8784 = vadd.f32 %v8757, %v8775
        %v8785 = vadd.f32 %v8758, %v8775
        %v8786 = vmax.f32 %v8777, 0.0
        %v8787 = vmax.f32 %v8778, 0.0
        %v8788 = vmax.f32 %v8779, 0.0
        %v8789 = vmax.f32 %v8780, 0.0
        %v8790 = vmax.f32 %v8781, 0.0
        %v8791 = vmax.f32 %v8782, 0.0
        %v8792 = vmax.f32 %v8783, 0.0
        %v8793 = vmax.f32 %v8784, 0.0
        %v8794 = vmax.f32 %v8785, 0.0
        %v8795 = vld [vmem:[%s5] sm:$0xff]
        %v8796 = vld [vmem:[%s5 + $0x8] sm:$0xff]
        %v8797 = vld [vmem:[%s5 + $0x10] sm:$0xff]
        %v8798 = vld [vmem:[%s5 + $0x18] sm:$0xff]
        %v8799 = vld [vmem:[%s5 + $0x20] sm:$0xff]
        %v8800 = vld [vmem:[%s5 + $0x28] sm:$0xff]
        %v8801 = vld [vmem:[%s5 + $0x30] sm:$0xff]
        %v8802 = vld [vmem:[%s5 + $0x38] sm:$0xff]
        %v8803 = vld [vmem:[%s5 + $0x40] sm:$0xff]
        %v8804 = vld [vmem:[%s5 + $0x48] sm:$0xff]
        %v8805 = vld [vmem:[%s5 + $0x50] sm:$0xff]
        %v8806 = vld [vmem:[%s5 + $0x58] sm:$0xff]
        %v8807 = vld [vmem:[%s5 + $0x60] sm:$0xff]
        %v8808 = vld [vmem:[%s5 + $0x68] sm:$0xff]
        %v8809 = vld [vmem:[%s5 + $0x70] sm:$0xff]
        %v8810 = vld [vmem:[%s5 + $0x78] sm:$0xff]
        %v8811 = vld [vmem:[%s5 + $0x80] sm:$0xff]
        %v8812 = vld [vmem:[%s5 + $0x88] sm:$0xff]
        %v8813 = vld [vmem:[%s5 + $0x90] sm:$0xff]
        %v8814 = vld [vmem:[%s5 + $0x98] sm:$0xff]
        %v8815 = vld [vmem:[%s5 + $0xa0] sm:$0xff]
        %v8816 = vld [vmem:[%s5 + $0xa8] sm:$0xff]
        %v8817 = vld [vmem:[%s5 + $0xb0] sm:$0xff]
        %v8818 = vld [vmem:[%s5 + $0xb8] sm:$0xff]
        %v8819 = vld [vmem:[%s5 + $0xc0] sm:$0xff]
        %v8820 = vld [vmem:[%s5 + $0xc8] sm:$0xff]
        %v8821 = vld [vmem:[%s5 + $0xd0] sm:$0xff]
        %v8822 = vld [vmem:[%s5 + $0xd8] sm:$0xff]
        %v8823 = vld [vmem:[%s5 + $0xe0] sm:$0xff]
        %v8824 = vld [vmem:[%s5 + $0xe8] sm:$0xff]
        %v8825 = vld [vmem:[%s5 + $0xf0] sm:$0xff]
        %v8826 = vld [vmem:[%s5 + $0xf8] sm:$0xff]
        %v8827 = vld [vmem:[%s5 + $0x100] sm:$0xff]
        %v8828 = vld [vmem:[%s5 + $0x108] sm:$0xff]
        %v8829 = vld [vmem:[%s5 + $0x110] sm:$0xff]
        %v8830 = vld [vmem:[%s5 + $0x118] sm:$0xff]
        %v8831 = vld [vmem:[%s5 + $0x120] sm:$0xff]
        %v8832 = vld [vmem:[%s5 + $0x128] sm:$0xff]
        %v8833 = vld [vmem:[%s5 + $0x130] sm:$0xff]
        %v8834 = vld [vmem:[%s5 + $0x138] sm:$0xff]
        %v8835 = vld [vmem:[%s5 + $0x140] sm:$0xff]
        %v8836 = vld [vmem:[%s5 + $0x148] sm:$0xff]
        %v8837 = vld [vmem:[%s5 + $0x150] sm:$0xff]
        %v8838 = vld [vmem:[%s5 + $0x158] sm:$0x1f]
        %vm8839 = vcmask 760832
        %v8841 = vsel %vm8839, %v8788, 0
        %v8844 = vsel %vm8839, %v8791, 0
        %v8847 = vsel %vm8839, %v8794, 0
        %vm8849 = vcmask 1044480
        %v8851 = vsel %vm8849, %v8838, 0
        %8853 = vmatprep.subr.mxu0 0.0
        %8854 = vmatpush1.msra.mxu0 %v8795
        %8855 = vmatprep.subr.mxu0 0.0
        %8856 = vmatpush1.msra.mxu0 %v8796
        %8857 = vmatprep.subr.mxu0 0.0
        %8858 = vmatpush1.msra.mxu0 %v8797
        %8859 = vmatprep.subr.mxu0 0.0
        %8860 = vmatpush1.msra.mxu0 %v8798
        %8861 = vmatprep.subr.mxu0 0.0
        %8862 = vmatpush1.msra.mxu0 %v8799
        %8863 = vmatprep.subr.mxu0 0.0
        %8864 = vmatpush1.msra.mxu0 %v8800
        %8865 = vmatprep.subr.mxu0 0.0
        %8866 = vmatpush1.msra.mxu0 %v8801
        %8867 = vmatprep.subr.mxu0 0.0
        %8868 = vmatpush1.msra.mxu0 %v8802
        %8869 = vmatprep.subr.mxu0 0.0
        %8870 = vmatpush1.msra.mxu0 %v8803
        %8871 = vmatprep.subr.mxu0 0.0
        %8872 = vmatpush1.msra.mxu0 %v8804
        %8873 = vmatprep.subr.mxu0 0.0
        %8874 = vmatpush1.msra.mxu0 %v8805
        %8875 = vmatprep.subr.mxu0 0.0
        %8876 = vmatpush1.msra.mxu0 %v8806
        %8877 = vmatprep.subr.mxu0 0.0
        %8878 = vmatpush1.msra.mxu0 %v8807
        %8879 = vmatprep.subr.mxu0 0.0
        %8880 = vmatpush1.msra.mxu0 %v8808
        %8881 = vmatprep.subr.mxu0 0.0
        %8882 = vmatpush1.msra.mxu0 %v8809
        %8883 = vmatprep.subr.mxu0 0.0
        %8884 = vmatpush1.msra.mxu0 %v8810
        %8885 = vmatprep.subr.mxu0 0.0
        %8886 = vmatpush1.msra.mxu0 %v8811
        %8887 = vmatprep.subr.mxu0 0.0
        %8888 = vmatpush1.msra.mxu0 %v8812
        %8889 = vmatprep.subr.mxu0 0.0
        %8890 = vmatpush1.msra.mxu0 %v8813
        %8891 = vmatprep.subr.mxu0 0.0
        %8892 = vmatpush1.msra.mxu0 %v8814
        %8893 = vmatprep.subr.mxu0 0.0
        %8894 = vmatpush1.msra.mxu0 %v8815
        %8895 = vmatprep.subr.mxu0 0.0
        %8896 = vmatpush1.msra.mxu0 %v8816
        %8897 = vmatprep.subr.mxu0 0.0
        %8898 = vmatpush1.msra.mxu0 %v8817
        %8899 = vmatprep.subr.mxu0 0.0
        %8900 = vmatpush1.msra.mxu0 %v8818
        %8901 = vmatprep.subr.mxu0 0.0
        %8902 = vmatpush1.msra.mxu0 %v8819
        %8903 = vmatprep.subr.mxu0 0.0
        %8904 = vmatpush1.msra.mxu0 %v8820
        %8905 = vmatprep.subr.mxu0 0.0
        %8906 = vmatpush1.msra.mxu0 %v8821
        %8907 = vmatprep.subr.mxu0 0.0
        %8908 = vmatpush1.msra.mxu0 %v8822
        %8909 = vmatprep.subr.mxu0 0.0
        %8910 = vmatpush1.msra.mxu0 %v8823
        %8911 = vmatprep.subr.mxu0 0.0
        %8912 = vmatpush1.msra.mxu0 %v8824
        %8913 = vmatprep.subr.mxu0 0.0
        %8914 = vmatpush1.msra.mxu0 %v8825
        %8915 = vmatprep.subr.mxu0 0.0
        %8916 = vmatpush1.msra.mxu0 %v8826
        %8917 = vmatprep.mubr.f32.mxu0 %v8787
        %8918 = vmatmul.mubr.f32.gmra.mrb[0].mxu0 %v8786
        %v8919 = vpop.f32.mrb[0].mxu0
        %v8920 = vadd.f32 0.0, %v8919
        %v8921 = vpop.f32.mrb[0].mxu0
        %8922 = vmatprep.mubr.f32.mxu0 %v8790
        %8923 = vmatmul.mubr.f32.gmra.mrb[0].mxu0 %v8789
        %v8924 = vpop.f32.mrb[0].mxu0
        %v8925 = vadd.f32 0.0, %v8924
        %v8926 = vpop.f32.mrb[0].mxu0
        %8927 = vmatprep.mubr.f32.mxu0 %v8793
        %8928 = vmatmul.mubr.f32.gmra.mrb[0].mxu0 %v8792
        %v8929 = vpop.f32.mrb[0].mxu0
        %v8930 = vadd.f32 0.0, %v8929
        %v8931 = vpop.f32.mrb[0].mxu0
        %8932 = vdwg.mxu0
        %8933 = vmatprep.subr.mxu0 0.0
        %8934 = vmatpush1.msra.mxu0 %v8827
        %8935 = vmatprep.subr.mxu0 0.0
        %8936 = vmatpush1.msra.mxu0 %v8828
        %8937 = vmatprep.subr.mxu0 0.0
        %8938 = vmatpush1.msra.mxu0 %v8829
        %8939 = vmatprep.subr.mxu0 0.0
        %8940 = vmatpush1.msra.mxu0 %v8830
        %8941 = vmatprep.subr.mxu0 0.0
        %8942 = vmatpush1.msra.mxu0 %v8831
        %8943 = vmatprep.subr.mxu0 0.0
        %8944 = vmatpush1.msra.mxu0 %v8832
        %8945 = vmatprep.subr.mxu0 0.0
        %8946 = vmatpush1.msra.mxu0 %v8833
        %8947 = vmatprep.subr.mxu0 0.0
        %8948 = vmatpush1.msra.mxu0 %v8834
        %8949 = vmatprep.subr.mxu0 0.0
        %8950 = vmatpush1.msra.mxu0 %v8835
        %8951 = vmatprep.subr.mxu0 0.0
        %8952 = vmatpush1.msra.mxu0 %v8836
        %8953 = vmatprep.subr.mxu0 0.0
        %8954 = vmatpush1.msra.mxu0 %v8837
        %8955 = vmatprep.subr.mxu0 0.0
        %8956 = vmatpush1.msra.mxu0 %v8851
        %8957 = vmatprep.subr.mxu0 0.0
        %8958 = vmatpush1.msra.mxu0 0.0
        %8959 = vmatprep.subr.mxu0 0.0
        %8960 = vmatpush1.msra.mxu0 0.0
        %8961 = vmatprep.subr.mxu0 0.0
        %8962 = vmatpush1.msra.mxu0 0.0
        %8963 = vmatprep.subr.mxu0 0.0
        %8964 = vmatpush1.msra.mxu0 0.0
        %8965 = vmatprep.subr.mxu0 0.0
        %8966 = vmatpush1.msra.mxu0 0.0
        %8967 = vmatprep.subr.mxu0 0.0
        %8968 = vmatpush1.msra.mxu0 0.0
        %8969 = vmatprep.subr.mxu0 0.0
        %8970 = vmatpush1.msra.mxu0 0.0
        %8971 = vmatprep.subr.mxu0 0.0
        %8972 = vmatpush1.msra.mxu0 0.0
        %8973 = vmatprep.subr.mxu0 0.0
        %8974 = vmatpush1.msra.mxu0 0.0
        %8975 = vmatprep.subr.mxu0 0.0
        %8976 = vmatpush1.msra.mxu0 0.0
        %8977 = vmatprep.subr.mxu0 0.0
        %8978 = vmatpush1.msra.mxu0 0.0
        %8979 = vmatprep.subr.mxu0 0.0
        %8980 = vmatpush1.msra.mxu0 0.0
        %8981 = vmatprep.subr.mxu0 0.0
        %8982 = vmatpush1.msra.mxu0 0.0
        %8983 = vmatprep.subr.mxu0 0.0
        %8984 = vmatpush1.msra.mxu0 0.0
        %8985 = vmatprep.subr.mxu0 0.0
        %8986 = vmatpush1.msra.mxu0 0.0
        %8987 = vmatprep.subr.mxu0 0.0
        %8988 = vmatpush1.msra.mxu0 0.0
        %8989 = vmatprep.subr.mxu0 0.0
        %8990 = vmatpush1.msra.mxu0 0.0
        %8991 = vmatprep.subr.mxu0 0.0
        %8992 = vmatpush1.msra.mxu0 0.0
        %8993 = vmatprep.subr.mxu0 0.0
        %8994 = vmatpush1.msra.mxu0 0.0
        %8995 = vmatprep.subr.mxu0 0.0
        %8996 = vmatpush1.msra.mxu0 0.0
        %8997 = vmatprep.mubr.f32.mxu0 0.0
        %8998 = vmatmul.mubr.f32.gmra.mrb[0].mxu0 %v8841
        %v8999 = vpop.f32.mrb[0].mxu0
        %v9000 = vadd.f32 %v8920, %v8999
        %v9001 = vpop.f32.mrb[0].mxu0
        %9002 = vmatprep.mubr.f32.mxu0 0.0
        %9003 = vmatmul.mubr.f32.gmra.mrb[0].mxu0 %v8844
        %v9004 = vpop.f32.mrb[0].mxu0
        %v9005 = vadd.f32 %v8925, %v9004
        %v9006 = vpop.f32.mrb[0].mxu0
        %9007 = vmatprep.mubr.f32.mxu0 0.0
        %9008 = vmatmul.mubr.f32.gmra.mrb[0].mxu0 %v8847
        %v9009 = vpop.f32.mrb[0].mxu0
        %v9010 = vadd.f32 %v8930, %v9009
        %v9011 = vpop.f32.mrb[0].mxu0
        %9012 = vdwg.mxu0
        %9013 = vst.msk [vmem:[#allocation5] sm:$0xff] %vm2289, %v9000
        %9014 = vst.msk [vmem:[#allocation5 + $0x8] sm:$0xff] %vm2289, %v9005
        %vm9015 = vcmask 125952
        %9016 = vst.msk [vmem:[#allocation5 + $0x10] sm:$0xf] %vm9015, %v9010
        %v9017 = vld [vmem:[%s7] sm:$0x1]
        %v9018 = vld [vmem:[#allocation5] sm:$0x1]
        %v9019 = vld [vmem:[%s6] sm:$0xff]
        %v9020 = vld [vmem:[%s6 + $0x8] sm:$0xff]
        %v9022 = vsel %vm2289, %v9018, 0
        %9024 = vmatprep.subr.mxu0 0.0
        %9025 = vmatpush1.msra.mxu0 %v9019
        %9026 = vmatprep.subr.mxu0 0.0
        %9027 = vmatpush1.msra.mxu0 %v9020
        %9028 = vmatprep.subr.mxu0 0.0
        %9029 = vmatpush1.msra.mxu0 0.0
        %9030 = vmatprep.subr.mxu0 0.0
        %9031 = vmatpush1.msra.mxu0 0.0
        %9032 = vmatprep.subr.mxu0 0.0
        %9033 = vmatpush1.msra.mxu0 0.0
        %9034 = vmatprep.subr.mxu0 0.0
        %9035 = vmatpush1.msra.mxu0 0.0
        %9036 = vmatprep.subr.mxu0 0.0
        %9037 = vmatpush1.msra.mxu0 0.0
        %9038 = vmatprep.subr.mxu0 0.0
        %9039 = vmatpush1.msra.mxu0 0.0
        %9040 = vmatprep.subr.mxu0 0.0
        %9041 = vmatpush1.msra.mxu0 0.0
        %9042 = vmatprep.subr.mxu0 0.0
        %9043 = vmatpush1.msra.mxu0 0.0
        %9044 = vmatprep.subr.mxu0 0.0
        %9045 = vmatpush1.msra.mxu0 0.0
        %9046 = vmatprep.subr.mxu0 0.0
        %9047 = vmatpush1.msra.mxu0 0.0
        %9048 = vmatprep.subr.mxu0 0.0
        %9049 = vmatpush1.msra.mxu0 0.0
        %9050 = vmatprep.subr.mxu0 0.0
        %9051 = vmatpush1.msra.mxu0 0.0
        %9052 = vmatprep.subr.mxu0 0.0
        %9053 = vmatpush1.msra.mxu0 0.0
        %9054 = vmatprep.subr.mxu0 0.0
        %9055 = vmatpush1.msra.mxu0 0.0
        %9056 = vmatprep.subr.mxu0 0.0
        %9057 = vmatpush1.msra.mxu0 0.0
        %9058 = vmatprep.subr.mxu0 0.0
        %9059 = vmatpush1.msra.mxu0 0.0
        %9060 = vmatprep.subr.mxu0 0.0
        %9061 = vmatpush1.msra.mxu0 0.0
        %9062 = vmatprep.subr.mxu0 0.0
        %9063 = vmatpush1.msra.mxu0 0.0
        %9064 = vmatprep.subr.mxu0 0.0
        %9065 = vmatpush1.msra.mxu0 0.0
        %9066 = vmatprep.subr.mxu0 0.0
        %9067 = vmatpush1.msra.mxu0 0.0
        %9068 = vmatprep.subr.mxu0 0.0
        %9069 = vmatpush1.msra.mxu0 0.0
        %9070 = vmatprep.subr.mxu0 0.0
        %9071 = vmatpush1.msra.mxu0 0.0
        %9072 = vmatprep.subr.mxu0 0.0
        %9073 = vmatpush1.msra.mxu0 0.0
        %9074 = vmatprep.subr.mxu0 0.0
        %9075 = vmatpush1.msra.mxu0 0.0
        %9076 = vmatprep.subr.mxu0 0.0
        %9077 = vmatpush1.msra.mxu0 0.0
        %9078 = vmatprep.subr.mxu0 0.0
        %9079 = vmatpush1.msra.mxu0 0.0
        %9080 = vmatprep.subr.mxu0 0.0
        %9081 = vmatpush1.msra.mxu0 0.0
        %9082 = vmatprep.subr.mxu0 0.0
        %9083 = vmatpush1.msra.mxu0 0.0
        %9084 = vmatprep.subr.mxu0 0.0
        %9085 = vmatpush1.msra.mxu0 0.0
        %9086 = vmatprep.subr.mxu0 0.0
        %9087 = vmatpush1.msra.mxu0 0.0
        %9088 = vmatprep.mubr.f32.mxu0 0.0
        %9089 = vmatmul.mubr.f32.gmra.mrb[0].mxu0 %v9022
        %v9090 = vpop.f32.mrb[0].mxu0
        %v9091 = vadd.f32 0.0, %v9090
        %v9092 = vpop.f32.mrb[0].mxu0
        %9093 = vdwg.mxu0
        %v9094 = vadd.f32 %v9017, %v9091
        %v9095 = vld [vmem:[#allocation5 + $0x1] sm:$0x1]
        %s9096 = scalar_lea.vmem %s6, 16
        %v9097 = vld [vmem:[%s9096] sm:$0xff]
        %v9098 = vld [vmem:[%s9096 + $0x8] sm:$0xff]
        %v9100 = vsel %vm2289, %v9095, 0
        %9102 = vmatprep.subr.mxu0 0.0
        %9103 = vmatpush1.msra.mxu0 %v9097
        %9104 = vmatprep.subr.mxu0 0.0
        %9105 = vmatpush1.msra.mxu0 %v9098
        %9106 = vmatprep.subr.mxu0 0.0
        %9107 = vmatpush1.msra.mxu0 0.0
        %9108 = vmatprep.subr.mxu0 0.0
        %9109 = vmatpush1.msra.mxu0 0.0
        %9110 = vmatprep.subr.mxu0 0.0
        %9111 = vmatpush1.msra.mxu0 0.0
        %9112 = vmatprep.subr.mxu0 0.0
        %9113 = vmatpush1.msra.mxu0 0.0
        %9114 = vmatprep.subr.mxu0 0.0
        %9115 = vmatpush1.msra.mxu0 0.0
        %9116 = vmatprep.subr.mxu0 0.0
        %9117 = vmatpush1.msra.mxu0 0.0
        %9118 = vmatprep.subr.mxu0 0.0
        %9119 = vmatpush1.msra.mxu0 0.0
        %9120 = vmatprep.subr.mxu0 0.0
        %9121 = vmatpush1.msra.mxu0 0.0
        %9122 = vmatprep.subr.mxu0 0.0
        %9123 = vmatpush1.msra.mxu0 0.0
        %9124 = vmatprep.subr.mxu0 0.0
        %9125 = vmatpush1.msra.mxu0 0.0
        %9126 = vmatprep.subr.mxu0 0.0
        %9127 = vmatpush1.msra.mxu0 0.0
        %9128 = vmatprep.subr.mxu0 0.0
        %9129 = vmatpush1.msra.mxu0 0.0
        %9130 = vmatprep.subr.mxu0 0.0
        %9131 = vmatpush1.msra.mxu0 0.0
        %9132 = vmatprep.subr.mxu0 0.0
        %9133 = vmatpush1.msra.mxu0 0.0
        %9134 = vmatprep.subr.mxu0 0.0
        %9135 = vmatpush1.msra.mxu0 0.0
        %9136 = vmatprep.subr.mxu0 0.0
        %9137 = vmatpush1.msra.mxu0 0.0
        %9138 = vmatprep.subr.mxu0 0.0
        %9139 = vmatpush1.msra.mxu0 0.0
        %9140 = vmatprep.subr.mxu0 0.0
        %9141 = vmatpush1.msra.mxu0 0.0
        %9142 = vmatprep.subr.mxu0 0.0
        %9143 = vmatpush1.msra.mxu0 0.0
        %9144 = vmatprep.subr.mxu0 0.0
        %9145 = vmatpush1.msra.mxu0 0.0
        %9146 = vmatprep.subr.mxu0 0.0
        %9147 = vmatpush1.msra.mxu0 0.0
        %9148 = vmatprep.subr.mxu0 0.0
        %9149 = vmatpush1.msra.mxu0 0.0
        %9150 = vmatprep.subr.mxu0 0.0
        %9151 = vmatpush1.msra.mxu0 0.0
        %9152 = vmatprep.subr.mxu0 0.0
        %9153 = vmatpush1.msra.mxu0 0.0
        %9154 = vmatprep.subr.mxu0 0.0
        %9155 = vmatpush1.msra.mxu0 0.0
        %9156 = vmatprep.subr.mxu0 0.0
        %9157 = vmatpush1.msra.mxu0 0.0
        %9158 = vmatprep.subr.mxu0 0.0
        %9159 = vmatpush1.msra.mxu0 0.0
        %9160 = vmatprep.subr.mxu0 0.0
        %9161 = vmatpush1.msra.mxu0 0.0
        %9162 = vmatprep.subr.mxu0 0.0
        %9163 = vmatpush1.msra.mxu0 0.0
        %9164 = vmatprep.subr.mxu0 0.0
        %9165 = vmatpush1.msra.mxu0 0.0
        %9166 = vmatprep.mubr.f32.mxu0 0.0
        %9167 = vmatmul.mubr.f32.gmra.mrb[0].mxu0 %v9100
        %v9168 = vpop.f32.mrb[0].mxu0
        %v9169 = vadd.f32 0.0, %v9168
        %v9170 = vpop.f32.mrb[0].mxu0
        %9171 = vdwg.mxu0
        %v9172 = vadd.f32 %v9094, %v9169
        %v9173 = vld [vmem:[#allocation5 + $0x2] sm:$0x1]
        %s9174 = scalar_lea.vmem %s6, 32
        %v9175 = vld [vmem:[%s9174] sm:$0xff]
        %v9176 = vld [vmem:[%s9174 + $0x8] sm:$0xff]
        %v9178 = vsel %vm2289, %v9173, 0
        %9180 = vmatprep.subr.mxu0 0.0
        %9181 = vmatpush1.msra.mxu0 %v9175
        %9182 = vmatprep.subr.mxu0 0.0
        %9183 = vmatpush1.msra.mxu0 %v9176
        %9184 = vmatprep.subr.mxu0 0.0
        %9185 = vmatpush1.msra.mxu0 0.0
        %9186 = vmatprep.subr.mxu0 0.0
        %9187 = vmatpush1.msra.mxu0 0.0
        %9188 = vmatprep.subr.mxu0 0.0
        %9189 = vmatpush1.msra.mxu0 0.0
        %9190 = vmatprep.subr.mxu0 0.0
        %9191 = vmatpush1.msra.mxu0 0.0
        %9192 = vmatprep.subr.mxu0 0.0
        %9193 = vmatpush1.msra.mxu0 0.0
        %9194 = vmatprep.subr.mxu0 0.0
        %9195 = vmatpush1.msra.mxu0 0.0
        %9196 = vmatprep.subr.mxu0 0.0
        %9197 = vmatpush1.msra.mxu0 0.0
        %9198 = vmatprep.subr.mxu0 0.0
        %9199 = vmatpush1.msra.mxu0 0.0
        %9200 = vmatprep.subr.mxu0 0.0
        %9201 = vmatpush1.msra.mxu0 0.0
        %9202 = vmatprep.subr.mxu0 0.0
        %9203 = vmatpush1.msra.mxu0 0.0
        %9204 = vmatprep.subr.mxu0 0.0
        %9205 = vmatpush1.msra.mxu0 0.0
        %9206 = vmatprep.subr.mxu0 0.0
        %9207 = vmatpush1.msra.mxu0 0.0
        %9208 = vmatprep.subr.mxu0 0.0
        %9209 = vmatpush1.msra.mxu0 0.0
        %9210 = vmatprep.subr.mxu0 0.0
        %9211 = vmatpush1.msra.mxu0 0.0
        %9212 = vmatprep.subr.mxu0 0.0
        %9213 = vmatpush1.msra.mxu0 0.0
        %9214 = vmatprep.subr.mxu0 0.0
        %9215 = vmatpush1.msra.mxu0 0.0
        %9216 = vmatprep.subr.mxu0 0.0
        %9217 = vmatpush1.msra.mxu0 0.0
        %9218 = vmatprep.subr.mxu0 0.0
        %9219 = vmatpush1.msra.mxu0 0.0
        %9220 = vmatprep.subr.mxu0 0.0
        %9221 = vmatpush1.msra.mxu0 0.0
        %9222 = vmatprep.subr.mxu0 0.0
        %9223 = vmatpush1.msra.mxu0 0.0
        %9224 = vmatprep.subr.mxu0 0.0
        %9225 = vmatpush1.msra.mxu0 0.0
        %9226 = vmatprep.subr.mxu0 0.0
        %9227 = vmatpush1.msra.mxu0 0.0
        %9228 = vmatprep.subr.mxu0 0.0
        %9229 = vmatpush1.msra.mxu0 0.0
        %9230 = vmatprep.subr.mxu0 0.0
        %9231 = vmatpush1.msra.mxu0 0.0
        %9232 = vmatprep.subr.mxu0 0.0
        %9233 = vmatpush1.msra.mxu0 0.0
        %9234 = vmatprep.subr.mxu0 0.0
        %9235 = vmatpush1.msra.mxu0 0.0
        %9236 = vmatprep.subr.mxu0 0.0
        %9237 = vmatpush1.msra.mxu0 0.0
        %9238 = vmatprep.subr.mxu0 0.0
        %9239 = vmatpush1.msra.mxu0 0.0
        %9240 = vmatprep.subr.mxu0 0.0
        %9241 = vmatpush1.msra.mxu0 0.0
        %9242 = vmatprep.subr.mxu0 0.0
        %9243 = vmatpush1.msra.mxu0 0.0
        %9244 = vmatprep.mubr.f32.mxu0 0.0
        %9245 = vmatmul.mubr.f32.gmra.mrb[0].mxu0 %v9178
        %v9246 = vpop.f32.mrb[0].mxu0
        %v9247 = vadd.f32 0.0, %v9246
        %v9248 = vpop.f32.mrb[0].mxu0
        %9249 = vdwg.mxu0
        %v9250 = vadd.f32 %v9172, %v9247
        %v9251 = vld [vmem:[#allocation5 + $0x3] sm:$0x1]
        %s9252 = scalar_lea.vmem %s6, 48
        %v9253 = vld [vmem:[%s9252] sm:$0xff]
        %v9254 = vld [vmem:[%s9252 + $0x8] sm:$0xff]
        %v9256 = vsel %vm2289, %v9251, 0
        %9258 = vmatprep.subr.mxu0 0.0
        %9259 = vmatpush1.msra.mxu0 %v9253
        %9260 = vmatprep.subr.mxu0 0.0
        %9261 = vmatpush1.msra.mxu0 %v9254
        %9262 = vmatprep.subr.mxu0 0.0
        %9263 = vmatpush1.msra.mxu0 0.0
        %9264 = vmatprep.subr.mxu0 0.0
        %9265 = vmatpush1.msra.mxu0 0.0
        %9266 = vmatprep.subr.mxu0 0.0
        %9267 = vmatpush1.msra.mxu0 0.0
        %9268 = vmatprep.subr.mxu0 0.0
        %9269 = vmatpush1.msra.mxu0 0.0
        %9270 = vmatprep.subr.mxu0 0.0
        %9271 = vmatpush1.msra.mxu0 0.0
        %9272 = vmatprep.subr.mxu0 0.0
        %9273 = vmatpush1.msra.mxu0 0.0
        %9274 = vmatprep.subr.mxu0 0.0
        %9275 = vmatpush1.msra.mxu0 0.0
        %9276 = vmatprep.subr.mxu0 0.0
        %9277 = vmatpush1.msra.mxu0 0.0
        %9278 = vmatprep.subr.mxu0 0.0
        %9279 = vmatpush1.msra.mxu0 0.0
        %9280 = vmatprep.subr.mxu0 0.0
        %9281 = vmatpush1.msra.mxu0 0.0
        %9282 = vmatprep.subr.mxu0 0.0
        %9283 = vmatpush1.msra.mxu0 0.0
        %9284 = vmatprep.subr.mxu0 0.0
        %9285 = vmatpush1.msra.mxu0 0.0
        %9286 = vmatprep.subr.mxu0 0.0
        %9287 = vmatpush1.msra.mxu0 0.0
        %9288 = vmatprep.subr.mxu0 0.0
        %9289 = vmatpush1.msra.mxu0 0.0
        %9290 = vmatprep.subr.mxu0 0.0
        %9291 = vmatpush1.msra.mxu0 0.0
        %9292 = vmatprep.subr.mxu0 0.0
        %9293 = vmatpush1.msra.mxu0 0.0
        %9294 = vmatprep.subr.mxu0 0.0
        %9295 = vmatpush1.msra.mxu0 0.0
        %9296 = vmatprep.subr.mxu0 0.0
        %9297 = vmatpush1.msra.mxu0 0.0
        %9298 = vmatprep.subr.mxu0 0.0
        %9299 = vmatpush1.msra.mxu0 0.0
        %9300 = vmatprep.subr.mxu0 0.0
        %9301 = vmatpush1.msra.mxu0 0.0
        %9302 = vmatprep.subr.mxu0 0.0
        %9303 = vmatpush1.msra.mxu0 0.0
        %9304 = vmatprep.subr.mxu0 0.0
        %9305 = vmatpush1.msra.mxu0 0.0
        %9306 = vmatprep.subr.mxu0 0.0
        %9307 = vmatpush1.msra.mxu0 0.0
        %9308 = vmatprep.subr.mxu0 0.0
        %9309 = vmatpush1.msra.mxu0 0.0
        %9310 = vmatprep.subr.mxu0 0.0
        %9311 = vmatpush1.msra.mxu0 0.0
        %9312 = vmatprep.subr.mxu0 0.0
        %9313 = vmatpush1.msra.mxu0 0.0
        %9314 = vmatprep.subr.mxu0 0.0
        %9315 = vmatpush1.msra.mxu0 0.0
        %9316 = vmatprep.subr.mxu0 0.0
        %9317 = vmatpush1.msra.mxu0 0.0
        %9318 = vmatprep.subr.mxu0 0.0
        %9319 = vmatpush1.msra.mxu0 0.0
        %9320 = vmatprep.subr.mxu0 0.0
        %9321 = vmatpush1.msra.mxu0 0.0
        %9322 = vmatprep.mubr.f32.mxu0 0.0
        %9323 = vmatmul.mubr.f32.gmra.mrb[0].mxu0 %v9256
        %v9324 = vpop.f32.mrb[0].mxu0
        %v9325 = vadd.f32 0.0, %v9324
        %v9326 = vpop.f32.mrb[0].mxu0
        %9327 = vdwg.mxu0
        %v9328 = vadd.f32 %v9250, %v9325
        %v9329 = vld [vmem:[#allocation5 + $0x4] sm:$0x1]
        %s9330 = scalar_lea.vmem %s6, 64
        %v9331 = vld [vmem:[%s9330] sm:$0xff]
        %v9332 = vld [vmem:[%s9330 + $0x8] sm:$0xff]
        %v9334 = vsel %vm2289, %v9329, 0
        %9336 = vmatprep.subr.mxu0 0.0
        %9337 = vmatpush1.msra.mxu0 %v9331
        %9338 = vmatprep.subr.mxu0 0.0
        %9339 = vmatpush1.msra.mxu0 %v9332
        %9340 = vmatprep.subr.mxu0 0.0
        %9341 = vmatpush1.msra.mxu0 0.0
        %9342 = vmatprep.subr.mxu0 0.0
        %9343 = vmatpush1.msra.mxu0 0.0
        %9344 = vmatprep.subr.mxu0 0.0
        %9345 = vmatpush1.msra.mxu0 0.0
        %9346 = vmatprep.subr.mxu0 0.0
        %9347 = vmatpush1.msra.mxu0 0.0
        %9348 = vmatprep.subr.mxu0 0.0
        %9349 = vmatpush1.msra.mxu0 0.0
        %9350 = vmatprep.subr.mxu0 0.0
        %9351 = vmatpush1.msra.mxu0 0.0
        %9352 = vmatprep.subr.mxu0 0.0
        %9353 = vmatpush1.msra.mxu0 0.0
        %9354 = vmatprep.subr.mxu0 0.0
        %9355 = vmatpush1.msra.mxu0 0.0
        %9356 = vmatprep.subr.mxu0 0.0
        %9357 = vmatpush1.msra.mxu0 0.0
        %9358 = vmatprep.subr.mxu0 0.0
        %9359 = vmatpush1.msra.mxu0 0.0
        %9360 = vmatprep.subr.mxu0 0.0
        %9361 = vmatpush1.msra.mxu0 0.0
        %9362 = vmatprep.subr.mxu0 0.0
        %9363 = vmatpush1.msra.mxu0 0.0
        %9364 = vmatprep.subr.mxu0 0.0
        %9365 = vmatpush1.msra.mxu0 0.0
        %9366 = vmatprep.subr.mxu0 0.0
        %9367 = vmatpush1.msra.mxu0 0.0
        %9368 = vmatprep.subr.mxu0 0.0
        %9369 = vmatpush1.msra.mxu0 0.0
        %9370 = vmatprep.subr.mxu0 0.0
        %9371 = vmatpush1.msra.mxu0 0.0
        %9372 = vmatprep.subr.mxu0 0.0
        %9373 = vmatpush1.msra.mxu0 0.0
        %9374 = vmatprep.subr.mxu0 0.0
        %9375 = vmatpush1.msra.mxu0 0.0
        %9376 = vmatprep.subr.mxu0 0.0
        %9377 = vmatpush1.msra.mxu0 0.0
        %9378 = vmatprep.subr.mxu0 0.0
        %9379 = vmatpush1.msra.mxu0 0.0
        %9380 = vmatprep.subr.mxu0 0.0
        %9381 = vmatpush1.msra.mxu0 0.0
        %9382 = vmatprep.subr.mxu0 0.0
        %9383 = vmatpush1.msra.mxu0 0.0
        %9384 = vmatprep.subr.mxu0 0.0
        %9385 = vmatpush1.msra.mxu0 0.0
        %9386 = vmatprep.subr.mxu0 0.0
        %9387 = vmatpush1.msra.mxu0 0.0
        %9388 = vmatprep.subr.mxu0 0.0
        %9389 = vmatpush1.msra.mxu0 0.0
        %9390 = vmatprep.subr.mxu0 0.0
        %9391 = vmatpush1.msra.mxu0 0.0
        %9392 = vmatprep.subr.mxu0 0.0
        %9393 = vmatpush1.msra.mxu0 0.0
        %9394 = vmatprep.subr.mxu0 0.0
        %9395 = vmatpush1.msra.mxu0 0.0
        %9396 = vmatprep.subr.mxu0 0.0
        %9397 = vmatpush1.msra.mxu0 0.0
        %9398 = vmatprep.subr.mxu0 0.0
        %9399 = vmatpush1.msra.mxu0 0.0
        %9400 = vmatprep.mubr.f32.mxu0 0.0
        %9401 = vmatmul.mubr.f32.gmra.mrb[0].mxu0 %v9334
        %v9402 = vpop.f32.mrb[0].mxu0
        %v9403 = vadd.f32 0.0, %v9402
        %v9404 = vpop.f32.mrb[0].mxu0
        %9405 = vdwg.mxu0
        %v9406 = vadd.f32 %v9328, %v9403
        %v9407 = vld [vmem:[#allocation5 + $0x5] sm:$0x1]
        %s9408 = scalar_lea.vmem %s6, 80
        %v9409 = vld [vmem:[%s9408] sm:$0xff]
        %v9410 = vld [vmem:[%s9408 + $0x8] sm:$0xff]
        %v9412 = vsel %vm2289, %v9407, 0
        %9414 = vmatprep.subr.mxu0 0.0
        %9415 = vmatpush1.msra.mxu0 %v9409
        %9416 = vmatprep.subr.mxu0 0.0
        %9417 = vmatpush1.msra.mxu0 %v9410
        %9418 = vmatprep.subr.mxu0 0.0
        %9419 = vmatpush1.msra.mxu0 0.0
        %9420 = vmatprep.subr.mxu0 0.0
        %9421 = vmatpush1.msra.mxu0 0.0
        %9422 = vmatprep.subr.mxu0 0.0
        %9423 = vmatpush1.msra.mxu0 0.0
        %9424 = vmatprep.subr.mxu0 0.0
        %9425 = vmatpush1.msra.mxu0 0.0
        %9426 = vmatprep.subr.mxu0 0.0
        %9427 = vmatpush1.msra.mxu0 0.0
        %9428 = vmatprep.subr.mxu0 0.0
        %9429 = vmatpush1.msra.mxu0 0.0
        %9430 = vmatprep.subr.mxu0 0.0
        %9431 = vmatpush1.msra.mxu0 0.0
        %9432 = vmatprep.subr.mxu0 0.0
        %9433 = vmatpush1.msra.mxu0 0.0
        %9434 = vmatprep.subr.mxu0 0.0
        %9435 = vmatpush1.msra.mxu0 0.0
        %9436 = vmatprep.subr.mxu0 0.0
        %9437 = vmatpush1.msra.mxu0 0.0
        %9438 = vmatprep.subr.mxu0 0.0
        %9439 = vmatpush1.msra.mxu0 0.0
        %9440 = vmatprep.subr.mxu0 0.0
        %9441 = vmatpush1.msra.mxu0 0.0
        %9442 = vmatprep.subr.mxu0 0.0
        %9443 = vmatpush1.msra.mxu0 0.0
        %9444 = vmatprep.subr.mxu0 0.0
        %9445 = vmatpush1.msra.mxu0 0.0
        %9446 = vmatprep.subr.mxu0 0.0
        %9447 = vmatpush1.msra.mxu0 0.0
        %9448 = vmatprep.subr.mxu0 0.0
        %9449 = vmatpush1.msra.mxu0 0.0
        %9450 = vmatprep.subr.mxu0 0.0
        %9451 = vmatpush1.msra.mxu0 0.0
        %9452 = vmatprep.subr.mxu0 0.0
        %9453 = vmatpush1.msra.mxu0 0.0
        %9454 = vmatprep.subr.mxu0 0.0
        %9455 = vmatpush1.msra.mxu0 0.0
        %9456 = vmatprep.subr.mxu0 0.0
        %9457 = vmatpush1.msra.mxu0 0.0
        %9458 = vmatprep.subr.mxu0 0.0
        %9459 = vmatpush1.msra.mxu0 0.0
        %9460 = vmatprep.subr.mxu0 0.0
        %9461 = vmatpush1.msra.mxu0 0.0
        %9462 = vmatprep.subr.mxu0 0.0
        %9463 = vmatpush1.msra.mxu0 0.0
        %9464 = vmatprep.subr.mxu0 0.0
        %9465 = vmatpush1.msra.mxu0 0.0
        %9466 = vmatprep.subr.mxu0 0.0
        %9467 = vmatpush1.msra.mxu0 0.0
        %9468 = vmatprep.subr.mxu0 0.0
        %9469 = vmatpush1.msra.mxu0 0.0
        %9470 = vmatprep.subr.mxu0 0.0
        %9471 = vmatpush1.msra.mxu0 0.0
        %9472 = vmatprep.subr.mxu0 0.0
        %9473 = vmatpush1.msra.mxu0 0.0
        %9474 = vmatprep.subr.mxu0 0.0
        %9475 = vmatpush1.msra.mxu0 0.0
        %9476 = vmatprep.subr.mxu0 0.0
        %9477 = vmatpush1.msra.mxu0 0.0
        %9478 = vmatprep.mubr.f32.mxu0 0.0
        %9479 = vmatmul.mubr.f32.gmra.mrb[0].mxu0 %v9412
        %v9480 = vpop.f32.mrb[0].mxu0
        %v9481 = vadd.f32 0.0, %v9480
        %v9482 = vpop.f32.mrb[0].mxu0
        %9483 = vdwg.mxu0
        %v9484 = vadd.f32 %v9406, %v9481
        %v9485 = vld [vmem:[#allocation5 + $0x6] sm:$0x1]
        %s9486 = scalar_lea.vmem %s6, 96
        %v9487 = vld [vmem:[%s9486] sm:$0xff]
        %v9488 = vld [vmem:[%s9486 + $0x8] sm:$0xff]
        %v9490 = vsel %vm2289, %v9485, 0
        %9492 = vmatprep.subr.mxu0 0.0
        %9493 = vmatpush1.msra.mxu0 %v9487
        %9494 = vmatprep.subr.mxu0 0.0
        %9495 = vmatpush1.msra.mxu0 %v9488
        %9496 = vmatprep.subr.mxu0 0.0
        %9497 = vmatpush1.msra.mxu0 0.0
        %9498 = vmatprep.subr.mxu0 0.0
        %9499 = vmatpush1.msra.mxu0 0.0
        %9500 = vmatprep.subr.mxu0 0.0
        %9501 = vmatpush1.msra.mxu0 0.0
        %9502 = vmatprep.subr.mxu0 0.0
        %9503 = vmatpush1.msra.mxu0 0.0
        %9504 = vmatprep.subr.mxu0 0.0
        %9505 = vmatpush1.msra.mxu0 0.0
        %9506 = vmatprep.subr.mxu0 0.0
        %9507 = vmatpush1.msra.mxu0 0.0
        %9508 = vmatprep.subr.mxu0 0.0
        %9509 = vmatpush1.msra.mxu0 0.0
        %9510 = vmatprep.subr.mxu0 0.0
        %9511 = vmatpush1.msra.mxu0 0.0
        %9512 = vmatprep.subr.mxu0 0.0
        %9513 = vmatpush1.msra.mxu0 0.0
        %9514 = vmatprep.subr.mxu0 0.0
        %9515 = vmatpush1.msra.mxu0 0.0
        %9516 = vmatprep.subr.mxu0 0.0
        %9517 = vmatpush1.msra.mxu0 0.0
        %9518 = vmatprep.subr.mxu0 0.0
        %9519 = vmatpush1.msra.mxu0 0.0
        %9520 = vmatprep.subr.mxu0 0.0
        %9521 = vmatpush1.msra.mxu0 0.0
        %9522 = vmatprep.subr.mxu0 0.0
        %9523 = vmatpush1.msra.mxu0 0.0
        %9524 = vmatprep.subr.mxu0 0.0
        %9525 = vmatpush1.msra.mxu0 0.0
        %9526 = vmatprep.subr.mxu0 0.0
        %9527 = vmatpush1.msra.mxu0 0.0
        %9528 = vmatprep.subr.mxu0 0.0
        %9529 = vmatpush1.msra.mxu0 0.0
        %9530 = vmatprep.subr.mxu0 0.0
        %9531 = vmatpush1.msra.mxu0 0.0
        %9532 = vmatprep.subr.mxu0 0.0
        %9533 = vmatpush1.msra.mxu0 0.0
        %9534 = vmatprep.subr.mxu0 0.0
        %9535 = vmatpush1.msra.mxu0 0.0
        %9536 = vmatprep.subr.mxu0 0.0
        %9537 = vmatpush1.msra.mxu0 0.0
        %9538 = vmatprep.subr.mxu0 0.0
        %9539 = vmatpush1.msra.mxu0 0.0
        %9540 = vmatprep.subr.mxu0 0.0
        %9541 = vmatpush1.msra.mxu0 0.0
        %9542 = vmatprep.subr.mxu0 0.0
        %9543 = vmatpush1.msra.mxu0 0.0
        %9544 = vmatprep.subr.mxu0 0.0
        %9545 = vmatpush1.msra.mxu0 0.0
        %9546 = vmatprep.subr.mxu0 0.0
        %9547 = vmatpush1.msra.mxu0 0.0
        %9548 = vmatprep.subr.mxu0 0.0
        %9549 = vmatpush1.msra.mxu0 0.0
        %9550 = vmatprep.subr.mxu0 0.0
        %9551 = vmatpush1.msra.mxu0 0.0
        %9552 = vmatprep.subr.mxu0 0.0
        %9553 = vmatpush1.msra.mxu0 0.0
        %9554 = vmatprep.subr.mxu0 0.0
        %9555 = vmatpush1.msra.mxu0 0.0
        %9556 = vmatprep.mubr.f32.mxu0 0.0
        %9557 = vmatmul.mubr.f32.gmra.mrb[0].mxu0 %v9490
        %v9558 = vpop.f32.mrb[0].mxu0
        %v9559 = vadd.f32 0.0, %v9558
        %v9560 = vpop.f32.mrb[0].mxu0
        %9561 = vdwg.mxu0
        %v9562 = vadd.f32 %v9484, %v9559
        %v9563 = vld [vmem:[#allocation5 + $0x7] sm:$0x1]
        %s9564 = scalar_lea.vmem %s6, 112
        %v9565 = vld [vmem:[%s9564] sm:$0xff]
        %v9566 = vld [vmem:[%s9564 + $0x8] sm:$0xff]
        %v9568 = vsel %vm2289, %v9563, 0
        %9570 = vmatprep.subr.mxu0 0.0
        %9571 = vmatpush1.msra.mxu0 %v9565
        %9572 = vmatprep.subr.mxu0 0.0
        %9573 = vmatpush1.msra.mxu0 %v9566
        %9574 = vmatprep.subr.mxu0 0.0
        %9575 = vmatpush1.msra.mxu0 0.0
        %9576 = vmatprep.subr.mxu0 0.0
        %9577 = vmatpush1.msra.mxu0 0.0
        %9578 = vmatprep.subr.mxu0 0.0
        %9579 = vmatpush1.msra.mxu0 0.0
        %9580 = vmatprep.subr.mxu0 0.0
        %9581 = vmatpush1.msra.mxu0 0.0
        %9582 = vmatprep.subr.mxu0 0.0
        %9583 = vmatpush1.msra.mxu0 0.0
        %9584 = vmatprep.subr.mxu0 0.0
        %9585 = vmatpush1.msra.mxu0 0.0
        %9586 = vmatprep.subr.mxu0 0.0
        %9587 = vmatpush1.msra.mxu0 0.0
        %9588 = vmatprep.subr.mxu0 0.0
        %9589 = vmatpush1.msra.mxu0 0.0
        %9590 = vmatprep.subr.mxu0 0.0
        %9591 = vmatpush1.msra.mxu0 0.0
        %9592 = vmatprep.subr.mxu0 0.0
        %9593 = vmatpush1.msra.mxu0 0.0
        %9594 = vmatprep.subr.mxu0 0.0
        %9595 = vmatpush1.msra.mxu0 0.0
        %9596 = vmatprep.subr.mxu0 0.0
        %9597 = vmatpush1.msra.mxu0 0.0
        %9598 = vmatprep.subr.mxu0 0.0
        %9599 = vmatpush1.msra.mxu0 0.0
        %9600 = vmatprep.subr.mxu0 0.0
        %9601 = vmatpush1.msra.mxu0 0.0
        %9602 = vmatprep.subr.mxu0 0.0
        %9603 = vmatpush1.msra.mxu0 0.0
        %9604 = vmatprep.subr.mxu0 0.0
        %9605 = vmatpush1.msra.mxu0 0.0
        %9606 = vmatprep.subr.mxu0 0.0
        %9607 = vmatpush1.msra.mxu0 0.0
        %9608 = vmatprep.subr.mxu0 0.0
        %9609 = vmatpush1.msra.mxu0 0.0
        %9610 = vmatprep.subr.mxu0 0.0
        %9611 = vmatpush1.msra.mxu0 0.0
        %9612 = vmatprep.subr.mxu0 0.0
        %9613 = vmatpush1.msra.mxu0 0.0
        %9614 = vmatprep.subr.mxu0 0.0
        %9615 = vmatpush1.msra.mxu0 0.0
        %9616 = vmatprep.subr.mxu0 0.0
        %9617 = vmatpush1.msra.mxu0 0.0
        %9618 = vmatprep.subr.mxu0 0.0
        %9619 = vmatpush1.msra.mxu0 0.0
        %9620 = vmatprep.subr.mxu0 0.0
        %9621 = vmatpush1.msra.mxu0 0.0
        %9622 = vmatprep.subr.mxu0 0.0
        %9623 = vmatpush1.msra.mxu0 0.0
        %9624 = vmatprep.subr.mxu0 0.0
        %9625 = vmatpush1.msra.mxu0 0.0
        %9626 = vmatprep.subr.mxu0 0.0
        %9627 = vmatpush1.msra.mxu0 0.0
        %9628 = vmatprep.subr.mxu0 0.0
        %9629 = vmatpush1.msra.mxu0 0.0
        %9630 = vmatprep.subr.mxu0 0.0
        %9631 = vmatpush1.msra.mxu0 0.0
        %9632 = vmatprep.subr.mxu0 0.0
        %9633 = vmatpush1.msra.mxu0 0.0
        %9634 = vmatprep.mubr.f32.mxu0 0.0
        %9635 = vmatmul.mubr.f32.gmra.mrb[0].mxu0 %v9568
        %v9636 = vpop.f32.mrb[0].mxu0
        %v9637 = vadd.f32 0.0, %v9636
        %v9638 = vpop.f32.mrb[0].mxu0
        %9639 = vdwg.mxu0
        %v9640 = vadd.f32 %v9562, %v9637
        %v9641 = vld [vmem:[#allocation5 + $0x8] sm:$0x1]
        %s9642 = scalar_lea.vmem %s6, 128
        %v9643 = vld [vmem:[%s9642] sm:$0xff]
        %v9644 = vld [vmem:[%s9642 + $0x8] sm:$0xff]
        %v9646 = vsel %vm2289, %v9641, 0
        %9648 = vmatprep.subr.mxu0 0.0
        %9649 = vmatpush1.msra.mxu0 %v9643
        %9650 = vmatprep.subr.mxu0 0.0
        %9651 = vmatpush1.msra.mxu0 %v9644
        %9652 = vmatprep.subr.mxu0 0.0
        %9653 = vmatpush1.msra.mxu0 0.0
        %9654 = vmatprep.subr.mxu0 0.0
        %9655 = vmatpush1.msra.mxu0 0.0
        %9656 = vmatprep.subr.mxu0 0.0
        %9657 = vmatpush1.msra.mxu0 0.0
        %9658 = vmatprep.subr.mxu0 0.0
        %9659 = vmatpush1.msra.mxu0 0.0
        %9660 = vmatprep.subr.mxu0 0.0
        %9661 = vmatpush1.msra.mxu0 0.0
        %9662 = vmatprep.subr.mxu0 0.0
        %9663 = vmatpush1.msra.mxu0 0.0
        %9664 = vmatprep.subr.mxu0 0.0
        %9665 = vmatpush1.msra.mxu0 0.0
        %9666 = vmatprep.subr.mxu0 0.0
        %9667 = vmatpush1.msra.mxu0 0.0
        %9668 = vmatprep.subr.mxu0 0.0
        %9669 = vmatpush1.msra.mxu0 0.0
        %9670 = vmatprep.subr.mxu0 0.0
        %9671 = vmatpush1.msra.mxu0 0.0
        %9672 = vmatprep.subr.mxu0 0.0
        %9673 = vmatpush1.msra.mxu0 0.0
        %9674 = vmatprep.subr.mxu0 0.0
        %9675 = vmatpush1.msra.mxu0 0.0
        %9676 = vmatprep.subr.mxu0 0.0
        %9677 = vmatpush1.msra.mxu0 0.0
        %9678 = vmatprep.subr.mxu0 0.0
        %9679 = vmatpush1.msra.mxu0 0.0
        %9680 = vmatprep.subr.mxu0 0.0
        %9681 = vmatpush1.msra.mxu0 0.0
        %9682 = vmatprep.subr.mxu0 0.0
        %9683 = vmatpush1.msra.mxu0 0.0
        %9684 = vmatprep.subr.mxu0 0.0
        %9685 = vmatpush1.msra.mxu0 0.0
        %9686 = vmatprep.subr.mxu0 0.0
        %9687 = vmatpush1.msra.mxu0 0.0
        %9688 = vmatprep.subr.mxu0 0.0
        %9689 = vmatpush1.msra.mxu0 0.0
        %9690 = vmatprep.subr.mxu0 0.0
        %9691 = vmatpush1.msra.mxu0 0.0
        %9692 = vmatprep.subr.mxu0 0.0
        %9693 = vmatpush1.msra.mxu0 0.0
        %9694 = vmatprep.subr.mxu0 0.0
        %9695 = vmatpush1.msra.mxu0 0.0
        %9696 = vmatprep.subr.mxu0 0.0
        %9697 = vmatpush1.msra.mxu0 0.0
        %9698 = vmatprep.subr.mxu0 0.0
        %9699 = vmatpush1.msra.mxu0 0.0
        %9700 = vmatprep.subr.mxu0 0.0
        %9701 = vmatpush1.msra.mxu0 0.0
        %9702 = vmatprep.subr.mxu0 0.0
        %9703 = vmatpush1.msra.mxu0 0.0
        %9704 = vmatprep.subr.mxu0 0.0
        %9705 = vmatpush1.msra.mxu0 0.0
        %9706 = vmatprep.subr.mxu0 0.0
        %9707 = vmatpush1.msra.mxu0 0.0
        %9708 = vmatprep.subr.mxu0 0.0
        %9709 = vmatpush1.msra.mxu0 0.0
        %9710 = vmatprep.subr.mxu0 0.0
        %9711 = vmatpush1.msra.mxu0 0.0
        %9712 = vmatprep.mubr.f32.mxu0 0.0
        %9713 = vmatmul.mubr.f32.gmra.mrb[0].mxu0 %v9646
        %v9714 = vpop.f32.mrb[0].mxu0
        %v9715 = vadd.f32 0.0, %v9714
        %v9716 = vpop.f32.mrb[0].mxu0
        %9717 = vdwg.mxu0
        %v9718 = vadd.f32 %v9640, %v9715
        %v9719 = vld [vmem:[#allocation5 + $0x9] sm:$0x1]
        %s9720 = scalar_lea.vmem %s6, 144
        %v9721 = vld [vmem:[%s9720] sm:$0xff]
        %v9722 = vld [vmem:[%s9720 + $0x8] sm:$0xff]
        %v9724 = vsel %vm2289, %v9719, 0
        %9726 = vmatprep.subr.mxu0 0.0
        %9727 = vmatpush1.msra.mxu0 %v9721
        %9728 = vmatprep.subr.mxu0 0.0
        %9729 = vmatpush1.msra.mxu0 %v9722
        %9730 = vmatprep.subr.mxu0 0.0
        %9731 = vmatpush1.msra.mxu0 0.0
        %9732 = vmatprep.subr.mxu0 0.0
        %9733 = vmatpush1.msra.mxu0 0.0
        %9734 = vmatprep.subr.mxu0 0.0
        %9735 = vmatpush1.msra.mxu0 0.0
        %9736 = vmatprep.subr.mxu0 0.0
        %9737 = vmatpush1.msra.mxu0 0.0
        %9738 = vmatprep.subr.mxu0 0.0
        %9739 = vmatpush1.msra.mxu0 0.0
        %9740 = vmatprep.subr.mxu0 0.0
        %9741 = vmatpush1.msra.mxu0 0.0
        %9742 = vmatprep.subr.mxu0 0.0
        %9743 = vmatpush1.msra.mxu0 0.0
        %9744 = vmatprep.subr.mxu0 0.0
        %9745 = vmatpush1.msra.mxu0 0.0
        %9746 = vmatprep.subr.mxu0 0.0
        %9747 = vmatpush1.msra.mxu0 0.0
        %9748 = vmatprep.subr.mxu0 0.0
        %9749 = vmatpush1.msra.mxu0 0.0
        %9750 = vmatprep.subr.mxu0 0.0
        %9751 = vmatpush1.msra.mxu0 0.0
        %9752 = vmatprep.subr.mxu0 0.0
        %9753 = vmatpush1.msra.mxu0 0.0
        %9754 = vmatprep.subr.mxu0 0.0
        %9755 = vmatpush1.msra.mxu0 0.0
        %9756 = vmatprep.subr.mxu0 0.0
        %9757 = vmatpush1.msra.mxu0 0.0
        %9758 = vmatprep.subr.mxu0 0.0
        %9759 = vmatpush1.msra.mxu0 0.0
        %9760 = vmatprep.subr.mxu0 0.0
        %9761 = vmatpush1.msra.mxu0 0.0
        %9762 = vmatprep.subr.mxu0 0.0
        %9763 = vmatpush1.msra.mxu0 0.0
        %9764 = vmatprep.subr.mxu0 0.0
        %9765 = vmatpush1.msra.mxu0 0.0
        %9766 = vmatprep.subr.mxu0 0.0
        %9767 = vmatpush1.msra.mxu0 0.0
        %9768 = vmatprep.subr.mxu0 0.0
        %9769 = vmatpush1.msra.mxu0 0.0
        %9770 = vmatprep.subr.mxu0 0.0
        %9771 = vmatpush1.msra.mxu0 0.0
        %9772 = vmatprep.subr.mxu0 0.0
        %9773 = vmatpush1.msra.mxu0 0.0
        %9774 = vmatprep.subr.mxu0 0.0
        %9775 = vmatpush1.msra.mxu0 0.0
        %9776 = vmatprep.subr.mxu0 0.0
        %9777 = vmatpush1.msra.mxu0 0.0
        %9778 = vmatprep.subr.mxu0 0.0
        %9779 = vmatpush1.msra.mxu0 0.0
        %9780 = vmatprep.subr.mxu0 0.0
        %9781 = vmatpush1.msra.mxu0 0.0
        %9782 = vmatprep.subr.mxu0 0.0
        %9783 = vmatpush1.msra.mxu0 0.0
        %9784 = vmatprep.subr.mxu0 0.0
        %9785 = vmatpush1.msra.mxu0 0.0
        %9786 = vmatprep.subr.mxu0 0.0
        %9787 = vmatpush1.msra.mxu0 0.0
        %9788 = vmatprep.subr.mxu0 0.0
        %9789 = vmatpush1.msra.mxu0 0.0
        %9790 = vmatprep.mubr.f32.mxu0 0.0
        %9791 = vmatmul.mubr.f32.gmra.mrb[0].mxu0 %v9724
        %v9792 = vpop.f32.mrb[0].mxu0
        %v9793 = vadd.f32 0.0, %v9792
        %v9794 = vpop.f32.mrb[0].mxu0
        %9795 = vdwg.mxu0
        %v9796 = vadd.f32 %v9718, %v9793
        %v9797 = vld [vmem:[#allocation5 + $0xa] sm:$0x1]
        %s9798 = scalar_lea.vmem %s6, 160
        %v9799 = vld [vmem:[%s9798] sm:$0xff]
        %v9800 = vld [vmem:[%s9798 + $0x8] sm:$0xff]
        %v9802 = vsel %vm2289, %v9797, 0
        %9804 = vmatprep.subr.mxu0 0.0
        %9805 = vmatpush1.msra.mxu0 %v9799
        %9806 = vmatprep.subr.mxu0 0.0
        %9807 = vmatpush1.msra.mxu0 %v9800
        %9808 = vmatprep.subr.mxu0 0.0
        %9809 = vmatpush1.msra.mxu0 0.0
        %9810 = vmatprep.subr.mxu0 0.0
        %9811 = vmatpush1.msra.mxu0 0.0
        %9812 = vmatprep.subr.mxu0 0.0
        %9813 = vmatpush1.msra.mxu0 0.0
        %9814 = vmatprep.subr.mxu0 0.0
        %9815 = vmatpush1.msra.mxu0 0.0
        %9816 = vmatprep.subr.mxu0 0.0
        %9817 = vmatpush1.msra.mxu0 0.0
        %9818 = vmatprep.subr.mxu0 0.0
        %9819 = vmatpush1.msra.mxu0 0.0
        %9820 = vmatprep.subr.mxu0 0.0
        %9821 = vmatpush1.msra.mxu0 0.0
        %9822 = vmatprep.subr.mxu0 0.0
        %9823 = vmatpush1.msra.mxu0 0.0
        %9824 = vmatprep.subr.mxu0 0.0
        %9825 = vmatpush1.msra.mxu0 0.0
        %9826 = vmatprep.subr.mxu0 0.0
        %9827 = vmatpush1.msra.mxu0 0.0
        %9828 = vmatprep.subr.mxu0 0.0
        %9829 = vmatpush1.msra.mxu0 0.0
        %9830 = vmatprep.subr.mxu0 0.0
        %9831 = vmatpush1.msra.mxu0 0.0
        %9832 = vmatprep.subr.mxu0 0.0
        %9833 = vmatpush1.msra.mxu0 0.0
        %9834 = vmatprep.subr.mxu0 0.0
        %9835 = vmatpush1.msra.mxu0 0.0
        %9836 = vmatprep.subr.mxu0 0.0
        %9837 = vmatpush1.msra.mxu0 0.0
        %9838 = vmatprep.subr.mxu0 0.0
        %9839 = vmatpush1.msra.mxu0 0.0
        %9840 = vmatprep.subr.mxu0 0.0
        %9841 = vmatpush1.msra.mxu0 0.0
        %9842 = vmatprep.subr.mxu0 0.0
        %9843 = vmatpush1.msra.mxu0 0.0
        %9844 = vmatprep.subr.mxu0 0.0
        %9845 = vmatpush1.msra.mxu0 0.0
        %9846 = vmatprep.subr.mxu0 0.0
        %9847 = vmatpush1.msra.mxu0 0.0
        %9848 = vmatprep.subr.mxu0 0.0
        %9849 = vmatpush1.msra.mxu0 0.0
        %9850 = vmatprep.subr.mxu0 0.0
        %9851 = vmatpush1.msra.mxu0 0.0
        %9852 = vmatprep.subr.mxu0 0.0
        %9853 = vmatpush1.msra.mxu0 0.0
        %9854 = vmatprep.subr.mxu0 0.0
        %9855 = vmatpush1.msra.mxu0 0.0
        %9856 = vmatprep.subr.mxu0 0.0
        %9857 = vmatpush1.msra.mxu0 0.0
        %9858 = vmatprep.subr.mxu0 0.0
        %9859 = vmatpush1.msra.mxu0 0.0
        %9860 = vmatprep.subr.mxu0 0.0
        %9861 = vmatpush1.msra.mxu0 0.0
        %9862 = vmatprep.subr.mxu0 0.0
        %9863 = vmatpush1.msra.mxu0 0.0
        %9864 = vmatprep.subr.mxu0 0.0
        %9865 = vmatpush1.msra.mxu0 0.0
        %9866 = vmatprep.subr.mxu0 0.0
        %9867 = vmatpush1.msra.mxu0 0.0
        %9868 = vmatprep.mubr.f32.mxu0 0.0
        %9869 = vmatmul.mubr.f32.gmra.mrb[0].mxu0 %v9802
        %v9870 = vpop.f32.mrb[0].mxu0
        %v9871 = vadd.f32 0.0, %v9870
        %v9872 = vpop.f32.mrb[0].mxu0
        %9873 = vdwg.mxu0
        %v9874 = vadd.f32 %v9796, %v9871
        %v9875 = vld [vmem:[#allocation5 + $0xb] sm:$0x1]
        %s9876 = scalar_lea.vmem %s6, 176
        %v9877 = vld [vmem:[%s9876] sm:$0xff]
        %v9878 = vld [vmem:[%s9876 + $0x8] sm:$0xff]
        %v9880 = vsel %vm2289, %v9875, 0
        %9882 = vmatprep.subr.mxu0 0.0
        %9883 = vmatpush1.msra.mxu0 %v9877
        %9884 = vmatprep.subr.mxu0 0.0
        %9885 = vmatpush1.msra.mxu0 %v9878
        %9886 = vmatprep.subr.mxu0 0.0
        %9887 = vmatpush1.msra.mxu0 0.0
        %9888 = vmatprep.subr.mxu0 0.0
        %9889 = vmatpush1.msra.mxu0 0.0
        %9890 = vmatprep.subr.mxu0 0.0
        %9891 = vmatpush1.msra.mxu0 0.0
        %9892 = vmatprep.subr.mxu0 0.0
        %9893 = vmatpush1.msra.mxu0 0.0
        %9894 = vmatprep.subr.mxu0 0.0
        %9895 = vmatpush1.msra.mxu0 0.0
        %9896 = vmatprep.subr.mxu0 0.0
        %9897 = vmatpush1.msra.mxu0 0.0
        %9898 = vmatprep.subr.mxu0 0.0
        %9899 = vmatpush1.msra.mxu0 0.0
        %9900 = vmatprep.subr.mxu0 0.0
        %9901 = vmatpush1.msra.mxu0 0.0
        %9902 = vmatprep.subr.mxu0 0.0
        %9903 = vmatpush1.msra.mxu0 0.0
        %9904 = vmatprep.subr.mxu0 0.0
        %9905 = vmatpush1.msra.mxu0 0.0
        %9906 = vmatprep.subr.mxu0 0.0
        %9907 = vmatpush1.msra.mxu0 0.0
        %9908 = vmatprep.subr.mxu0 0.0
        %9909 = vmatpush1.msra.mxu0 0.0
        %9910 = vmatprep.subr.mxu0 0.0
        %9911 = vmatpush1.msra.mxu0 0.0
        %9912 = vmatprep.subr.mxu0 0.0
        %9913 = vmatpush1.msra.mxu0 0.0
        %9914 = vmatprep.subr.mxu0 0.0
        %9915 = vmatpush1.msra.mxu0 0.0
        %9916 = vmatprep.subr.mxu0 0.0
        %9917 = vmatpush1.msra.mxu0 0.0
        %9918 = vmatprep.subr.mxu0 0.0
        %9919 = vmatpush1.msra.mxu0 0.0
        %9920 = vmatprep.subr.mxu0 0.0
        %9921 = vmatpush1.msra.mxu0 0.0
        %9922 = vmatprep.subr.mxu0 0.0
        %9923 = vmatpush1.msra.mxu0 0.0
        %9924 = vmatprep.subr.mxu0 0.0
        %9925 = vmatpush1.msra.mxu0 0.0
        %9926 = vmatprep.subr.mxu0 0.0
        %9927 = vmatpush1.msra.mxu0 0.0
        %9928 = vmatprep.subr.mxu0 0.0
        %9929 = vmatpush1.msra.mxu0 0.0
        %9930 = vmatprep.subr.mxu0 0.0
        %9931 = vmatpush1.msra.mxu0 0.0
        %9932 = vmatprep.subr.mxu0 0.0
        %9933 = vmatpush1.msra.mxu0 0.0
        %9934 = vmatprep.subr.mxu0 0.0
        %9935 = vmatpush1.msra.mxu0 0.0
        %9936 = vmatprep.subr.mxu0 0.0
        %9937 = vmatpush1.msra.mxu0 0.0
        %9938 = vmatprep.subr.mxu0 0.0
        %9939 = vmatpush1.msra.mxu0 0.0
        %9940 = vmatprep.subr.mxu0 0.0
        %9941 = vmatpush1.msra.mxu0 0.0
        %9942 = vmatprep.subr.mxu0 0.0
        %9943 = vmatpush1.msra.mxu0 0.0
        %9944 = vmatprep.subr.mxu0 0.0
        %9945 = vmatpush1.msra.mxu0 0.0
        %9946 = vmatprep.mubr.f32.mxu0 0.0
        %9947 = vmatmul.mubr.f32.gmra.mrb[0].mxu0 %v9880
        %v9948 = vpop.f32.mrb[0].mxu0
        %v9949 = vadd.f32 0.0, %v9948
        %v9950 = vpop.f32.mrb[0].mxu0
        %9951 = vdwg.mxu0
        %v9952 = vadd.f32 %v9874, %v9949
        %v9953 = vld [vmem:[#allocation5 + $0xc] sm:$0x1]
        %s9954 = scalar_lea.vmem %s6, 192
        %v9955 = vld [vmem:[%s9954] sm:$0xff]
        %v9956 = vld [vmem:[%s9954 + $0x8] sm:$0xff]
        %v9958 = vsel %vm2289, %v9953, 0
        %9960 = vmatprep.subr.mxu0 0.0
        %9961 = vmatpush1.msra.mxu0 %v9955
        %9962 = vmatprep.subr.mxu0 0.0
        %9963 = vmatpush1.msra.mxu0 %v9956
        %9964 = vmatprep.subr.mxu0 0.0
        %9965 = vmatpush1.msra.mxu0 0.0
        %9966 = vmatprep.subr.mxu0 0.0
        %9967 = vmatpush1.msra.mxu0 0.0
        %9968 = vmatprep.subr.mxu0 0.0
        %9969 = vmatpush1.msra.mxu0 0.0
        %9970 = vmatprep.subr.mxu0 0.0
        %9971 = vmatpush1.msra.mxu0 0.0
        %9972 = vmatprep.subr.mxu0 0.0
        %9973 = vmatpush1.msra.mxu0 0.0
        %9974 = vmatprep.subr.mxu0 0.0
        %9975 = vmatpush1.msra.mxu0 0.0
        %9976 = vmatprep.subr.mxu0 0.0
        %9977 = vmatpush1.msra.mxu0 0.0
        %9978 = vmatprep.subr.mxu0 0.0
        %9979 = vmatpush1.msra.mxu0 0.0
        %9980 = vmatprep.subr.mxu0 0.0
        %9981 = vmatpush1.msra.mxu0 0.0
        %9982 = vmatprep.subr.mxu0 0.0
        %9983 = vmatpush1.msra.mxu0 0.0
        %9984 = vmatprep.subr.mxu0 0.0
        %9985 = vmatpush1.msra.mxu0 0.0
        %9986 = vmatprep.subr.mxu0 0.0
        %9987 = vmatpush1.msra.mxu0 0.0
        %9988 = vmatprep.subr.mxu0 0.0
        %9989 = vmatpush1.msra.mxu0 0.0
        %9990 = vmatprep.subr.mxu0 0.0
        %9991 = vmatpush1.msra.mxu0 0.0
        %9992 = vmatprep.subr.mxu0 0.0
        %9993 = vmatpush1.msra.mxu0 0.0
        %9994 = vmatprep.subr.mxu0 0.0
        %9995 = vmatpush1.msra.mxu0 0.0
        %9996 = vmatprep.subr.mxu0 0.0
        %9997 = vmatpush1.msra.mxu0 0.0
        %9998 = vmatprep.subr.mxu0 0.0
        %9999 = vmatpush1.msra.mxu0 0.0
        %10000 = vmatprep.subr.mxu0 0.0
        %10001 = vmatpush1.msra.mxu0 0.0
        %10002 = vmatprep.subr.mxu0 0.0
        %10003 = vmatpush1.msra.mxu0 0.0
        %10004 = vmatprep.subr.mxu0 0.0
        %10005 = vmatpush1.msra.mxu0 0.0
        %10006 = vmatprep.subr.mxu0 0.0
        %10007 = vmatpush1.msra.mxu0 0.0
        %10008 = vmatprep.subr.mxu0 0.0
        %10009 = vmatpush1.msra.mxu0 0.0
        %10010 = vmatprep.subr.mxu0 0.0
        %10011 = vmatpush1.msra.mxu0 0.0
        %10012 = vmatprep.subr.mxu0 0.0
        %10013 = vmatpush1.msra.mxu0 0.0
        %10014 = vmatprep.subr.mxu0 0.0
        %10015 = vmatpush1.msra.mxu0 0.0
        %10016 = vmatprep.subr.mxu0 0.0
        %10017 = vmatpush1.msra.mxu0 0.0
        %10018 = vmatprep.subr.mxu0 0.0
        %10019 = vmatpush1.msra.mxu0 0.0
        %10020 = vmatprep.subr.mxu0 0.0
        %10021 = vmatpush1.msra.mxu0 0.0
        %10022 = vmatprep.subr.mxu0 0.0
        %10023 = vmatpush1.msra.mxu0 0.0
        %10024 = vmatprep.mubr.f32.mxu0 0.0
        %10025 = vmatmul.mubr.f32.gmra.mrb[0].mxu0 %v9958
        %v10026 = vpop.f32.mrb[0].mxu0
        %v10027 = vadd.f32 0.0, %v10026
        %v10028 = vpop.f32.mrb[0].mxu0
        %10029 = vdwg.mxu0
        %v10030 = vadd.f32 %v9952, %v10027
        %v10031 = vld [vmem:[#allocation5 + $0xd] sm:$0x1]
        %s10032 = scalar_lea.vmem %s6, 208
        %v10033 = vld [vmem:[%s10032] sm:$0xff]
        %v10034 = vld [vmem:[%s10032 + $0x8] sm:$0xff]
        %v10036 = vsel %vm2289, %v10031, 0
        %10038 = vmatprep.subr.mxu0 0.0
        %10039 = vmatpush1.msra.mxu0 %v10033
        %10040 = vmatprep.subr.mxu0 0.0
        %10041 = vmatpush1.msra.mxu0 %v10034
        %10042 = vmatprep.subr.mxu0 0.0
        %10043 = vmatpush1.msra.mxu0 0.0
        %10044 = vmatprep.subr.mxu0 0.0
        %10045 = vmatpush1.msra.mxu0 0.0
        %10046 = vmatprep.subr.mxu0 0.0
        %10047 = vmatpush1.msra.mxu0 0.0
        %10048 = vmatprep.subr.mxu0 0.0
        %10049 = vmatpush1.msra.mxu0 0.0
        %10050 = vmatprep.subr.mxu0 0.0
        %10051 = vmatpush1.msra.mxu0 0.0
        %10052 = vmatprep.subr.mxu0 0.0
        %10053 = vmatpush1.msra.mxu0 0.0
        %10054 = vmatprep.subr.mxu0 0.0
        %10055 = vmatpush1.msra.mxu0 0.0
        %10056 = vmatprep.subr.mxu0 0.0
        %10057 = vmatpush1.msra.mxu0 0.0
        %10058 = vmatprep.subr.mxu0 0.0
        %10059 = vmatpush1.msra.mxu0 0.0
        %10060 = vmatprep.subr.mxu0 0.0
        %10061 = vmatpush1.msra.mxu0 0.0
        %10062 = vmatprep.subr.mxu0 0.0
        %10063 = vmatpush1.msra.mxu0 0.0
        %10064 = vmatprep.subr.mxu0 0.0
        %10065 = vmatpush1.msra.mxu0 0.0
        %10066 = vmatprep.subr.mxu0 0.0
        %10067 = vmatpush1.msra.mxu0 0.0
        %10068 = vmatprep.subr.mxu0 0.0
        %10069 = vmatpush1.msra.mxu0 0.0
        %10070 = vmatprep.subr.mxu0 0.0
        %10071 = vmatpush1.msra.mxu0 0.0
        %10072 = vmatprep.subr.mxu0 0.0
        %10073 = vmatpush1.msra.mxu0 0.0
        %10074 = vmatprep.subr.mxu0 0.0
        %10075 = vmatpush1.msra.mxu0 0.0
        %10076 = vmatprep.subr.mxu0 0.0
        %10077 = vmatpush1.msra.mxu0 0.0
        %10078 = vmatprep.subr.mxu0 0.0
        %10079 = vmatpush1.msra.mxu0 0.0
        %10080 = vmatprep.subr.mxu0 0.0
        %10081 = vmatpush1.msra.mxu0 0.0
        %10082 = vmatprep.subr.mxu0 0.0
        %10083 = vmatpush1.msra.mxu0 0.0
        %10084 = vmatprep.subr.mxu0 0.0
        %10085 = vmatpush1.msra.mxu0 0.0
        %10086 = vmatprep.subr.mxu0 0.0
        %10087 = vmatpush1.msra.mxu0 0.0
        %10088 = vmatprep.subr.mxu0 0.0
        %10089 = vmatpush1.msra.mxu0 0.0
        %10090 = vmatprep.subr.mxu0 0.0
        %10091 = vmatpush1.msra.mxu0 0.0
        %10092 = vmatprep.subr.mxu0 0.0
        %10093 = vmatpush1.msra.mxu0 0.0
        %10094 = vmatprep.subr.mxu0 0.0
        %10095 = vmatpush1.msra.mxu0 0.0
        %10096 = vmatprep.subr.mxu0 0.0
        %10097 = vmatpush1.msra.mxu0 0.0
        %10098 = vmatprep.subr.mxu0 0.0
        %10099 = vmatpush1.msra.mxu0 0.0
        %10100 = vmatprep.subr.mxu0 0.0
        %10101 = vmatpush1.msra.mxu0 0.0
        %10102 = vmatprep.mubr.f32.mxu0 0.0
        %10103 = vmatmul.mubr.f32.gmra.mrb[0].mxu0 %v10036
        %v10104 = vpop.f32.mrb[0].mxu0
        %v10105 = vadd.f32 0.0, %v10104
        %v10106 = vpop.f32.mrb[0].mxu0
        %10107 = vdwg.mxu0
        %v10108 = vadd.f32 %v10030, %v10105
        %v10109 = vld [vmem:[#allocation5 + $0xe] sm:$0x1]
        %s10110 = scalar_lea.vmem %s6, 224
        %v10111 = vld [vmem:[%s10110] sm:$0xff]
        %v10112 = vld [vmem:[%s10110 + $0x8] sm:$0xff]
        %v10114 = vsel %vm2289, %v10109, 0
        %10116 = vmatprep.subr.mxu0 0.0
        %10117 = vmatpush1.msra.mxu0 %v10111
        %10118 = vmatprep.subr.mxu0 0.0
        %10119 = vmatpush1.msra.mxu0 %v10112
        %10120 = vmatprep.subr.mxu0 0.0
        %10121 = vmatpush1.msra.mxu0 0.0
        %10122 = vmatprep.subr.mxu0 0.0
        %10123 = vmatpush1.msra.mxu0 0.0
        %10124 = vmatprep.subr.mxu0 0.0
        %10125 = vmatpush1.msra.mxu0 0.0
        %10126 = vmatprep.subr.mxu0 0.0
        %10127 = vmatpush1.msra.mxu0 0.0
        %10128 = vmatprep.subr.mxu0 0.0
        %10129 = vmatpush1.msra.mxu0 0.0
        %10130 = vmatprep.subr.mxu0 0.0
        %10131 = vmatpush1.msra.mxu0 0.0
        %10132 = vmatprep.subr.mxu0 0.0
        %10133 = vmatpush1.msra.mxu0 0.0
        %10134 = vmatprep.subr.mxu0 0.0
        %10135 = vmatpush1.msra.mxu0 0.0
        %10136 = vmatprep.subr.mxu0 0.0
        %10137 = vmatpush1.msra.mxu0 0.0
        %10138 = vmatprep.subr.mxu0 0.0
        %10139 = vmatpush1.msra.mxu0 0.0
        %10140 = vmatprep.subr.mxu0 0.0
        %10141 = vmatpush1.msra.mxu0 0.0
        %10142 = vmatprep.subr.mxu0 0.0
        %10143 = vmatpush1.msra.mxu0 0.0
        %10144 = vmatprep.subr.mxu0 0.0
        %10145 = vmatpush1.msra.mxu0 0.0
        %10146 = vmatprep.subr.mxu0 0.0
        %10147 = vmatpush1.msra.mxu0 0.0
        %10148 = vmatprep.subr.mxu0 0.0
        %10149 = vmatpush1.msra.mxu0 0.0
        %10150 = vmatprep.subr.mxu0 0.0
        %10151 = vmatpush1.msra.mxu0 0.0
        %10152 = vmatprep.subr.mxu0 0.0
        %10153 = vmatpush1.msra.mxu0 0.0
        %10154 = vmatprep.subr.mxu0 0.0
        %10155 = vmatpush1.msra.mxu0 0.0
        %10156 = vmatprep.subr.mxu0 0.0
        %10157 = vmatpush1.msra.mxu0 0.0
        %10158 = vmatprep.subr.mxu0 0.0
        %10159 = vmatpush1.msra.mxu0 0.0
        %10160 = vmatprep.subr.mxu0 0.0
        %10161 = vmatpush1.msra.mxu0 0.0
        %10162 = vmatprep.subr.mxu0 0.0
        %10163 = vmatpush1.msra.mxu0 0.0
        %10164 = vmatprep.subr.mxu0 0.0
        %10165 = vmatpush1.msra.mxu0 0.0
        %10166 = vmatprep.subr.mxu0 0.0
        %10167 = vmatpush1.msra.mxu0 0.0
        %10168 = vmatprep.subr.mxu0 0.0
        %10169 = vmatpush1.msra.mxu0 0.0
        %10170 = vmatprep.subr.mxu0 0.0
        %10171 = vmatpush1.msra.mxu0 0.0
        %10172 = vmatprep.subr.mxu0 0.0
        %10173 = vmatpush1.msra.mxu0 0.0
        %10174 = vmatprep.subr.mxu0 0.0
        %10175 = vmatpush1.msra.mxu0 0.0
        %10176 = vmatprep.subr.mxu0 0.0
        %10177 = vmatpush1.msra.mxu0 0.0
        %10178 = vmatprep.subr.mxu0 0.0
        %10179 = vmatpush1.msra.mxu0 0.0
        %10180 = vmatprep.mubr.f32.mxu0 0.0
        %10181 = vmatmul.mubr.f32.gmra.mrb[0].mxu0 %v10114
        %v10182 = vpop.f32.mrb[0].mxu0
        %v10183 = vadd.f32 0.0, %v10182
        %v10184 = vpop.f32.mrb[0].mxu0
        %10185 = vdwg.mxu0
        %v10186 = vadd.f32 %v10108, %v10183
        %v10187 = vld [vmem:[#allocation5 + $0xf] sm:$0x1]
        %s10188 = scalar_lea.vmem %s6, 240
        %v10189 = vld [vmem:[%s10188] sm:$0xff]
        %v10190 = vld [vmem:[%s10188 + $0x8] sm:$0xff]
        %v10192 = vsel %vm2289, %v10187, 0
        %10194 = vmatprep.subr.mxu0 0.0
        %10195 = vmatpush1.msra.mxu0 %v10189
        %10196 = vmatprep.subr.mxu0 0.0
        %10197 = vmatpush1.msra.mxu0 %v10190
        %10198 = vmatprep.subr.mxu0 0.0
        %10199 = vmatpush1.msra.mxu0 0.0
        %10200 = vmatprep.subr.mxu0 0.0
        %10201 = vmatpush1.msra.mxu0 0.0
        %10202 = vmatprep.subr.mxu0 0.0
        %10203 = vmatpush1.msra.mxu0 0.0
        %10204 = vmatprep.subr.mxu0 0.0
        %10205 = vmatpush1.msra.mxu0 0.0
        %10206 = vmatprep.subr.mxu0 0.0
        %10207 = vmatpush1.msra.mxu0 0.0
        %10208 = vmatprep.subr.mxu0 0.0
        %10209 = vmatpush1.msra.mxu0 0.0
        %10210 = vmatprep.subr.mxu0 0.0
        %10211 = vmatpush1.msra.mxu0 0.0
        %10212 = vmatprep.subr.mxu0 0.0
        %10213 = vmatpush1.msra.mxu0 0.0
        %10214 = vmatprep.subr.mxu0 0.0
        %10215 = vmatpush1.msra.mxu0 0.0
        %10216 = vmatprep.subr.mxu0 0.0
        %10217 = vmatpush1.msra.mxu0 0.0
        %10218 = vmatprep.subr.mxu0 0.0
        %10219 = vmatpush1.msra.mxu0 0.0
        %10220 = vmatprep.subr.mxu0 0.0
        %10221 = vmatpush1.msra.mxu0 0.0
        %10222 = vmatprep.subr.mxu0 0.0
        %10223 = vmatpush1.msra.mxu0 0.0
        %10224 = vmatprep.subr.mxu0 0.0
        %10225 = vmatpush1.msra.mxu0 0.0
        %10226 = vmatprep.subr.mxu0 0.0
        %10227 = vmatpush1.msra.mxu0 0.0
        %10228 = vmatprep.subr.mxu0 0.0
        %10229 = vmatpush1.msra.mxu0 0.0
        %10230 = vmatprep.subr.mxu0 0.0
        %10231 = vmatpush1.msra.mxu0 0.0
        %10232 = vmatprep.subr.mxu0 0.0
        %10233 = vmatpush1.msra.mxu0 0.0
        %10234 = vmatprep.subr.mxu0 0.0
        %10235 = vmatpush1.msra.mxu0 0.0
        %10236 = vmatprep.subr.mxu0 0.0
        %10237 = vmatpush1.msra.mxu0 0.0
        %10238 = vmatprep.subr.mxu0 0.0
        %10239 = vmatpush1.msra.mxu0 0.0
        %10240 = vmatprep.subr.mxu0 0.0
        %10241 = vmatpush1.msra.mxu0 0.0
        %10242 = vmatprep.subr.mxu0 0.0
        %10243 = vmatpush1.msra.mxu0 0.0
        %10244 = vmatprep.subr.mxu0 0.0
        %10245 = vmatpush1.msra.mxu0 0.0
        %10246 = vmatprep.subr.mxu0 0.0
        %10247 = vmatpush1.msra.mxu0 0.0
        %10248 = vmatprep.subr.mxu0 0.0
        %10249 = vmatpush1.msra.mxu0 0.0
        %10250 = vmatprep.subr.mxu0 0.0
        %10251 = vmatpush1.msra.mxu0 0.0
        %10252 = vmatprep.subr.mxu0 0.0
        %10253 = vmatpush1.msra.mxu0 0.0
        %10254 = vmatprep.subr.mxu0 0.0
        %10255 = vmatpush1.msra.mxu0 0.0
        %10256 = vmatprep.subr.mxu0 0.0
        %10257 = vmatpush1.msra.mxu0 0.0
        %10258 = vmatprep.mubr.f32.mxu0 0.0
        %10259 = vmatmul.mubr.f32.gmra.mrb[0].mxu0 %v10192
        %v10260 = vpop.f32.mrb[0].mxu0
        %v10261 = vadd.f32 0.0, %v10260
        %v10262 = vpop.f32.mrb[0].mxu0
        %10263 = vdwg.mxu0
        %v10264 = vadd.f32 %v10186, %v10261
        %v10265 = vld [vmem:[#allocation5 + $0x10] sm:$0x1]
        %s10266 = scalar_lea.vmem %s6, 256
        %v10267 = vld [vmem:[%s10266] sm:$0xff]
        %v10268 = vld [vmem:[%s10266 + $0x8] sm:$0xff]
        %v10270 = vsel %vm2289, %v10265, 0
        %10272 = vmatprep.subr.mxu0 0.0
        %10273 = vmatpush1.msra.mxu0 %v10267
        %10274 = vmatprep.subr.mxu0 0.0
        %10275 = vmatpush1.msra.mxu0 %v10268
        %10276 = vmatprep.subr.mxu0 0.0
        %10277 = vmatpush1.msra.mxu0 0.0
        %10278 = vmatprep.subr.mxu0 0.0
        %10279 = vmatpush1.msra.mxu0 0.0
        %10280 = vmatprep.subr.mxu0 0.0
        %10281 = vmatpush1.msra.mxu0 0.0
        %10282 = vmatprep.subr.mxu0 0.0
        %10283 = vmatpush1.msra.mxu0 0.0
        %10284 = vmatprep.subr.mxu0 0.0
        %10285 = vmatpush1.msra.mxu0 0.0
        %10286 = vmatprep.subr.mxu0 0.0
        %10287 = vmatpush1.msra.mxu0 0.0
        %10288 = vmatprep.subr.mxu0 0.0
        %10289 = vmatpush1.msra.mxu0 0.0
        %10290 = vmatprep.subr.mxu0 0.0
        %10291 = vmatpush1.msra.mxu0 0.0
        %10292 = vmatprep.subr.mxu0 0.0
        %10293 = vmatpush1.msra.mxu0 0.0
        %10294 = vmatprep.subr.mxu0 0.0
        %10295 = vmatpush1.msra.mxu0 0.0
        %10296 = vmatprep.subr.mxu0 0.0
        %10297 = vmatpush1.msra.mxu0 0.0
        %10298 = vmatprep.subr.mxu0 0.0
        %10299 = vmatpush1.msra.mxu0 0.0
        %10300 = vmatprep.subr.mxu0 0.0
        %10301 = vmatpush1.msra.mxu0 0.0
        %10302 = vmatprep.subr.mxu0 0.0
        %10303 = vmatpush1.msra.mxu0 0.0
        %10304 = vmatprep.subr.mxu0 0.0
        %10305 = vmatpush1.msra.mxu0 0.0
        %10306 = vmatprep.subr.mxu0 0.0
        %10307 = vmatpush1.msra.mxu0 0.0
        %10308 = vmatprep.subr.mxu0 0.0
        %10309 = vmatpush1.msra.mxu0 0.0
        %10310 = vmatprep.subr.mxu0 0.0
        %10311 = vmatpush1.msra.mxu0 0.0
        %10312 = vmatprep.subr.mxu0 0.0
        %10313 = vmatpush1.msra.mxu0 0.0
        %10314 = vmatprep.subr.mxu0 0.0
        %10315 = vmatpush1.msra.mxu0 0.0
        %10316 = vmatprep.subr.mxu0 0.0
        %10317 = vmatpush1.msra.mxu0 0.0
        %10318 = vmatprep.subr.mxu0 0.0
        %10319 = vmatpush1.msra.mxu0 0.0
        %10320 = vmatprep.subr.mxu0 0.0
        %10321 = vmatpush1.msra.mxu0 0.0
        %10322 = vmatprep.subr.mxu0 0.0
        %10323 = vmatpush1.msra.mxu0 0.0
        %10324 = vmatprep.subr.mxu0 0.0
        %10325 = vmatpush1.msra.mxu0 0.0
        %10326 = vmatprep.subr.mxu0 0.0
        %10327 = vmatpush1.msra.mxu0 0.0
        %10328 = vmatprep.subr.mxu0 0.0
        %10329 = vmatpush1.msra.mxu0 0.0
        %10330 = vmatprep.subr.mxu0 0.0
        %10331 = vmatpush1.msra.mxu0 0.0
        %10332 = vmatprep.subr.mxu0 0.0
        %10333 = vmatpush1.msra.mxu0 0.0
        %10334 = vmatprep.subr.mxu0 0.0
        %10335 = vmatpush1.msra.mxu0 0.0
        %10336 = vmatprep.mubr.f32.mxu0 0.0
        %10337 = vmatmul.mubr.f32.gmra.mrb[0].mxu0 %v10270
        %v10338 = vpop.f32.mrb[0].mxu0
        %v10339 = vadd.f32 0.0, %v10338
        %v10340 = vpop.f32.mrb[0].mxu0
        %10341 = vdwg.mxu0
        %v10342 = vadd.f32 %v10264, %v10339
        %v10343 = vld [vmem:[#allocation5 + $0x11] sm:$0x1]
        %s10344 = scalar_lea.vmem %s6, 272
        %v10345 = vld [vmem:[%s10344] sm:$0xff]
        %v10346 = vld [vmem:[%s10344 + $0x8] sm:$0xff]
        %v10348 = vsel %vm2289, %v10343, 0
        %10350 = vmatprep.subr.mxu0 0.0
        %10351 = vmatpush1.msra.mxu0 %v10345
        %10352 = vmatprep.subr.mxu0 0.0
        %10353 = vmatpush1.msra.mxu0 %v10346
        %10354 = vmatprep.subr.mxu0 0.0
        %10355 = vmatpush1.msra.mxu0 0.0
        %10356 = vmatprep.subr.mxu0 0.0
        %10357 = vmatpush1.msra.mxu0 0.0
        %10358 = vmatprep.subr.mxu0 0.0
        %10359 = vmatpush1.msra.mxu0 0.0
        %10360 = vmatprep.subr.mxu0 0.0
        %10361 = vmatpush1.msra.mxu0 0.0
        %10362 = vmatprep.subr.mxu0 0.0
        %10363 = vmatpush1.msra.mxu0 0.0
        %10364 = vmatprep.subr.mxu0 0.0
        %10365 = vmatpush1.msra.mxu0 0.0
        %10366 = vmatprep.subr.mxu0 0.0
        %10367 = vmatpush1.msra.mxu0 0.0
        %10368 = vmatprep.subr.mxu0 0.0
        %10369 = vmatpush1.msra.mxu0 0.0
        %10370 = vmatprep.subr.mxu0 0.0
        %10371 = vmatpush1.msra.mxu0 0.0
        %10372 = vmatprep.subr.mxu0 0.0
        %10373 = vmatpush1.msra.mxu0 0.0
        %10374 = vmatprep.subr.mxu0 0.0
        %10375 = vmatpush1.msra.mxu0 0.0
        %10376 = vmatprep.subr.mxu0 0.0
        %10377 = vmatpush1.msra.mxu0 0.0
        %10378 = vmatprep.subr.mxu0 0.0
        %10379 = vmatpush1.msra.mxu0 0.0
        %10380 = vmatprep.subr.mxu0 0.0
        %10381 = vmatpush1.msra.mxu0 0.0
        %10382 = vmatprep.subr.mxu0 0.0
        %10383 = vmatpush1.msra.mxu0 0.0
        %10384 = vmatprep.subr.mxu0 0.0
        %10385 = vmatpush1.msra.mxu0 0.0
        %10386 = vmatprep.subr.mxu0 0.0
        %10387 = vmatpush1.msra.mxu0 0.0
        %10388 = vmatprep.subr.mxu0 0.0
        %10389 = vmatpush1.msra.mxu0 0.0
        %10390 = vmatprep.subr.mxu0 0.0
        %10391 = vmatpush1.msra.mxu0 0.0
        %10392 = vmatprep.subr.mxu0 0.0
        %10393 = vmatpush1.msra.mxu0 0.0
        %10394 = vmatprep.subr.mxu0 0.0
        %10395 = vmatpush1.msra.mxu0 0.0
        %10396 = vmatprep.subr.mxu0 0.0
        %10397 = vmatpush1.msra.mxu0 0.0
        %10398 = vmatprep.subr.mxu0 0.0
        %10399 = vmatpush1.msra.mxu0 0.0
        %10400 = vmatprep.subr.mxu0 0.0
        %10401 = vmatpush1.msra.mxu0 0.0
        %10402 = vmatprep.subr.mxu0 0.0
        %10403 = vmatpush1.msra.mxu0 0.0
        %10404 = vmatprep.subr.mxu0 0.0
        %10405 = vmatpush1.msra.mxu0 0.0
        %10406 = vmatprep.subr.mxu0 0.0
        %10407 = vmatpush1.msra.mxu0 0.0
        %10408 = vmatprep.subr.mxu0 0.0
        %10409 = vmatpush1.msra.mxu0 0.0
        %10410 = vmatprep.subr.mxu0 0.0
        %10411 = vmatpush1.msra.mxu0 0.0
        %10412 = vmatprep.subr.mxu0 0.0
        %10413 = vmatpush1.msra.mxu0 0.0
        %10414 = vmatprep.mubr.f32.mxu0 0.0
        %10415 = vmatmul.mubr.f32.gmra.mrb[0].mxu0 %v10348
        %v10416 = vpop.f32.mrb[0].mxu0
        %v10417 = vadd.f32 0.0, %v10416
        %v10418 = vpop.f32.mrb[0].mxu0
        %10419 = vdwg.mxu0
        %v10420 = vadd.f32 %v10342, %v10417
        %v10421 = vld [vmem:[#allocation5 + $0x12] sm:$0x1]
        %s10422 = scalar_lea.vmem %s6, 288
        %v10423 = vld [vmem:[%s10422] sm:$0xff]
        %v10424 = vld [vmem:[%s10422 + $0x8] sm:$0xff]
        %v10426 = vsel %vm2289, %v10421, 0
        %10428 = vmatprep.subr.mxu0 0.0
        %10429 = vmatpush1.msra.mxu0 %v10423
        %10430 = vmatprep.subr.mxu0 0.0
        %10431 = vmatpush1.msra.mxu0 %v10424
        %10432 = vmatprep.subr.mxu0 0.0
        %10433 = vmatpush1.msra.mxu0 0.0
        %10434 = vmatprep.subr.mxu0 0.0
        %10435 = vmatpush1.msra.mxu0 0.0
        %10436 = vmatprep.subr.mxu0 0.0
        %10437 = vmatpush1.msra.mxu0 0.0
        %10438 = vmatprep.subr.mxu0 0.0
        %10439 = vmatpush1.msra.mxu0 0.0
        %10440 = vmatprep.subr.mxu0 0.0
        %10441 = vmatpush1.msra.mxu0 0.0
        %10442 = vmatprep.subr.mxu0 0.0
        %10443 = vmatpush1.msra.mxu0 0.0
        %10444 = vmatprep.subr.mxu0 0.0
        %10445 = vmatpush1.msra.mxu0 0.0
        %10446 = vmatprep.subr.mxu0 0.0
        %10447 = vmatpush1.msra.mxu0 0.0
        %10448 = vmatprep.subr.mxu0 0.0
        %10449 = vmatpush1.msra.mxu0 0.0
        %10450 = vmatprep.subr.mxu0 0.0
        %10451 = vmatpush1.msra.mxu0 0.0
        %10452 = vmatprep.subr.mxu0 0.0
        %10453 = vmatpush1.msra.mxu0 0.0
        %10454 = vmatprep.subr.mxu0 0.0
        %10455 = vmatpush1.msra.mxu0 0.0
        %10456 = vmatprep.subr.mxu0 0.0
        %10457 = vmatpush1.msra.mxu0 0.0
        %10458 = vmatprep.subr.mxu0 0.0
        %10459 = vmatpush1.msra.mxu0 0.0
        %10460 = vmatprep.subr.mxu0 0.0
        %10461 = vmatpush1.msra.mxu0 0.0
        %10462 = vmatprep.subr.mxu0 0.0
        %10463 = vmatpush1.msra.mxu0 0.0
        %10464 = vmatprep.subr.mxu0 0.0
        %10465 = vmatpush1.msra.mxu0 0.0
        %10466 = vmatprep.subr.mxu0 0.0
        %10467 = vmatpush1.msra.mxu0 0.0
        %10468 = vmatprep.subr.mxu0 0.0
        %10469 = vmatpush1.msra.mxu0 0.0
        %10470 = vmatprep.subr.mxu0 0.0
        %10471 = vmatpush1.msra.mxu0 0.0
        %10472 = vmatprep.subr.mxu0 0.0
        %10473 = vmatpush1.msra.mxu0 0.0
        %10474 = vmatprep.subr.mxu0 0.0
        %10475 = vmatpush1.msra.mxu0 0.0
        %10476 = vmatprep.subr.mxu0 0.0
        %10477 = vmatpush1.msra.mxu0 0.0
        %10478 = vmatprep.subr.mxu0 0.0
        %10479 = vmatpush1.msra.mxu0 0.0
        %10480 = vmatprep.subr.mxu0 0.0
        %10481 = vmatpush1.msra.mxu0 0.0
        %10482 = vmatprep.subr.mxu0 0.0
        %10483 = vmatpush1.msra.mxu0 0.0
        %10484 = vmatprep.subr.mxu0 0.0
        %10485 = vmatpush1.msra.mxu0 0.0
        %10486 = vmatprep.subr.mxu0 0.0
        %10487 = vmatpush1.msra.mxu0 0.0
        %10488 = vmatprep.subr.mxu0 0.0
        %10489 = vmatpush1.msra.mxu0 0.0
        %10490 = vmatprep.subr.mxu0 0.0
        %10491 = vmatpush1.msra.mxu0 0.0
        %10492 = vmatprep.mubr.f32.mxu0 0.0
        %10493 = vmatmul.mubr.f32.gmra.mrb[0].mxu0 %v10426
        %v10494 = vpop.f32.mrb[0].mxu0
        %v10495 = vadd.f32 0.0, %v10494
        %v10496 = vpop.f32.mrb[0].mxu0
        %10497 = vdwg.mxu0
        %v10498 = vadd.f32 %v10420, %v10495
        %v10499 = vld [vmem:[#allocation5 + $0x13] sm:$0x1]
        %s10500 = scalar_lea.vmem %s6, 304
        %v10501 = vld [vmem:[%s10500] sm:$0xff]
        %v10502 = vld [vmem:[%s10500 + $0x8] sm:$0xff]
        %v10504 = vsel %vm2289, %v10499, 0
        %10506 = vmatprep.subr.mxu0 0.0
        %10507 = vmatpush1.msra.mxu0 %v10501
        %10508 = vmatprep.subr.mxu0 0.0
        %10509 = vmatpush1.msra.mxu0 %v10502
        %10510 = vmatprep.subr.mxu0 0.0
        %10511 = vmatpush1.msra.mxu0 0.0
        %10512 = vmatprep.subr.mxu0 0.0
        %10513 = vmatpush1.msra.mxu0 0.0
        %10514 = vmatprep.subr.mxu0 0.0
        %10515 = vmatpush1.msra.mxu0 0.0
        %10516 = vmatprep.subr.mxu0 0.0
        %10517 = vmatpush1.msra.mxu0 0.0
        %10518 = vmatprep.subr.mxu0 0.0
        %10519 = vmatpush1.msra.mxu0 0.0
        %10520 = vmatprep.subr.mxu0 0.0
        %10521 = vmatpush1.msra.mxu0 0.0
        %10522 = vmatprep.subr.mxu0 0.0
        %10523 = vmatpush1.msra.mxu0 0.0
        %10524 = vmatprep.subr.mxu0 0.0
        %10525 = vmatpush1.msra.mxu0 0.0
        %10526 = vmatprep.subr.mxu0 0.0
        %10527 = vmatpush1.msra.mxu0 0.0
        %10528 = vmatprep.subr.mxu0 0.0
        %10529 = vmatpush1.msra.mxu0 0.0
        %10530 = vmatprep.subr.mxu0 0.0
        %10531 = vmatpush1.msra.mxu0 0.0
        %10532 = vmatprep.subr.mxu0 0.0
        %10533 = vmatpush1.msra.mxu0 0.0
        %10534 = vmatprep.subr.mxu0 0.0
        %10535 = vmatpush1.msra.mxu0 0.0
        %10536 = vmatprep.subr.mxu0 0.0
        %10537 = vmatpush1.msra.mxu0 0.0
        %10538 = vmatprep.subr.mxu0 0.0
        %10539 = vmatpush1.msra.mxu0 0.0
        %10540 = vmatprep.subr.mxu0 0.0
        %10541 = vmatpush1.msra.mxu0 0.0
        %10542 = vmatprep.subr.mxu0 0.0
        %10543 = vmatpush1.msra.mxu0 0.0
        %10544 = vmatprep.subr.mxu0 0.0
        %10545 = vmatpush1.msra.mxu0 0.0
        %10546 = vmatprep.subr.mxu0 0.0
        %10547 = vmatpush1.msra.mxu0 0.0
        %10548 = vmatprep.subr.mxu0 0.0
        %10549 = vmatpush1.msra.mxu0 0.0
        %10550 = vmatprep.subr.mxu0 0.0
        %10551 = vmatpush1.msra.mxu0 0.0
        %10552 = vmatprep.subr.mxu0 0.0
        %10553 = vmatpush1.msra.mxu0 0.0
        %10554 = vmatprep.subr.mxu0 0.0
        %10555 = vmatpush1.msra.mxu0 0.0
        %10556 = vmatprep.subr.mxu0 0.0
        %10557 = vmatpush1.msra.mxu0 0.0
        %10558 = vmatprep.subr.mxu0 0.0
        %10559 = vmatpush1.msra.mxu0 0.0
        %10560 = vmatprep.subr.mxu0 0.0
        %10561 = vmatpush1.msra.mxu0 0.0
        %10562 = vmatprep.subr.mxu0 0.0
        %10563 = vmatpush1.msra.mxu0 0.0
        %10564 = vmatprep.subr.mxu0 0.0
        %10565 = vmatpush1.msra.mxu0 0.0
        %10566 = vmatprep.subr.mxu0 0.0
        %10567 = vmatpush1.msra.mxu0 0.0
        %10568 = vmatprep.subr.mxu0 0.0
        %10569 = vmatpush1.msra.mxu0 0.0
        %10570 = vmatprep.mubr.f32.mxu0 0.0
        %10571 = vmatmul.mubr.f32.gmra.mrb[0].mxu0 %v10504
        %v10572 = vpop.f32.mrb[0].mxu0
        %v10573 = vadd.f32 0.0, %v10572
        %v10574 = vpop.f32.mrb[0].mxu0
        %10575 = vdwg.mxu0
        %v10576 = vadd.f32 %v10498, %v10573
        %v10577 = vmax.f32 %v10576, 0.0
        %10578 = vst [vmem:[%s380] sm:$0x1] %v10577
        %v10579 = vld [vmem:[%s8] sm:$0xff]
        %v10580 = vld [vmem:[%s8 + $0x8] sm:$0xff]
        %v10581 = vld [vmem:[%s8 + $0x10] sm:$0xff]
        %v10582 = vld [vmem:[%s8 + $0x18] sm:$0xff]
        %v10583 = vld [vmem:[%s8 + $0x20] sm:$0xff]
        %v10584 = vld [vmem:[%s8 + $0x28] sm:$0xff]
        %v10585 = vld [vmem:[%s8 + $0x30] sm:$0xff]
        %v10586 = vld [vmem:[%s8 + $0x38] sm:$0xff]
        %v10587 = vld [vmem:[%s8 + $0x40] sm:$0xff]
        %v10588 = vld [vmem:[%s8 + $0x48] sm:$0xff]
        %v10589 = vld [vmem:[%s8 + $0x50] sm:$0xff]
        %v10590 = vld [vmem:[%s8 + $0x58] sm:$0xff]
        %v10591 = vld [vmem:[%s8 + $0x60] sm:$0xff]
        %v10592 = vld [vmem:[%s8 + $0x68] sm:$0xff]
        %v10593 = vld [vmem:[%s8 + $0x70] sm:$0xff]
        %v10594 = vld [vmem:[%s8 + $0x78] sm:$0xff]
        %v10595 = vld [vmem:[%s9] sm:$0x1]
        %10596 = vmatprep.subr.mxu0 0.0
        %10597 = vmatpush1.msra.mxu0 %v10579
        %10598 = vmatprep.subr.mxu0 0.0
        %10599 = vmatpush1.msra.mxu0 %v10580
        %10600 = vmatprep.subr.mxu0 0.0
        %10601 = vmatpush1.msra.mxu0 %v10581
        %10602 = vmatprep.subr.mxu0 0.0
        %10603 = vmatpush1.msra.mxu0 %v10582
        %10604 = vmatprep.subr.mxu0 0.0
        %10605 = vmatpush1.msra.mxu0 %v10583
        %10606 = vmatprep.subr.mxu0 0.0
        %10607 = vmatpush1.msra.mxu0 %v10584
        %10608 = vmatprep.subr.mxu0 0.0
        %10609 = vmatpush1.msra.mxu0 %v10585
        %10610 = vmatprep.subr.mxu0 0.0
        %10611 = vmatpush1.msra.mxu0 %v10586
        %10612 = vmatprep.subr.mxu0 0.0
        %10613 = vmatpush1.msra.mxu0 %v10587
        %10614 = vmatprep.subr.mxu0 0.0
        %10615 = vmatpush1.msra.mxu0 %v10588
        %10616 = vmatprep.subr.mxu0 0.0
        %10617 = vmatpush1.msra.mxu0 %v10589
        %10618 = vmatprep.subr.mxu0 0.0
        %10619 = vmatpush1.msra.mxu0 %v10590
        %10620 = vmatprep.subr.mxu0 0.0
        %10621 = vmatpush1.msra.mxu0 %v10591
        %10622 = vmatprep.subr.mxu0 0.0
        %10623 = vmatpush1.msra.mxu0 %v10592
        %10624 = vmatprep.subr.mxu0 0.0
        %10625 = vmatpush1.msra.mxu0 %v10593
        %10626 = vmatprep.subr.mxu0 0.0
        %10627 = vmatpush1.msra.mxu0 %v10594
        %10628 = vmatprep.subr.mxu0 0.0
        %10629 = vmatpush1.msra.mxu0 0.0
        %10630 = vmatprep.subr.mxu0 0.0
        %10631 = vmatpush1.msra.mxu0 0.0
        %10632 = vmatprep.subr.mxu0 0.0
        %10633 = vmatpush1.msra.mxu0 0.0
        %10634 = vmatprep.subr.mxu0 0.0
        %10635 = vmatpush1.msra.mxu0 0.0
        %10636 = vmatprep.subr.mxu0 0.0
        %10637 = vmatpush1.msra.mxu0 0.0
        %10638 = vmatprep.subr.mxu0 0.0
        %10639 = vmatpush1.msra.mxu0 0.0
        %10640 = vmatprep.subr.mxu0 0.0
        %10641 = vmatpush1.msra.mxu0 0.0
        %10642 = vmatprep.subr.mxu0 0.0
        %10643 = vmatpush1.msra.mxu0 0.0
        %10644 = vmatprep.subr.mxu0 0.0
        %10645 = vmatpush1.msra.mxu0 0.0
        %10646 = vmatprep.subr.mxu0 0.0
        %10647 = vmatpush1.msra.mxu0 0.0
        %10648 = vmatprep.subr.mxu0 0.0
        %10649 = vmatpush1.msra.mxu0 0.0
        %10650 = vmatprep.subr.mxu0 0.0
        %10651 = vmatpush1.msra.mxu0 0.0
        %10652 = vmatprep.subr.mxu0 0.0
        %10653 = vmatpush1.msra.mxu0 0.0
        %10654 = vmatprep.subr.mxu0 0.0
        %10655 = vmatpush1.msra.mxu0 0.0
        %10656 = vmatprep.subr.mxu0 0.0
        %10657 = vmatpush1.msra.mxu0 0.0
        %10658 = vmatprep.subr.mxu0 0.0
        %10659 = vmatpush1.msra.mxu0 0.0
        %10660 = vmatprep.mubr.f32.mxu0 0.0
        %10661 = vmatmul.mubr.f32.gmra.mrb[0].mxu0 %v10577
        %v10662 = vpop.f32.mrb[0].mxu0
        %v10663 = vadd.f32 %v10595, %v10662
        %v10664 = vpop.f32.mrb[0].mxu0
        %10665 = vdwg.mxu0
        %vm10666 = vcmask 73728
        %10667 = vst.msk [vmem:[%s386] sm:$0x1] %vm10666, %v10663
        %s10668 = sand.u32 %s252, 1
        %s10669 = scalar_lea.sflag [#allocation7], %s10668
        %s10670 = sand.u32 %s252, 1
        %s10671 = scalar_lea.vmem [#allocation6], %s10670
        %s10672 = sand.u32 %s278, 1
        %s10673 = scalar_lea.sflag [#allocation9], %s10672
        %s10674 = sand.u32 %s278, 1
        %s10675 = scalar_lea.vmem [#allocation8], %s10674
        // Predicated region
        $region61: #{net_forward.1} parent=59 // pred_check
          %p10676 = pneg %p262
        $region62: #{net_forward.1} parent=59 // pred_check_branch
          %10678 = sbr.rel (%p10676) target = $region64
        $region63: #{net_forward.1} parent=59 // pred_region
          %s10680 = ssub.s32 16, 16
          %10681 = vsyncadd %s10669, %s10680
          %s10682 = smul.addr %s29, 16
          %s10683 = scalar_lea.hbm %s10, %s10682
          %s10685 = sshll.u32 %s10671, 4
          %s10686 = int_to_ptr.vmem [resolvable:$true] %s10685
          %10688 = dma.vmem_to_hbm [thread:$0]  %s10686, 16, %s10683, %s10669
        $region64: #{net_forward.1} parent=59 // pred_fallthru
          _
        // Predicated region
        $region65: #{net_forward.1} parent=59 // pred_check
          %p10689 = pneg %p288
        $region66: #{net_forward.1} parent=59 // pred_check_branch
          %10691 = sbr.rel (%p10689) target = $region68
        $region67: #{net_forward.1} parent=59 // pred_region
          %s10693 = ssub.s32 16, 16
          %10694 = vsyncadd %s10673, %s10693
          %s10695 = smul.addr %s29, 16
          %s10696 = scalar_lea.hbm %s11, %s10695
          %s10698 = sshll.u32 %s10675, 4
          %s10699 = int_to_ptr.vmem [resolvable:$true] %s10698
          %10701 = dma.vmem_to_hbm [thread:$0]  %s10699, 16, %s10696, %s10673
        $region68: #{net_forward.1} parent=59 // pred_fallthru
          _
      $region60: #{net_forward.1} parent=5 // pred_fallthru
        _
      %p10702 = scmp.le.s32.totalorder 2, %s24
      // Predicated region
      $region69: #{net_forward.1} parent=5 // pred_check
        %p10703 = pneg %p10702
      $region70: #{net_forward.1} parent=5 // pred_check_branch
        %10705 = sbr.rel (%p10703) target = $region72
      $region71: #{net_forward.1} parent=5 // pred_region
        %s10706 = ssub.s32 %s24, 2
        // Predicated region
        $region73: #{net_forward.1} parent=71 // pred_check
          %p10707 = pneg %p268
        $region74: #{net_forward.1} parent=71 // pred_check_branch
          %10709 = sbr.rel (%p10707) target = $region76
        $region75: #{net_forward.1} parent=71 // pred_region
          %s10710 = sand.u32 %s253, 1
          %s10711 = scalar_lea.sflag [#allocation7], %s10710
          %s10712 = sand.u32 %s253, 1
          %s10713 = scalar_lea.vmem [#allocation6], %s10712
          %10714 = dma.done %s10711, 16
        $region76: #{net_forward.1} parent=71 // pred_fallthru
          _
        // Predicated region
        $region77: #{net_forward.1} parent=71 // pred_check
          %p10715 = pneg %p294
        $region78: #{net_forward.1} parent=71 // pred_check_branch
          %10717 = sbr.rel (%p10715) target = $region80
        $region79: #{net_forward.1} parent=71 // pred_region
          %s10718 = sand.u32 %s279, 1
          %s10719 = scalar_lea.sflag [#allocation9], %s10718
          %s10720 = sand.u32 %s279, 1
          %s10721 = scalar_lea.vmem [#allocation8], %s10720
          %10722 = dma.done %s10719, 16
        $region80: #{net_forward.1} parent=71 // pred_fallthru
          _
      $region72: #{net_forward.1} parent=5 // pred_fallthru
        _
    $region6: #{net_forward.1} parent=1 // loop_footer
      %s28 = sadd.s32 1, %s24
    $region7: #{net_forward.1} parent=1 // loop_footer_branch
      %23 = sbr.rel target = $region3
    $region8: #{net_forward.1} parent=1 // loop_exit
      _
    %10723 = vsyncpa [#allocation7], 1
    %s10724 = scalar_lea.sflag [#allocation7], 1
    %10725 = vsyncpa %s10724, 1
    %10726 = vsyncpa [#allocation9], 1
    %s10727 = scalar_lea.sflag [#allocation9], 1
    %10728 = vsyncpa %s10727, 1

</llo_original>
